<compile_context>
chip_gen: v6e
topology: v6e:2x2x1
jax: 0.10.0
libtpu: 0.0.40
codegen_flags: <defaults>
</compile_context>

<pallas_src>
import functools

import jax
import jax.numpy as jnp
import numpy as np
from jax import lax
from jax.experimental import pallas as pl
from jax.experimental.pallas import tpu as pltpu

INPUT_DIM = 159
HIDDEN_DIM = 512
POSE_EMBED_DIM = 256


def _lstm_recurrence_kernel(t_total, t_chunk,
                            xg_ref, whh_ref, wlin_ref, blin_ref,
                            out_ref, h_sc, c_sc):
    """Sequential LSTM recurrence over one chunk of timesteps.

    xg_ref:   (t_chunk, B, 4H) f32  -- precomputed x_t @ W_ih^T + (b_ih + b_hh)
    whh_ref:  (H, 4H)          bf16 -- W_hh^T
    wlin_ref: (H, 256)         bf16 -- linear.weight.T
    blin_ref: (1, 256)         f32  -- linear.bias
    out_ref:  (B, 256)         f32  -- final pose embedding (written on last chunk)
    h_sc/c_sc:(B, H)           f32  -- LSTM state carried across grid steps
    """
    chunk = pl.program_id(0)
    H = HIDDEN_DIM

    @pl.when(chunk == 0)
    def _():
        h_sc[...] = jnp.zeros_like(h_sc)
        c_sc[...] = jnp.zeros_like(c_sc)

    def step(t, carry):
        h, c = carry
        # Only the recurrent matmul remains inside the step; the input projection
        # and bias were hoisted into xg (one big matmul in the wrapper).
        gates = xg_ref[t] + jnp.dot(h.astype(jnp.bfloat16), whh_ref[...],
                                    preferred_element_type=jnp.float32)
        # PyTorch gate order: [i, f, g, o]; each slice is a lane-aligned 512-wide block.
        i_g = jax.nn.sigmoid(gates[:, 0 * H:1 * H])
        f_g = jax.nn.sigmoid(gates[:, 1 * H:2 * H])
        g_g = jnp.tanh(gates[:, 2 * H:3 * H])
        o_g = jax.nn.sigmoid(gates[:, 3 * H:4 * H])
        c_new = f_g * c + i_g * g_g
        h_new = o_g * jnp.tanh(c_new)
        return h_new, c_new

    carry0 = (h_sc[...], c_sc[...])
    if t_total % t_chunk == 0:
        # Static trip count: partial unroll gives the scheduler cross-step visibility
        # without exploding code size for long chunks.
        h, c = lax.fori_loop(0, t_chunk, step, carry0, unroll=min(t_chunk, 8))
    else:
        # Ragged last chunk: dynamic trip count skips the padded tail timesteps.
        n_steps = jnp.minimum(t_chunk, t_total - chunk * t_chunk)
        h, c = lax.fori_loop(0, n_steps, step, carry0)

    h_sc[...] = h
    c_sc[...] = c

    @pl.when(chunk == pl.num_programs(0) - 1)
    def _():
        # Final projection of the last hidden state: Linear(512 -> 256).
        out_ref[...] = (
            jnp.dot(h.astype(jnp.bfloat16), wlin_ref[...],
                    preferred_element_type=jnp.float32)
            + blin_ref[...]
        ).astype(out_ref.dtype)


@jax.jit
def pose_encoder(x, wih_t, whh_t, b, wlin_t, blin):
    """x: (B, T, INPUT_DIM) float32 (batch_first, like nn.LSTM(batch_first=True))."""
    B, T, D = x.shape
    assert T >= 1 and B >= 1, "PoseEncoder requires at least one timestep / sequence"

    G = 4 * HIDDEN_DIM
    t_chunk = min(128, T)
    num_chunks = pl.cdiv(T, t_chunk)

    # bf16 weights, f32 accumulation everywhere.
    wih_bf = wih_t.astype(jnp.bfloat16)
    whh_bf = whh_t.astype(jnp.bfloat16)
    wlin_bf = wlin_t.astype(jnp.bfloat16)

    # Hoisted input projection (one (B*T, D) x (D, 4H) matmul) with the combined
    # LSTM bias folded in; reshaped time-major to (T, B, 4H) for the kernel.
    xg = jnp.dot(x.reshape(B * T, D).astype(jnp.bfloat16), wih_bf,
                 preferred_element_type=jnp.float32) + b            # (B*T, 4H) f32
    xg = xg.reshape(B, T, G).transpose(1, 0, 2)                      # (T, B, 4H)

    kernel = functools.partial(_lstm_recurrence_kernel, T, t_chunk)

    return pl.pallas_call(
        kernel,
        out_shape=jax.ShapeDtypeStruct((B, POSE_EMBED_DIM), jnp.float32),
        grid_spec=pltpu.PrefetchScalarGridSpec(
            num_scalar_prefetch=0,
            grid=(num_chunks,),
            in_specs=[
                pl.BlockSpec((t_chunk, B, G), lambda c: (c, 0, 0)),               # xg chunk
                pl.BlockSpec((HIDDEN_DIM, G), lambda c: (0, 0)),                   # W_hh^T (bf16)
                pl.BlockSpec((HIDDEN_DIM, POSE_EMBED_DIM), lambda c: (0, 0)),      # W_lin^T (bf16)
                pl.BlockSpec((1, POSE_EMBED_DIM), lambda c: (0, 0)),               # b_lin
            ],
            out_specs=pl.BlockSpec((B, POSE_EMBED_DIM), lambda c: (0, 0)),
            scratch_shapes=[
                pltpu.VMEM((B, HIDDEN_DIM), jnp.float32),  # h carry
                pltpu.VMEM((B, HIDDEN_DIM), jnp.float32),  # c carry
            ],
        ),
        compiler_params=pltpu.CompilerParams(
            dimension_semantics=("arbitrary",),  # sequential recurrence over T chunks
            vmem_limit_bytes=32 << 20,           # ~22 MiB actual footprint; v7x-safe
        ),
    )(xg, whh_bf, wlin_bf, blin)


def reference(x, wih_t, whh_t, b, wlin_t, blin):
    """Pure-JAX f32 reference (lax.scan LSTM), mirrors torch.nn.LSTM + Linear."""
    B = x.shape[0]
    h0 = jnp.zeros((B, HIDDEN_DIM), jnp.float32)
    c0 = jnp.zeros((B, HIDDEN_DIM), jnp.float32)

    def step(carry, x_t):
        h, c = carry
        gates = x_t @ wih_t + h @ whh_t + b[0]
        i, f, g, o = jnp.split(gates, 4, axis=-1)
        i = jax.nn.sigmoid(i)
        f = jax.nn.sigmoid(f)
        g = jnp.tanh(g)
        o = jax.nn.sigmoid(o)
        c = f * c + i * g
        h = o * jnp.tanh(c)
        return (h, c), None

    (h, _), _ = lax.scan(step, (h0, c0), jnp.transpose(x, (1, 0, 2)))
    return h @ wlin_t + blin[0]


def init_params(key):
    """Deterministic init matching the PyTorch module's parameter shapes.

    nn.LSTM uses U(-1/sqrt(H), 1/sqrt(H)); weights are stored transposed (in, out)
    so the kernel/wrapper can do x @ W^T directly.
    """
    ks = jax.random.split(key, 7)
    bound = 1.0 / np.sqrt(HIDDEN_DIM)
    u = lambda k, shape: jax.random.uniform(k, shape, jnp.float32, -bound, bound)

    wih_t = u(ks[0], (INPUT_DIM, 4 * HIDDEN_DIM))      # = weight_ih_l0.T
    whh_t = u(ks[1], (HIDDEN_DIM, 4 * HIDDEN_DIM))     # = weight_hh_l0.T
    b = (u(ks[2], (1, 4 * HIDDEN_DIM))                 # = bias_ih_l0 + bias_hh_l0
         + u(ks[3], (1, 4 * HIDDEN_DIM)))
    wlin_t = u(ks[4], (HIDDEN_DIM, POSE_EMBED_DIM))    # = linear.weight.T
    blin = u(ks[5], (1, POSE_EMBED_DIM))               # = linear.bias
    return wih_t, whh_t, b, wlin_t, blin


if __name__ == "__main__":
    key = jax.random.PRNGKey(0)
    k_x, k_p = jax.random.split(key)

    B, T = 2, 8  # small batch / sequence; feature dims fixed by the module
    x = jax.random.normal(k_x, (B, T, INPUT_DIM), jnp.float32)
    params = init_params(k_p)

    out = pose_encoder(x, *params)
    out = jax.block_until_ready(out)
    assert out.shape == (B, POSE_EMBED_DIM), out.shape

    ref = jax.block_until_ready(reference(x, *params))
    # bf16 weights + f32 accumulation vs. pure-f32 reference -> loosen tolerance.
    np.testing.assert_allclose(np.asarray(out), np.asarray(ref), rtol=2e-2, atol=2e-2)

    print("KERNEL_OK")
</pallas_src>

<mosaic_0001>
module attributes {stable_mosaic.version = 11 : i64} {
  func.func @_lstm_recurrence_kernel(%arg0: i32, %arg1: memref<8x2x2048xf32, #tpu.memory_space<vmem>>, %arg2: memref<512x2048xbf16, #tpu.memory_space<vmem>>, %arg3: memref<512x256xbf16, #tpu.memory_space<vmem>>, %arg4: memref<1x256xf32, #tpu.memory_space<vmem>>, %arg5: memref<2x256xf32, #tpu.memory_space<vmem>>, %arg6: memref<2x512xf32, #tpu.memory_space<vmem>>, %arg7: memref<2x512xf32, #tpu.memory_space<vmem>>) attributes {dimension_semantics = [#tpu.dimension_semantics<arbitrary>], iteration_bounds = array<i64: 1>, scalar_prefetch = 0 : i64, scratch_operands = 2 : i64, tpu.core_type = #tpu.core_type<tc>, window_params = [{transform_indices = @transform_0, window_bounds = array<i64: 8, 2, 2048>}, {pipeline_mode = #tpu.pipeline_mode<synchronous>, transform_indices = @transform_1, window_bounds = array<i64: 512, 2048>}, {pipeline_mode = #tpu.pipeline_mode<synchronous>, transform_indices = @transform_2, window_bounds = array<i64: 512, 256>}, {pipeline_mode = #tpu.pipeline_mode<synchronous>, transform_indices = @transform_3, window_bounds = array<i64: 1, 256>}, {pipeline_mode = #tpu.pipeline_mode<synchronous>, transform_indices = @transform_4, window_bounds = array<i64: 2, 256>}]} {
    %c0_i32 = arith.constant 0 : i32
    %0 = arith.cmpi eq, %arg0, %c0_i32 : i32
    %1 = arith.extui %0 : i1 to i32
    %c0_i32_0 = arith.constant 0 : i32
    %2 = arith.cmpi ne, %1, %c0_i32_0 : i32
    scf.if %2 {
      %cst_74 = arith.constant 0.000000e+00 : f32
      %266 = vector.broadcast %cst_74 : f32 to vector<2x512xf32>
      %c0_75 = arith.constant 0 : index
      %c0_76 = arith.constant 0 : index
      %267 = vector.load %arg6[%c0_75, %c0_76] : memref<2x512xf32, #tpu.memory_space<vmem>>, vector<2x512xf32>
      tpu.vector_store %arg6[%c0_75, %c0_76], %266 {strides = array<i32>} : memref<2x512xf32, #tpu.memory_space<vmem>>, vector<2x512xf32>,
      %cst_77 = arith.constant 0.000000e+00 : f32
      %268 = vector.broadcast %cst_77 : f32 to vector<2x512xf32>
      %c0_78 = arith.constant 0 : index
      %c0_79 = arith.constant 0 : index
      %269 = vector.load %arg7[%c0_78, %c0_79] : memref<2x512xf32, #tpu.memory_space<vmem>>, vector<2x512xf32>
      tpu.vector_store %arg7[%c0_78, %c0_79], %268 {strides = array<i32>} : memref<2x512xf32, #tpu.memory_space<vmem>>, vector<2x512xf32>,
    } else {
    }
    %c0 = arith.constant 0 : index
    %c0_1 = arith.constant 0 : index
    %3 = vector.load %arg6[%c0, %c0_1] : memref<2x512xf32, #tpu.memory_space<vmem>>, vector<2x512xf32>
    %c0_2 = arith.constant 0 : index
    %c0_3 = arith.constant 0 : index
    %4 = vector.load %arg7[%c0_2, %c0_3] : memref<2x512xf32, #tpu.memory_space<vmem>>, vector<2x512xf32>
    %c0_i32_4 = arith.constant 0 : i32
    %5 = arith.index_cast %c0_i32_4 : i32 to index
    %c0_5 = arith.constant 0 : index
    %c0_6 = arith.constant 0 : index
    %6 = vector.load %arg1[%5, %c0_5, %c0_6] : memref<8x2x2048xf32, #tpu.memory_space<vmem>>, vector<1x2x2048xf32>
    %7 = vector.shape_cast %6 : vector<1x2x2048xf32> to vector<2x2048xf32>
    %8 = arith.truncf %3 : vector<2x512xf32> to vector<2x512xbf16>
    %c0_7 = arith.constant 0 : index
    %c0_8 = arith.constant 0 : index
    %9 = vector.load %arg2[%c0_7, %c0_8] : memref<512x2048xbf16, #tpu.memory_space<vmem>>, vector<512x2048xbf16>
    %cst = arith.constant dense<0.000000e+00> : vector<2x2048xf32>
    %10 = tpu.matmul %8, %9, %cst {dimension_numbers = #tpu.dot_dimension_numbers<[1], [0], [0], [1], [0, 0, 1, 1], [], []>} : vector<2x512xbf16>, vector<512x2048xbf16>, vector<2x2048xf32> -> vector<2x2048xf32>
    %11 = arith.addf %7, %10 : vector<2x2048xf32>
    %12 = vector.extract_strided_slice %11 {offsets = [0, 0], sizes = [2, 512], strides = [1, 1]} : vector<2x2048xf32> to vector<2x512xf32>
    %13 = arith.negf %12 : vector<2x512xf32>
    %14 = math.exp %13 : vector<2x512xf32>
    %cst_9 = arith.constant 1.000000e+00 : f32
    %15 = vector.broadcast %cst_9 : f32 to vector<2x512xf32>
    %16 = arith.addf %15, %14 : vector<2x512xf32>
    %17 = arith.divf %15, %16 : vector<2x512xf32>
    %18 = vector.extract_strided_slice %11 {offsets = [0, 512], sizes = [2, 512], strides = [1, 1]} : vector<2x2048xf32> to vector<2x512xf32>
    %19 = arith.negf %18 : vector<2x512xf32>
    %20 = math.exp %19 : vector<2x512xf32>
    %cst_10 = arith.constant 1.000000e+00 : f32
    %21 = vector.broadcast %cst_10 : f32 to vector<2x512xf32>
    %22 = arith.addf %21, %20 : vector<2x512xf32>
    %23 = arith.divf %21, %22 : vector<2x512xf32>
    %24 = vector.extract_strided_slice %11 {offsets = [0, 1024], sizes = [2, 512], strides = [1, 1]} : vector<2x2048xf32> to vector<2x512xf32>
    %25 = math.tanh %24 : vector<2x512xf32>
    %26 = vector.extract_strided_slice %11 {offsets = [0, 1536], sizes = [2, 512], strides = [1, 1]} : vector<2x2048xf32> to vector<2x512xf32>
    %27 = arith.negf %26 : vector<2x512xf32>
    %28 = math.exp %27 : vector<2x512xf32>
    %cst_11 = arith.constant 1.000000e+00 : f32
    %29 = vector.broadcast %cst_11 : f32 to vector<2x512xf32>
    %30 = arith.addf %29, %28 : vector<2x512xf32>
    %31 = arith.divf %29, %30 : vector<2x512xf32>
    %32 = arith.mulf %23, %4 : vector<2x512xf32>
    %33 = arith.mulf %17, %25 : vector<2x512xf32>
    %34 = arith.addf %32, %33 : vector<2x512xf32>
    %35 = math.tanh %34 : vector<2x512xf32>
    %36 = arith.mulf %31, %35 : vector<2x512xf32>
    %c1_i32 = arith.constant 1 : i32
    %37 = arith.index_cast %c1_i32 : i32 to index
    %c0_12 = arith.constant 0 : index
    %c0_13 = arith.constant 0 : index
    %38 = vector.load %arg1[%37, %c0_12, %c0_13] : memref<8x2x2048xf32, #tpu.memory_space<vmem>>, vector<1x2x2048xf32>
    %39 = vector.shape_cast %38 : vector<1x2x2048xf32> to vector<2x2048xf32>
    %40 = arith.truncf %36 : vector<2x512xf32> to vector<2x512xbf16>
    %c0_14 = arith.constant 0 : index
    %c0_15 = arith.constant 0 : index
    %41 = vector.load %arg2[%c0_14, %c0_15] : memref<512x2048xbf16, #tpu.memory_space<vmem>>, vector<512x2048xbf16>
    %cst_16 = arith.constant dense<0.000000e+00> : vector<2x2048xf32>
    %42 = tpu.matmul %40, %41, %cst_16 {dimension_numbers = #tpu.dot_dimension_numbers<[1], [0], [0], [1], [0, 0, 1, 1], [], []>} : vector<2x512xbf16>, vector<512x2048xbf16>, vector<2x2048xf32> -> vector<2x2048xf32>
    %43 = arith.addf %39, %42 : vector<2x2048xf32>
    %44 = vector.extract_strided_slice %43 {offsets = [0, 0], sizes = [2, 512], strides = [1, 1]} : vector<2x2048xf32> to vector<2x512xf32>
    %45 = arith.negf %44 : vector<2x512xf32>
    %46 = math.exp %45 : vector<2x512xf32>
    %cst_17 = arith.constant 1.000000e+00 : f32
    %47 = vector.broadcast %cst_17 : f32 to vector<2x512xf32>
    %48 = arith.addf %47, %46 : vector<2x512xf32>
    %49 = arith.divf %47, %48 : vector<2x512xf32>
    %50 = vector.extract_strided_slice %43 {offsets = [0, 512], sizes = [2, 512], strides = [1, 1]} : vector<2x2048xf32> to vector<2x512xf32>
    %51 = arith.negf %50 : vector<2x512xf32>
    %52 = math.exp %51 : vector<2x512xf32>
    %cst_18 = arith.constant 1.000000e+00 : f32
    %53 = vector.broadcast %cst_18 : f32 to vector<2x512xf32>
    %54 = arith.addf %53, %52 : vector<2x512xf32>
    %55 = arith.divf %53, %54 : vector<2x512xf32>
    %56 = vector.extract_strided_slice %43 {offsets = [0, 1024], sizes = [2, 512], strides = [1, 1]} : vector<2x2048xf32> to vector<2x512xf32>
    %57 = math.tanh %56 : vector<2x512xf32>
    %58 = vector.extract_strided_slice %43 {offsets = [0, 1536], sizes = [2, 512], strides = [1, 1]} : vector<2x2048xf32> to vector<2x512xf32>
    %59 = arith.negf %58 : vector<2x512xf32>
    %60 = math.exp %59 : vector<2x512xf32>
    %cst_19 = arith.constant 1.000000e+00 : f32
    %61 = vector.broadcast %cst_19 : f32 to vector<2x512xf32>
    %62 = arith.addf %61, %60 : vector<2x512xf32>
    %63 = arith.divf %61, %62 : vector<2x512xf32>
    %64 = arith.mulf %55, %34 : vector<2x512xf32>
    %65 = arith.mulf %49, %57 : vector<2x512xf32>
    %66 = arith.addf %64, %65 : vector<2x512xf32>
    %67 = math.tanh %66 : vector<2x512xf32>
    %68 = arith.mulf %63, %67 : vector<2x512xf32>
    %c2_i32 = arith.constant 2 : i32
    %69 = arith.index_cast %c2_i32 : i32 to index
    %c0_20 = arith.constant 0 : index
    %c0_21 = arith.constant 0 : index
    %70 = vector.load %arg1[%69, %c0_20, %c0_21] : memref<8x2x2048xf32, #tpu.memory_space<vmem>>, vector<1x2x2048xf32>
    %71 = vector.shape_cast %70 : vector<1x2x2048xf32> to vector<2x2048xf32>
    %72 = arith.truncf %68 : vector<2x512xf32> to vector<2x512xbf16>
    %c0_22 = arith.constant 0 : index
    %c0_23 = arith.constant 0 : index
    %73 = vector.load %arg2[%c0_22, %c0_23] : memref<512x2048xbf16, #tpu.memory_space<vmem>>, vector<512x2048xbf16>
    %cst_24 = arith.constant dense<0.000000e+00> : vector<2x2048xf32>
    %74 = tpu.matmul %72, %73, %cst_24 {dimension_numbers = #tpu.dot_dimension_numbers<[1], [0], [0], [1], [0, 0, 1, 1], [], []>} : vector<2x512xbf16>, vector<512x2048xbf16>, vector<2x2048xf32> -> vector<2x2048xf32>
    %75 = arith.addf %71, %74 : vector<2x2048xf32>
    %76 = vector.extract_strided_slice %75 {offsets = [0, 0], sizes = [2, 512], strides = [1, 1]} : vector<2x2048xf32> to vector<2x512xf32>
    %77 = arith.negf %76 : vector<2x512xf32>
    %78 = math.exp %77 : vector<2x512xf32>
    %cst_25 = arith.constant 1.000000e+00 : f32
    %79 = vector.broadcast %cst_25 : f32 to vector<2x512xf32>
    %80 = arith.addf %79, %78 : vector<2x512xf32>
    %81 = arith.divf %79, %80 : vector<2x512xf32>
    %82 = vector.extract_strided_slice %75 {offsets = [0, 512], sizes = [2, 512], strides = [1, 1]} : vector<2x2048xf32> to vector<2x512xf32>
    %83 = arith.negf %82 : vector<2x512xf32>
    %84 = math.exp %83 : vector<2x512xf32>
    %cst_26 = arith.constant 1.000000e+00 : f32
    %85 = vector.broadcast %cst_26 : f32 to vector<2x512xf32>
    %86 = arith.addf %85, %84 : vector<2x512xf32>
    %87 = arith.divf %85, %86 : vector<2x512xf32>
    %88 = vector.extract_strided_slice %75 {offsets = [0, 1024], sizes = [2, 512], strides = [1, 1]} : vector<2x2048xf32> to vector<2x512xf32>
    %89 = math.tanh %88 : vector<2x512xf32>
    %90 = vector.extract_strided_slice %75 {offsets = [0, 1536], sizes = [2, 512], strides = [1, 1]} : vector<2x2048xf32> to vector<2x512xf32>
    %91 = arith.negf %90 : vector<2x512xf32>
    %92 = math.exp %91 : vector<2x512xf32>
    %cst_27 = arith.constant 1.000000e+00 : f32
    %93 = vector.broadcast %cst_27 : f32 to vector<2x512xf32>
    %94 = arith.addf %93, %92 : vector<2x512xf32>
    %95 = arith.divf %93, %94 : vector<2x512xf32>
    %96 = arith.mulf %87, %66 : vector<2x512xf32>
    %97 = arith.mulf %81, %89 : vector<2x512xf32>
    %98 = arith.addf %96, %97 : vector<2x512xf32>
    %99 = math.tanh %98 : vector<2x512xf32>
    %100 = arith.mulf %95, %99 : vector<2x512xf32>
    %c3_i32 = arith.constant 3 : i32
    %101 = arith.index_cast %c3_i32 : i32 to index
    %c0_28 = arith.constant 0 : index
    %c0_29 = arith.constant 0 : index
    %102 = vector.load %arg1[%101, %c0_28, %c0_29] : memref<8x2x2048xf32, #tpu.memory_space<vmem>>, vector<1x2x2048xf32>
    %103 = vector.shape_cast %102 : vector<1x2x2048xf32> to vector<2x2048xf32>
    %104 = arith.truncf %100 : vector<2x512xf32> to vector<2x512xbf16>
    %c0_30 = arith.constant 0 : index
    %c0_31 = arith.constant 0 : index
    %105 = vector.load %arg2[%c0_30, %c0_31] : memref<512x2048xbf16, #tpu.memory_space<vmem>>, vector<512x2048xbf16>
    %cst_32 = arith.constant dense<0.000000e+00> : vector<2x2048xf32>
    %106 = tpu.matmul %104, %105, %cst_32 {dimension_numbers = #tpu.dot_dimension_numbers<[1], [0], [0], [1], [0, 0, 1, 1], [], []>} : vector<2x512xbf16>, vector<512x2048xbf16>, vector<2x2048xf32> -> vector<2x2048xf32>
    %107 = arith.addf %103, %106 : vector<2x2048xf32>
    %108 = vector.extract_strided_slice %107 {offsets = [0, 0], sizes = [2, 512], strides = [1, 1]} : vector<2x2048xf32> to vector<2x512xf32>
    %109 = arith.negf %108 : vector<2x512xf32>
    %110 = math.exp %109 : vector<2x512xf32>
    %cst_33 = arith.constant 1.000000e+00 : f32
    %111 = vector.broadcast %cst_33 : f32 to vector<2x512xf32>
    %112 = arith.addf %111, %110 : vector<2x512xf32>
    %113 = arith.divf %111, %112 : vector<2x512xf32>
    %114 = vector.extract_strided_slice %107 {offsets = [0, 512], sizes = [2, 512], strides = [1, 1]} : vector<2x2048xf32> to vector<2x512xf32>
    %115 = arith.negf %114 : vector<2x512xf32>
    %116 = math.exp %115 : vector<2x512xf32>
    %cst_34 = arith.constant 1.000000e+00 : f32
    %117 = vector.broadcast %cst_34 : f32 to vector<2x512xf32>
    %118 = arith.addf %117, %116 : vector<2x512xf32>
    %119 = arith.divf %117, %118 : vector<2x512xf32>
    %120 = vector.extract_strided_slice %107 {offsets = [0, 1024], sizes = [2, 512], strides = [1, 1]} : vector<2x2048xf32> to vector<2x512xf32>
    %121 = math.tanh %120 : vector<2x512xf32>
    %122 = vector.extract_strided_slice %107 {offsets = [0, 1536], sizes = [2, 512], strides = [1, 1]} : vector<2x2048xf32> to vector<2x512xf32>
    %123 = arith.negf %122 : vector<2x512xf32>
    %124 = math.exp %123 : vector<2x512xf32>
    %cst_35 = arith.constant 1.000000e+00 : f32
    %125 = vector.broadcast %cst_35 : f32 to vector<2x512xf32>
    %126 = arith.addf %125, %124 : vector<2x512xf32>
    %127 = arith.divf %125, %126 : vector<2x512xf32>
    %128 = arith.mulf %119, %98 : vector<2x512xf32>
    %129 = arith.mulf %113, %121 : vector<2x512xf32>
    %130 = arith.addf %128, %129 : vector<2x512xf32>
    %131 = math.tanh %130 : vector<2x512xf32>
    %132 = arith.mulf %127, %131 : vector<2x512xf32>
    %c4_i32 = arith.constant 4 : i32
    %133 = arith.index_cast %c4_i32 : i32 to index
    %c0_36 = arith.constant 0 : index
    %c0_37 = arith.constant 0 : index
    %134 = vector.load %arg1[%133, %c0_36, %c0_37] : memref<8x2x2048xf32, #tpu.memory_space<vmem>>, vector<1x2x2048xf32>
    %135 = vector.shape_cast %134 : vector<1x2x2048xf32> to vector<2x2048xf32>
    %136 = arith.truncf %132 : vector<2x512xf32> to vector<2x512xbf16>
    %c0_38 = arith.constant 0 : index
    %c0_39 = arith.constant 0 : index
    %137 = vector.load %arg2[%c0_38, %c0_39] : memref<512x2048xbf16, #tpu.memory_space<vmem>>, vector<512x2048xbf16>
    %cst_40 = arith.constant dense<0.000000e+00> : vector<2x2048xf32>
    %138 = tpu.matmul %136, %137, %cst_40 {dimension_numbers = #tpu.dot_dimension_numbers<[1], [0], [0], [1], [0, 0, 1, 1], [], []>} : vector<2x512xbf16>, vector<512x2048xbf16>, vector<2x2048xf32> -> vector<2x2048xf32>
    %139 = arith.addf %135, %138 : vector<2x2048xf32>
    %140 = vector.extract_strided_slice %139 {offsets = [0, 0], sizes = [2, 512], strides = [1, 1]} : vector<2x2048xf32> to vector<2x512xf32>
    %141 = arith.negf %140 : vector<2x512xf32>
    %142 = math.exp %141 : vector<2x512xf32>
    %cst_41 = arith.constant 1.000000e+00 : f32
    %143 = vector.broadcast %cst_41 : f32 to vector<2x512xf32>
    %144 = arith.addf %143, %142 : vector<2x512xf32>
    %145 = arith.divf %143, %144 : vector<2x512xf32>
    %146 = vector.extract_strided_slice %139 {offsets = [0, 512], sizes = [2, 512], strides = [1, 1]} : vector<2x2048xf32> to vector<2x512xf32>
    %147 = arith.negf %146 : vector<2x512xf32>
    %148 = math.exp %147 : vector<2x512xf32>
    %cst_42 = arith.constant 1.000000e+00 : f32
    %149 = vector.broadcast %cst_42 : f32 to vector<2x512xf32>
    %150 = arith.addf %149, %148 : vector<2x512xf32>
    %151 = arith.divf %149, %150 : vector<2x512xf32>
    %152 = vector.extract_strided_slice %139 {offsets = [0, 1024], sizes = [2, 512], strides = [1, 1]} : vector<2x2048xf32> to vector<2x512xf32>
    %153 = math.tanh %152 : vector<2x512xf32>
    %154 = vector.extract_strided_slice %139 {offsets = [0, 1536], sizes = [2, 512], strides = [1, 1]} : vector<2x2048xf32> to vector<2x512xf32>
    %155 = arith.negf %154 : vector<2x512xf32>
    %156 = math.exp %155 : vector<2x512xf32>
    %cst_43 = arith.constant 1.000000e+00 : f32
    %157 = vector.broadcast %cst_43 : f32 to vector<2x512xf32>
    %158 = arith.addf %157, %156 : vector<2x512xf32>
    %159 = arith.divf %157, %158 : vector<2x512xf32>
    %160 = arith.mulf %151, %130 : vector<2x512xf32>
    %161 = arith.mulf %145, %153 : vector<2x512xf32>
    %162 = arith.addf %160, %161 : vector<2x512xf32>
    %163 = math.tanh %162 : vector<2x512xf32>
    %164 = arith.mulf %159, %163 : vector<2x512xf32>
    %c5_i32 = arith.constant 5 : i32
    %165 = arith.index_cast %c5_i32 : i32 to index
    %c0_44 = arith.constant 0 : index
    %c0_45 = arith.constant 0 : index
    %166 = vector.load %arg1[%165, %c0_44, %c0_45] : memref<8x2x2048xf32, #tpu.memory_space<vmem>>, vector<1x2x2048xf32>
    %167 = vector.shape_cast %166 : vector<1x2x2048xf32> to vector<2x2048xf32>
    %168 = arith.truncf %164 : vector<2x512xf32> to vector<2x512xbf16>
    %c0_46 = arith.constant 0 : index
    %c0_47 = arith.constant 0 : index
    %169 = vector.load %arg2[%c0_46, %c0_47] : memref<512x2048xbf16, #tpu.memory_space<vmem>>, vector<512x2048xbf16>
    %cst_48 = arith.constant dense<0.000000e+00> : vector<2x2048xf32>
    %170 = tpu.matmul %168, %169, %cst_48 {dimension_numbers = #tpu.dot_dimension_numbers<[1], [0], [0], [1], [0, 0, 1, 1], [], []>} : vector<2x512xbf16>, vector<512x2048xbf16>, vector<2x2048xf32> -> vector<2x2048xf32>
    %171 = arith.addf %167, %170 : vector<2x2048xf32>
    %172 = vector.extract_strided_slice %171 {offsets = [0, 0], sizes = [2, 512], strides = [1, 1]} : vector<2x2048xf32> to vector<2x512xf32>
    %173 = arith.negf %172 : vector<2x512xf32>
    %174 = math.exp %173 : vector<2x512xf32>
    %cst_49 = arith.constant 1.000000e+00 : f32
    %175 = vector.broadcast %cst_49 : f32 to vector<2x512xf32>
    %176 = arith.addf %175, %174 : vector<2x512xf32>
    %177 = arith.divf %175, %176 : vector<2x512xf32>
    %178 = vector.extract_strided_slice %171 {offsets = [0, 512], sizes = [2, 512], strides = [1, 1]} : vector<2x2048xf32> to vector<2x512xf32>
    %179 = arith.negf %178 : vector<2x512xf32>
    %180 = math.exp %179 : vector<2x512xf32>
    %cst_50 = arith.constant 1.000000e+00 : f32
    %181 = vector.broadcast %cst_50 : f32 to vector<2x512xf32>
    %182 = arith.addf %181, %180 : vector<2x512xf32>
    %183 = arith.divf %181, %182 : vector<2x512xf32>
    %184 = vector.extract_strided_slice %171 {offsets = [0, 1024], sizes = [2, 512], strides = [1, 1]} : vector<2x2048xf32> to vector<2x512xf32>
    %185 = math.tanh %184 : vector<2x512xf32>
    %186 = vector.extract_strided_slice %171 {offsets = [0, 1536], sizes = [2, 512], strides = [1, 1]} : vector<2x2048xf32> to vector<2x512xf32>
    %187 = arith.negf %186 : vector<2x512xf32>
    %188 = math.exp %187 : vector<2x512xf32>
    %cst_51 = arith.constant 1.000000e+00 : f32
    %189 = vector.broadcast %cst_51 : f32 to vector<2x512xf32>
    %190 = arith.addf %189, %188 : vector<2x512xf32>
    %191 = arith.divf %189, %190 : vector<2x512xf32>
    %192 = arith.mulf %183, %162 : vector<2x512xf32>
    %193 = arith.mulf %177, %185 : vector<2x512xf32>
    %194 = arith.addf %192, %193 : vector<2x512xf32>
    %195 = math.tanh %194 : vector<2x512xf32>
    %196 = arith.mulf %191, %195 : vector<2x512xf32>
    %c6_i32 = arith.constant 6 : i32
    %197 = arith.index_cast %c6_i32 : i32 to index
    %c0_52 = arith.constant 0 : index
    %c0_53 = arith.constant 0 : index
    %198 = vector.load %arg1[%197, %c0_52, %c0_53] : memref<8x2x2048xf32, #tpu.memory_space<vmem>>, vector<1x2x2048xf32>
    %199 = vector.shape_cast %198 : vector<1x2x2048xf32> to vector<2x2048xf32>
    %200 = arith.truncf %196 : vector<2x512xf32> to vector<2x512xbf16>
    %c0_54 = arith.constant 0 : index
    %c0_55 = arith.constant 0 : index
    %201 = vector.load %arg2[%c0_54, %c0_55] : memref<512x2048xbf16, #tpu.memory_space<vmem>>, vector<512x2048xbf16>
    %cst_56 = arith.constant dense<0.000000e+00> : vector<2x2048xf32>
    %202 = tpu.matmul %200, %201, %cst_56 {dimension_numbers = #tpu.dot_dimension_numbers<[1], [0], [0], [1], [0, 0, 1, 1], [], []>} : vector<2x512xbf16>, vector<512x2048xbf16>, vector<2x2048xf32> -> vector<2x2048xf32>
    %203 = arith.addf %199, %202 : vector<2x2048xf32>
    %204 = vector.extract_strided_slice %203 {offsets = [0, 0], sizes = [2, 512], strides = [1, 1]} : vector<2x2048xf32> to vector<2x512xf32>
    %205 = arith.negf %204 : vector<2x512xf32>
    %206 = math.exp %205 : vector<2x512xf32>
    %cst_57 = arith.constant 1.000000e+00 : f32
    %207 = vector.broadcast %cst_57 : f32 to vector<2x512xf32>
    %208 = arith.addf %207, %206 : vector<2x512xf32>
    %209 = arith.divf %207, %208 : vector<2x512xf32>
    %210 = vector.extract_strided_slice %203 {offsets = [0, 512], sizes = [2, 512], strides = [1, 1]} : vector<2x2048xf32> to vector<2x512xf32>
    %211 = arith.negf %210 : vector<2x512xf32>
    %212 = math.exp %211 : vector<2x512xf32>
    %cst_58 = arith.constant 1.000000e+00 : f32
    %213 = vector.broadcast %cst_58 : f32 to vector<2x512xf32>
    %214 = arith.addf %213, %212 : vector<2x512xf32>
    %215 = arith.divf %213, %214 : vector<2x512xf32>
    %216 = vector.extract_strided_slice %203 {offsets = [0, 1024], sizes = [2, 512], strides = [1, 1]} : vector<2x2048xf32> to vector<2x512xf32>
    %217 = math.tanh %216 : vector<2x512xf32>
    %218 = vector.extract_strided_slice %203 {offsets = [0, 1536], sizes = [2, 512], strides = [1, 1]} : vector<2x2048xf32> to vector<2x512xf32>
    %219 = arith.negf %218 : vector<2x512xf32>
    %220 = math.exp %219 : vector<2x512xf32>
    %cst_59 = arith.constant 1.000000e+00 : f32
    %221 = vector.broadcast %cst_59 : f32 to vector<2x512xf32>
    %222 = arith.addf %221, %220 : vector<2x512xf32>
    %223 = arith.divf %221, %222 : vector<2x512xf32>
    %224 = arith.mulf %215, %194 : vector<2x512xf32>
    %225 = arith.mulf %209, %217 : vector<2x512xf32>
    %226 = arith.addf %224, %225 : vector<2x512xf32>
    %227 = math.tanh %226 : vector<2x512xf32>
    %228 = arith.mulf %223, %227 : vector<2x512xf32>
    %c7_i32 = arith.constant 7 : i32
    %229 = arith.index_cast %c7_i32 : i32 to index
    %c0_60 = arith.constant 0 : index
    %c0_61 = arith.constant 0 : index
    %230 = vector.load %arg1[%229, %c0_60, %c0_61] : memref<8x2x2048xf32, #tpu.memory_space<vmem>>, vector<1x2x2048xf32>
    %231 = vector.shape_cast %230 : vector<1x2x2048xf32> to vector<2x2048xf32>
    %232 = arith.truncf %228 : vector<2x512xf32> to vector<2x512xbf16>
    %c0_62 = arith.constant 0 : index
    %c0_63 = arith.constant 0 : index
    %233 = vector.load %arg2[%c0_62, %c0_63] : memref<512x2048xbf16, #tpu.memory_space<vmem>>, vector<512x2048xbf16>
    %cst_64 = arith.constant dense<0.000000e+00> : vector<2x2048xf32>
    %234 = tpu.matmul %232, %233, %cst_64 {dimension_numbers = #tpu.dot_dimension_numbers<[1], [0], [0], [1], [0, 0, 1, 1], [], []>} : vector<2x512xbf16>, vector<512x2048xbf16>, vector<2x2048xf32> -> vector<2x2048xf32>
    %235 = arith.addf %231, %234 : vector<2x2048xf32>
    %236 = vector.extract_strided_slice %235 {offsets = [0, 0], sizes = [2, 512], strides = [1, 1]} : vector<2x2048xf32> to vector<2x512xf32>
    %237 = arith.negf %236 : vector<2x512xf32>
    %238 = math.exp %237 : vector<2x512xf32>
    %cst_65 = arith.constant 1.000000e+00 : f32
    %239 = vector.broadcast %cst_65 : f32 to vector<2x512xf32>
    %240 = arith.addf %239, %238 : vector<2x512xf32>
    %241 = arith.divf %239, %240 : vector<2x512xf32>
    %242 = vector.extract_strided_slice %235 {offsets = [0, 512], sizes = [2, 512], strides = [1, 1]} : vector<2x2048xf32> to vector<2x512xf32>
    %243 = arith.negf %242 : vector<2x512xf32>
    %244 = math.exp %243 : vector<2x512xf32>
    %cst_66 = arith.constant 1.000000e+00 : f32
    %245 = vector.broadcast %cst_66 : f32 to vector<2x512xf32>
    %246 = arith.addf %245, %244 : vector<2x512xf32>
    %247 = arith.divf %245, %246 : vector<2x512xf32>
    %248 = vector.extract_strided_slice %235 {offsets = [0, 1024], sizes = [2, 512], strides = [1, 1]} : vector<2x2048xf32> to vector<2x512xf32>
    %249 = math.tanh %248 : vector<2x512xf32>
    %250 = vector.extract_strided_slice %235 {offsets = [0, 1536], sizes = [2, 512], strides = [1, 1]} : vector<2x2048xf32> to vector<2x512xf32>
    %251 = arith.negf %250 : vector<2x512xf32>
    %252 = math.exp %251 : vector<2x512xf32>
    %cst_67 = arith.constant 1.000000e+00 : f32
    %253 = vector.broadcast %cst_67 : f32 to vector<2x512xf32>
    %254 = arith.addf %253, %252 : vector<2x512xf32>
    %255 = arith.divf %253, %254 : vector<2x512xf32>
    %256 = arith.mulf %247, %226 : vector<2x512xf32>
    %257 = arith.mulf %241, %249 : vector<2x512xf32>
    %258 = arith.addf %256, %257 : vector<2x512xf32>
    %259 = math.tanh %258 : vector<2x512xf32>
    %260 = arith.mulf %255, %259 : vector<2x512xf32>
    %c8_i32 = arith.constant 8 : i32
    %c0_68 = arith.constant 0 : index
    %c0_69 = arith.constant 0 : index
    %261 = vector.load %arg6[%c0_68, %c0_69] : memref<2x512xf32, #tpu.memory_space<vmem>>, vector<2x512xf32>
    tpu.vector_store %arg6[%c0_68, %c0_69], %260 {strides = array<i32>} : memref<2x512xf32, #tpu.memory_space<vmem>>, vector<2x512xf32>,
    %c0_70 = arith.constant 0 : index
    %c0_71 = arith.constant 0 : index
    %262 = vector.load %arg7[%c0_70, %c0_71] : memref<2x512xf32, #tpu.memory_space<vmem>>, vector<2x512xf32>
    tpu.vector_store %arg7[%c0_70, %c0_71], %258 {strides = array<i32>} : memref<2x512xf32, #tpu.memory_space<vmem>>, vector<2x512xf32>,
    %c0_i32_72 = arith.constant 0 : i32
    %263 = arith.cmpi eq, %arg0, %c0_i32_72 : i32
    %264 = arith.extui %263 : i1 to i32
    %c0_i32_73 = arith.constant 0 : i32
    %265 = arith.cmpi ne, %264, %c0_i32_73 : i32
    scf.if %265 {
      %266 = arith.truncf %260 : vector<2x512xf32> to vector<2x512xbf16>
      %c0_74 = arith.constant 0 : index
      %c0_75 = arith.constant 0 : index
      %267 = vector.load %arg3[%c0_74, %c0_75] : memref<512x256xbf16, #tpu.memory_space<vmem>>, vector<512x256xbf16>
      %cst_76 = arith.constant dense<0.000000e+00> : vector<2x256xf32>
      %268 = tpu.matmul %266, %267, %cst_76 {dimension_numbers = #tpu.dot_dimension_numbers<[1], [0], [0], [1], [0, 0, 1, 1], [], []>} : vector<2x512xbf16>, vector<512x256xbf16>, vector<2x256xf32> -> vector<2x256xf32>
      %c0_77 = arith.constant 0 : index
      %c0_78 = arith.constant 0 : index
      %269 = vector.load %arg4[%c0_77, %c0_78] : memref<1x256xf32, #tpu.memory_space<vmem>>, vector<1x256xf32>
      %270 = vector.broadcast %269 : vector<1x256xf32> to vector<2x256xf32>
      %271 = arith.addf %268, %270 : vector<2x256xf32>
      %c0_79 = arith.constant 0 : index
      %c0_80 = arith.constant 0 : index
      %272 = vector.load %arg5[%c0_79, %c0_80] : memref<2x256xf32, #tpu.memory_space<vmem>>, vector<2x256xf32>
      tpu.vector_store %arg5[%c0_79, %c0_80], %271 {strides = array<i32>} : memref<2x256xf32, #tpu.memory_space<vmem>>, vector<2x256xf32>,
    } else {
    }
    return
  }
  func.func @transform_0(%arg0: i32) -> (i32, i32, i32) {
    %c0_i32 = arith.constant 0 : i32
    %c0_i32_0 = arith.constant 0 : i32
    %c0_i32_1 = arith.constant 0 : i32
    return %arg0, %c0_i32, %c0_i32_0 : i32, i32, i32
  }
  func.func @transform_1(%arg0: i32) -> (i32, i32) {
    %c0_i32 = arith.constant 0 : i32
    %c0_i32_0 = arith.constant 0 : i32
    %c0_i32_1 = arith.constant 0 : i32
    return %c0_i32, %c0_i32_0 : i32, i32
  }
  func.func @transform_2(%arg0: i32) -> (i32, i32) {
    %c0_i32 = arith.constant 0 : i32
    %c0_i32_0 = arith.constant 0 : i32
    %c0_i32_1 = arith.constant 0 : i32
    return %c0_i32, %c0_i32_0 : i32, i32
  }
  func.func @transform_3(%arg0: i32) -> (i32, i32) {
    %c0_i32 = arith.constant 0 : i32
    %c0_i32_0 = arith.constant 0 : i32
    %c0_i32_1 = arith.constant 0 : i32
    return %c0_i32, %c0_i32_0 : i32, i32
  }
  func.func @transform_4(%arg0: i32) -> (i32, i32) {
    %c0_i32 = arith.constant 0 : i32
    %c0_i32_0 = arith.constant 0 : i32
    %c0_i32_1 = arith.constant 0 : i32
    return %c0_i32, %c0_i32_0 : i32, i32
  }
}

</mosaic_0001>

<llo_original>
// kernel: pose_encoder.1
$region0: #{pose_encoder.1}
  #allocation0 [shape = 'u32[]', space=smem, size = 0x4, offset = 0x4, fixed_abs, tag = 'smem constant byte address 0x4 - core index']
  #allocation1 [shape = 'u32[144,128]{1,0:T(1,128)}', space=vmem, size = 0x12000, scoped, tag = 'internal scratch']
  #allocation2 [shape = 'f32[2,512]{1,0:T(2,128)}', space=vmem, size = 0x1000, scoped, tag = 'scratch operand']
  #allocation3 [shape = 'f32[2,512]{1,0:T(2,128)}', space=vmem, size = 0x1000, scoped, tag = 'scratch operand']
  %s0 = inlined_call_operand.vmem [shape: f32[8,2,2048], index: 0, kind: input, shape index: {}]
  %s1 = inlined_call_operand.vmem [shape: bf16[512,2048], index: 1, kind: input, shape index: {}]
  %s2 = inlined_call_operand.vmem [shape: bf16[512,256], index: 2, kind: input, shape index: {}]
  %s3 = inlined_call_operand.vmem [shape: f32[1,256], index: 3, kind: input, shape index: {}]
  %s4 = inlined_call_operand.hbm [shape: f32[2,256], index: 4, kind: output, shape index: {}]
  %s5 = sld [smem:[#allocation0]]
  $region34: #{pose_encoder.1} parent=0
    _
  %s7 = ssub.s32 1, %s5
  %s8 = scalar_select 0, %s7, %s5
  $region1: #{pose_encoder.1} parent=0
    #allocation4 [shape = 'u8[2048]{0}', space=vmem, size = 0x800, scoped, tag = 'output window, operand 0, single buffered']
    #allocation5 [shape = 's32[1]{0}', space=sflag, size = 0x4, scoped, tag = 'scoped memory for pose_encoder.1']
    %9 = vsyncpa [#allocation5], 0
    // Predicated region
    $region2: #{pose_encoder.1} parent=1 // pred_check
      _
    $region3: #{pose_encoder.1} parent=1 // pred_check_branch
      %11 = sbr.rel (0) target = $region5
    $region4: #{pose_encoder.1} parent=1 // pred_region
      _
    $region5: #{pose_encoder.1} parent=1 // pred_fallthru
      _
    // Predicated region
    $region6: #{pose_encoder.1} parent=1 // pred_check
      _
    $region7: #{pose_encoder.1} parent=1 // pred_check_branch
      %13 = sbr.rel (0) target = $region9
    $region8: #{pose_encoder.1} parent=1 // pred_region
      _
    $region9: #{pose_encoder.1} parent=1 // pred_fallthru
      _
    // Predicated region
    $region10: #{pose_encoder.1} parent=1 // pred_check
      _
    $region11: #{pose_encoder.1} parent=1 // pred_check_branch
      %15 = sbr.rel (0) target = $region13
    $region12: #{pose_encoder.1} parent=1 // pred_region
      _
    $region13: #{pose_encoder.1} parent=1 // pred_fallthru
      _
    // Predicated region
    $region14: #{pose_encoder.1} parent=1 // pred_check
      _
    $region15: #{pose_encoder.1} parent=1 // pred_check_branch
      %17 = sbr.rel (0) target = $region17
    $region16: #{pose_encoder.1} parent=1 // pred_region
      _
    $region17: #{pose_encoder.1} parent=1 // pred_fallthru
      _
    %p18 = scmp.eq.s32.totalorder 0, 0
    // Predicated region
    $region18: #{pose_encoder.1} parent=1 // pred_check
      %p19 = pneg %p18
    $region19: #{pose_encoder.1} parent=1 // pred_check_branch
      %21 = sbr.rel (%p19) target = $region21
    $region20: #{pose_encoder.1} parent=1 // pred_region
      %22 = vst [vmem:[#allocation2] sm:$0xff] 0.0
      %23 = vst [vmem:[#allocation3] sm:$0xff] 0.0
    $region21: #{pose_encoder.1} parent=1 // pred_fallthru
      _
    %v24 = vld [vmem:[#allocation2] sm:$0xff]
    %v25 = vld [vmem:[#allocation3] sm:$0xff]
    %v26 = vld [vmem:[%s0] sm:$0xff]
    %v27 = vld [vmem:[%s0 + $0x8] sm:$0xff]
    %v28 = vld [vmem:[%s0 + $0x10] sm:$0xff]
    %v29 = vld [vmem:[%s0 + $0x18] sm:$0xff]
    %v31 = vcombine.high %v24, %v24
    %v33 = vunpack.c.l.s4 1983009808
    %v34 = vunpack.c.0.s8 %v33
    %v35 = vlaneseq
    %v36 = vshrl.u32 %v35, 7
    %v37 = vsub.s32 %v34, %v36
    %v38 = vrot.slane %v24, %v37
    %v40 = vunpack.c.l.s4 1983009808
    %v41 = vunpack.c.0.s8 %v40
    %v42 = vlaneseq
    %v43 = vshrl.u32 %v42, 7
    %v44 = vsub.s32 %v41, %v43
    %v45 = vrot.slane %v31, %v44
    %v46 = vcombine.high %v38, %v38
    %v47 = vcombine.high %v45, %v45
    %v52 = vpack.c.bf16 %v38, %v38
    %v53 = vpack.c.bf16 %v46, %v46
    %v54 = vpack.c.bf16 %v45, %v45
    %v55 = vpack.c.bf16 %v47, %v47
    %v56 = vld [vmem:[%s1] sm:$0xff]
    %v57 = vld [vmem:[%s1 + $0x8] sm:$0xff]
    %v58 = vld [vmem:[%s1 + $0x10] sm:$0xff]
    %v59 = vld [vmem:[%s1 + $0x18] sm:$0xff]
    %v60 = vld [vmem:[%s1 + $0x20] sm:$0xff]
    %v61 = vld [vmem:[%s1 + $0x28] sm:$0xff]
    %v62 = vld [vmem:[%s1 + $0x30] sm:$0xff]
    %v63 = vld [vmem:[%s1 + $0x38] sm:$0xff]
    %v64 = vld [vmem:[%s1 + $0x40] sm:$0xff]
    %v65 = vld [vmem:[%s1 + $0x48] sm:$0xff]
    %v66 = vld [vmem:[%s1 + $0x50] sm:$0xff]
    %v67 = vld [vmem:[%s1 + $0x58] sm:$0xff]
    %v68 = vld [vmem:[%s1 + $0x60] sm:$0xff]
    %v69 = vld [vmem:[%s1 + $0x68] sm:$0xff]
    %v70 = vld [vmem:[%s1 + $0x70] sm:$0xff]
    %v71 = vld [vmem:[%s1 + $0x78] sm:$0xff]
    %v72 = vld [vmem:[%s1 + $0x80] sm:$0xff]
    %v73 = vld [vmem:[%s1 + $0x88] sm:$0xff]
    %v74 = vld [vmem:[%s1 + $0x90] sm:$0xff]
    %v75 = vld [vmem:[%s1 + $0x98] sm:$0xff]
    %v76 = vld [vmem:[%s1 + $0xa0] sm:$0xff]
    %v77 = vld [vmem:[%s1 + $0xa8] sm:$0xff]
    %v78 = vld [vmem:[%s1 + $0xb0] sm:$0xff]
    %v79 = vld [vmem:[%s1 + $0xb8] sm:$0xff]
    %v80 = vld [vmem:[%s1 + $0xc0] sm:$0xff]
    %v81 = vld [vmem:[%s1 + $0xc8] sm:$0xff]
    %v82 = vld [vmem:[%s1 + $0xd0] sm:$0xff]
    %v83 = vld [vmem:[%s1 + $0xd8] sm:$0xff]
    %v84 = vld [vmem:[%s1 + $0xe0] sm:$0xff]
    %v85 = vld [vmem:[%s1 + $0xe8] sm:$0xff]
    %v86 = vld [vmem:[%s1 + $0xf0] sm:$0xff]
    %v87 = vld [vmem:[%s1 + $0xf8] sm:$0xff]
    %v88 = vld [vmem:[%s1 + $0x100] sm:$0xff]
    %v89 = vld [vmem:[%s1 + $0x108] sm:$0xff]
    %v90 = vld [vmem:[%s1 + $0x110] sm:$0xff]
    %v91 = vld [vmem:[%s1 + $0x118] sm:$0xff]
    %v92 = vld [vmem:[%s1 + $0x120] sm:$0xff]
    %v93 = vld [vmem:[%s1 + $0x128] sm:$0xff]
    %v94 = vld [vmem:[%s1 + $0x130] sm:$0xff]
    %v95 = vld [vmem:[%s1 + $0x138] sm:$0xff]
    %v96 = vld [vmem:[%s1 + $0x140] sm:$0xff]
    %v97 = vld [vmem:[%s1 + $0x148] sm:$0xff]
    %v98 = vld [vmem:[%s1 + $0x150] sm:$0xff]
    %v99 = vld [vmem:[%s1 + $0x158] sm:$0xff]
    %v100 = vld [vmem:[%s1 + $0x160] sm:$0xff]
    %v101 = vld [vmem:[%s1 + $0x168] sm:$0xff]
    %v102 = vld [vmem:[%s1 + $0x170] sm:$0xff]
    %v103 = vld [vmem:[%s1 + $0x178] sm:$0xff]
    %v104 = vld [vmem:[%s1 + $0x180] sm:$0xff]
    %v105 = vld [vmem:[%s1 + $0x188] sm:$0xff]
    %v106 = vld [vmem:[%s1 + $0x190] sm:$0xff]
    %v107 = vld [vmem:[%s1 + $0x198] sm:$0xff]
    %v108 = vld [vmem:[%s1 + $0x1a0] sm:$0xff]
    %v109 = vld [vmem:[%s1 + $0x1a8] sm:$0xff]
    %v110 = vld [vmem:[%s1 + $0x1b0] sm:$0xff]
    %v111 = vld [vmem:[%s1 + $0x1b8] sm:$0xff]
    %v112 = vld [vmem:[%s1 + $0x1c0] sm:$0xff]
    %v113 = vld [vmem:[%s1 + $0x1c8] sm:$0xff]
    %v114 = vld [vmem:[%s1 + $0x1d0] sm:$0xff]
    %v115 = vld [vmem:[%s1 + $0x1d8] sm:$0xff]
    %v116 = vld [vmem:[%s1 + $0x1e0] sm:$0xff]
    %v117 = vld [vmem:[%s1 + $0x1e8] sm:$0xff]
    %v118 = vld [vmem:[%s1 + $0x1f0] sm:$0xff]
    %v119 = vld [vmem:[%s1 + $0x1f8] sm:$0xff]
    %v120 = vld [vmem:[%s1 + $0x200] sm:$0xff]
    %v121 = vld [vmem:[%s1 + $0x208] sm:$0xff]
    %v122 = vld [vmem:[%s1 + $0x210] sm:$0xff]
    %v123 = vld [vmem:[%s1 + $0x218] sm:$0xff]
    %v124 = vld [vmem:[%s1 + $0x220] sm:$0xff]
    %v125 = vld [vmem:[%s1 + $0x228] sm:$0xff]
    %v126 = vld [vmem:[%s1 + $0x230] sm:$0xff]
    %v127 = vld [vmem:[%s1 + $0x238] sm:$0xff]
    %v128 = vld [vmem:[%s1 + $0x240] sm:$0xff]
    %v129 = vld [vmem:[%s1 + $0x248] sm:$0xff]
    %v130 = vld [vmem:[%s1 + $0x250] sm:$0xff]
    %v131 = vld [vmem:[%s1 + $0x258] sm:$0xff]
    %v132 = vld [vmem:[%s1 + $0x260] sm:$0xff]
    %v133 = vld [vmem:[%s1 + $0x268] sm:$0xff]
    %v134 = vld [vmem:[%s1 + $0x270] sm:$0xff]
    %v135 = vld [vmem:[%s1 + $0x278] sm:$0xff]
    %v136 = vld [vmem:[%s1 + $0x280] sm:$0xff]
    %v137 = vld [vmem:[%s1 + $0x288] sm:$0xff]
    %v138 = vld [vmem:[%s1 + $0x290] sm:$0xff]
    %v139 = vld [vmem:[%s1 + $0x298] sm:$0xff]
    %v140 = vld [vmem:[%s1 + $0x2a0] sm:$0xff]
    %v141 = vld [vmem:[%s1 + $0x2a8] sm:$0xff]
    %v142 = vld [vmem:[%s1 + $0x2b0] sm:$0xff]
    %v143 = vld [vmem:[%s1 + $0x2b8] sm:$0xff]
    %v144 = vld [vmem:[%s1 + $0x2c0] sm:$0xff]
    %v145 = vld [vmem:[%s1 + $0x2c8] sm:$0xff]
    %v146 = vld [vmem:[%s1 + $0x2d0] sm:$0xff]
    %v147 = vld [vmem:[%s1 + $0x2d8] sm:$0xff]
    %v148 = vld [vmem:[%s1 + $0x2e0] sm:$0xff]
    %v149 = vld [vmem:[%s1 + $0x2e8] sm:$0xff]
    %v150 = vld [vmem:[%s1 + $0x2f0] sm:$0xff]
    %v151 = vld [vmem:[%s1 + $0x2f8] sm:$0xff]
    %v152 = vld [vmem:[%s1 + $0x300] sm:$0xff]
    %v153 = vld [vmem:[%s1 + $0x308] sm:$0xff]
    %v154 = vld [vmem:[%s1 + $0x310] sm:$0xff]
    %v155 = vld [vmem:[%s1 + $0x318] sm:$0xff]
    %v156 = vld [vmem:[%s1 + $0x320] sm:$0xff]
    %v157 = vld [vmem:[%s1 + $0x328] sm:$0xff]
    %v158 = vld [vmem:[%s1 + $0x330] sm:$0xff]
    %v159 = vld [vmem:[%s1 + $0x338] sm:$0xff]
    %v160 = vld [vmem:[%s1 + $0x340] sm:$0xff]
    %v161 = vld [vmem:[%s1 + $0x348] sm:$0xff]
    %v162 = vld [vmem:[%s1 + $0x350] sm:$0xff]
    %v163 = vld [vmem:[%s1 + $0x358] sm:$0xff]
    %v164 = vld [vmem:[%s1 + $0x360] sm:$0xff]
    %v165 = vld [vmem:[%s1 + $0x368] sm:$0xff]
    %v166 = vld [vmem:[%s1 + $0x370] sm:$0xff]
    %v167 = vld [vmem:[%s1 + $0x378] sm:$0xff]
    %v168 = vld [vmem:[%s1 + $0x380] sm:$0xff]
    %v169 = vld [vmem:[%s1 + $0x388] sm:$0xff]
    %v170 = vld [vmem:[%s1 + $0x390] sm:$0xff]
    %v171 = vld [vmem:[%s1 + $0x398] sm:$0xff]
    %v172 = vld [vmem:[%s1 + $0x3a0] sm:$0xff]
    %v173 = vld [vmem:[%s1 + $0x3a8] sm:$0xff]
    %v174 = vld [vmem:[%s1 + $0x3b0] sm:$0xff]
    %v175 = vld [vmem:[%s1 + $0x3b8] sm:$0xff]
    %v176 = vld [vmem:[%s1 + $0x3c0] sm:$0xff]
    %v177 = vld [vmem:[%s1 + $0x3c8] sm:$0xff]
    %v178 = vld [vmem:[%s1 + $0x3d0] sm:$0xff]
    %v179 = vld [vmem:[%s1 + $0x3d8] sm:$0xff]
    %v180 = vld [vmem:[%s1 + $0x3e0] sm:$0xff]
    %v181 = vld [vmem:[%s1 + $0x3e8] sm:$0xff]
    %v182 = vld [vmem:[%s1 + $0x3f0] sm:$0xff]
    %v183 = vld [vmem:[%s1 + $0x3f8] sm:$0xff]
    %v184 = vld [vmem:[%s1 + $0x400] sm:$0xff]
    %v185 = vld [vmem:[%s1 + $0x408] sm:$0xff]
    %v186 = vld [vmem:[%s1 + $0x410] sm:$0xff]
    %v187 = vld [vmem:[%s1 + $0x418] sm:$0xff]
    %v188 = vld [vmem:[%s1 + $0x420] sm:$0xff]
    %v189 = vld [vmem:[%s1 + $0x428] sm:$0xff]
    %v190 = vld [vmem:[%s1 + $0x430] sm:$0xff]
    %v191 = vld [vmem:[%s1 + $0x438] sm:$0xff]
    %v192 = vld [vmem:[%s1 + $0x440] sm:$0xff]
    %v193 = vld [vmem:[%s1 + $0x448] sm:$0xff]
    %v194 = vld [vmem:[%s1 + $0x450] sm:$0xff]
    %v195 = vld [vmem:[%s1 + $0x458] sm:$0xff]
    %v196 = vld [vmem:[%s1 + $0x460] sm:$0xff]
    %v197 = vld [vmem:[%s1 + $0x468] sm:$0xff]
    %v198 = vld [vmem:[%s1 + $0x470] sm:$0xff]
    %v199 = vld [vmem:[%s1 + $0x478] sm:$0xff]
    %v200 = vld [vmem:[%s1 + $0x480] sm:$0xff]
    %v201 = vld [vmem:[%s1 + $0x488] sm:$0xff]
    %v202 = vld [vmem:[%s1 + $0x490] sm:$0xff]
    %v203 = vld [vmem:[%s1 + $0x498] sm:$0xff]
    %v204 = vld [vmem:[%s1 + $0x4a0] sm:$0xff]
    %v205 = vld [vmem:[%s1 + $0x4a8] sm:$0xff]
    %v206 = vld [vmem:[%s1 + $0x4b0] sm:$0xff]
    %v207 = vld [vmem:[%s1 + $0x4b8] sm:$0xff]
    %v208 = vld [vmem:[%s1 + $0x4c0] sm:$0xff]
    %v209 = vld [vmem:[%s1 + $0x4c8] sm:$0xff]
    %v210 = vld [vmem:[%s1 + $0x4d0] sm:$0xff]
    %v211 = vld [vmem:[%s1 + $0x4d8] sm:$0xff]
    %v212 = vld [vmem:[%s1 + $0x4e0] sm:$0xff]
    %v213 = vld [vmem:[%s1 + $0x4e8] sm:$0xff]
    %v214 = vld [vmem:[%s1 + $0x4f0] sm:$0xff]
    %v215 = vld [vmem:[%s1 + $0x4f8] sm:$0xff]
    %v216 = vld [vmem:[%s1 + $0x500] sm:$0xff]
    %v217 = vld [vmem:[%s1 + $0x508] sm:$0xff]
    %v218 = vld [vmem:[%s1 + $0x510] sm:$0xff]
    %v219 = vld [vmem:[%s1 + $0x518] sm:$0xff]
    %v220 = vld [vmem:[%s1 + $0x520] sm:$0xff]
    %v221 = vld [vmem:[%s1 + $0x528] sm:$0xff]
    %v222 = vld [vmem:[%s1 + $0x530] sm:$0xff]
    %v223 = vld [vmem:[%s1 + $0x538] sm:$0xff]
    %v224 = vld [vmem:[%s1 + $0x540] sm:$0xff]
    %v225 = vld [vmem:[%s1 + $0x548] sm:$0xff]
    %v226 = vld [vmem:[%s1 + $0x550] sm:$0xff]
    %v227 = vld [vmem:[%s1 + $0x558] sm:$0xff]
    %v228 = vld [vmem:[%s1 + $0x560] sm:$0xff]
    %v229 = vld [vmem:[%s1 + $0x568] sm:$0xff]
    %v230 = vld [vmem:[%s1 + $0x570] sm:$0xff]
    %v231 = vld [vmem:[%s1 + $0x578] sm:$0xff]
    %v232 = vld [vmem:[%s1 + $0x580] sm:$0xff]
    %v233 = vld [vmem:[%s1 + $0x588] sm:$0xff]
    %v234 = vld [vmem:[%s1 + $0x590] sm:$0xff]
    %v235 = vld [vmem:[%s1 + $0x598] sm:$0xff]
    %v236 = vld [vmem:[%s1 + $0x5a0] sm:$0xff]
    %v237 = vld [vmem:[%s1 + $0x5a8] sm:$0xff]
    %v238 = vld [vmem:[%s1 + $0x5b0] sm:$0xff]
    %v239 = vld [vmem:[%s1 + $0x5b8] sm:$0xff]
    %v240 = vld [vmem:[%s1 + $0x5c0] sm:$0xff]
    %v241 = vld [vmem:[%s1 + $0x5c8] sm:$0xff]
    %v242 = vld [vmem:[%s1 + $0x5d0] sm:$0xff]
    %v243 = vld [vmem:[%s1 + $0x5d8] sm:$0xff]
    %v244 = vld [vmem:[%s1 + $0x5e0] sm:$0xff]
    %v245 = vld [vmem:[%s1 + $0x5e8] sm:$0xff]
    %v246 = vld [vmem:[%s1 + $0x5f0] sm:$0xff]
    %v247 = vld [vmem:[%s1 + $0x5f8] sm:$0xff]
    %v248 = vld [vmem:[%s1 + $0x600] sm:$0xff]
    %v249 = vld [vmem:[%s1 + $0x608] sm:$0xff]
    %v250 = vld [vmem:[%s1 + $0x610] sm:$0xff]
    %v251 = vld [vmem:[%s1 + $0x618] sm:$0xff]
    %v252 = vld [vmem:[%s1 + $0x620] sm:$0xff]
    %v253 = vld [vmem:[%s1 + $0x628] sm:$0xff]
    %v254 = vld [vmem:[%s1 + $0x630] sm:$0xff]
    %v255 = vld [vmem:[%s1 + $0x638] sm:$0xff]
    %v256 = vld [vmem:[%s1 + $0x640] sm:$0xff]
    %v257 = vld [vmem:[%s1 + $0x648] sm:$0xff]
    %v258 = vld [vmem:[%s1 + $0x650] sm:$0xff]
    %v259 = vld [vmem:[%s1 + $0x658] sm:$0xff]
    %v260 = vld [vmem:[%s1 + $0x660] sm:$0xff]
    %v261 = vld [vmem:[%s1 + $0x668] sm:$0xff]
    %v262 = vld [vmem:[%s1 + $0x670] sm:$0xff]
    %v263 = vld [vmem:[%s1 + $0x678] sm:$0xff]
    %v264 = vld [vmem:[%s1 + $0x680] sm:$0xff]
    %v265 = vld [vmem:[%s1 + $0x688] sm:$0xff]
    %v266 = vld [vmem:[%s1 + $0x690] sm:$0xff]
    %v267 = vld [vmem:[%s1 + $0x698] sm:$0xff]
    %v268 = vld [vmem:[%s1 + $0x6a0] sm:$0xff]
    %v269 = vld [vmem:[%s1 + $0x6a8] sm:$0xff]
    %v270 = vld [vmem:[%s1 + $0x6b0] sm:$0xff]
    %v271 = vld [vmem:[%s1 + $0x6b8] sm:$0xff]
    %v272 = vld [vmem:[%s1 + $0x6c0] sm:$0xff]
    %v273 = vld [vmem:[%s1 + $0x6c8] sm:$0xff]
    %v274 = vld [vmem:[%s1 + $0x6d0] sm:$0xff]
    %v275 = vld [vmem:[%s1 + $0x6d8] sm:$0xff]
    %v276 = vld [vmem:[%s1 + $0x6e0] sm:$0xff]
    %v277 = vld [vmem:[%s1 + $0x6e8] sm:$0xff]
    %v278 = vld [vmem:[%s1 + $0x6f0] sm:$0xff]
    %v279 = vld [vmem:[%s1 + $0x6f8] sm:$0xff]
    %v280 = vld [vmem:[%s1 + $0x700] sm:$0xff]
    %v281 = vld [vmem:[%s1 + $0x708] sm:$0xff]
    %v282 = vld [vmem:[%s1 + $0x710] sm:$0xff]
    %v283 = vld [vmem:[%s1 + $0x718] sm:$0xff]
    %v284 = vld [vmem:[%s1 + $0x720] sm:$0xff]
    %v285 = vld [vmem:[%s1 + $0x728] sm:$0xff]
    %v286 = vld [vmem:[%s1 + $0x730] sm:$0xff]
    %v287 = vld [vmem:[%s1 + $0x738] sm:$0xff]
    %v288 = vld [vmem:[%s1 + $0x740] sm:$0xff]
    %v289 = vld [vmem:[%s1 + $0x748] sm:$0xff]
    %v290 = vld [vmem:[%s1 + $0x750] sm:$0xff]
    %v291 = vld [vmem:[%s1 + $0x758] sm:$0xff]
    %v292 = vld [vmem:[%s1 + $0x760] sm:$0xff]
    %v293 = vld [vmem:[%s1 + $0x768] sm:$0xff]
    %v294 = vld [vmem:[%s1 + $0x770] sm:$0xff]
    %v295 = vld [vmem:[%s1 + $0x778] sm:$0xff]
    %v296 = vld [vmem:[%s1 + $0x780] sm:$0xff]
    %v297 = vld [vmem:[%s1 + $0x788] sm:$0xff]
    %v298 = vld [vmem:[%s1 + $0x790] sm:$0xff]
    %v299 = vld [vmem:[%s1 + $0x798] sm:$0xff]
    %v300 = vld [vmem:[%s1 + $0x7a0] sm:$0xff]
    %v301 = vld [vmem:[%s1 + $0x7a8] sm:$0xff]
    %v302 = vld [vmem:[%s1 + $0x7b0] sm:$0xff]
    %v303 = vld [vmem:[%s1 + $0x7b8] sm:$0xff]
    %v304 = vld [vmem:[%s1 + $0x7c0] sm:$0xff]
    %v305 = vld [vmem:[%s1 + $0x7c8] sm:$0xff]
    %v306 = vld [vmem:[%s1 + $0x7d0] sm:$0xff]
    %v307 = vld [vmem:[%s1 + $0x7d8] sm:$0xff]
    %v308 = vld [vmem:[%s1 + $0x7e0] sm:$0xff]
    %v309 = vld [vmem:[%s1 + $0x7e8] sm:$0xff]
    %v310 = vld [vmem:[%s1 + $0x7f0] sm:$0xff]
    %v311 = vld [vmem:[%s1 + $0x7f8] sm:$0xff]
    %v312 = vld [vmem:[%s1 + $0x800] sm:$0xff]
    %v313 = vld [vmem:[%s1 + $0x808] sm:$0xff]
    %v314 = vld [vmem:[%s1 + $0x810] sm:$0xff]
    %v315 = vld [vmem:[%s1 + $0x818] sm:$0xff]
    %v316 = vld [vmem:[%s1 + $0x820] sm:$0xff]
    %v317 = vld [vmem:[%s1 + $0x828] sm:$0xff]
    %v318 = vld [vmem:[%s1 + $0x830] sm:$0xff]
    %v319 = vld [vmem:[%s1 + $0x838] sm:$0xff]
    %v320 = vld [vmem:[%s1 + $0x840] sm:$0xff]
    %v321 = vld [vmem:[%s1 + $0x848] sm:$0xff]
    %v322 = vld [vmem:[%s1 + $0x850] sm:$0xff]
    %v323 = vld [vmem:[%s1 + $0x858] sm:$0xff]
    %v324 = vld [vmem:[%s1 + $0x860] sm:$0xff]
    %v325 = vld [vmem:[%s1 + $0x868] sm:$0xff]
    %v326 = vld [vmem:[%s1 + $0x870] sm:$0xff]
    %v327 = vld [vmem:[%s1 + $0x878] sm:$0xff]
    %v328 = vld [vmem:[%s1 + $0x880] sm:$0xff]
    %v329 = vld [vmem:[%s1 + $0x888] sm:$0xff]
    %v330 = vld [vmem:[%s1 + $0x890] sm:$0xff]
    %v331 = vld [vmem:[%s1 + $0x898] sm:$0xff]
    %v332 = vld [vmem:[%s1 + $0x8a0] sm:$0xff]
    %v333 = vld [vmem:[%s1 + $0x8a8] sm:$0xff]
    %v334 = vld [vmem:[%s1 + $0x8b0] sm:$0xff]
    %v335 = vld [vmem:[%s1 + $0x8b8] sm:$0xff]
    %v336 = vld [vmem:[%s1 + $0x8c0] sm:$0xff]
    %v337 = vld [vmem:[%s1 + $0x8c8] sm:$0xff]
    %v338 = vld [vmem:[%s1 + $0x8d0] sm:$0xff]
    %v339 = vld [vmem:[%s1 + $0x8d8] sm:$0xff]
    %v340 = vld [vmem:[%s1 + $0x8e0] sm:$0xff]
    %v341 = vld [vmem:[%s1 + $0x8e8] sm:$0xff]
    %v342 = vld [vmem:[%s1 + $0x8f0] sm:$0xff]
    %v343 = vld [vmem:[%s1 + $0x8f8] sm:$0xff]
    %v344 = vld [vmem:[%s1 + $0x900] sm:$0xff]
    %v345 = vld [vmem:[%s1 + $0x908] sm:$0xff]
    %v346 = vld [vmem:[%s1 + $0x910] sm:$0xff]
    %v347 = vld [vmem:[%s1 + $0x918] sm:$0xff]
    %v348 = vld [vmem:[%s1 + $0x920] sm:$0xff]
    %v349 = vld [vmem:[%s1 + $0x928] sm:$0xff]
    %v350 = vld [vmem:[%s1 + $0x930] sm:$0xff]
    %v351 = vld [vmem:[%s1 + $0x938] sm:$0xff]
    %v352 = vld [vmem:[%s1 + $0x940] sm:$0xff]
    %v353 = vld [vmem:[%s1 + $0x948] sm:$0xff]
    %v354 = vld [vmem:[%s1 + $0x950] sm:$0xff]
    %v355 = vld [vmem:[%s1 + $0x958] sm:$0xff]
    %v356 = vld [vmem:[%s1 + $0x960] sm:$0xff]
    %v357 = vld [vmem:[%s1 + $0x968] sm:$0xff]
    %v358 = vld [vmem:[%s1 + $0x970] sm:$0xff]
    %v359 = vld [vmem:[%s1 + $0x978] sm:$0xff]
    %v360 = vld [vmem:[%s1 + $0x980] sm:$0xff]
    %v361 = vld [vmem:[%s1 + $0x988] sm:$0xff]
    %v362 = vld [vmem:[%s1 + $0x990] sm:$0xff]
    %v363 = vld [vmem:[%s1 + $0x998] sm:$0xff]
    %v364 = vld [vmem:[%s1 + $0x9a0] sm:$0xff]
    %v365 = vld [vmem:[%s1 + $0x9a8] sm:$0xff]
    %v366 = vld [vmem:[%s1 + $0x9b0] sm:$0xff]
    %v367 = vld [vmem:[%s1 + $0x9b8] sm:$0xff]
    %v368 = vld [vmem:[%s1 + $0x9c0] sm:$0xff]
    %v369 = vld [vmem:[%s1 + $0x9c8] sm:$0xff]
    %v370 = vld [vmem:[%s1 + $0x9d0] sm:$0xff]
    %v371 = vld [vmem:[%s1 + $0x9d8] sm:$0xff]
    %v372 = vld [vmem:[%s1 + $0x9e0] sm:$0xff]
    %v373 = vld [vmem:[%s1 + $0x9e8] sm:$0xff]
    %v374 = vld [vmem:[%s1 + $0x9f0] sm:$0xff]
    %v375 = vld [vmem:[%s1 + $0x9f8] sm:$0xff]
    %v376 = vld [vmem:[%s1 + $0xa00] sm:$0xff]
    %v377 = vld [vmem:[%s1 + $0xa08] sm:$0xff]
    %v378 = vld [vmem:[%s1 + $0xa10] sm:$0xff]
    %v379 = vld [vmem:[%s1 + $0xa18] sm:$0xff]
    %v380 = vld [vmem:[%s1 + $0xa20] sm:$0xff]
    %v381 = vld [vmem:[%s1 + $0xa28] sm:$0xff]
    %v382 = vld [vmem:[%s1 + $0xa30] sm:$0xff]
    %v383 = vld [vmem:[%s1 + $0xa38] sm:$0xff]
    %v384 = vld [vmem:[%s1 + $0xa40] sm:$0xff]
    %v385 = vld [vmem:[%s1 + $0xa48] sm:$0xff]
    %v386 = vld [vmem:[%s1 + $0xa50] sm:$0xff]
    %v387 = vld [vmem:[%s1 + $0xa58] sm:$0xff]
    %v388 = vld [vmem:[%s1 + $0xa60] sm:$0xff]
    %v389 = vld [vmem:[%s1 + $0xa68] sm:$0xff]
    %v390 = vld [vmem:[%s1 + $0xa70] sm:$0xff]
    %v391 = vld [vmem:[%s1 + $0xa78] sm:$0xff]
    %v392 = vld [vmem:[%s1 + $0xa80] sm:$0xff]
    %v393 = vld [vmem:[%s1 + $0xa88] sm:$0xff]
    %v394 = vld [vmem:[%s1 + $0xa90] sm:$0xff]
    %v395 = vld [vmem:[%s1 + $0xa98] sm:$0xff]
    %v396 = vld [vmem:[%s1 + $0xaa0] sm:$0xff]
    %v397 = vld [vmem:[%s1 + $0xaa8] sm:$0xff]
    %v398 = vld [vmem:[%s1 + $0xab0] sm:$0xff]
    %v399 = vld [vmem:[%s1 + $0xab8] sm:$0xff]
    %v400 = vld [vmem:[%s1 + $0xac0] sm:$0xff]
    %v401 = vld [vmem:[%s1 + $0xac8] sm:$0xff]
    %v402 = vld [vmem:[%s1 + $0xad0] sm:$0xff]
    %v403 = vld [vmem:[%s1 + $0xad8] sm:$0xff]
    %v404 = vld [vmem:[%s1 + $0xae0] sm:$0xff]
    %v405 = vld [vmem:[%s1 + $0xae8] sm:$0xff]
    %v406 = vld [vmem:[%s1 + $0xaf0] sm:$0xff]
    %v407 = vld [vmem:[%s1 + $0xaf8] sm:$0xff]
    %v408 = vld [vmem:[%s1 + $0xb00] sm:$0xff]
    %v409 = vld [vmem:[%s1 + $0xb08] sm:$0xff]
    %v410 = vld [vmem:[%s1 + $0xb10] sm:$0xff]
    %v411 = vld [vmem:[%s1 + $0xb18] sm:$0xff]
    %v412 = vld [vmem:[%s1 + $0xb20] sm:$0xff]
    %v413 = vld [vmem:[%s1 + $0xb28] sm:$0xff]
    %v414 = vld [vmem:[%s1 + $0xb30] sm:$0xff]
    %v415 = vld [vmem:[%s1 + $0xb38] sm:$0xff]
    %v416 = vld [vmem:[%s1 + $0xb40] sm:$0xff]
    %v417 = vld [vmem:[%s1 + $0xb48] sm:$0xff]
    %v418 = vld [vmem:[%s1 + $0xb50] sm:$0xff]
    %v419 = vld [vmem:[%s1 + $0xb58] sm:$0xff]
    %v420 = vld [vmem:[%s1 + $0xb60] sm:$0xff]
    %v421 = vld [vmem:[%s1 + $0xb68] sm:$0xff]
    %v422 = vld [vmem:[%s1 + $0xb70] sm:$0xff]
    %v423 = vld [vmem:[%s1 + $0xb78] sm:$0xff]
    %v424 = vld [vmem:[%s1 + $0xb80] sm:$0xff]
    %v425 = vld [vmem:[%s1 + $0xb88] sm:$0xff]
    %v426 = vld [vmem:[%s1 + $0xb90] sm:$0xff]
    %v427 = vld [vmem:[%s1 + $0xb98] sm:$0xff]
    %v428 = vld [vmem:[%s1 + $0xba0] sm:$0xff]
    %v429 = vld [vmem:[%s1 + $0xba8] sm:$0xff]
    %v430 = vld [vmem:[%s1 + $0xbb0] sm:$0xff]
    %v431 = vld [vmem:[%s1 + $0xbb8] sm:$0xff]
    %v432 = vld [vmem:[%s1 + $0xbc0] sm:$0xff]
    %v433 = vld [vmem:[%s1 + $0xbc8] sm:$0xff]
    %v434 = vld [vmem:[%s1 + $0xbd0] sm:$0xff]
    %v435 = vld [vmem:[%s1 + $0xbd8] sm:$0xff]
    %v436 = vld [vmem:[%s1 + $0xbe0] sm:$0xff]
    %v437 = vld [vmem:[%s1 + $0xbe8] sm:$0xff]
    %v438 = vld [vmem:[%s1 + $0xbf0] sm:$0xff]
    %v439 = vld [vmem:[%s1 + $0xbf8] sm:$0xff]
    %v440 = vld [vmem:[%s1 + $0xc00] sm:$0xff]
    %v441 = vld [vmem:[%s1 + $0xc08] sm:$0xff]
    %v442 = vld [vmem:[%s1 + $0xc10] sm:$0xff]
    %v443 = vld [vmem:[%s1 + $0xc18] sm:$0xff]
    %v444 = vld [vmem:[%s1 + $0xc20] sm:$0xff]
    %v445 = vld [vmem:[%s1 + $0xc28] sm:$0xff]
    %v446 = vld [vmem:[%s1 + $0xc30] sm:$0xff]
    %v447 = vld [vmem:[%s1 + $0xc38] sm:$0xff]
    %v448 = vld [vmem:[%s1 + $0xc40] sm:$0xff]
    %v449 = vld [vmem:[%s1 + $0xc48] sm:$0xff]
    %v450 = vld [vmem:[%s1 + $0xc50] sm:$0xff]
    %v451 = vld [vmem:[%s1 + $0xc58] sm:$0xff]
    %v452 = vld [vmem:[%s1 + $0xc60] sm:$0xff]
    %v453 = vld [vmem:[%s1 + $0xc68] sm:$0xff]
    %v454 = vld [vmem:[%s1 + $0xc70] sm:$0xff]
    %v455 = vld [vmem:[%s1 + $0xc78] sm:$0xff]
    %v456 = vld [vmem:[%s1 + $0xc80] sm:$0xff]
    %v457 = vld [vmem:[%s1 + $0xc88] sm:$0xff]
    %v458 = vld [vmem:[%s1 + $0xc90] sm:$0xff]
    %v459 = vld [vmem:[%s1 + $0xc98] sm:$0xff]
    %v460 = vld [vmem:[%s1 + $0xca0] sm:$0xff]
    %v461 = vld [vmem:[%s1 + $0xca8] sm:$0xff]
    %v462 = vld [vmem:[%s1 + $0xcb0] sm:$0xff]
    %v463 = vld [vmem:[%s1 + $0xcb8] sm:$0xff]
    %v464 = vld [vmem:[%s1 + $0xcc0] sm:$0xff]
    %v465 = vld [vmem:[%s1 + $0xcc8] sm:$0xff]
    %v466 = vld [vmem:[%s1 + $0xcd0] sm:$0xff]
    %v467 = vld [vmem:[%s1 + $0xcd8] sm:$0xff]
    %v468 = vld [vmem:[%s1 + $0xce0] sm:$0xff]
    %v469 = vld [vmem:[%s1 + $0xce8] sm:$0xff]
    %v470 = vld [vmem:[%s1 + $0xcf0] sm:$0xff]
    %v471 = vld [vmem:[%s1 + $0xcf8] sm:$0xff]
    %v472 = vld [vmem:[%s1 + $0xd00] sm:$0xff]
    %v473 = vld [vmem:[%s1 + $0xd08] sm:$0xff]
    %v474 = vld [vmem:[%s1 + $0xd10] sm:$0xff]
    %v475 = vld [vmem:[%s1 + $0xd18] sm:$0xff]
    %v476 = vld [vmem:[%s1 + $0xd20] sm:$0xff]
    %v477 = vld [vmem:[%s1 + $0xd28] sm:$0xff]
    %v478 = vld [vmem:[%s1 + $0xd30] sm:$0xff]
    %v479 = vld [vmem:[%s1 + $0xd38] sm:$0xff]
    %v480 = vld [vmem:[%s1 + $0xd40] sm:$0xff]
    %v481 = vld [vmem:[%s1 + $0xd48] sm:$0xff]
    %v482 = vld [vmem:[%s1 + $0xd50] sm:$0xff]
    %v483 = vld [vmem:[%s1 + $0xd58] sm:$0xff]
    %v484 = vld [vmem:[%s1 + $0xd60] sm:$0xff]
    %v485 = vld [vmem:[%s1 + $0xd68] sm:$0xff]
    %v486 = vld [vmem:[%s1 + $0xd70] sm:$0xff]
    %v487 = vld [vmem:[%s1 + $0xd78] sm:$0xff]
    %v488 = vld [vmem:[%s1 + $0xd80] sm:$0xff]
    %v489 = vld [vmem:[%s1 + $0xd88] sm:$0xff]
    %v490 = vld [vmem:[%s1 + $0xd90] sm:$0xff]
    %v491 = vld [vmem:[%s1 + $0xd98] sm:$0xff]
    %v492 = vld [vmem:[%s1 + $0xda0] sm:$0xff]
    %v493 = vld [vmem:[%s1 + $0xda8] sm:$0xff]
    %v494 = vld [vmem:[%s1 + $0xdb0] sm:$0xff]
    %v495 = vld [vmem:[%s1 + $0xdb8] sm:$0xff]
    %v496 = vld [vmem:[%s1 + $0xdc0] sm:$0xff]
    %v497 = vld [vmem:[%s1 + $0xdc8] sm:$0xff]
    %v498 = vld [vmem:[%s1 + $0xdd0] sm:$0xff]
    %v499 = vld [vmem:[%s1 + $0xdd8] sm:$0xff]
    %v500 = vld [vmem:[%s1 + $0xde0] sm:$0xff]
    %v501 = vld [vmem:[%s1 + $0xde8] sm:$0xff]
    %v502 = vld [vmem:[%s1 + $0xdf0] sm:$0xff]
    %v503 = vld [vmem:[%s1 + $0xdf8] sm:$0xff]
    %v504 = vld [vmem:[%s1 + $0xe00] sm:$0xff]
    %v505 = vld [vmem:[%s1 + $0xe08] sm:$0xff]
    %v506 = vld [vmem:[%s1 + $0xe10] sm:$0xff]
    %v507 = vld [vmem:[%s1 + $0xe18] sm:$0xff]
    %v508 = vld [vmem:[%s1 + $0xe20] sm:$0xff]
    %v509 = vld [vmem:[%s1 + $0xe28] sm:$0xff]
    %v510 = vld [vmem:[%s1 + $0xe30] sm:$0xff]
    %v511 = vld [vmem:[%s1 + $0xe38] sm:$0xff]
    %v512 = vld [vmem:[%s1 + $0xe40] sm:$0xff]
    %v513 = vld [vmem:[%s1 + $0xe48] sm:$0xff]
    %v514 = vld [vmem:[%s1 + $0xe50] sm:$0xff]
    %v515 = vld [vmem:[%s1 + $0xe58] sm:$0xff]
    %v516 = vld [vmem:[%s1 + $0xe60] sm:$0xff]
    %v517 = vld [vmem:[%s1 + $0xe68] sm:$0xff]
    %v518 = vld [vmem:[%s1 + $0xe70] sm:$0xff]
    %v519 = vld [vmem:[%s1 + $0xe78] sm:$0xff]
    %v520 = vld [vmem:[%s1 + $0xe80] sm:$0xff]
    %v521 = vld [vmem:[%s1 + $0xe88] sm:$0xff]
    %v522 = vld [vmem:[%s1 + $0xe90] sm:$0xff]
    %v523 = vld [vmem:[%s1 + $0xe98] sm:$0xff]
    %v524 = vld [vmem:[%s1 + $0xea0] sm:$0xff]
    %v525 = vld [vmem:[%s1 + $0xea8] sm:$0xff]
    %v526 = vld [vmem:[%s1 + $0xeb0] sm:$0xff]
    %v527 = vld [vmem:[%s1 + $0xeb8] sm:$0xff]
    %v528 = vld [vmem:[%s1 + $0xec0] sm:$0xff]
    %v529 = vld [vmem:[%s1 + $0xec8] sm:$0xff]
    %v530 = vld [vmem:[%s1 + $0xed0] sm:$0xff]
    %v531 = vld [vmem:[%s1 + $0xed8] sm:$0xff]
    %v532 = vld [vmem:[%s1 + $0xee0] sm:$0xff]
    %v533 = vld [vmem:[%s1 + $0xee8] sm:$0xff]
    %v534 = vld [vmem:[%s1 + $0xef0] sm:$0xff]
    %v535 = vld [vmem:[%s1 + $0xef8] sm:$0xff]
    %v536 = vld [vmem:[%s1 + $0xf00] sm:$0xff]
    %v537 = vld [vmem:[%s1 + $0xf08] sm:$0xff]
    %v538 = vld [vmem:[%s1 + $0xf10] sm:$0xff]
    %v539 = vld [vmem:[%s1 + $0xf18] sm:$0xff]
    %v540 = vld [vmem:[%s1 + $0xf20] sm:$0xff]
    %v541 = vld [vmem:[%s1 + $0xf28] sm:$0xff]
    %v542 = vld [vmem:[%s1 + $0xf30] sm:$0xff]
    %v543 = vld [vmem:[%s1 + $0xf38] sm:$0xff]
    %v544 = vld [vmem:[%s1 + $0xf40] sm:$0xff]
    %v545 = vld [vmem:[%s1 + $0xf48] sm:$0xff]
    %v546 = vld [vmem:[%s1 + $0xf50] sm:$0xff]
    %v547 = vld [vmem:[%s1 + $0xf58] sm:$0xff]
    %v548 = vld [vmem:[%s1 + $0xf60] sm:$0xff]
    %v549 = vld [vmem:[%s1 + $0xf68] sm:$0xff]
    %v550 = vld [vmem:[%s1 + $0xf70] sm:$0xff]
    %v551 = vld [vmem:[%s1 + $0xf78] sm:$0xff]
    %v552 = vld [vmem:[%s1 + $0xf80] sm:$0xff]
    %v553 = vld [vmem:[%s1 + $0xf88] sm:$0xff]
    %v554 = vld [vmem:[%s1 + $0xf90] sm:$0xff]
    %v555 = vld [vmem:[%s1 + $0xf98] sm:$0xff]
    %v556 = vld [vmem:[%s1 + $0xfa0] sm:$0xff]
    %v557 = vld [vmem:[%s1 + $0xfa8] sm:$0xff]
    %v558 = vld [vmem:[%s1 + $0xfb0] sm:$0xff]
    %v559 = vld [vmem:[%s1 + $0xfb8] sm:$0xff]
    %v560 = vld [vmem:[%s1 + $0xfc0] sm:$0xff]
    %v561 = vld [vmem:[%s1 + $0xfc8] sm:$0xff]
    %v562 = vld [vmem:[%s1 + $0xfd0] sm:$0xff]
    %v563 = vld [vmem:[%s1 + $0xfd8] sm:$0xff]
    %v564 = vld [vmem:[%s1 + $0xfe0] sm:$0xff]
    %v565 = vld [vmem:[%s1 + $0xfe8] sm:$0xff]
    %v566 = vld [vmem:[%s1 + $0xff0] sm:$0xff]
    %v567 = vld [vmem:[%s1 + $0xff8] sm:$0xff]
    %v1080 = vunpack.c.l.b16 %v56
    %v1081 = vunpack.c.h.b16 %v56
    %v1082 = vunpack.c.l.b16 %v57
    %v1083 = vunpack.c.h.b16 %v57
    %v1084 = vunpack.c.l.b16 %v58
    %v1085 = vunpack.c.h.b16 %v58
    %v1086 = vunpack.c.l.b16 %v59
    %v1087 = vunpack.c.h.b16 %v59
    %v1088 = vunpack.c.l.b16 %v60
    %v1089 = vunpack.c.h.b16 %v60
    %v1090 = vunpack.c.l.b16 %v61
    %v1091 = vunpack.c.h.b16 %v61
    %v1092 = vunpack.c.l.b16 %v62
    %v1093 = vunpack.c.h.b16 %v62
    %v1094 = vunpack.c.l.b16 %v63
    %v1095 = vunpack.c.h.b16 %v63
    %v1096 = vunpack.c.l.b16 %v64
    %v1097 = vunpack.c.h.b16 %v64
    %v1098 = vunpack.c.l.b16 %v65
    %v1099 = vunpack.c.h.b16 %v65
    %v1100 = vunpack.c.l.b16 %v66
    %v1101 = vunpack.c.h.b16 %v66
    %v1102 = vunpack.c.l.b16 %v67
    %v1103 = vunpack.c.h.b16 %v67
    %v1104 = vunpack.c.l.b16 %v68
    %v1105 = vunpack.c.h.b16 %v68
    %v1106 = vunpack.c.l.b16 %v69
    %v1107 = vunpack.c.h.b16 %v69
    %v1108 = vunpack.c.l.b16 %v70
    %v1109 = vunpack.c.h.b16 %v70
    %v1110 = vunpack.c.l.b16 %v71
    %v1111 = vunpack.c.h.b16 %v71
    %v1112 = vunpack.c.l.b16 %v72
    %v1113 = vunpack.c.h.b16 %v72
    %v1114 = vunpack.c.l.b16 %v73
    %v1115 = vunpack.c.h.b16 %v73
    %v1116 = vunpack.c.l.b16 %v74
    %v1117 = vunpack.c.h.b16 %v74
    %v1118 = vunpack.c.l.b16 %v75
    %v1119 = vunpack.c.h.b16 %v75
    %v1120 = vunpack.c.l.b16 %v76
    %v1121 = vunpack.c.h.b16 %v76
    %v1122 = vunpack.c.l.b16 %v77
    %v1123 = vunpack.c.h.b16 %v77
    %v1124 = vunpack.c.l.b16 %v78
    %v1125 = vunpack.c.h.b16 %v78
    %v1126 = vunpack.c.l.b16 %v79
    %v1127 = vunpack.c.h.b16 %v79
    %v1128 = vunpack.c.l.b16 %v80
    %v1129 = vunpack.c.h.b16 %v80
    %v1130 = vunpack.c.l.b16 %v81
    %v1131 = vunpack.c.h.b16 %v81
    %v1132 = vunpack.c.l.b16 %v82
    %v1133 = vunpack.c.h.b16 %v82
    %v1134 = vunpack.c.l.b16 %v83
    %v1135 = vunpack.c.h.b16 %v83
    %v1136 = vunpack.c.l.b16 %v84
    %v1137 = vunpack.c.h.b16 %v84
    %v1138 = vunpack.c.l.b16 %v85
    %v1139 = vunpack.c.h.b16 %v85
    %v1140 = vunpack.c.l.b16 %v86
    %v1141 = vunpack.c.h.b16 %v86
    %v1142 = vunpack.c.l.b16 %v87
    %v1143 = vunpack.c.h.b16 %v87
    %v1144 = vunpack.c.l.b16 %v88
    %v1145 = vunpack.c.h.b16 %v88
    %v1146 = vunpack.c.l.b16 %v89
    %v1147 = vunpack.c.h.b16 %v89
    %v1148 = vunpack.c.l.b16 %v90
    %v1149 = vunpack.c.h.b16 %v90
    %v1150 = vunpack.c.l.b16 %v91
    %v1151 = vunpack.c.h.b16 %v91
    %v1152 = vunpack.c.l.b16 %v92
    %v1153 = vunpack.c.h.b16 %v92
    %v1154 = vunpack.c.l.b16 %v93
    %v1155 = vunpack.c.h.b16 %v93
    %v1156 = vunpack.c.l.b16 %v94
    %v1157 = vunpack.c.h.b16 %v94
    %v1158 = vunpack.c.l.b16 %v95
    %v1159 = vunpack.c.h.b16 %v95
    %v1160 = vunpack.c.l.b16 %v96
    %v1161 = vunpack.c.h.b16 %v96
    %v1162 = vunpack.c.l.b16 %v97
    %v1163 = vunpack.c.h.b16 %v97
    %v1164 = vunpack.c.l.b16 %v98
    %v1165 = vunpack.c.h.b16 %v98
    %v1166 = vunpack.c.l.b16 %v99
    %v1167 = vunpack.c.h.b16 %v99
    %v1168 = vunpack.c.l.b16 %v100
    %v1169 = vunpack.c.h.b16 %v100
    %v1170 = vunpack.c.l.b16 %v101
    %v1171 = vunpack.c.h.b16 %v101
    %v1172 = vunpack.c.l.b16 %v102
    %v1173 = vunpack.c.h.b16 %v102
    %v1174 = vunpack.c.l.b16 %v103
    %v1175 = vunpack.c.h.b16 %v103
    %v1176 = vunpack.c.l.b16 %v104
    %v1177 = vunpack.c.h.b16 %v104
    %v1178 = vunpack.c.l.b16 %v105
    %v1179 = vunpack.c.h.b16 %v105
    %v1180 = vunpack.c.l.b16 %v106
    %v1181 = vunpack.c.h.b16 %v106
    %v1182 = vunpack.c.l.b16 %v107
    %v1183 = vunpack.c.h.b16 %v107
    %v1184 = vunpack.c.l.b16 %v108
    %v1185 = vunpack.c.h.b16 %v108
    %v1186 = vunpack.c.l.b16 %v109
    %v1187 = vunpack.c.h.b16 %v109
    %v1188 = vunpack.c.l.b16 %v110
    %v1189 = vunpack.c.h.b16 %v110
    %v1190 = vunpack.c.l.b16 %v111
    %v1191 = vunpack.c.h.b16 %v111
    %v1192 = vunpack.c.l.b16 %v112
    %v1193 = vunpack.c.h.b16 %v112
    %v1194 = vunpack.c.l.b16 %v113
    %v1195 = vunpack.c.h.b16 %v113
    %v1196 = vunpack.c.l.b16 %v114
    %v1197 = vunpack.c.h.b16 %v114
    %v1198 = vunpack.c.l.b16 %v115
    %v1199 = vunpack.c.h.b16 %v115
    %v1200 = vunpack.c.l.b16 %v116
    %v1201 = vunpack.c.h.b16 %v116
    %v1202 = vunpack.c.l.b16 %v117
    %v1203 = vunpack.c.h.b16 %v117
    %v1204 = vunpack.c.l.b16 %v118
    %v1205 = vunpack.c.h.b16 %v118
    %v1206 = vunpack.c.l.b16 %v119
    %v1207 = vunpack.c.h.b16 %v119
    %v1208 = vunpack.c.l.b16 %v120
    %v1209 = vunpack.c.h.b16 %v120
    %v1210 = vunpack.c.l.b16 %v121
    %v1211 = vunpack.c.h.b16 %v121
    %v1212 = vunpack.c.l.b16 %v122
    %v1213 = vunpack.c.h.b16 %v122
    %v1214 = vunpack.c.l.b16 %v123
    %v1215 = vunpack.c.h.b16 %v123
    %v1216 = vunpack.c.l.b16 %v124
    %v1217 = vunpack.c.h.b16 %v124
    %v1218 = vunpack.c.l.b16 %v125
    %v1219 = vunpack.c.h.b16 %v125
    %v1220 = vunpack.c.l.b16 %v126
    %v1221 = vunpack.c.h.b16 %v126
    %v1222 = vunpack.c.l.b16 %v127
    %v1223 = vunpack.c.h.b16 %v127
    %v1224 = vunpack.c.l.b16 %v128
    %v1225 = vunpack.c.h.b16 %v128
    %v1226 = vunpack.c.l.b16 %v129
    %v1227 = vunpack.c.h.b16 %v129
    %v1228 = vunpack.c.l.b16 %v130
    %v1229 = vunpack.c.h.b16 %v130
    %v1230 = vunpack.c.l.b16 %v131
    %v1231 = vunpack.c.h.b16 %v131
    %v1232 = vunpack.c.l.b16 %v132
    %v1233 = vunpack.c.h.b16 %v132
    %v1234 = vunpack.c.l.b16 %v133
    %v1235 = vunpack.c.h.b16 %v133
    %v1236 = vunpack.c.l.b16 %v134
    %v1237 = vunpack.c.h.b16 %v134
    %v1238 = vunpack.c.l.b16 %v135
    %v1239 = vunpack.c.h.b16 %v135
    %v1240 = vunpack.c.l.b16 %v136
    %v1241 = vunpack.c.h.b16 %v136
    %v1242 = vunpack.c.l.b16 %v137
    %v1243 = vunpack.c.h.b16 %v137
    %v1244 = vunpack.c.l.b16 %v138
    %v1245 = vunpack.c.h.b16 %v138
    %v1246 = vunpack.c.l.b16 %v139
    %v1247 = vunpack.c.h.b16 %v139
    %v1248 = vunpack.c.l.b16 %v140
    %v1249 = vunpack.c.h.b16 %v140
    %v1250 = vunpack.c.l.b16 %v141
    %v1251 = vunpack.c.h.b16 %v141
    %v1252 = vunpack.c.l.b16 %v142
    %v1253 = vunpack.c.h.b16 %v142
    %v1254 = vunpack.c.l.b16 %v143
    %v1255 = vunpack.c.h.b16 %v143
    %v1256 = vunpack.c.l.b16 %v144
    %v1257 = vunpack.c.h.b16 %v144
    %v1258 = vunpack.c.l.b16 %v145
    %v1259 = vunpack.c.h.b16 %v145
    %v1260 = vunpack.c.l.b16 %v146
    %v1261 = vunpack.c.h.b16 %v146
    %v1262 = vunpack.c.l.b16 %v147
    %v1263 = vunpack.c.h.b16 %v147
    %v1264 = vunpack.c.l.b16 %v148
    %v1265 = vunpack.c.h.b16 %v148
    %v1266 = vunpack.c.l.b16 %v149
    %v1267 = vunpack.c.h.b16 %v149
    %v1268 = vunpack.c.l.b16 %v150
    %v1269 = vunpack.c.h.b16 %v150
    %v1270 = vunpack.c.l.b16 %v151
    %v1271 = vunpack.c.h.b16 %v151
    %v1272 = vunpack.c.l.b16 %v152
    %v1273 = vunpack.c.h.b16 %v152
    %v1274 = vunpack.c.l.b16 %v153
    %v1275 = vunpack.c.h.b16 %v153
    %v1276 = vunpack.c.l.b16 %v154
    %v1277 = vunpack.c.h.b16 %v154
    %v1278 = vunpack.c.l.b16 %v155
    %v1279 = vunpack.c.h.b16 %v155
    %v1280 = vunpack.c.l.b16 %v156
    %v1281 = vunpack.c.h.b16 %v156
    %v1282 = vunpack.c.l.b16 %v157
    %v1283 = vunpack.c.h.b16 %v157
    %v1284 = vunpack.c.l.b16 %v158
    %v1285 = vunpack.c.h.b16 %v158
    %v1286 = vunpack.c.l.b16 %v159
    %v1287 = vunpack.c.h.b16 %v159
    %v1288 = vunpack.c.l.b16 %v160
    %v1289 = vunpack.c.h.b16 %v160
    %v1290 = vunpack.c.l.b16 %v161
    %v1291 = vunpack.c.h.b16 %v161
    %v1292 = vunpack.c.l.b16 %v162
    %v1293 = vunpack.c.h.b16 %v162
    %v1294 = vunpack.c.l.b16 %v163
    %v1295 = vunpack.c.h.b16 %v163
    %v1296 = vunpack.c.l.b16 %v164
    %v1297 = vunpack.c.h.b16 %v164
    %v1298 = vunpack.c.l.b16 %v165
    %v1299 = vunpack.c.h.b16 %v165
    %v1300 = vunpack.c.l.b16 %v166
    %v1301 = vunpack.c.h.b16 %v166
    %v1302 = vunpack.c.l.b16 %v167
    %v1303 = vunpack.c.h.b16 %v167
    %v1304 = vunpack.c.l.b16 %v168
    %v1305 = vunpack.c.h.b16 %v168
    %v1306 = vunpack.c.l.b16 %v169
    %v1307 = vunpack.c.h.b16 %v169
    %v1308 = vunpack.c.l.b16 %v170
    %v1309 = vunpack.c.h.b16 %v170
    %v1310 = vunpack.c.l.b16 %v171
    %v1311 = vunpack.c.h.b16 %v171
    %v1312 = vunpack.c.l.b16 %v172
    %v1313 = vunpack.c.h.b16 %v172
    %v1314 = vunpack.c.l.b16 %v173
    %v1315 = vunpack.c.h.b16 %v173
    %v1316 = vunpack.c.l.b16 %v174
    %v1317 = vunpack.c.h.b16 %v174
    %v1318 = vunpack.c.l.b16 %v175
    %v1319 = vunpack.c.h.b16 %v175
    %v1320 = vunpack.c.l.b16 %v176
    %v1321 = vunpack.c.h.b16 %v176
    %v1322 = vunpack.c.l.b16 %v177
    %v1323 = vunpack.c.h.b16 %v177
    %v1324 = vunpack.c.l.b16 %v178
    %v1325 = vunpack.c.h.b16 %v178
    %v1326 = vunpack.c.l.b16 %v179
    %v1327 = vunpack.c.h.b16 %v179
    %v1328 = vunpack.c.l.b16 %v180
    %v1329 = vunpack.c.h.b16 %v180
    %v1330 = vunpack.c.l.b16 %v181
    %v1331 = vunpack.c.h.b16 %v181
    %v1332 = vunpack.c.l.b16 %v182
    %v1333 = vunpack.c.h.b16 %v182
    %v1334 = vunpack.c.l.b16 %v183
    %v1335 = vunpack.c.h.b16 %v183
    %v1336 = vunpack.c.l.b16 %v184
    %v1337 = vunpack.c.h.b16 %v184
    %v1338 = vunpack.c.l.b16 %v185
    %v1339 = vunpack.c.h.b16 %v185
    %v1340 = vunpack.c.l.b16 %v186
    %v1341 = vunpack.c.h.b16 %v186
    %v1342 = vunpack.c.l.b16 %v187
    %v1343 = vunpack.c.h.b16 %v187
    %v1344 = vunpack.c.l.b16 %v188
    %v1345 = vunpack.c.h.b16 %v188
    %v1346 = vunpack.c.l.b16 %v189
    %v1347 = vunpack.c.h.b16 %v189
    %v1348 = vunpack.c.l.b16 %v190
    %v1349 = vunpack.c.h.b16 %v190
    %v1350 = vunpack.c.l.b16 %v191
    %v1351 = vunpack.c.h.b16 %v191
    %v1352 = vunpack.c.l.b16 %v192
    %v1353 = vunpack.c.h.b16 %v192
    %v1354 = vunpack.c.l.b16 %v193
    %v1355 = vunpack.c.h.b16 %v193
    %v1356 = vunpack.c.l.b16 %v194
    %v1357 = vunpack.c.h.b16 %v194
    %v1358 = vunpack.c.l.b16 %v195
    %v1359 = vunpack.c.h.b16 %v195
    %v1360 = vunpack.c.l.b16 %v196
    %v1361 = vunpack.c.h.b16 %v196
    %v1362 = vunpack.c.l.b16 %v197
    %v1363 = vunpack.c.h.b16 %v197
    %v1364 = vunpack.c.l.b16 %v198
    %v1365 = vunpack.c.h.b16 %v198
    %v1366 = vunpack.c.l.b16 %v199
    %v1367 = vunpack.c.h.b16 %v199
    %v1368 = vunpack.c.l.b16 %v200
    %v1369 = vunpack.c.h.b16 %v200
    %v1370 = vunpack.c.l.b16 %v201
    %v1371 = vunpack.c.h.b16 %v201
    %v1372 = vunpack.c.l.b16 %v202
    %v1373 = vunpack.c.h.b16 %v202
    %v1374 = vunpack.c.l.b16 %v203
    %v1375 = vunpack.c.h.b16 %v203
    %v1376 = vunpack.c.l.b16 %v204
    %v1377 = vunpack.c.h.b16 %v204
    %v1378 = vunpack.c.l.b16 %v205
    %v1379 = vunpack.c.h.b16 %v205
    %v1380 = vunpack.c.l.b16 %v206
    %v1381 = vunpack.c.h.b16 %v206
    %v1382 = vunpack.c.l.b16 %v207
    %v1383 = vunpack.c.h.b16 %v207
    %v1384 = vunpack.c.l.b16 %v208
    %v1385 = vunpack.c.h.b16 %v208
    %v1386 = vunpack.c.l.b16 %v209
    %v1387 = vunpack.c.h.b16 %v209
    %v1388 = vunpack.c.l.b16 %v210
    %v1389 = vunpack.c.h.b16 %v210
    %v1390 = vunpack.c.l.b16 %v211
    %v1391 = vunpack.c.h.b16 %v211
    %v1392 = vunpack.c.l.b16 %v212
    %v1393 = vunpack.c.h.b16 %v212
    %v1394 = vunpack.c.l.b16 %v213
    %v1395 = vunpack.c.h.b16 %v213
    %v1396 = vunpack.c.l.b16 %v214
    %v1397 = vunpack.c.h.b16 %v214
    %v1398 = vunpack.c.l.b16 %v215
    %v1399 = vunpack.c.h.b16 %v215
    %v1400 = vunpack.c.l.b16 %v216
    %v1401 = vunpack.c.h.b16 %v216
    %v1402 = vunpack.c.l.b16 %v217
    %v1403 = vunpack.c.h.b16 %v217
    %v1404 = vunpack.c.l.b16 %v218
    %v1405 = vunpack.c.h.b16 %v218
    %v1406 = vunpack.c.l.b16 %v219
    %v1407 = vunpack.c.h.b16 %v219
    %v1408 = vunpack.c.l.b16 %v220
    %v1409 = vunpack.c.h.b16 %v220
    %v1410 = vunpack.c.l.b16 %v221
    %v1411 = vunpack.c.h.b16 %v221
    %v1412 = vunpack.c.l.b16 %v222
    %v1413 = vunpack.c.h.b16 %v222
    %v1414 = vunpack.c.l.b16 %v223
    %v1415 = vunpack.c.h.b16 %v223
    %v1416 = vunpack.c.l.b16 %v224
    %v1417 = vunpack.c.h.b16 %v224
    %v1418 = vunpack.c.l.b16 %v225
    %v1419 = vunpack.c.h.b16 %v225
    %v1420 = vunpack.c.l.b16 %v226
    %v1421 = vunpack.c.h.b16 %v226
    %v1422 = vunpack.c.l.b16 %v227
    %v1423 = vunpack.c.h.b16 %v227
    %v1424 = vunpack.c.l.b16 %v228
    %v1425 = vunpack.c.h.b16 %v228
    %v1426 = vunpack.c.l.b16 %v229
    %v1427 = vunpack.c.h.b16 %v229
    %v1428 = vunpack.c.l.b16 %v230
    %v1429 = vunpack.c.h.b16 %v230
    %v1430 = vunpack.c.l.b16 %v231
    %v1431 = vunpack.c.h.b16 %v231
    %v1432 = vunpack.c.l.b16 %v232
    %v1433 = vunpack.c.h.b16 %v232
    %v1434 = vunpack.c.l.b16 %v233
    %v1435 = vunpack.c.h.b16 %v233
    %v1436 = vunpack.c.l.b16 %v234
    %v1437 = vunpack.c.h.b16 %v234
    %v1438 = vunpack.c.l.b16 %v235
    %v1439 = vunpack.c.h.b16 %v235
    %v1440 = vunpack.c.l.b16 %v236
    %v1441 = vunpack.c.h.b16 %v236
    %v1442 = vunpack.c.l.b16 %v237
    %v1443 = vunpack.c.h.b16 %v237
    %v1444 = vunpack.c.l.b16 %v238
    %v1445 = vunpack.c.h.b16 %v238
    %v1446 = vunpack.c.l.b16 %v239
    %v1447 = vunpack.c.h.b16 %v239
    %v1448 = vunpack.c.l.b16 %v240
    %v1449 = vunpack.c.h.b16 %v240
    %v1450 = vunpack.c.l.b16 %v241
    %v1451 = vunpack.c.h.b16 %v241
    %v1452 = vunpack.c.l.b16 %v242
    %v1453 = vunpack.c.h.b16 %v242
    %v1454 = vunpack.c.l.b16 %v243
    %v1455 = vunpack.c.h.b16 %v243
    %v1456 = vunpack.c.l.b16 %v244
    %v1457 = vunpack.c.h.b16 %v244
    %v1458 = vunpack.c.l.b16 %v245
    %v1459 = vunpack.c.h.b16 %v245
    %v1460 = vunpack.c.l.b16 %v246
    %v1461 = vunpack.c.h.b16 %v246
    %v1462 = vunpack.c.l.b16 %v247
    %v1463 = vunpack.c.h.b16 %v247
    %v1464 = vunpack.c.l.b16 %v248
    %v1465 = vunpack.c.h.b16 %v248
    %v1466 = vunpack.c.l.b16 %v249
    %v1467 = vunpack.c.h.b16 %v249
    %v1468 = vunpack.c.l.b16 %v250
    %v1469 = vunpack.c.h.b16 %v250
    %v1470 = vunpack.c.l.b16 %v251
    %v1471 = vunpack.c.h.b16 %v251
    %v1472 = vunpack.c.l.b16 %v252
    %v1473 = vunpack.c.h.b16 %v252
    %v1474 = vunpack.c.l.b16 %v253
    %v1475 = vunpack.c.h.b16 %v253
    %v1476 = vunpack.c.l.b16 %v254
    %v1477 = vunpack.c.h.b16 %v254
    %v1478 = vunpack.c.l.b16 %v255
    %v1479 = vunpack.c.h.b16 %v255
    %v1480 = vunpack.c.l.b16 %v256
    %v1481 = vunpack.c.h.b16 %v256
    %v1482 = vunpack.c.l.b16 %v257
    %v1483 = vunpack.c.h.b16 %v257
    %v1484 = vunpack.c.l.b16 %v258
    %v1485 = vunpack.c.h.b16 %v258
    %v1486 = vunpack.c.l.b16 %v259
    %v1487 = vunpack.c.h.b16 %v259
    %v1488 = vunpack.c.l.b16 %v260
    %v1489 = vunpack.c.h.b16 %v260
    %v1490 = vunpack.c.l.b16 %v261
    %v1491 = vunpack.c.h.b16 %v261
    %v1492 = vunpack.c.l.b16 %v262
    %v1493 = vunpack.c.h.b16 %v262
    %v1494 = vunpack.c.l.b16 %v263
    %v1495 = vunpack.c.h.b16 %v263
    %v1496 = vunpack.c.l.b16 %v264
    %v1497 = vunpack.c.h.b16 %v264
    %v1498 = vunpack.c.l.b16 %v265
    %v1499 = vunpack.c.h.b16 %v265
    %v1500 = vunpack.c.l.b16 %v266
    %v1501 = vunpack.c.h.b16 %v266
    %v1502 = vunpack.c.l.b16 %v267
    %v1503 = vunpack.c.h.b16 %v267
    %v1504 = vunpack.c.l.b16 %v268
    %v1505 = vunpack.c.h.b16 %v268
    %v1506 = vunpack.c.l.b16 %v269
    %v1507 = vunpack.c.h.b16 %v269
    %v1508 = vunpack.c.l.b16 %v270
    %v1509 = vunpack.c.h.b16 %v270
    %v1510 = vunpack.c.l.b16 %v271
    %v1511 = vunpack.c.h.b16 %v271
    %v1512 = vunpack.c.l.b16 %v272
    %v1513 = vunpack.c.h.b16 %v272
    %v1514 = vunpack.c.l.b16 %v273
    %v1515 = vunpack.c.h.b16 %v273
    %v1516 = vunpack.c.l.b16 %v274
    %v1517 = vunpack.c.h.b16 %v274
    %v1518 = vunpack.c.l.b16 %v275
    %v1519 = vunpack.c.h.b16 %v275
    %v1520 = vunpack.c.l.b16 %v276
    %v1521 = vunpack.c.h.b16 %v276
    %v1522 = vunpack.c.l.b16 %v277
    %v1523 = vunpack.c.h.b16 %v277
    %v1524 = vunpack.c.l.b16 %v278
    %v1525 = vunpack.c.h.b16 %v278
    %v1526 = vunpack.c.l.b16 %v279
    %v1527 = vunpack.c.h.b16 %v279
    %v1528 = vunpack.c.l.b16 %v280
    %v1529 = vunpack.c.h.b16 %v280
    %v1530 = vunpack.c.l.b16 %v281
    %v1531 = vunpack.c.h.b16 %v281
    %v1532 = vunpack.c.l.b16 %v282
    %v1533 = vunpack.c.h.b16 %v282
    %v1534 = vunpack.c.l.b16 %v283
    %v1535 = vunpack.c.h.b16 %v283
    %v1536 = vunpack.c.l.b16 %v284
    %v1537 = vunpack.c.h.b16 %v284
    %v1538 = vunpack.c.l.b16 %v285
    %v1539 = vunpack.c.h.b16 %v285
    %v1540 = vunpack.c.l.b16 %v286
    %v1541 = vunpack.c.h.b16 %v286
    %v1542 = vunpack.c.l.b16 %v287
    %v1543 = vunpack.c.h.b16 %v287
    %v1544 = vunpack.c.l.b16 %v288
    %v1545 = vunpack.c.h.b16 %v288
    %v1546 = vunpack.c.l.b16 %v289
    %v1547 = vunpack.c.h.b16 %v289
    %v1548 = vunpack.c.l.b16 %v290
    %v1549 = vunpack.c.h.b16 %v290
    %v1550 = vunpack.c.l.b16 %v291
    %v1551 = vunpack.c.h.b16 %v291
    %v1552 = vunpack.c.l.b16 %v292
    %v1553 = vunpack.c.h.b16 %v292
    %v1554 = vunpack.c.l.b16 %v293
    %v1555 = vunpack.c.h.b16 %v293
    %v1556 = vunpack.c.l.b16 %v294
    %v1557 = vunpack.c.h.b16 %v294
    %v1558 = vunpack.c.l.b16 %v295
    %v1559 = vunpack.c.h.b16 %v295
    %v1560 = vunpack.c.l.b16 %v296
    %v1561 = vunpack.c.h.b16 %v296
    %v1562 = vunpack.c.l.b16 %v297
    %v1563 = vunpack.c.h.b16 %v297
    %v1564 = vunpack.c.l.b16 %v298
    %v1565 = vunpack.c.h.b16 %v298
    %v1566 = vunpack.c.l.b16 %v299
    %v1567 = vunpack.c.h.b16 %v299
    %v1568 = vunpack.c.l.b16 %v300
    %v1569 = vunpack.c.h.b16 %v300
    %v1570 = vunpack.c.l.b16 %v301
    %v1571 = vunpack.c.h.b16 %v301
    %v1572 = vunpack.c.l.b16 %v302
    %v1573 = vunpack.c.h.b16 %v302
    %v1574 = vunpack.c.l.b16 %v303
    %v1575 = vunpack.c.h.b16 %v303
    %v1576 = vunpack.c.l.b16 %v304
    %v1577 = vunpack.c.h.b16 %v304
    %v1578 = vunpack.c.l.b16 %v305
    %v1579 = vunpack.c.h.b16 %v305
    %v1580 = vunpack.c.l.b16 %v306
    %v1581 = vunpack.c.h.b16 %v306
    %v1582 = vunpack.c.l.b16 %v307
    %v1583 = vunpack.c.h.b16 %v307
    %v1584 = vunpack.c.l.b16 %v308
    %v1585 = vunpack.c.h.b16 %v308
    %v1586 = vunpack.c.l.b16 %v309
    %v1587 = vunpack.c.h.b16 %v309
    %v1588 = vunpack.c.l.b16 %v310
    %v1589 = vunpack.c.h.b16 %v310
    %v1590 = vunpack.c.l.b16 %v311
    %v1591 = vunpack.c.h.b16 %v311
    %v1592 = vunpack.c.l.b16 %v312
    %v1593 = vunpack.c.h.b16 %v312
    %v1594 = vunpack.c.l.b16 %v313
    %v1595 = vunpack.c.h.b16 %v313
    %v1596 = vunpack.c.l.b16 %v314
    %v1597 = vunpack.c.h.b16 %v314
    %v1598 = vunpack.c.l.b16 %v315
    %v1599 = vunpack.c.h.b16 %v315
    %v1600 = vunpack.c.l.b16 %v316
    %v1601 = vunpack.c.h.b16 %v316
    %v1602 = vunpack.c.l.b16 %v317
    %v1603 = vunpack.c.h.b16 %v317
    %v1604 = vunpack.c.l.b16 %v318
    %v1605 = vunpack.c.h.b16 %v318
    %v1606 = vunpack.c.l.b16 %v319
    %v1607 = vunpack.c.h.b16 %v319
    %v1608 = vunpack.c.l.b16 %v320
    %v1609 = vunpack.c.h.b16 %v320
    %v1610 = vunpack.c.l.b16 %v321
    %v1611 = vunpack.c.h.b16 %v321
    %v1612 = vunpack.c.l.b16 %v322
    %v1613 = vunpack.c.h.b16 %v322
    %v1614 = vunpack.c.l.b16 %v323
    %v1615 = vunpack.c.h.b16 %v323
    %v1616 = vunpack.c.l.b16 %v324
    %v1617 = vunpack.c.h.b16 %v324
    %v1618 = vunpack.c.l.b16 %v325
    %v1619 = vunpack.c.h.b16 %v325
    %v1620 = vunpack.c.l.b16 %v326
    %v1621 = vunpack.c.h.b16 %v326
    %v1622 = vunpack.c.l.b16 %v327
    %v1623 = vunpack.c.h.b16 %v327
    %v1624 = vunpack.c.l.b16 %v328
    %v1625 = vunpack.c.h.b16 %v328
    %v1626 = vunpack.c.l.b16 %v329
    %v1627 = vunpack.c.h.b16 %v329
    %v1628 = vunpack.c.l.b16 %v330
    %v1629 = vunpack.c.h.b16 %v330
    %v1630 = vunpack.c.l.b16 %v331
    %v1631 = vunpack.c.h.b16 %v331
    %v1632 = vunpack.c.l.b16 %v332
    %v1633 = vunpack.c.h.b16 %v332
    %v1634 = vunpack.c.l.b16 %v333
    %v1635 = vunpack.c.h.b16 %v333
    %v1636 = vunpack.c.l.b16 %v334
    %v1637 = vunpack.c.h.b16 %v334
    %v1638 = vunpack.c.l.b16 %v335
    %v1639 = vunpack.c.h.b16 %v335
    %v1640 = vunpack.c.l.b16 %v336
    %v1641 = vunpack.c.h.b16 %v336
    %v1642 = vunpack.c.l.b16 %v337
    %v1643 = vunpack.c.h.b16 %v337
    %v1644 = vunpack.c.l.b16 %v338
    %v1645 = vunpack.c.h.b16 %v338
    %v1646 = vunpack.c.l.b16 %v339
    %v1647 = vunpack.c.h.b16 %v339
    %v1648 = vunpack.c.l.b16 %v340
    %v1649 = vunpack.c.h.b16 %v340
    %v1650 = vunpack.c.l.b16 %v341
    %v1651 = vunpack.c.h.b16 %v341
    %v1652 = vunpack.c.l.b16 %v342
    %v1653 = vunpack.c.h.b16 %v342
    %v1654 = vunpack.c.l.b16 %v343
    %v1655 = vunpack.c.h.b16 %v343
    %v1656 = vunpack.c.l.b16 %v344
    %v1657 = vunpack.c.h.b16 %v344
    %v1658 = vunpack.c.l.b16 %v345
    %v1659 = vunpack.c.h.b16 %v345
    %v1660 = vunpack.c.l.b16 %v346
    %v1661 = vunpack.c.h.b16 %v346
    %v1662 = vunpack.c.l.b16 %v347
    %v1663 = vunpack.c.h.b16 %v347
    %v1664 = vunpack.c.l.b16 %v348
    %v1665 = vunpack.c.h.b16 %v348
    %v1666 = vunpack.c.l.b16 %v349
    %v1667 = vunpack.c.h.b16 %v349
    %v1668 = vunpack.c.l.b16 %v350
    %v1669 = vunpack.c.h.b16 %v350
    %v1670 = vunpack.c.l.b16 %v351
    %v1671 = vunpack.c.h.b16 %v351
    %v1672 = vunpack.c.l.b16 %v352
    %v1673 = vunpack.c.h.b16 %v352
    %v1674 = vunpack.c.l.b16 %v353
    %v1675 = vunpack.c.h.b16 %v353
    %v1676 = vunpack.c.l.b16 %v354
    %v1677 = vunpack.c.h.b16 %v354
    %v1678 = vunpack.c.l.b16 %v355
    %v1679 = vunpack.c.h.b16 %v355
    %v1680 = vunpack.c.l.b16 %v356
    %v1681 = vunpack.c.h.b16 %v356
    %v1682 = vunpack.c.l.b16 %v357
    %v1683 = vunpack.c.h.b16 %v357
    %v1684 = vunpack.c.l.b16 %v358
    %v1685 = vunpack.c.h.b16 %v358
    %v1686 = vunpack.c.l.b16 %v359
    %v1687 = vunpack.c.h.b16 %v359
    %v1688 = vunpack.c.l.b16 %v360
    %v1689 = vunpack.c.h.b16 %v360
    %v1690 = vunpack.c.l.b16 %v361
    %v1691 = vunpack.c.h.b16 %v361
    %v1692 = vunpack.c.l.b16 %v362
    %v1693 = vunpack.c.h.b16 %v362
    %v1694 = vunpack.c.l.b16 %v363
    %v1695 = vunpack.c.h.b16 %v363
    %v1696 = vunpack.c.l.b16 %v364
    %v1697 = vunpack.c.h.b16 %v364
    %v1698 = vunpack.c.l.b16 %v365
    %v1699 = vunpack.c.h.b16 %v365
    %v1700 = vunpack.c.l.b16 %v366
    %v1701 = vunpack.c.h.b16 %v366
    %v1702 = vunpack.c.l.b16 %v367
    %v1703 = vunpack.c.h.b16 %v367
    %v1704 = vunpack.c.l.b16 %v368
    %v1705 = vunpack.c.h.b16 %v368
    %v1706 = vunpack.c.l.b16 %v369
    %v1707 = vunpack.c.h.b16 %v369
    %v1708 = vunpack.c.l.b16 %v370
    %v1709 = vunpack.c.h.b16 %v370
    %v1710 = vunpack.c.l.b16 %v371
    %v1711 = vunpack.c.h.b16 %v371
    %v1712 = vunpack.c.l.b16 %v372
    %v1713 = vunpack.c.h.b16 %v372
    %v1714 = vunpack.c.l.b16 %v373
    %v1715 = vunpack.c.h.b16 %v373
    %v1716 = vunpack.c.l.b16 %v374
    %v1717 = vunpack.c.h.b16 %v374
    %v1718 = vunpack.c.l.b16 %v375
    %v1719 = vunpack.c.h.b16 %v375
    %v1720 = vunpack.c.l.b16 %v376
    %v1721 = vunpack.c.h.b16 %v376
    %v1722 = vunpack.c.l.b16 %v377
    %v1723 = vunpack.c.h.b16 %v377
    %v1724 = vunpack.c.l.b16 %v378
    %v1725 = vunpack.c.h.b16 %v378
    %v1726 = vunpack.c.l.b16 %v379
    %v1727 = vunpack.c.h.b16 %v379
    %v1728 = vunpack.c.l.b16 %v380
    %v1729 = vunpack.c.h.b16 %v380
    %v1730 = vunpack.c.l.b16 %v381
    %v1731 = vunpack.c.h.b16 %v381
    %v1732 = vunpack.c.l.b16 %v382
    %v1733 = vunpack.c.h.b16 %v382
    %v1734 = vunpack.c.l.b16 %v383
    %v1735 = vunpack.c.h.b16 %v383
    %v1736 = vunpack.c.l.b16 %v384
    %v1737 = vunpack.c.h.b16 %v384
    %v1738 = vunpack.c.l.b16 %v385
    %v1739 = vunpack.c.h.b16 %v385
    %v1740 = vunpack.c.l.b16 %v386
    %v1741 = vunpack.c.h.b16 %v386
    %v1742 = vunpack.c.l.b16 %v387
    %v1743 = vunpack.c.h.b16 %v387
    %v1744 = vunpack.c.l.b16 %v388
    %v1745 = vunpack.c.h.b16 %v388
    %v1746 = vunpack.c.l.b16 %v389
    %v1747 = vunpack.c.h.b16 %v389
    %v1748 = vunpack.c.l.b16 %v390
    %v1749 = vunpack.c.h.b16 %v390
    %v1750 = vunpack.c.l.b16 %v391
    %v1751 = vunpack.c.h.b16 %v391
    %v1752 = vunpack.c.l.b16 %v392
    %v1753 = vunpack.c.h.b16 %v392
    %v1754 = vunpack.c.l.b16 %v393
    %v1755 = vunpack.c.h.b16 %v393
    %v1756 = vunpack.c.l.b16 %v394
    %v1757 = vunpack.c.h.b16 %v394
    %v1758 = vunpack.c.l.b16 %v395
    %v1759 = vunpack.c.h.b16 %v395
    %v1760 = vunpack.c.l.b16 %v396
    %v1761 = vunpack.c.h.b16 %v396
    %v1762 = vunpack.c.l.b16 %v397
    %v1763 = vunpack.c.h.b16 %v397
    %v1764 = vunpack.c.l.b16 %v398
    %v1765 = vunpack.c.h.b16 %v398
    %v1766 = vunpack.c.l.b16 %v399
    %v1767 = vunpack.c.h.b16 %v399
    %v1768 = vunpack.c.l.b16 %v400
    %v1769 = vunpack.c.h.b16 %v400
    %v1770 = vunpack.c.l.b16 %v401
    %v1771 = vunpack.c.h.b16 %v401
    %v1772 = vunpack.c.l.b16 %v402
    %v1773 = vunpack.c.h.b16 %v402
    %v1774 = vunpack.c.l.b16 %v403
    %v1775 = vunpack.c.h.b16 %v403
    %v1776 = vunpack.c.l.b16 %v404
    %v1777 = vunpack.c.h.b16 %v404
    %v1778 = vunpack.c.l.b16 %v405
    %v1779 = vunpack.c.h.b16 %v405
    %v1780 = vunpack.c.l.b16 %v406
    %v1781 = vunpack.c.h.b16 %v406
    %v1782 = vunpack.c.l.b16 %v407
    %v1783 = vunpack.c.h.b16 %v407
    %v1784 = vunpack.c.l.b16 %v408
    %v1785 = vunpack.c.h.b16 %v408
    %v1786 = vunpack.c.l.b16 %v409
    %v1787 = vunpack.c.h.b16 %v409
    %v1788 = vunpack.c.l.b16 %v410
    %v1789 = vunpack.c.h.b16 %v410
    %v1790 = vunpack.c.l.b16 %v411
    %v1791 = vunpack.c.h.b16 %v411
    %v1792 = vunpack.c.l.b16 %v412
    %v1793 = vunpack.c.h.b16 %v412
    %v1794 = vunpack.c.l.b16 %v413
    %v1795 = vunpack.c.h.b16 %v413
    %v1796 = vunpack.c.l.b16 %v414
    %v1797 = vunpack.c.h.b16 %v414
    %v1798 = vunpack.c.l.b16 %v415
    %v1799 = vunpack.c.h.b16 %v415
    %v1800 = vunpack.c.l.b16 %v416
    %v1801 = vunpack.c.h.b16 %v416
    %v1802 = vunpack.c.l.b16 %v417
    %v1803 = vunpack.c.h.b16 %v417
    %v1804 = vunpack.c.l.b16 %v418
    %v1805 = vunpack.c.h.b16 %v418
    %v1806 = vunpack.c.l.b16 %v419
    %v1807 = vunpack.c.h.b16 %v419
    %v1808 = vunpack.c.l.b16 %v420
    %v1809 = vunpack.c.h.b16 %v420
    %v1810 = vunpack.c.l.b16 %v421
    %v1811 = vunpack.c.h.b16 %v421
    %v1812 = vunpack.c.l.b16 %v422
    %v1813 = vunpack.c.h.b16 %v422
    %v1814 = vunpack.c.l.b16 %v423
    %v1815 = vunpack.c.h.b16 %v423
    %v1816 = vunpack.c.l.b16 %v424
    %v1817 = vunpack.c.h.b16 %v424
    %v1818 = vunpack.c.l.b16 %v425
    %v1819 = vunpack.c.h.b16 %v425
    %v1820 = vunpack.c.l.b16 %v426
    %v1821 = vunpack.c.h.b16 %v426
    %v1822 = vunpack.c.l.b16 %v427
    %v1823 = vunpack.c.h.b16 %v427
    %v1824 = vunpack.c.l.b16 %v428
    %v1825 = vunpack.c.h.b16 %v428
    %v1826 = vunpack.c.l.b16 %v429
    %v1827 = vunpack.c.h.b16 %v429
    %v1828 = vunpack.c.l.b16 %v430
    %v1829 = vunpack.c.h.b16 %v430
    %v1830 = vunpack.c.l.b16 %v431
    %v1831 = vunpack.c.h.b16 %v431
    %v1832 = vunpack.c.l.b16 %v432
    %v1833 = vunpack.c.h.b16 %v432
    %v1834 = vunpack.c.l.b16 %v433
    %v1835 = vunpack.c.h.b16 %v433
    %v1836 = vunpack.c.l.b16 %v434
    %v1837 = vunpack.c.h.b16 %v434
    %v1838 = vunpack.c.l.b16 %v435
    %v1839 = vunpack.c.h.b16 %v435
    %v1840 = vunpack.c.l.b16 %v436
    %v1841 = vunpack.c.h.b16 %v436
    %v1842 = vunpack.c.l.b16 %v437
    %v1843 = vunpack.c.h.b16 %v437
    %v1844 = vunpack.c.l.b16 %v438
    %v1845 = vunpack.c.h.b16 %v438
    %v1846 = vunpack.c.l.b16 %v439
    %v1847 = vunpack.c.h.b16 %v439
    %v1848 = vunpack.c.l.b16 %v440
    %v1849 = vunpack.c.h.b16 %v440
    %v1850 = vunpack.c.l.b16 %v441
    %v1851 = vunpack.c.h.b16 %v441
    %v1852 = vunpack.c.l.b16 %v442
    %v1853 = vunpack.c.h.b16 %v442
    %v1854 = vunpack.c.l.b16 %v443
    %v1855 = vunpack.c.h.b16 %v443
    %v1856 = vunpack.c.l.b16 %v444
    %v1857 = vunpack.c.h.b16 %v444
    %v1858 = vunpack.c.l.b16 %v445
    %v1859 = vunpack.c.h.b16 %v445
    %v1860 = vunpack.c.l.b16 %v446
    %v1861 = vunpack.c.h.b16 %v446
    %v1862 = vunpack.c.l.b16 %v447
    %v1863 = vunpack.c.h.b16 %v447
    %v1864 = vunpack.c.l.b16 %v448
    %v1865 = vunpack.c.h.b16 %v448
    %v1866 = vunpack.c.l.b16 %v449
    %v1867 = vunpack.c.h.b16 %v449
    %v1868 = vunpack.c.l.b16 %v450
    %v1869 = vunpack.c.h.b16 %v450
    %v1870 = vunpack.c.l.b16 %v451
    %v1871 = vunpack.c.h.b16 %v451
    %v1872 = vunpack.c.l.b16 %v452
    %v1873 = vunpack.c.h.b16 %v452
    %v1874 = vunpack.c.l.b16 %v453
    %v1875 = vunpack.c.h.b16 %v453
    %v1876 = vunpack.c.l.b16 %v454
    %v1877 = vunpack.c.h.b16 %v454
    %v1878 = vunpack.c.l.b16 %v455
    %v1879 = vunpack.c.h.b16 %v455
    %v1880 = vunpack.c.l.b16 %v456
    %v1881 = vunpack.c.h.b16 %v456
    %v1882 = vunpack.c.l.b16 %v457
    %v1883 = vunpack.c.h.b16 %v457
    %v1884 = vunpack.c.l.b16 %v458
    %v1885 = vunpack.c.h.b16 %v458
    %v1886 = vunpack.c.l.b16 %v459
    %v1887 = vunpack.c.h.b16 %v459
    %v1888 = vunpack.c.l.b16 %v460
    %v1889 = vunpack.c.h.b16 %v460
    %v1890 = vunpack.c.l.b16 %v461
    %v1891 = vunpack.c.h.b16 %v461
    %v1892 = vunpack.c.l.b16 %v462
    %v1893 = vunpack.c.h.b16 %v462
    %v1894 = vunpack.c.l.b16 %v463
    %v1895 = vunpack.c.h.b16 %v463
    %v1896 = vunpack.c.l.b16 %v464
    %v1897 = vunpack.c.h.b16 %v464
    %v1898 = vunpack.c.l.b16 %v465
    %v1899 = vunpack.c.h.b16 %v465
    %v1900 = vunpack.c.l.b16 %v466
    %v1901 = vunpack.c.h.b16 %v466
    %v1902 = vunpack.c.l.b16 %v467
    %v1903 = vunpack.c.h.b16 %v467
    %v1904 = vunpack.c.l.b16 %v468
    %v1905 = vunpack.c.h.b16 %v468
    %v1906 = vunpack.c.l.b16 %v469
    %v1907 = vunpack.c.h.b16 %v469
    %v1908 = vunpack.c.l.b16 %v470
    %v1909 = vunpack.c.h.b16 %v470
    %v1910 = vunpack.c.l.b16 %v471
    %v1911 = vunpack.c.h.b16 %v471
    %v1912 = vunpack.c.l.b16 %v472
    %v1913 = vunpack.c.h.b16 %v472
    %v1914 = vunpack.c.l.b16 %v473
    %v1915 = vunpack.c.h.b16 %v473
    %v1916 = vunpack.c.l.b16 %v474
    %v1917 = vunpack.c.h.b16 %v474
    %v1918 = vunpack.c.l.b16 %v475
    %v1919 = vunpack.c.h.b16 %v475
    %v1920 = vunpack.c.l.b16 %v476
    %v1921 = vunpack.c.h.b16 %v476
    %v1922 = vunpack.c.l.b16 %v477
    %v1923 = vunpack.c.h.b16 %v477
    %v1924 = vunpack.c.l.b16 %v478
    %v1925 = vunpack.c.h.b16 %v478
    %v1926 = vunpack.c.l.b16 %v479
    %v1927 = vunpack.c.h.b16 %v479
    %v1928 = vunpack.c.l.b16 %v480
    %v1929 = vunpack.c.h.b16 %v480
    %v1930 = vunpack.c.l.b16 %v481
    %v1931 = vunpack.c.h.b16 %v481
    %v1932 = vunpack.c.l.b16 %v482
    %v1933 = vunpack.c.h.b16 %v482
    %v1934 = vunpack.c.l.b16 %v483
    %v1935 = vunpack.c.h.b16 %v483
    %v1936 = vunpack.c.l.b16 %v484
    %v1937 = vunpack.c.h.b16 %v484
    %v1938 = vunpack.c.l.b16 %v485
    %v1939 = vunpack.c.h.b16 %v485
    %v1940 = vunpack.c.l.b16 %v486
    %v1941 = vunpack.c.h.b16 %v486
    %v1942 = vunpack.c.l.b16 %v487
    %v1943 = vunpack.c.h.b16 %v487
    %v1944 = vunpack.c.l.b16 %v488
    %v1945 = vunpack.c.h.b16 %v488
    %v1946 = vunpack.c.l.b16 %v489
    %v1947 = vunpack.c.h.b16 %v489
    %v1948 = vunpack.c.l.b16 %v490
    %v1949 = vunpack.c.h.b16 %v490
    %v1950 = vunpack.c.l.b16 %v491
    %v1951 = vunpack.c.h.b16 %v491
    %v1952 = vunpack.c.l.b16 %v492
    %v1953 = vunpack.c.h.b16 %v492
    %v1954 = vunpack.c.l.b16 %v493
    %v1955 = vunpack.c.h.b16 %v493
    %v1956 = vunpack.c.l.b16 %v494
    %v1957 = vunpack.c.h.b16 %v494
    %v1958 = vunpack.c.l.b16 %v495
    %v1959 = vunpack.c.h.b16 %v495
    %v1960 = vunpack.c.l.b16 %v496
    %v1961 = vunpack.c.h.b16 %v496
    %v1962 = vunpack.c.l.b16 %v497
    %v1963 = vunpack.c.h.b16 %v497
    %v1964 = vunpack.c.l.b16 %v498
    %v1965 = vunpack.c.h.b16 %v498
    %v1966 = vunpack.c.l.b16 %v499
    %v1967 = vunpack.c.h.b16 %v499
    %v1968 = vunpack.c.l.b16 %v500
    %v1969 = vunpack.c.h.b16 %v500
    %v1970 = vunpack.c.l.b16 %v501
    %v1971 = vunpack.c.h.b16 %v501
    %v1972 = vunpack.c.l.b16 %v502
    %v1973 = vunpack.c.h.b16 %v502
    %v1974 = vunpack.c.l.b16 %v503
    %v1975 = vunpack.c.h.b16 %v503
    %v1976 = vunpack.c.l.b16 %v504
    %v1977 = vunpack.c.h.b16 %v504
    %v1978 = vunpack.c.l.b16 %v505
    %v1979 = vunpack.c.h.b16 %v505
    %v1980 = vunpack.c.l.b16 %v506
    %v1981 = vunpack.c.h.b16 %v506
    %v1982 = vunpack.c.l.b16 %v507
    %v1983 = vunpack.c.h.b16 %v507
    %v1984 = vunpack.c.l.b16 %v508
    %v1985 = vunpack.c.h.b16 %v508
    %v1986 = vunpack.c.l.b16 %v509
    %v1987 = vunpack.c.h.b16 %v509
    %v1988 = vunpack.c.l.b16 %v510
    %v1989 = vunpack.c.h.b16 %v510
    %v1990 = vunpack.c.l.b16 %v511
    %v1991 = vunpack.c.h.b16 %v511
    %v1992 = vunpack.c.l.b16 %v512
    %v1993 = vunpack.c.h.b16 %v512
    %v1994 = vunpack.c.l.b16 %v513
    %v1995 = vunpack.c.h.b16 %v513
    %v1996 = vunpack.c.l.b16 %v514
    %v1997 = vunpack.c.h.b16 %v514
    %v1998 = vunpack.c.l.b16 %v515
    %v1999 = vunpack.c.h.b16 %v515
    %v2000 = vunpack.c.l.b16 %v516
    %v2001 = vunpack.c.h.b16 %v516
    %v2002 = vunpack.c.l.b16 %v517
    %v2003 = vunpack.c.h.b16 %v517
    %v2004 = vunpack.c.l.b16 %v518
    %v2005 = vunpack.c.h.b16 %v518
    %v2006 = vunpack.c.l.b16 %v519
    %v2007 = vunpack.c.h.b16 %v519
    %v2008 = vunpack.c.l.b16 %v520
    %v2009 = vunpack.c.h.b16 %v520
    %v2010 = vunpack.c.l.b16 %v521
    %v2011 = vunpack.c.h.b16 %v521
    %v2012 = vunpack.c.l.b16 %v522
    %v2013 = vunpack.c.h.b16 %v522
    %v2014 = vunpack.c.l.b16 %v523
    %v2015 = vunpack.c.h.b16 %v523
    %v2016 = vunpack.c.l.b16 %v524
    %v2017 = vunpack.c.h.b16 %v524
    %v2018 = vunpack.c.l.b16 %v525
    %v2019 = vunpack.c.h.b16 %v525
    %v2020 = vunpack.c.l.b16 %v526
    %v2021 = vunpack.c.h.b16 %v526
    %v2022 = vunpack.c.l.b16 %v527
    %v2023 = vunpack.c.h.b16 %v527
    %v2024 = vunpack.c.l.b16 %v528
    %v2025 = vunpack.c.h.b16 %v528
    %v2026 = vunpack.c.l.b16 %v529
    %v2027 = vunpack.c.h.b16 %v529
    %v2028 = vunpack.c.l.b16 %v530
    %v2029 = vunpack.c.h.b16 %v530
    %v2030 = vunpack.c.l.b16 %v531
    %v2031 = vunpack.c.h.b16 %v531
    %v2032 = vunpack.c.l.b16 %v532
    %v2033 = vunpack.c.h.b16 %v532
    %v2034 = vunpack.c.l.b16 %v533
    %v2035 = vunpack.c.h.b16 %v533
    %v2036 = vunpack.c.l.b16 %v534
    %v2037 = vunpack.c.h.b16 %v534
    %v2038 = vunpack.c.l.b16 %v535
    %v2039 = vunpack.c.h.b16 %v535
    %v2040 = vunpack.c.l.b16 %v536
    %v2041 = vunpack.c.h.b16 %v536
    %v2042 = vunpack.c.l.b16 %v537
    %v2043 = vunpack.c.h.b16 %v537
    %v2044 = vunpack.c.l.b16 %v538
    %v2045 = vunpack.c.h.b16 %v538
    %v2046 = vunpack.c.l.b16 %v539
    %v2047 = vunpack.c.h.b16 %v539
    %v2048 = vunpack.c.l.b16 %v540
    %v2049 = vunpack.c.h.b16 %v540
    %v2050 = vunpack.c.l.b16 %v541
    %v2051 = vunpack.c.h.b16 %v541
    %v2052 = vunpack.c.l.b16 %v542
    %v2053 = vunpack.c.h.b16 %v542
    %v2054 = vunpack.c.l.b16 %v543
    %v2055 = vunpack.c.h.b16 %v543
    %v2056 = vunpack.c.l.b16 %v544
    %v2057 = vunpack.c.h.b16 %v544
    %v2058 = vunpack.c.l.b16 %v545
    %v2059 = vunpack.c.h.b16 %v545
    %v2060 = vunpack.c.l.b16 %v546
    %v2061 = vunpack.c.h.b16 %v546
    %v2062 = vunpack.c.l.b16 %v547
    %v2063 = vunpack.c.h.b16 %v547
    %v2064 = vunpack.c.l.b16 %v548
    %v2065 = vunpack.c.h.b16 %v548
    %v2066 = vunpack.c.l.b16 %v549
    %v2067 = vunpack.c.h.b16 %v549
    %v2068 = vunpack.c.l.b16 %v550
    %v2069 = vunpack.c.h.b16 %v550
    %v2070 = vunpack.c.l.b16 %v551
    %v2071 = vunpack.c.h.b16 %v551
    %v2072 = vunpack.c.l.b16 %v552
    %v2073 = vunpack.c.h.b16 %v552
    %v2074 = vunpack.c.l.b16 %v553
    %v2075 = vunpack.c.h.b16 %v553
    %v2076 = vunpack.c.l.b16 %v554
    %v2077 = vunpack.c.h.b16 %v554
    %v2078 = vunpack.c.l.b16 %v555
    %v2079 = vunpack.c.h.b16 %v555
    %v2080 = vunpack.c.l.b16 %v556
    %v2081 = vunpack.c.h.b16 %v556
    %v2082 = vunpack.c.l.b16 %v557
    %v2083 = vunpack.c.h.b16 %v557
    %v2084 = vunpack.c.l.b16 %v558
    %v2085 = vunpack.c.h.b16 %v558
    %v2086 = vunpack.c.l.b16 %v559
    %v2087 = vunpack.c.h.b16 %v559
    %v2088 = vunpack.c.l.b16 %v560
    %v2089 = vunpack.c.h.b16 %v560
    %v2090 = vunpack.c.l.b16 %v561
    %v2091 = vunpack.c.h.b16 %v561
    %v2092 = vunpack.c.l.b16 %v562
    %v2093 = vunpack.c.h.b16 %v562
    %v2094 = vunpack.c.l.b16 %v563
    %v2095 = vunpack.c.h.b16 %v563
    %v2096 = vunpack.c.l.b16 %v564
    %v2097 = vunpack.c.h.b16 %v564
    %v2098 = vunpack.c.l.b16 %v565
    %v2099 = vunpack.c.h.b16 %v565
    %v2100 = vunpack.c.l.b16 %v566
    %v2101 = vunpack.c.h.b16 %v566
    %v2102 = vunpack.c.l.b16 %v567
    %v2103 = vunpack.c.h.b16 %v567
    %v2104 = vpack.c.b16 %v1096, %v1080
    %v2105 = vpack.c.b16 %v1097, %v1081
    %v2106 = vpack.c.b16 %v1098, %v1082
    %v2107 = vpack.c.b16 %v1099, %v1083
    %v2108 = vpack.c.b16 %v1100, %v1084
    %v2109 = vpack.c.b16 %v1101, %v1085
    %v2110 = vpack.c.b16 %v1102, %v1086
    %v2111 = vpack.c.b16 %v1103, %v1087
    %v2112 = vpack.c.b16 %v1104, %v1088
    %v2113 = vpack.c.b16 %v1105, %v1089
    %v2114 = vpack.c.b16 %v1106, %v1090
    %v2115 = vpack.c.b16 %v1107, %v1091
    %v2116 = vpack.c.b16 %v1108, %v1092
    %v2117 = vpack.c.b16 %v1109, %v1093
    %v2118 = vpack.c.b16 %v1110, %v1094
    %v2119 = vpack.c.b16 %v1111, %v1095
    %v2120 = vpack.c.b16 %v1128, %v1112
    %v2121 = vpack.c.b16 %v1129, %v1113
    %v2122 = vpack.c.b16 %v1130, %v1114
    %v2123 = vpack.c.b16 %v1131, %v1115
    %v2124 = vpack.c.b16 %v1132, %v1116
    %v2125 = vpack.c.b16 %v1133, %v1117
    %v2126 = vpack.c.b16 %v1134, %v1118
    %v2127 = vpack.c.b16 %v1135, %v1119
    %v2128 = vpack.c.b16 %v1136, %v1120
    %v2129 = vpack.c.b16 %v1137, %v1121
    %v2130 = vpack.c.b16 %v1138, %v1122
    %v2131 = vpack.c.b16 %v1139, %v1123
    %v2132 = vpack.c.b16 %v1140, %v1124
    %v2133 = vpack.c.b16 %v1141, %v1125
    %v2134 = vpack.c.b16 %v1142, %v1126
    %v2135 = vpack.c.b16 %v1143, %v1127
    %v2136 = vpack.c.b16 %v1160, %v1144
    %v2137 = vpack.c.b16 %v1161, %v1145
    %v2138 = vpack.c.b16 %v1162, %v1146
    %v2139 = vpack.c.b16 %v1163, %v1147
    %v2140 = vpack.c.b16 %v1164, %v1148
    %v2141 = vpack.c.b16 %v1165, %v1149
    %v2142 = vpack.c.b16 %v1166, %v1150
    %v2143 = vpack.c.b16 %v1167, %v1151
    %v2144 = vpack.c.b16 %v1168, %v1152
    %v2145 = vpack.c.b16 %v1169, %v1153
    %v2146 = vpack.c.b16 %v1170, %v1154
    %v2147 = vpack.c.b16 %v1171, %v1155
    %v2148 = vpack.c.b16 %v1172, %v1156
    %v2149 = vpack.c.b16 %v1173, %v1157
    %v2150 = vpack.c.b16 %v1174, %v1158
    %v2151 = vpack.c.b16 %v1175, %v1159
    %v2152 = vpack.c.b16 %v1192, %v1176
    %v2153 = vpack.c.b16 %v1193, %v1177
    %v2154 = vpack.c.b16 %v1194, %v1178
    %v2155 = vpack.c.b16 %v1195, %v1179
    %v2156 = vpack.c.b16 %v1196, %v1180
    %v2157 = vpack.c.b16 %v1197, %v1181
    %v2158 = vpack.c.b16 %v1198, %v1182
    %v2159 = vpack.c.b16 %v1199, %v1183
    %v2160 = vpack.c.b16 %v1200, %v1184
    %v2161 = vpack.c.b16 %v1201, %v1185
    %v2162 = vpack.c.b16 %v1202, %v1186
    %v2163 = vpack.c.b16 %v1203, %v1187
    %v2164 = vpack.c.b16 %v1204, %v1188
    %v2165 = vpack.c.b16 %v1205, %v1189
    %v2166 = vpack.c.b16 %v1206, %v1190
    %v2167 = vpack.c.b16 %v1207, %v1191
    %v2168 = vpack.c.b16 %v1224, %v1208
    %v2169 = vpack.c.b16 %v1225, %v1209
    %v2170 = vpack.c.b16 %v1226, %v1210
    %v2171 = vpack.c.b16 %v1227, %v1211
    %v2172 = vpack.c.b16 %v1228, %v1212
    %v2173 = vpack.c.b16 %v1229, %v1213
    %v2174 = vpack.c.b16 %v1230, %v1214
    %v2175 = vpack.c.b16 %v1231, %v1215
    %v2176 = vpack.c.b16 %v1232, %v1216
    %v2177 = vpack.c.b16 %v1233, %v1217
    %v2178 = vpack.c.b16 %v1234, %v1218
    %v2179 = vpack.c.b16 %v1235, %v1219
    %v2180 = vpack.c.b16 %v1236, %v1220
    %v2181 = vpack.c.b16 %v1237, %v1221
    %v2182 = vpack.c.b16 %v1238, %v1222
    %v2183 = vpack.c.b16 %v1239, %v1223
    %v2184 = vpack.c.b16 %v1256, %v1240
    %v2185 = vpack.c.b16 %v1257, %v1241
    %v2186 = vpack.c.b16 %v1258, %v1242
    %v2187 = vpack.c.b16 %v1259, %v1243
    %v2188 = vpack.c.b16 %v1260, %v1244
    %v2189 = vpack.c.b16 %v1261, %v1245
    %v2190 = vpack.c.b16 %v1262, %v1246
    %v2191 = vpack.c.b16 %v1263, %v1247
    %v2192 = vpack.c.b16 %v1264, %v1248
    %v2193 = vpack.c.b16 %v1265, %v1249
    %v2194 = vpack.c.b16 %v1266, %v1250
    %v2195 = vpack.c.b16 %v1267, %v1251
    %v2196 = vpack.c.b16 %v1268, %v1252
    %v2197 = vpack.c.b16 %v1269, %v1253
    %v2198 = vpack.c.b16 %v1270, %v1254
    %v2199 = vpack.c.b16 %v1271, %v1255
    %v2200 = vpack.c.b16 %v1288, %v1272
    %v2201 = vpack.c.b16 %v1289, %v1273
    %v2202 = vpack.c.b16 %v1290, %v1274
    %v2203 = vpack.c.b16 %v1291, %v1275
    %v2204 = vpack.c.b16 %v1292, %v1276
    %v2205 = vpack.c.b16 %v1293, %v1277
    %v2206 = vpack.c.b16 %v1294, %v1278
    %v2207 = vpack.c.b16 %v1295, %v1279
    %v2208 = vpack.c.b16 %v1296, %v1280
    %v2209 = vpack.c.b16 %v1297, %v1281
    %v2210 = vpack.c.b16 %v1298, %v1282
    %v2211 = vpack.c.b16 %v1299, %v1283
    %v2212 = vpack.c.b16 %v1300, %v1284
    %v2213 = vpack.c.b16 %v1301, %v1285
    %v2214 = vpack.c.b16 %v1302, %v1286
    %v2215 = vpack.c.b16 %v1303, %v1287
    %v2216 = vpack.c.b16 %v1320, %v1304
    %v2217 = vpack.c.b16 %v1321, %v1305
    %v2218 = vpack.c.b16 %v1322, %v1306
    %v2219 = vpack.c.b16 %v1323, %v1307
    %v2220 = vpack.c.b16 %v1324, %v1308
    %v2221 = vpack.c.b16 %v1325, %v1309
    %v2222 = vpack.c.b16 %v1326, %v1310
    %v2223 = vpack.c.b16 %v1327, %v1311
    %v2224 = vpack.c.b16 %v1328, %v1312
    %v2225 = vpack.c.b16 %v1329, %v1313
    %v2226 = vpack.c.b16 %v1330, %v1314
    %v2227 = vpack.c.b16 %v1331, %v1315
    %v2228 = vpack.c.b16 %v1332, %v1316
    %v2229 = vpack.c.b16 %v1333, %v1317
    %v2230 = vpack.c.b16 %v1334, %v1318
    %v2231 = vpack.c.b16 %v1335, %v1319
    %v2232 = vpack.c.b16 %v1352, %v1336
    %v2233 = vpack.c.b16 %v1353, %v1337
    %v2234 = vpack.c.b16 %v1354, %v1338
    %v2235 = vpack.c.b16 %v1355, %v1339
    %v2236 = vpack.c.b16 %v1356, %v1340
    %v2237 = vpack.c.b16 %v1357, %v1341
    %v2238 = vpack.c.b16 %v1358, %v1342
    %v2239 = vpack.c.b16 %v1359, %v1343
    %v2240 = vpack.c.b16 %v1360, %v1344
    %v2241 = vpack.c.b16 %v1361, %v1345
    %v2242 = vpack.c.b16 %v1362, %v1346
    %v2243 = vpack.c.b16 %v1363, %v1347
    %v2244 = vpack.c.b16 %v1364, %v1348
    %v2245 = vpack.c.b16 %v1365, %v1349
    %v2246 = vpack.c.b16 %v1366, %v1350
    %v2247 = vpack.c.b16 %v1367, %v1351
    %v2248 = vpack.c.b16 %v1384, %v1368
    %v2249 = vpack.c.b16 %v1385, %v1369
    %v2250 = vpack.c.b16 %v1386, %v1370
    %v2251 = vpack.c.b16 %v1387, %v1371
    %v2252 = vpack.c.b16 %v1388, %v1372
    %v2253 = vpack.c.b16 %v1389, %v1373
    %v2254 = vpack.c.b16 %v1390, %v1374
    %v2255 = vpack.c.b16 %v1391, %v1375
    %v2256 = vpack.c.b16 %v1392, %v1376
    %v2257 = vpack.c.b16 %v1393, %v1377
    %v2258 = vpack.c.b16 %v1394, %v1378
    %v2259 = vpack.c.b16 %v1395, %v1379
    %v2260 = vpack.c.b16 %v1396, %v1380
    %v2261 = vpack.c.b16 %v1397, %v1381
    %v2262 = vpack.c.b16 %v1398, %v1382
    %v2263 = vpack.c.b16 %v1399, %v1383
    %v2264 = vpack.c.b16 %v1416, %v1400
    %v2265 = vpack.c.b16 %v1417, %v1401
    %v2266 = vpack.c.b16 %v1418, %v1402
    %v2267 = vpack.c.b16 %v1419, %v1403
    %v2268 = vpack.c.b16 %v1420, %v1404
    %v2269 = vpack.c.b16 %v1421, %v1405
    %v2270 = vpack.c.b16 %v1422, %v1406
    %v2271 = vpack.c.b16 %v1423, %v1407
    %v2272 = vpack.c.b16 %v1424, %v1408
    %v2273 = vpack.c.b16 %v1425, %v1409
    %v2274 = vpack.c.b16 %v1426, %v1410
    %v2275 = vpack.c.b16 %v1427, %v1411
    %v2276 = vpack.c.b16 %v1428, %v1412
    %v2277 = vpack.c.b16 %v1429, %v1413
    %v2278 = vpack.c.b16 %v1430, %v1414
    %v2279 = vpack.c.b16 %v1431, %v1415
    %v2280 = vpack.c.b16 %v1448, %v1432
    %v2281 = vpack.c.b16 %v1449, %v1433
    %v2282 = vpack.c.b16 %v1450, %v1434
    %v2283 = vpack.c.b16 %v1451, %v1435
    %v2284 = vpack.c.b16 %v1452, %v1436
    %v2285 = vpack.c.b16 %v1453, %v1437
    %v2286 = vpack.c.b16 %v1454, %v1438
    %v2287 = vpack.c.b16 %v1455, %v1439
    %v2288 = vpack.c.b16 %v1456, %v1440
    %v2289 = vpack.c.b16 %v1457, %v1441
    %v2290 = vpack.c.b16 %v1458, %v1442
    %v2291 = vpack.c.b16 %v1459, %v1443
    %v2292 = vpack.c.b16 %v1460, %v1444
    %v2293 = vpack.c.b16 %v1461, %v1445
    %v2294 = vpack.c.b16 %v1462, %v1446
    %v2295 = vpack.c.b16 %v1463, %v1447
    %v2296 = vpack.c.b16 %v1480, %v1464
    %v2297 = vpack.c.b16 %v1481, %v1465
    %v2298 = vpack.c.b16 %v1482, %v1466
    %v2299 = vpack.c.b16 %v1483, %v1467
    %v2300 = vpack.c.b16 %v1484, %v1468
    %v2301 = vpack.c.b16 %v1485, %v1469
    %v2302 = vpack.c.b16 %v1486, %v1470
    %v2303 = vpack.c.b16 %v1487, %v1471
    %v2304 = vpack.c.b16 %v1488, %v1472
    %v2305 = vpack.c.b16 %v1489, %v1473
    %v2306 = vpack.c.b16 %v1490, %v1474
    %v2307 = vpack.c.b16 %v1491, %v1475
    %v2308 = vpack.c.b16 %v1492, %v1476
    %v2309 = vpack.c.b16 %v1493, %v1477
    %v2310 = vpack.c.b16 %v1494, %v1478
    %v2311 = vpack.c.b16 %v1495, %v1479
    %v2312 = vpack.c.b16 %v1512, %v1496
    %v2313 = vpack.c.b16 %v1513, %v1497
    %v2314 = vpack.c.b16 %v1514, %v1498
    %v2315 = vpack.c.b16 %v1515, %v1499
    %v2316 = vpack.c.b16 %v1516, %v1500
    %v2317 = vpack.c.b16 %v1517, %v1501
    %v2318 = vpack.c.b16 %v1518, %v1502
    %v2319 = vpack.c.b16 %v1519, %v1503
    %v2320 = vpack.c.b16 %v1520, %v1504
    %v2321 = vpack.c.b16 %v1521, %v1505
    %v2322 = vpack.c.b16 %v1522, %v1506
    %v2323 = vpack.c.b16 %v1523, %v1507
    %v2324 = vpack.c.b16 %v1524, %v1508
    %v2325 = vpack.c.b16 %v1525, %v1509
    %v2326 = vpack.c.b16 %v1526, %v1510
    %v2327 = vpack.c.b16 %v1527, %v1511
    %v2328 = vpack.c.b16 %v1544, %v1528
    %v2329 = vpack.c.b16 %v1545, %v1529
    %v2330 = vpack.c.b16 %v1546, %v1530
    %v2331 = vpack.c.b16 %v1547, %v1531
    %v2332 = vpack.c.b16 %v1548, %v1532
    %v2333 = vpack.c.b16 %v1549, %v1533
    %v2334 = vpack.c.b16 %v1550, %v1534
    %v2335 = vpack.c.b16 %v1551, %v1535
    %v2336 = vpack.c.b16 %v1552, %v1536
    %v2337 = vpack.c.b16 %v1553, %v1537
    %v2338 = vpack.c.b16 %v1554, %v1538
    %v2339 = vpack.c.b16 %v1555, %v1539
    %v2340 = vpack.c.b16 %v1556, %v1540
    %v2341 = vpack.c.b16 %v1557, %v1541
    %v2342 = vpack.c.b16 %v1558, %v1542
    %v2343 = vpack.c.b16 %v1559, %v1543
    %v2344 = vpack.c.b16 %v1576, %v1560
    %v2345 = vpack.c.b16 %v1577, %v1561
    %v2346 = vpack.c.b16 %v1578, %v1562
    %v2347 = vpack.c.b16 %v1579, %v1563
    %v2348 = vpack.c.b16 %v1580, %v1564
    %v2349 = vpack.c.b16 %v1581, %v1565
    %v2350 = vpack.c.b16 %v1582, %v1566
    %v2351 = vpack.c.b16 %v1583, %v1567
    %v2352 = vpack.c.b16 %v1584, %v1568
    %v2353 = vpack.c.b16 %v1585, %v1569
    %v2354 = vpack.c.b16 %v1586, %v1570
    %v2355 = vpack.c.b16 %v1587, %v1571
    %v2356 = vpack.c.b16 %v1588, %v1572
    %v2357 = vpack.c.b16 %v1589, %v1573
    %v2358 = vpack.c.b16 %v1590, %v1574
    %v2359 = vpack.c.b16 %v1591, %v1575
    %v2360 = vpack.c.b16 %v1608, %v1592
    %v2361 = vpack.c.b16 %v1609, %v1593
    %v2362 = vpack.c.b16 %v1610, %v1594
    %v2363 = vpack.c.b16 %v1611, %v1595
    %v2364 = vpack.c.b16 %v1612, %v1596
    %v2365 = vpack.c.b16 %v1613, %v1597
    %v2366 = vpack.c.b16 %v1614, %v1598
    %v2367 = vpack.c.b16 %v1615, %v1599
    %v2368 = vpack.c.b16 %v1616, %v1600
    %v2369 = vpack.c.b16 %v1617, %v1601
    %v2370 = vpack.c.b16 %v1618, %v1602
    %v2371 = vpack.c.b16 %v1619, %v1603
    %v2372 = vpack.c.b16 %v1620, %v1604
    %v2373 = vpack.c.b16 %v1621, %v1605
    %v2374 = vpack.c.b16 %v1622, %v1606
    %v2375 = vpack.c.b16 %v1623, %v1607
    %v2376 = vpack.c.b16 %v1640, %v1624
    %v2377 = vpack.c.b16 %v1641, %v1625
    %v2378 = vpack.c.b16 %v1642, %v1626
    %v2379 = vpack.c.b16 %v1643, %v1627
    %v2380 = vpack.c.b16 %v1644, %v1628
    %v2381 = vpack.c.b16 %v1645, %v1629
    %v2382 = vpack.c.b16 %v1646, %v1630
    %v2383 = vpack.c.b16 %v1647, %v1631
    %v2384 = vpack.c.b16 %v1648, %v1632
    %v2385 = vpack.c.b16 %v1649, %v1633
    %v2386 = vpack.c.b16 %v1650, %v1634
    %v2387 = vpack.c.b16 %v1651, %v1635
    %v2388 = vpack.c.b16 %v1652, %v1636
    %v2389 = vpack.c.b16 %v1653, %v1637
    %v2390 = vpack.c.b16 %v1654, %v1638
    %v2391 = vpack.c.b16 %v1655, %v1639
    %v2392 = vpack.c.b16 %v1672, %v1656
    %v2393 = vpack.c.b16 %v1673, %v1657
    %v2394 = vpack.c.b16 %v1674, %v1658
    %v2395 = vpack.c.b16 %v1675, %v1659
    %v2396 = vpack.c.b16 %v1676, %v1660
    %v2397 = vpack.c.b16 %v1677, %v1661
    %v2398 = vpack.c.b16 %v1678, %v1662
    %v2399 = vpack.c.b16 %v1679, %v1663
    %v2400 = vpack.c.b16 %v1680, %v1664
    %v2401 = vpack.c.b16 %v1681, %v1665
    %v2402 = vpack.c.b16 %v1682, %v1666
    %v2403 = vpack.c.b16 %v1683, %v1667
    %v2404 = vpack.c.b16 %v1684, %v1668
    %v2405 = vpack.c.b16 %v1685, %v1669
    %v2406 = vpack.c.b16 %v1686, %v1670
    %v2407 = vpack.c.b16 %v1687, %v1671
    %v2408 = vpack.c.b16 %v1704, %v1688
    %v2409 = vpack.c.b16 %v1705, %v1689
    %v2410 = vpack.c.b16 %v1706, %v1690
    %v2411 = vpack.c.b16 %v1707, %v1691
    %v2412 = vpack.c.b16 %v1708, %v1692
    %v2413 = vpack.c.b16 %v1709, %v1693
    %v2414 = vpack.c.b16 %v1710, %v1694
    %v2415 = vpack.c.b16 %v1711, %v1695
    %v2416 = vpack.c.b16 %v1712, %v1696
    %v2417 = vpack.c.b16 %v1713, %v1697
    %v2418 = vpack.c.b16 %v1714, %v1698
    %v2419 = vpack.c.b16 %v1715, %v1699
    %v2420 = vpack.c.b16 %v1716, %v1700
    %v2421 = vpack.c.b16 %v1717, %v1701
    %v2422 = vpack.c.b16 %v1718, %v1702
    %v2423 = vpack.c.b16 %v1719, %v1703
    %v2424 = vpack.c.b16 %v1736, %v1720
    %v2425 = vpack.c.b16 %v1737, %v1721
    %v2426 = vpack.c.b16 %v1738, %v1722
    %v2427 = vpack.c.b16 %v1739, %v1723
    %v2428 = vpack.c.b16 %v1740, %v1724
    %v2429 = vpack.c.b16 %v1741, %v1725
    %v2430 = vpack.c.b16 %v1742, %v1726
    %v2431 = vpack.c.b16 %v1743, %v1727
    %v2432 = vpack.c.b16 %v1744, %v1728
    %v2433 = vpack.c.b16 %v1745, %v1729
    %v2434 = vpack.c.b16 %v1746, %v1730
    %v2435 = vpack.c.b16 %v1747, %v1731
    %v2436 = vpack.c.b16 %v1748, %v1732
    %v2437 = vpack.c.b16 %v1749, %v1733
    %v2438 = vpack.c.b16 %v1750, %v1734
    %v2439 = vpack.c.b16 %v1751, %v1735
    %v2440 = vpack.c.b16 %v1768, %v1752
    %v2441 = vpack.c.b16 %v1769, %v1753
    %v2442 = vpack.c.b16 %v1770, %v1754
    %v2443 = vpack.c.b16 %v1771, %v1755
    %v2444 = vpack.c.b16 %v1772, %v1756
    %v2445 = vpack.c.b16 %v1773, %v1757
    %v2446 = vpack.c.b16 %v1774, %v1758
    %v2447 = vpack.c.b16 %v1775, %v1759
    %v2448 = vpack.c.b16 %v1776, %v1760
    %v2449 = vpack.c.b16 %v1777, %v1761
    %v2450 = vpack.c.b16 %v1778, %v1762
    %v2451 = vpack.c.b16 %v1779, %v1763
    %v2452 = vpack.c.b16 %v1780, %v1764
    %v2453 = vpack.c.b16 %v1781, %v1765
    %v2454 = vpack.c.b16 %v1782, %v1766
    %v2455 = vpack.c.b16 %v1783, %v1767
    %v2456 = vpack.c.b16 %v1800, %v1784
    %v2457 = vpack.c.b16 %v1801, %v1785
    %v2458 = vpack.c.b16 %v1802, %v1786
    %v2459 = vpack.c.b16 %v1803, %v1787
    %v2460 = vpack.c.b16 %v1804, %v1788
    %v2461 = vpack.c.b16 %v1805, %v1789
    %v2462 = vpack.c.b16 %v1806, %v1790
    %v2463 = vpack.c.b16 %v1807, %v1791
    %v2464 = vpack.c.b16 %v1808, %v1792
    %v2465 = vpack.c.b16 %v1809, %v1793
    %v2466 = vpack.c.b16 %v1810, %v1794
    %v2467 = vpack.c.b16 %v1811, %v1795
    %v2468 = vpack.c.b16 %v1812, %v1796
    %v2469 = vpack.c.b16 %v1813, %v1797
    %v2470 = vpack.c.b16 %v1814, %v1798
    %v2471 = vpack.c.b16 %v1815, %v1799
    %v2472 = vpack.c.b16 %v1832, %v1816
    %v2473 = vpack.c.b16 %v1833, %v1817
    %v2474 = vpack.c.b16 %v1834, %v1818
    %v2475 = vpack.c.b16 %v1835, %v1819
    %v2476 = vpack.c.b16 %v1836, %v1820
    %v2477 = vpack.c.b16 %v1837, %v1821
    %v2478 = vpack.c.b16 %v1838, %v1822
    %v2479 = vpack.c.b16 %v1839, %v1823
    %v2480 = vpack.c.b16 %v1840, %v1824
    %v2481 = vpack.c.b16 %v1841, %v1825
    %v2482 = vpack.c.b16 %v1842, %v1826
    %v2483 = vpack.c.b16 %v1843, %v1827
    %v2484 = vpack.c.b16 %v1844, %v1828
    %v2485 = vpack.c.b16 %v1845, %v1829
    %v2486 = vpack.c.b16 %v1846, %v1830
    %v2487 = vpack.c.b16 %v1847, %v1831
    %v2488 = vpack.c.b16 %v1864, %v1848
    %v2489 = vpack.c.b16 %v1865, %v1849
    %v2490 = vpack.c.b16 %v1866, %v1850
    %v2491 = vpack.c.b16 %v1867, %v1851
    %v2492 = vpack.c.b16 %v1868, %v1852
    %v2493 = vpack.c.b16 %v1869, %v1853
    %v2494 = vpack.c.b16 %v1870, %v1854
    %v2495 = vpack.c.b16 %v1871, %v1855
    %v2496 = vpack.c.b16 %v1872, %v1856
    %v2497 = vpack.c.b16 %v1873, %v1857
    %v2498 = vpack.c.b16 %v1874, %v1858
    %v2499 = vpack.c.b16 %v1875, %v1859
    %v2500 = vpack.c.b16 %v1876, %v1860
    %v2501 = vpack.c.b16 %v1877, %v1861
    %v2502 = vpack.c.b16 %v1878, %v1862
    %v2503 = vpack.c.b16 %v1879, %v1863
    %v2504 = vpack.c.b16 %v1896, %v1880
    %v2505 = vpack.c.b16 %v1897, %v1881
    %v2506 = vpack.c.b16 %v1898, %v1882
    %v2507 = vpack.c.b16 %v1899, %v1883
    %v2508 = vpack.c.b16 %v1900, %v1884
    %v2509 = vpack.c.b16 %v1901, %v1885
    %v2510 = vpack.c.b16 %v1902, %v1886
    %v2511 = vpack.c.b16 %v1903, %v1887
    %v2512 = vpack.c.b16 %v1904, %v1888
    %v2513 = vpack.c.b16 %v1905, %v1889
    %v2514 = vpack.c.b16 %v1906, %v1890
    %v2515 = vpack.c.b16 %v1907, %v1891
    %v2516 = vpack.c.b16 %v1908, %v1892
    %v2517 = vpack.c.b16 %v1909, %v1893
    %v2518 = vpack.c.b16 %v1910, %v1894
    %v2519 = vpack.c.b16 %v1911, %v1895
    %v2520 = vpack.c.b16 %v1928, %v1912
    %v2521 = vpack.c.b16 %v1929, %v1913
    %v2522 = vpack.c.b16 %v1930, %v1914
    %v2523 = vpack.c.b16 %v1931, %v1915
    %v2524 = vpack.c.b16 %v1932, %v1916
    %v2525 = vpack.c.b16 %v1933, %v1917
    %v2526 = vpack.c.b16 %v1934, %v1918
    %v2527 = vpack.c.b16 %v1935, %v1919
    %v2528 = vpack.c.b16 %v1936, %v1920
    %v2529 = vpack.c.b16 %v1937, %v1921
    %v2530 = vpack.c.b16 %v1938, %v1922
    %v2531 = vpack.c.b16 %v1939, %v1923
    %v2532 = vpack.c.b16 %v1940, %v1924
    %v2533 = vpack.c.b16 %v1941, %v1925
    %v2534 = vpack.c.b16 %v1942, %v1926
    %v2535 = vpack.c.b16 %v1943, %v1927
    %v2536 = vpack.c.b16 %v1960, %v1944
    %v2537 = vpack.c.b16 %v1961, %v1945
    %v2538 = vpack.c.b16 %v1962, %v1946
    %v2539 = vpack.c.b16 %v1963, %v1947
    %v2540 = vpack.c.b16 %v1964, %v1948
    %v2541 = vpack.c.b16 %v1965, %v1949
    %v2542 = vpack.c.b16 %v1966, %v1950
    %v2543 = vpack.c.b16 %v1967, %v1951
    %v2544 = vpack.c.b16 %v1968, %v1952
    %v2545 = vpack.c.b16 %v1969, %v1953
    %v2546 = vpack.c.b16 %v1970, %v1954
    %v2547 = vpack.c.b16 %v1971, %v1955
    %v2548 = vpack.c.b16 %v1972, %v1956
    %v2549 = vpack.c.b16 %v1973, %v1957
    %v2550 = vpack.c.b16 %v1974, %v1958
    %v2551 = vpack.c.b16 %v1975, %v1959
    %v2552 = vpack.c.b16 %v1992, %v1976
    %v2553 = vpack.c.b16 %v1993, %v1977
    %v2554 = vpack.c.b16 %v1994, %v1978
    %v2555 = vpack.c.b16 %v1995, %v1979
    %v2556 = vpack.c.b16 %v1996, %v1980
    %v2557 = vpack.c.b16 %v1997, %v1981
    %v2558 = vpack.c.b16 %v1998, %v1982
    %v2559 = vpack.c.b16 %v1999, %v1983
    %v2560 = vpack.c.b16 %v2000, %v1984
    %v2561 = vpack.c.b16 %v2001, %v1985
    %v2562 = vpack.c.b16 %v2002, %v1986
    %v2563 = vpack.c.b16 %v2003, %v1987
    %v2564 = vpack.c.b16 %v2004, %v1988
    %v2565 = vpack.c.b16 %v2005, %v1989
    %v2566 = vpack.c.b16 %v2006, %v1990
    %v2567 = vpack.c.b16 %v2007, %v1991
    %v2568 = vpack.c.b16 %v2024, %v2008
    %v2569 = vpack.c.b16 %v2025, %v2009
    %v2570 = vpack.c.b16 %v2026, %v2010
    %v2571 = vpack.c.b16 %v2027, %v2011
    %v2572 = vpack.c.b16 %v2028, %v2012
    %v2573 = vpack.c.b16 %v2029, %v2013
    %v2574 = vpack.c.b16 %v2030, %v2014
    %v2575 = vpack.c.b16 %v2031, %v2015
    %v2576 = vpack.c.b16 %v2032, %v2016
    %v2577 = vpack.c.b16 %v2033, %v2017
    %v2578 = vpack.c.b16 %v2034, %v2018
    %v2579 = vpack.c.b16 %v2035, %v2019
    %v2580 = vpack.c.b16 %v2036, %v2020
    %v2581 = vpack.c.b16 %v2037, %v2021
    %v2582 = vpack.c.b16 %v2038, %v2022
    %v2583 = vpack.c.b16 %v2039, %v2023
    %v2584 = vpack.c.b16 %v2056, %v2040
    %v2585 = vpack.c.b16 %v2057, %v2041
    %v2586 = vpack.c.b16 %v2058, %v2042
    %v2587 = vpack.c.b16 %v2059, %v2043
    %v2588 = vpack.c.b16 %v2060, %v2044
    %v2589 = vpack.c.b16 %v2061, %v2045
    %v2590 = vpack.c.b16 %v2062, %v2046
    %v2591 = vpack.c.b16 %v2063, %v2047
    %v2592 = vpack.c.b16 %v2064, %v2048
    %v2593 = vpack.c.b16 %v2065, %v2049
    %v2594 = vpack.c.b16 %v2066, %v2050
    %v2595 = vpack.c.b16 %v2067, %v2051
    %v2596 = vpack.c.b16 %v2068, %v2052
    %v2597 = vpack.c.b16 %v2069, %v2053
    %v2598 = vpack.c.b16 %v2070, %v2054
    %v2599 = vpack.c.b16 %v2071, %v2055
    %v2600 = vpack.c.b16 %v2088, %v2072
    %v2601 = vpack.c.b16 %v2089, %v2073
    %v2602 = vpack.c.b16 %v2090, %v2074
    %v2603 = vpack.c.b16 %v2091, %v2075
    %v2604 = vpack.c.b16 %v2092, %v2076
    %v2605 = vpack.c.b16 %v2093, %v2077
    %v2606 = vpack.c.b16 %v2094, %v2078
    %v2607 = vpack.c.b16 %v2095, %v2079
    %v2608 = vpack.c.b16 %v2096, %v2080
    %v2609 = vpack.c.b16 %v2097, %v2081
    %v2610 = vpack.c.b16 %v2098, %v2082
    %v2611 = vpack.c.b16 %v2099, %v2083
    %v2612 = vpack.c.b16 %v2100, %v2084
    %v2613 = vpack.c.b16 %v2101, %v2085
    %v2614 = vpack.c.b16 %v2102, %v2086
    %v2615 = vpack.c.b16 %v2103, %v2087
    %3128 = vmatprep.subr.bf16.mxu0 %v2217
    %3129 = vmatpush1.bf16.msra.mxu0 %v2216
    %3130 = vmatprep.subr.bf16.mxu0 %v2201
    %3131 = vmatpush1.bf16.msra.mxu0 %v2200
    %3132 = vmatprep.subr.bf16.mxu0 %v2185
    %3133 = vmatpush1.bf16.msra.mxu0 %v2184
    %3134 = vmatprep.subr.bf16.mxu0 %v2169
    %3135 = vmatpush1.bf16.msra.mxu0 %v2168
    %3136 = vmatprep.subr.bf16.mxu0 %v2153
    %3137 = vmatpush1.bf16.msra.mxu0 %v2152
    %3138 = vmatprep.subr.bf16.mxu0 %v2137
    %3139 = vmatpush1.bf16.msra.mxu0 %v2136
    %3140 = vmatprep.subr.bf16.mxu0 %v2121
    %3141 = vmatpush1.bf16.msra.mxu0 %v2120
    %3142 = vmatprep.subr.bf16.mxu0 %v2105
    %3143 = vmatpush1.bf16.msra.mxu0 %v2104
    %3144 = vmatprep.subr.bf16.mxu0 %v2345
    %3145 = vmatpush2.bf16.msra.mxu0 %v2344
    %3146 = vmatprep.subr.bf16.mxu0 %v2329
    %3147 = vmatpush2.bf16.msra.mxu0 %v2328
    %3148 = vmatprep.subr.bf16.mxu0 %v2313
    %3149 = vmatpush2.bf16.msra.mxu0 %v2312
    %3150 = vmatprep.subr.bf16.mxu0 %v2297
    %3151 = vmatpush2.bf16.msra.mxu0 %v2296
    %3152 = vmatprep.subr.bf16.mxu0 %v2281
    %3153 = vmatpush2.bf16.msra.mxu0 %v2280
    %3154 = vmatprep.subr.bf16.mxu0 %v2265
    %3155 = vmatpush2.bf16.msra.mxu0 %v2264
    %3156 = vmatprep.subr.bf16.mxu0 %v2249
    %3157 = vmatpush2.bf16.msra.mxu0 %v2248
    %3158 = vmatprep.subr.bf16.mxu0 %v2233
    %3159 = vmatpush2.bf16.msra.mxu0 %v2232
    %3160 = vmatprep.mubr.bf16.mxu0 %v53
    %3161 = vmatmul.mubr.bf16.gmra.mxu0 %v52
    %v3162 = vpop.f32.mrf.mxu0
    %v3163 = vadd.f32 0.0, %v3162
    %v3164 = vpop.f32.mrf.mxu0
    %v3165 = vadd.f32 0.0, %v3164
    %v3166 = vpop.f32.mrf.mxu0
    %v3167 = vpop.f32.mrf.mxu0
    %3168 = vdwg.mxu0
    %3169 = vmatprep.subr.bf16.mxu0 %v2473
    %3170 = vmatpush1.bf16.msra.mxu0 %v2472
    %3171 = vmatprep.subr.bf16.mxu0 %v2457
    %3172 = vmatpush1.bf16.msra.mxu0 %v2456
    %3173 = vmatprep.subr.bf16.mxu0 %v2441
    %3174 = vmatpush1.bf16.msra.mxu0 %v2440
    %3175 = vmatprep.subr.bf16.mxu0 %v2425
    %3176 = vmatpush1.bf16.msra.mxu0 %v2424
    %3177 = vmatprep.subr.bf16.mxu0 %v2409
    %3178 = vmatpush1.bf16.msra.mxu0 %v2408
    %3179 = vmatprep.subr.bf16.mxu0 %v2393
    %3180 = vmatpush1.bf16.msra.mxu0 %v2392
    %3181 = vmatprep.subr.bf16.mxu0 %v2377
    %3182 = vmatpush1.bf16.msra.mxu0 %v2376
    %3183 = vmatprep.subr.bf16.mxu0 %v2361
    %3184 = vmatpush1.bf16.msra.mxu0 %v2360
    %3185 = vmatprep.subr.bf16.mxu0 %v2601
    %3186 = vmatpush2.bf16.msra.mxu0 %v2600
    %3187 = vmatprep.subr.bf16.mxu0 %v2585
    %3188 = vmatpush2.bf16.msra.mxu0 %v2584
    %3189 = vmatprep.subr.bf16.mxu0 %v2569
    %3190 = vmatpush2.bf16.msra.mxu0 %v2568
    %3191 = vmatprep.subr.bf16.mxu0 %v2553
    %3192 = vmatpush2.bf16.msra.mxu0 %v2552
    %3193 = vmatprep.subr.bf16.mxu0 %v2537
    %3194 = vmatpush2.bf16.msra.mxu0 %v2536
    %3195 = vmatprep.subr.bf16.mxu0 %v2521
    %3196 = vmatpush2.bf16.msra.mxu0 %v2520
    %3197 = vmatprep.subr.bf16.mxu0 %v2505
    %3198 = vmatpush2.bf16.msra.mxu0 %v2504
    %3199 = vmatprep.subr.bf16.mxu0 %v2489
    %3200 = vmatpush2.bf16.msra.mxu0 %v2488
    %3201 = vmatprep.mubr.bf16.mxu0 %v55
    %3202 = vmatmul.mubr.bf16.gmra.mxu0 %v54
    %v3203 = vpop.f32.mrf.mxu0
    %v3204 = vadd.f32 %v3163, %v3203
    %v3205 = vpop.f32.mrf.mxu0
    %v3206 = vadd.f32 %v3165, %v3205
    %v3207 = vpop.f32.mrf.mxu0
    %v3208 = vpop.f32.mrf.mxu0
    %3209 = vdwg.mxu0
    %3210 = vmatprep.subr.bf16.mxu0 %v2219
    %3211 = vmatpush1.bf16.msra.mxu0 %v2218
    %3212 = vmatprep.subr.bf16.mxu0 %v2203
    %3213 = vmatpush1.bf16.msra.mxu0 %v2202
    %3214 = vmatprep.subr.bf16.mxu0 %v2187
    %3215 = vmatpush1.bf16.msra.mxu0 %v2186
    %3216 = vmatprep.subr.bf16.mxu0 %v2171
    %3217 = vmatpush1.bf16.msra.mxu0 %v2170
    %3218 = vmatprep.subr.bf16.mxu0 %v2155
    %3219 = vmatpush1.bf16.msra.mxu0 %v2154
    %3220 = vmatprep.subr.bf16.mxu0 %v2139
    %3221 = vmatpush1.bf16.msra.mxu0 %v2138
    %3222 = vmatprep.subr.bf16.mxu0 %v2123
    %3223 = vmatpush1.bf16.msra.mxu0 %v2122
    %3224 = vmatprep.subr.bf16.mxu0 %v2107
    %3225 = vmatpush1.bf16.msra.mxu0 %v2106
    %3226 = vmatprep.subr.bf16.mxu0 %v2347
    %3227 = vmatpush2.bf16.msra.mxu0 %v2346
    %3228 = vmatprep.subr.bf16.mxu0 %v2331
    %3229 = vmatpush2.bf16.msra.mxu0 %v2330
    %3230 = vmatprep.subr.bf16.mxu0 %v2315
    %3231 = vmatpush2.bf16.msra.mxu0 %v2314
    %3232 = vmatprep.subr.bf16.mxu0 %v2299
    %3233 = vmatpush2.bf16.msra.mxu0 %v2298
    %3234 = vmatprep.subr.bf16.mxu0 %v2283
    %3235 = vmatpush2.bf16.msra.mxu0 %v2282
    %3236 = vmatprep.subr.bf16.mxu0 %v2267
    %3237 = vmatpush2.bf16.msra.mxu0 %v2266
    %3238 = vmatprep.subr.bf16.mxu0 %v2251
    %3239 = vmatpush2.bf16.msra.mxu0 %v2250
    %3240 = vmatprep.subr.bf16.mxu0 %v2235
    %3241 = vmatpush2.bf16.msra.mxu0 %v2234
    %3242 = vmatprep.mubr.bf16.mxu0 %v53
    %3243 = vmatmul.mubr.bf16.gmra.mxu0 %v52
    %v3244 = vpop.f32.mrf.mxu0
    %v3245 = vadd.f32 0.0, %v3244
    %v3246 = vpop.f32.mrf.mxu0
    %v3247 = vadd.f32 0.0, %v3246
    %v3248 = vpop.f32.mrf.mxu0
    %v3249 = vpop.f32.mrf.mxu0
    %3250 = vdwg.mxu0
    %3251 = vmatprep.subr.bf16.mxu0 %v2475
    %3252 = vmatpush1.bf16.msra.mxu0 %v2474
    %3253 = vmatprep.subr.bf16.mxu0 %v2459
    %3254 = vmatpush1.bf16.msra.mxu0 %v2458
    %3255 = vmatprep.subr.bf16.mxu0 %v2443
    %3256 = vmatpush1.bf16.msra.mxu0 %v2442
    %3257 = vmatprep.subr.bf16.mxu0 %v2427
    %3258 = vmatpush1.bf16.msra.mxu0 %v2426
    %3259 = vmatprep.subr.bf16.mxu0 %v2411
    %3260 = vmatpush1.bf16.msra.mxu0 %v2410
    %3261 = vmatprep.subr.bf16.mxu0 %v2395
    %3262 = vmatpush1.bf16.msra.mxu0 %v2394
    %3263 = vmatprep.subr.bf16.mxu0 %v2379
    %3264 = vmatpush1.bf16.msra.mxu0 %v2378
    %3265 = vmatprep.subr.bf16.mxu0 %v2363
    %3266 = vmatpush1.bf16.msra.mxu0 %v2362
    %3267 = vmatprep.subr.bf16.mxu0 %v2603
    %3268 = vmatpush2.bf16.msra.mxu0 %v2602
    %3269 = vmatprep.subr.bf16.mxu0 %v2587
    %3270 = vmatpush2.bf16.msra.mxu0 %v2586
    %3271 = vmatprep.subr.bf16.mxu0 %v2571
    %3272 = vmatpush2.bf16.msra.mxu0 %v2570
    %3273 = vmatprep.subr.bf16.mxu0 %v2555
    %3274 = vmatpush2.bf16.msra.mxu0 %v2554
    %3275 = vmatprep.subr.bf16.mxu0 %v2539
    %3276 = vmatpush2.bf16.msra.mxu0 %v2538
    %3277 = vmatprep.subr.bf16.mxu0 %v2523
    %3278 = vmatpush2.bf16.msra.mxu0 %v2522
    %3279 = vmatprep.subr.bf16.mxu0 %v2507
    %3280 = vmatpush2.bf16.msra.mxu0 %v2506
    %3281 = vmatprep.subr.bf16.mxu0 %v2491
    %3282 = vmatpush2.bf16.msra.mxu0 %v2490
    %3283 = vmatprep.mubr.bf16.mxu0 %v55
    %3284 = vmatmul.mubr.bf16.gmra.mxu0 %v54
    %v3285 = vpop.f32.mrf.mxu0
    %v3286 = vadd.f32 %v3245, %v3285
    %v3287 = vpop.f32.mrf.mxu0
    %v3288 = vadd.f32 %v3247, %v3287
    %v3289 = vpop.f32.mrf.mxu0
    %v3290 = vpop.f32.mrf.mxu0
    %3291 = vdwg.mxu0
    %3292 = vmatprep.subr.bf16.mxu0 %v2221
    %3293 = vmatpush1.bf16.msra.mxu0 %v2220
    %3294 = vmatprep.subr.bf16.mxu0 %v2205
    %3295 = vmatpush1.bf16.msra.mxu0 %v2204
    %3296 = vmatprep.subr.bf16.mxu0 %v2189
    %3297 = vmatpush1.bf16.msra.mxu0 %v2188
    %3298 = vmatprep.subr.bf16.mxu0 %v2173
    %3299 = vmatpush1.bf16.msra.mxu0 %v2172
    %3300 = vmatprep.subr.bf16.mxu0 %v2157
    %3301 = vmatpush1.bf16.msra.mxu0 %v2156
    %3302 = vmatprep.subr.bf16.mxu0 %v2141
    %3303 = vmatpush1.bf16.msra.mxu0 %v2140
    %3304 = vmatprep.subr.bf16.mxu0 %v2125
    %3305 = vmatpush1.bf16.msra.mxu0 %v2124
    %3306 = vmatprep.subr.bf16.mxu0 %v2109
    %3307 = vmatpush1.bf16.msra.mxu0 %v2108
    %3308 = vmatprep.subr.bf16.mxu0 %v2349
    %3309 = vmatpush2.bf16.msra.mxu0 %v2348
    %3310 = vmatprep.subr.bf16.mxu0 %v2333
    %3311 = vmatpush2.bf16.msra.mxu0 %v2332
    %3312 = vmatprep.subr.bf16.mxu0 %v2317
    %3313 = vmatpush2.bf16.msra.mxu0 %v2316
    %3314 = vmatprep.subr.bf16.mxu0 %v2301
    %3315 = vmatpush2.bf16.msra.mxu0 %v2300
    %3316 = vmatprep.subr.bf16.mxu0 %v2285
    %3317 = vmatpush2.bf16.msra.mxu0 %v2284
    %3318 = vmatprep.subr.bf16.mxu0 %v2269
    %3319 = vmatpush2.bf16.msra.mxu0 %v2268
    %3320 = vmatprep.subr.bf16.mxu0 %v2253
    %3321 = vmatpush2.bf16.msra.mxu0 %v2252
    %3322 = vmatprep.subr.bf16.mxu0 %v2237
    %3323 = vmatpush2.bf16.msra.mxu0 %v2236
    %3324 = vmatprep.mubr.bf16.mxu0 %v53
    %3325 = vmatmul.mubr.bf16.gmra.mxu0 %v52
    %v3326 = vpop.f32.mrf.mxu0
    %v3327 = vadd.f32 0.0, %v3326
    %v3328 = vpop.f32.mrf.mxu0
    %v3329 = vadd.f32 0.0, %v3328
    %v3330 = vpop.f32.mrf.mxu0
    %v3331 = vpop.f32.mrf.mxu0
    %3332 = vdwg.mxu0
    %3333 = vmatprep.subr.bf16.mxu0 %v2477
    %3334 = vmatpush1.bf16.msra.mxu0 %v2476
    %3335 = vmatprep.subr.bf16.mxu0 %v2461
    %3336 = vmatpush1.bf16.msra.mxu0 %v2460
    %3337 = vmatprep.subr.bf16.mxu0 %v2445
    %3338 = vmatpush1.bf16.msra.mxu0 %v2444
    %3339 = vmatprep.subr.bf16.mxu0 %v2429
    %3340 = vmatpush1.bf16.msra.mxu0 %v2428
    %3341 = vmatprep.subr.bf16.mxu0 %v2413
    %3342 = vmatpush1.bf16.msra.mxu0 %v2412
    %3343 = vmatprep.subr.bf16.mxu0 %v2397
    %3344 = vmatpush1.bf16.msra.mxu0 %v2396
    %3345 = vmatprep.subr.bf16.mxu0 %v2381
    %3346 = vmatpush1.bf16.msra.mxu0 %v2380
    %3347 = vmatprep.subr.bf16.mxu0 %v2365
    %3348 = vmatpush1.bf16.msra.mxu0 %v2364
    %3349 = vmatprep.subr.bf16.mxu0 %v2605
    %3350 = vmatpush2.bf16.msra.mxu0 %v2604
    %3351 = vmatprep.subr.bf16.mxu0 %v2589
    %3352 = vmatpush2.bf16.msra.mxu0 %v2588
    %3353 = vmatprep.subr.bf16.mxu0 %v2573
    %3354 = vmatpush2.bf16.msra.mxu0 %v2572
    %3355 = vmatprep.subr.bf16.mxu0 %v2557
    %3356 = vmatpush2.bf16.msra.mxu0 %v2556
    %3357 = vmatprep.subr.bf16.mxu0 %v2541
    %3358 = vmatpush2.bf16.msra.mxu0 %v2540
    %3359 = vmatprep.subr.bf16.mxu0 %v2525
    %3360 = vmatpush2.bf16.msra.mxu0 %v2524
    %3361 = vmatprep.subr.bf16.mxu0 %v2509
    %3362 = vmatpush2.bf16.msra.mxu0 %v2508
    %3363 = vmatprep.subr.bf16.mxu0 %v2493
    %3364 = vmatpush2.bf16.msra.mxu0 %v2492
    %3365 = vmatprep.mubr.bf16.mxu0 %v55
    %3366 = vmatmul.mubr.bf16.gmra.mxu0 %v54
    %v3367 = vpop.f32.mrf.mxu0
    %v3368 = vadd.f32 %v3327, %v3367
    %v3369 = vpop.f32.mrf.mxu0
    %v3370 = vadd.f32 %v3329, %v3369
    %v3371 = vpop.f32.mrf.mxu0
    %v3372 = vpop.f32.mrf.mxu0
    %3373 = vdwg.mxu0
    %3374 = vmatprep.subr.bf16.mxu0 %v2223
    %3375 = vmatpush1.bf16.msra.mxu0 %v2222
    %3376 = vmatprep.subr.bf16.mxu0 %v2207
    %3377 = vmatpush1.bf16.msra.mxu0 %v2206
    %3378 = vmatprep.subr.bf16.mxu0 %v2191
    %3379 = vmatpush1.bf16.msra.mxu0 %v2190
    %3380 = vmatprep.subr.bf16.mxu0 %v2175
    %3381 = vmatpush1.bf16.msra.mxu0 %v2174
    %3382 = vmatprep.subr.bf16.mxu0 %v2159
    %3383 = vmatpush1.bf16.msra.mxu0 %v2158
    %3384 = vmatprep.subr.bf16.mxu0 %v2143
    %3385 = vmatpush1.bf16.msra.mxu0 %v2142
    %3386 = vmatprep.subr.bf16.mxu0 %v2127
    %3387 = vmatpush1.bf16.msra.mxu0 %v2126
    %3388 = vmatprep.subr.bf16.mxu0 %v2111
    %3389 = vmatpush1.bf16.msra.mxu0 %v2110
    %3390 = vmatprep.subr.bf16.mxu0 %v2351
    %3391 = vmatpush2.bf16.msra.mxu0 %v2350
    %3392 = vmatprep.subr.bf16.mxu0 %v2335
    %3393 = vmatpush2.bf16.msra.mxu0 %v2334
    %3394 = vmatprep.subr.bf16.mxu0 %v2319
    %3395 = vmatpush2.bf16.msra.mxu0 %v2318
    %3396 = vmatprep.subr.bf16.mxu0 %v2303
    %3397 = vmatpush2.bf16.msra.mxu0 %v2302
    %3398 = vmatprep.subr.bf16.mxu0 %v2287
    %3399 = vmatpush2.bf16.msra.mxu0 %v2286
    %3400 = vmatprep.subr.bf16.mxu0 %v2271
    %3401 = vmatpush2.bf16.msra.mxu0 %v2270
    %3402 = vmatprep.subr.bf16.mxu0 %v2255
    %3403 = vmatpush2.bf16.msra.mxu0 %v2254
    %3404 = vmatprep.subr.bf16.mxu0 %v2239
    %3405 = vmatpush2.bf16.msra.mxu0 %v2238
    %3406 = vmatprep.mubr.bf16.mxu0 %v53
    %3407 = vmatmul.mubr.bf16.gmra.mxu0 %v52
    %v3408 = vpop.f32.mrf.mxu0
    %v3409 = vadd.f32 0.0, %v3408
    %v3410 = vpop.f32.mrf.mxu0
    %v3411 = vadd.f32 0.0, %v3410
    %v3412 = vpop.f32.mrf.mxu0
    %v3413 = vpop.f32.mrf.mxu0
    %3414 = vdwg.mxu0
    %3415 = vmatprep.subr.bf16.mxu0 %v2479
    %3416 = vmatpush1.bf16.msra.mxu0 %v2478
    %3417 = vmatprep.subr.bf16.mxu0 %v2463
    %3418 = vmatpush1.bf16.msra.mxu0 %v2462
    %3419 = vmatprep.subr.bf16.mxu0 %v2447
    %3420 = vmatpush1.bf16.msra.mxu0 %v2446
    %3421 = vmatprep.subr.bf16.mxu0 %v2431
    %3422 = vmatpush1.bf16.msra.mxu0 %v2430
    %3423 = vmatprep.subr.bf16.mxu0 %v2415
    %3424 = vmatpush1.bf16.msra.mxu0 %v2414
    %3425 = vmatprep.subr.bf16.mxu0 %v2399
    %3426 = vmatpush1.bf16.msra.mxu0 %v2398
    %3427 = vmatprep.subr.bf16.mxu0 %v2383
    %3428 = vmatpush1.bf16.msra.mxu0 %v2382
    %3429 = vmatprep.subr.bf16.mxu0 %v2367
    %3430 = vmatpush1.bf16.msra.mxu0 %v2366
    %3431 = vmatprep.subr.bf16.mxu0 %v2607
    %3432 = vmatpush2.bf16.msra.mxu0 %v2606
    %3433 = vmatprep.subr.bf16.mxu0 %v2591
    %3434 = vmatpush2.bf16.msra.mxu0 %v2590
    %3435 = vmatprep.subr.bf16.mxu0 %v2575
    %3436 = vmatpush2.bf16.msra.mxu0 %v2574
    %3437 = vmatprep.subr.bf16.mxu0 %v2559
    %3438 = vmatpush2.bf16.msra.mxu0 %v2558
    %3439 = vmatprep.subr.bf16.mxu0 %v2543
    %3440 = vmatpush2.bf16.msra.mxu0 %v2542
    %3441 = vmatprep.subr.bf16.mxu0 %v2527
    %3442 = vmatpush2.bf16.msra.mxu0 %v2526
    %3443 = vmatprep.subr.bf16.mxu0 %v2511
    %3444 = vmatpush2.bf16.msra.mxu0 %v2510
    %3445 = vmatprep.subr.bf16.mxu0 %v2495
    %3446 = vmatpush2.bf16.msra.mxu0 %v2494
    %3447 = vmatprep.mubr.bf16.mxu0 %v55
    %3448 = vmatmul.mubr.bf16.gmra.mxu0 %v54
    %v3449 = vpop.f32.mrf.mxu0
    %v3450 = vadd.f32 %v3409, %v3449
    %v3451 = vpop.f32.mrf.mxu0
    %v3452 = vadd.f32 %v3411, %v3451
    %v3453 = vpop.f32.mrf.mxu0
    %v3454 = vpop.f32.mrf.mxu0
    %3455 = vdwg.mxu0
    %3456 = vmatprep.subr.bf16.mxu0 %v2225
    %3457 = vmatpush1.bf16.msra.mxu0 %v2224
    %3458 = vmatprep.subr.bf16.mxu0 %v2209
    %3459 = vmatpush1.bf16.msra.mxu0 %v2208
    %3460 = vmatprep.subr.bf16.mxu0 %v2193
    %3461 = vmatpush1.bf16.msra.mxu0 %v2192
    %3462 = vmatprep.subr.bf16.mxu0 %v2177
    %3463 = vmatpush1.bf16.msra.mxu0 %v2176
    %3464 = vmatprep.subr.bf16.mxu0 %v2161
    %3465 = vmatpush1.bf16.msra.mxu0 %v2160
    %3466 = vmatprep.subr.bf16.mxu0 %v2145
    %3467 = vmatpush1.bf16.msra.mxu0 %v2144
    %3468 = vmatprep.subr.bf16.mxu0 %v2129
    %3469 = vmatpush1.bf16.msra.mxu0 %v2128
    %3470 = vmatprep.subr.bf16.mxu0 %v2113
    %3471 = vmatpush1.bf16.msra.mxu0 %v2112
    %3472 = vmatprep.subr.bf16.mxu0 %v2353
    %3473 = vmatpush2.bf16.msra.mxu0 %v2352
    %3474 = vmatprep.subr.bf16.mxu0 %v2337
    %3475 = vmatpush2.bf16.msra.mxu0 %v2336
    %3476 = vmatprep.subr.bf16.mxu0 %v2321
    %3477 = vmatpush2.bf16.msra.mxu0 %v2320
    %3478 = vmatprep.subr.bf16.mxu0 %v2305
    %3479 = vmatpush2.bf16.msra.mxu0 %v2304
    %3480 = vmatprep.subr.bf16.mxu0 %v2289
    %3481 = vmatpush2.bf16.msra.mxu0 %v2288
    %3482 = vmatprep.subr.bf16.mxu0 %v2273
    %3483 = vmatpush2.bf16.msra.mxu0 %v2272
    %3484 = vmatprep.subr.bf16.mxu0 %v2257
    %3485 = vmatpush2.bf16.msra.mxu0 %v2256
    %3486 = vmatprep.subr.bf16.mxu0 %v2241
    %3487 = vmatpush2.bf16.msra.mxu0 %v2240
    %3488 = vmatprep.mubr.bf16.mxu0 %v53
    %3489 = vmatmul.mubr.bf16.gmra.mxu0 %v52
    %v3490 = vpop.f32.mrf.mxu0
    %v3491 = vadd.f32 0.0, %v3490
    %v3492 = vpop.f32.mrf.mxu0
    %v3493 = vadd.f32 0.0, %v3492
    %v3494 = vpop.f32.mrf.mxu0
    %v3495 = vpop.f32.mrf.mxu0
    %3496 = vdwg.mxu0
    %3497 = vmatprep.subr.bf16.mxu0 %v2481
    %3498 = vmatpush1.bf16.msra.mxu0 %v2480
    %3499 = vmatprep.subr.bf16.mxu0 %v2465
    %3500 = vmatpush1.bf16.msra.mxu0 %v2464
    %3501 = vmatprep.subr.bf16.mxu0 %v2449
    %3502 = vmatpush1.bf16.msra.mxu0 %v2448
    %3503 = vmatprep.subr.bf16.mxu0 %v2433
    %3504 = vmatpush1.bf16.msra.mxu0 %v2432
    %3505 = vmatprep.subr.bf16.mxu0 %v2417
    %3506 = vmatpush1.bf16.msra.mxu0 %v2416
    %3507 = vmatprep.subr.bf16.mxu0 %v2401
    %3508 = vmatpush1.bf16.msra.mxu0 %v2400
    %3509 = vmatprep.subr.bf16.mxu0 %v2385
    %3510 = vmatpush1.bf16.msra.mxu0 %v2384
    %3511 = vmatprep.subr.bf16.mxu0 %v2369
    %3512 = vmatpush1.bf16.msra.mxu0 %v2368
    %3513 = vmatprep.subr.bf16.mxu0 %v2609
    %3514 = vmatpush2.bf16.msra.mxu0 %v2608
    %3515 = vmatprep.subr.bf16.mxu0 %v2593
    %3516 = vmatpush2.bf16.msra.mxu0 %v2592
    %3517 = vmatprep.subr.bf16.mxu0 %v2577
    %3518 = vmatpush2.bf16.msra.mxu0 %v2576
    %3519 = vmatprep.subr.bf16.mxu0 %v2561
    %3520 = vmatpush2.bf16.msra.mxu0 %v2560
    %3521 = vmatprep.subr.bf16.mxu0 %v2545
    %3522 = vmatpush2.bf16.msra.mxu0 %v2544
    %3523 = vmatprep.subr.bf16.mxu0 %v2529
    %3524 = vmatpush2.bf16.msra.mxu0 %v2528
    %3525 = vmatprep.subr.bf16.mxu0 %v2513
    %3526 = vmatpush2.bf16.msra.mxu0 %v2512
    %3527 = vmatprep.subr.bf16.mxu0 %v2497
    %3528 = vmatpush2.bf16.msra.mxu0 %v2496
    %3529 = vmatprep.mubr.bf16.mxu0 %v55
    %3530 = vmatmul.mubr.bf16.gmra.mxu0 %v54
    %v3531 = vpop.f32.mrf.mxu0
    %v3532 = vadd.f32 %v3491, %v3531
    %v3533 = vpop.f32.mrf.mxu0
    %v3534 = vadd.f32 %v3493, %v3533
    %v3535 = vpop.f32.mrf.mxu0
    %v3536 = vpop.f32.mrf.mxu0
    %3537 = vdwg.mxu0
    %3538 = vmatprep.subr.bf16.mxu0 %v2227
    %3539 = vmatpush1.bf16.msra.mxu0 %v2226
    %3540 = vmatprep.subr.bf16.mxu0 %v2211
    %3541 = vmatpush1.bf16.msra.mxu0 %v2210
    %3542 = vmatprep.subr.bf16.mxu0 %v2195
    %3543 = vmatpush1.bf16.msra.mxu0 %v2194
    %3544 = vmatprep.subr.bf16.mxu0 %v2179
    %3545 = vmatpush1.bf16.msra.mxu0 %v2178
    %3546 = vmatprep.subr.bf16.mxu0 %v2163
    %3547 = vmatpush1.bf16.msra.mxu0 %v2162
    %3548 = vmatprep.subr.bf16.mxu0 %v2147
    %3549 = vmatpush1.bf16.msra.mxu0 %v2146
    %3550 = vmatprep.subr.bf16.mxu0 %v2131
    %3551 = vmatpush1.bf16.msra.mxu0 %v2130
    %3552 = vmatprep.subr.bf16.mxu0 %v2115
    %3553 = vmatpush1.bf16.msra.mxu0 %v2114
    %3554 = vmatprep.subr.bf16.mxu0 %v2355
    %3555 = vmatpush2.bf16.msra.mxu0 %v2354
    %3556 = vmatprep.subr.bf16.mxu0 %v2339
    %3557 = vmatpush2.bf16.msra.mxu0 %v2338
    %3558 = vmatprep.subr.bf16.mxu0 %v2323
    %3559 = vmatpush2.bf16.msra.mxu0 %v2322
    %3560 = vmatprep.subr.bf16.mxu0 %v2307
    %3561 = vmatpush2.bf16.msra.mxu0 %v2306
    %3562 = vmatprep.subr.bf16.mxu0 %v2291
    %3563 = vmatpush2.bf16.msra.mxu0 %v2290
    %3564 = vmatprep.subr.bf16.mxu0 %v2275
    %3565 = vmatpush2.bf16.msra.mxu0 %v2274
    %3566 = vmatprep.subr.bf16.mxu0 %v2259
    %3567 = vmatpush2.bf16.msra.mxu0 %v2258
    %3568 = vmatprep.subr.bf16.mxu0 %v2243
    %3569 = vmatpush2.bf16.msra.mxu0 %v2242
    %3570 = vmatprep.mubr.bf16.mxu0 %v53
    %3571 = vmatmul.mubr.bf16.gmra.mxu0 %v52
    %v3572 = vpop.f32.mrf.mxu0
    %v3573 = vadd.f32 0.0, %v3572
    %v3574 = vpop.f32.mrf.mxu0
    %v3575 = vadd.f32 0.0, %v3574
    %v3576 = vpop.f32.mrf.mxu0
    %v3577 = vpop.f32.mrf.mxu0
    %3578 = vdwg.mxu0
    %3579 = vmatprep.subr.bf16.mxu0 %v2483
    %3580 = vmatpush1.bf16.msra.mxu0 %v2482
    %3581 = vmatprep.subr.bf16.mxu0 %v2467
    %3582 = vmatpush1.bf16.msra.mxu0 %v2466
    %3583 = vmatprep.subr.bf16.mxu0 %v2451
    %3584 = vmatpush1.bf16.msra.mxu0 %v2450
    %3585 = vmatprep.subr.bf16.mxu0 %v2435
    %3586 = vmatpush1.bf16.msra.mxu0 %v2434
    %3587 = vmatprep.subr.bf16.mxu0 %v2419
    %3588 = vmatpush1.bf16.msra.mxu0 %v2418
    %3589 = vmatprep.subr.bf16.mxu0 %v2403
    %3590 = vmatpush1.bf16.msra.mxu0 %v2402
    %3591 = vmatprep.subr.bf16.mxu0 %v2387
    %3592 = vmatpush1.bf16.msra.mxu0 %v2386
    %3593 = vmatprep.subr.bf16.mxu0 %v2371
    %3594 = vmatpush1.bf16.msra.mxu0 %v2370
    %3595 = vmatprep.subr.bf16.mxu0 %v2611
    %3596 = vmatpush2.bf16.msra.mxu0 %v2610
    %3597 = vmatprep.subr.bf16.mxu0 %v2595
    %3598 = vmatpush2.bf16.msra.mxu0 %v2594
    %3599 = vmatprep.subr.bf16.mxu0 %v2579
    %3600 = vmatpush2.bf16.msra.mxu0 %v2578
    %3601 = vmatprep.subr.bf16.mxu0 %v2563
    %3602 = vmatpush2.bf16.msra.mxu0 %v2562
    %3603 = vmatprep.subr.bf16.mxu0 %v2547
    %3604 = vmatpush2.bf16.msra.mxu0 %v2546
    %3605 = vmatprep.subr.bf16.mxu0 %v2531
    %3606 = vmatpush2.bf16.msra.mxu0 %v2530
    %3607 = vmatprep.subr.bf16.mxu0 %v2515
    %3608 = vmatpush2.bf16.msra.mxu0 %v2514
    %3609 = vmatprep.subr.bf16.mxu0 %v2499
    %3610 = vmatpush2.bf16.msra.mxu0 %v2498
    %3611 = vmatprep.mubr.bf16.mxu0 %v55
    %3612 = vmatmul.mubr.bf16.gmra.mxu0 %v54
    %v3613 = vpop.f32.mrf.mxu0
    %v3614 = vadd.f32 %v3573, %v3613
    %v3615 = vpop.f32.mrf.mxu0
    %v3616 = vadd.f32 %v3575, %v3615
    %v3617 = vpop.f32.mrf.mxu0
    %v3618 = vpop.f32.mrf.mxu0
    %3619 = vdwg.mxu0
    %3620 = vmatprep.subr.bf16.mxu0 %v2229
    %3621 = vmatpush1.bf16.msra.mxu0 %v2228
    %3622 = vmatprep.subr.bf16.mxu0 %v2213
    %3623 = vmatpush1.bf16.msra.mxu0 %v2212
    %3624 = vmatprep.subr.bf16.mxu0 %v2197
    %3625 = vmatpush1.bf16.msra.mxu0 %v2196
    %3626 = vmatprep.subr.bf16.mxu0 %v2181
    %3627 = vmatpush1.bf16.msra.mxu0 %v2180
    %3628 = vmatprep.subr.bf16.mxu0 %v2165
    %3629 = vmatpush1.bf16.msra.mxu0 %v2164
    %3630 = vmatprep.subr.bf16.mxu0 %v2149
    %3631 = vmatpush1.bf16.msra.mxu0 %v2148
    %3632 = vmatprep.subr.bf16.mxu0 %v2133
    %3633 = vmatpush1.bf16.msra.mxu0 %v2132
    %3634 = vmatprep.subr.bf16.mxu0 %v2117
    %3635 = vmatpush1.bf16.msra.mxu0 %v2116
    %3636 = vmatprep.subr.bf16.mxu0 %v2357
    %3637 = vmatpush2.bf16.msra.mxu0 %v2356
    %3638 = vmatprep.subr.bf16.mxu0 %v2341
    %3639 = vmatpush2.bf16.msra.mxu0 %v2340
    %3640 = vmatprep.subr.bf16.mxu0 %v2325
    %3641 = vmatpush2.bf16.msra.mxu0 %v2324
    %3642 = vmatprep.subr.bf16.mxu0 %v2309
    %3643 = vmatpush2.bf16.msra.mxu0 %v2308
    %3644 = vmatprep.subr.bf16.mxu0 %v2293
    %3645 = vmatpush2.bf16.msra.mxu0 %v2292
    %3646 = vmatprep.subr.bf16.mxu0 %v2277
    %3647 = vmatpush2.bf16.msra.mxu0 %v2276
    %3648 = vmatprep.subr.bf16.mxu0 %v2261
    %3649 = vmatpush2.bf16.msra.mxu0 %v2260
    %3650 = vmatprep.subr.bf16.mxu0 %v2245
    %3651 = vmatpush2.bf16.msra.mxu0 %v2244
    %3652 = vmatprep.mubr.bf16.mxu0 %v53
    %3653 = vmatmul.mubr.bf16.gmra.mxu0 %v52
    %v3654 = vpop.f32.mrf.mxu0
    %v3655 = vadd.f32 0.0, %v3654
    %v3656 = vpop.f32.mrf.mxu0
    %v3657 = vadd.f32 0.0, %v3656
    %v3658 = vpop.f32.mrf.mxu0
    %v3659 = vpop.f32.mrf.mxu0
    %3660 = vdwg.mxu0
    %3661 = vmatprep.subr.bf16.mxu0 %v2485
    %3662 = vmatpush1.bf16.msra.mxu0 %v2484
    %3663 = vmatprep.subr.bf16.mxu0 %v2469
    %3664 = vmatpush1.bf16.msra.mxu0 %v2468
    %3665 = vmatprep.subr.bf16.mxu0 %v2453
    %3666 = vmatpush1.bf16.msra.mxu0 %v2452
    %3667 = vmatprep.subr.bf16.mxu0 %v2437
    %3668 = vmatpush1.bf16.msra.mxu0 %v2436
    %3669 = vmatprep.subr.bf16.mxu0 %v2421
    %3670 = vmatpush1.bf16.msra.mxu0 %v2420
    %3671 = vmatprep.subr.bf16.mxu0 %v2405
    %3672 = vmatpush1.bf16.msra.mxu0 %v2404
    %3673 = vmatprep.subr.bf16.mxu0 %v2389
    %3674 = vmatpush1.bf16.msra.mxu0 %v2388
    %3675 = vmatprep.subr.bf16.mxu0 %v2373
    %3676 = vmatpush1.bf16.msra.mxu0 %v2372
    %3677 = vmatprep.subr.bf16.mxu0 %v2613
    %3678 = vmatpush2.bf16.msra.mxu0 %v2612
    %3679 = vmatprep.subr.bf16.mxu0 %v2597
    %3680 = vmatpush2.bf16.msra.mxu0 %v2596
    %3681 = vmatprep.subr.bf16.mxu0 %v2581
    %3682 = vmatpush2.bf16.msra.mxu0 %v2580
    %3683 = vmatprep.subr.bf16.mxu0 %v2565
    %3684 = vmatpush2.bf16.msra.mxu0 %v2564
    %3685 = vmatprep.subr.bf16.mxu0 %v2549
    %3686 = vmatpush2.bf16.msra.mxu0 %v2548
    %3687 = vmatprep.subr.bf16.mxu0 %v2533
    %3688 = vmatpush2.bf16.msra.mxu0 %v2532
    %3689 = vmatprep.subr.bf16.mxu0 %v2517
    %3690 = vmatpush2.bf16.msra.mxu0 %v2516
    %3691 = vmatprep.subr.bf16.mxu0 %v2501
    %3692 = vmatpush2.bf16.msra.mxu0 %v2500
    %3693 = vmatprep.mubr.bf16.mxu0 %v55
    %3694 = vmatmul.mubr.bf16.gmra.mxu0 %v54
    %v3695 = vpop.f32.mrf.mxu0
    %v3696 = vadd.f32 %v3655, %v3695
    %v3697 = vpop.f32.mrf.mxu0
    %v3698 = vadd.f32 %v3657, %v3697
    %v3699 = vpop.f32.mrf.mxu0
    %v3700 = vpop.f32.mrf.mxu0
    %3701 = vdwg.mxu0
    %3702 = vmatprep.subr.bf16.mxu0 %v2231
    %3703 = vmatpush1.bf16.msra.mxu0 %v2230
    %3704 = vmatprep.subr.bf16.mxu0 %v2215
    %3705 = vmatpush1.bf16.msra.mxu0 %v2214
    %3706 = vmatprep.subr.bf16.mxu0 %v2199
    %3707 = vmatpush1.bf16.msra.mxu0 %v2198
    %3708 = vmatprep.subr.bf16.mxu0 %v2183
    %3709 = vmatpush1.bf16.msra.mxu0 %v2182
    %3710 = vmatprep.subr.bf16.mxu0 %v2167
    %3711 = vmatpush1.bf16.msra.mxu0 %v2166
    %3712 = vmatprep.subr.bf16.mxu0 %v2151
    %3713 = vmatpush1.bf16.msra.mxu0 %v2150
    %3714 = vmatprep.subr.bf16.mxu0 %v2135
    %3715 = vmatpush1.bf16.msra.mxu0 %v2134
    %3716 = vmatprep.subr.bf16.mxu0 %v2119
    %3717 = vmatpush1.bf16.msra.mxu0 %v2118
    %3718 = vmatprep.subr.bf16.mxu0 %v2359
    %3719 = vmatpush2.bf16.msra.mxu0 %v2358
    %3720 = vmatprep.subr.bf16.mxu0 %v2343
    %3721 = vmatpush2.bf16.msra.mxu0 %v2342
    %3722 = vmatprep.subr.bf16.mxu0 %v2327
    %3723 = vmatpush2.bf16.msra.mxu0 %v2326
    %3724 = vmatprep.subr.bf16.mxu0 %v2311
    %3725 = vmatpush2.bf16.msra.mxu0 %v2310
    %3726 = vmatprep.subr.bf16.mxu0 %v2295
    %3727 = vmatpush2.bf16.msra.mxu0 %v2294
    %3728 = vmatprep.subr.bf16.mxu0 %v2279
    %3729 = vmatpush2.bf16.msra.mxu0 %v2278
    %3730 = vmatprep.subr.bf16.mxu0 %v2263
    %3731 = vmatpush2.bf16.msra.mxu0 %v2262
    %3732 = vmatprep.subr.bf16.mxu0 %v2247
    %3733 = vmatpush2.bf16.msra.mxu0 %v2246
    %3734 = vmatprep.mubr.bf16.mxu0 %v53
    %3735 = vmatmul.mubr.bf16.gmra.mxu0 %v52
    %v3736 = vpop.f32.mrf.mxu0
    %v3737 = vadd.f32 0.0, %v3736
    %v3738 = vpop.f32.mrf.mxu0
    %v3739 = vadd.f32 0.0, %v3738
    %v3740 = vpop.f32.mrf.mxu0
    %v3741 = vpop.f32.mrf.mxu0
    %3742 = vdwg.mxu0
    %3743 = vmatprep.subr.bf16.mxu0 %v2487
    %3744 = vmatpush1.bf16.msra.mxu0 %v2486
    %3745 = vmatprep.subr.bf16.mxu0 %v2471
    %3746 = vmatpush1.bf16.msra.mxu0 %v2470
    %3747 = vmatprep.subr.bf16.mxu0 %v2455
    %3748 = vmatpush1.bf16.msra.mxu0 %v2454
    %3749 = vmatprep.subr.bf16.mxu0 %v2439
    %3750 = vmatpush1.bf16.msra.mxu0 %v2438
    %3751 = vmatprep.subr.bf16.mxu0 %v2423
    %3752 = vmatpush1.bf16.msra.mxu0 %v2422
    %3753 = vmatprep.subr.bf16.mxu0 %v2407
    %3754 = vmatpush1.bf16.msra.mxu0 %v2406
    %3755 = vmatprep.subr.bf16.mxu0 %v2391
    %3756 = vmatpush1.bf16.msra.mxu0 %v2390
    %3757 = vmatprep.subr.bf16.mxu0 %v2375
    %3758 = vmatpush1.bf16.msra.mxu0 %v2374
    %3759 = vmatprep.subr.bf16.mxu0 %v2615
    %3760 = vmatpush2.bf16.msra.mxu0 %v2614
    %3761 = vmatprep.subr.bf16.mxu0 %v2599
    %3762 = vmatpush2.bf16.msra.mxu0 %v2598
    %3763 = vmatprep.subr.bf16.mxu0 %v2583
    %3764 = vmatpush2.bf16.msra.mxu0 %v2582
    %3765 = vmatprep.subr.bf16.mxu0 %v2567
    %3766 = vmatpush2.bf16.msra.mxu0 %v2566
    %3767 = vmatprep.subr.bf16.mxu0 %v2551
    %3768 = vmatpush2.bf16.msra.mxu0 %v2550
    %3769 = vmatprep.subr.bf16.mxu0 %v2535
    %3770 = vmatpush2.bf16.msra.mxu0 %v2534
    %3771 = vmatprep.subr.bf16.mxu0 %v2519
    %3772 = vmatpush2.bf16.msra.mxu0 %v2518
    %3773 = vmatprep.subr.bf16.mxu0 %v2503
    %3774 = vmatpush2.bf16.msra.mxu0 %v2502
    %3775 = vmatprep.mubr.bf16.mxu0 %v55
    %3776 = vmatmul.mubr.bf16.gmra.mxu0 %v54
    %v3777 = vpop.f32.mrf.mxu0
    %v3778 = vadd.f32 %v3737, %v3777
    %v3779 = vpop.f32.mrf.mxu0
    %v3780 = vadd.f32 %v3739, %v3779
    %v3781 = vpop.f32.mrf.mxu0
    %v3782 = vpop.f32.mrf.mxu0
    %3783 = vdwg.mxu0
    %v3800 = vcombine.low %v3204, %v3206
    %v3801 = vcombine.low %v3286, %v3288
    %v3803 = vunpack.c.l.s4 1983009808
    %v3804 = vunpack.c.0.s8 %v3803
    %v3805 = vlaneseq
    %v3806 = vshrl.u32 %v3805, 7
    %v3807 = vsub.s32 %v3804, %v3806
    %v3808 = vrot.slane %v3800, %v3807
    %v3810 = vunpack.c.l.s4 1983009808
    %v3811 = vunpack.c.0.s8 %v3810
    %v3812 = vlaneseq
    %v3813 = vshrl.u32 %v3812, 7
    %v3814 = vsub.s32 %v3811, %v3813
    %v3815 = vrot.slane %v3801, %v3814
    %v3816 = vcombine.low %v3808, %v3815
    %v3817 = vcombine.low %v3368, %v3370
    %v3818 = vcombine.low %v3450, %v3452
    %v3820 = vunpack.c.l.s4 1983009808
    %v3821 = vunpack.c.0.s8 %v3820
    %v3822 = vlaneseq
    %v3823 = vshrl.u32 %v3822, 7
    %v3824 = vsub.s32 %v3821, %v3823
    %v3825 = vrot.slane %v3817, %v3824
    %v3827 = vunpack.c.l.s4 1983009808
    %v3828 = vunpack.c.0.s8 %v3827
    %v3829 = vlaneseq
    %v3830 = vshrl.u32 %v3829, 7
    %v3831 = vsub.s32 %v3828, %v3830
    %v3832 = vrot.slane %v3818, %v3831
    %v3833 = vcombine.low %v3825, %v3832
    %v3834 = vcombine.low %v3532, %v3534
    %v3835 = vcombine.low %v3614, %v3616
    %v3837 = vunpack.c.l.s4 1983009808
    %v3838 = vunpack.c.0.s8 %v3837
    %v3839 = vlaneseq
    %v3840 = vshrl.u32 %v3839, 7
    %v3841 = vsub.s32 %v3838, %v3840
    %v3842 = vrot.slane %v3834, %v3841
    %v3844 = vunpack.c.l.s4 1983009808
    %v3845 = vunpack.c.0.s8 %v3844
    %v3846 = vlaneseq
    %v3847 = vshrl.u32 %v3846, 7
    %v3848 = vsub.s32 %v3845, %v3847
    %v3849 = vrot.slane %v3835, %v3848
    %v3850 = vcombine.low %v3842, %v3849
    %v3851 = vcombine.low %v3696, %v3698
    %v3852 = vcombine.low %v3778, %v3780
    %v3854 = vunpack.c.l.s4 1983009808
    %v3855 = vunpack.c.0.s8 %v3854
    %v3856 = vlaneseq
    %v3857 = vshrl.u32 %v3856, 7
    %v3858 = vsub.s32 %v3855, %v3857
    %v3859 = vrot.slane %v3851, %v3858
    %v3861 = vunpack.c.l.s4 1983009808
    %v3862 = vunpack.c.0.s8 %v3861
    %v3863 = vlaneseq
    %v3864 = vshrl.u32 %v3863, 7
    %v3865 = vsub.s32 %v3862, %v3864
    %v3866 = vrot.slane %v3852, %v3865
    %v3867 = vcombine.low %v3859, %v3866
    %v3872 = vadd.f32 %v26, %v3816
    %v3873 = vadd.f32 %v27, %v3833
    %v3874 = vadd.f32 %v28, %v3850
    %v3875 = vadd.f32 %v29, %v3867
    %v3876 = vxor.u32 %v3872, 2147483648
    %v3877 = vmul.f32 %v3876, 1.442695
    %v3878 = vpow.pop %v3877
    %v3879 = vadd.f32 %v3878, 1.0
    %v3880 = vrcp.pop %v3879
    %v3881 = vmul.f32 1.0, %v3880
    %v3882 = vxor.u32 %v3873, 2147483648
    %v3883 = vmul.f32 %v3882, 1.442695
    %v3884 = vpow.pop %v3883
    %v3885 = vadd.f32 %v3884, 1.0
    %v3886 = vrcp.pop %v3885
    %v3887 = vmul.f32 1.0, %v3886
    %v3888 = vtanh.pop %v3874
    %v3889 = vxor.u32 %v3875, 2147483648
    %v3890 = vmul.f32 %v3889, 1.442695
    %v3891 = vpow.pop %v3890
    %v3892 = vadd.f32 %v3891, 1.0
    %v3893 = vrcp.pop %v3892
    %v3894 = vmul.f32 1.0, %v3893
    %v3895 = vmul.f32 %v3887, %v25
    %v3896 = vmul.f32 %v3881, %v3888
    %v3897 = vadd.f32 %v3895, %v3896
    %v3898 = vtanh.pop %v3897
    %v3899 = vmul.f32 %v3894, %v3898
    %s3900 = scalar_lea.vmem %s0, 32
    %v3901 = vld [vmem:[%s3900] sm:$0xff]
    %v3902 = vld [vmem:[%s3900 + $0x8] sm:$0xff]
    %v3903 = vld [vmem:[%s3900 + $0x10] sm:$0xff]
    %v3904 = vld [vmem:[%s3900 + $0x18] sm:$0xff]
    %v3906 = vcombine.high %v3899, %v3899
    %v3908 = vunpack.c.l.s4 1983009808
    %v3909 = vunpack.c.0.s8 %v3908
    %v3910 = vlaneseq
    %v3911 = vshrl.u32 %v3910, 7
    %v3912 = vsub.s32 %v3909, %v3911
    %v3913 = vrot.slane %v3899, %v3912
    %v3915 = vunpack.c.l.s4 1983009808
    %v3916 = vunpack.c.0.s8 %v3915
    %v3917 = vlaneseq
    %v3918 = vshrl.u32 %v3917, 7
    %v3919 = vsub.s32 %v3916, %v3918
    %v3920 = vrot.slane %v3906, %v3919
    %v3921 = vcombine.high %v3913, %v3913
    %v3922 = vcombine.high %v3920, %v3920
    %v3927 = vpack.c.bf16 %v3913, %v3913
    %v3928 = vpack.c.bf16 %v3921, %v3921
    %v3929 = vpack.c.bf16 %v3920, %v3920
    %v3930 = vpack.c.bf16 %v3922, %v3922
    %3931 = vmatprep.subr.bf16.mxu0 %v2217
    %3932 = vmatpush1.bf16.msra.mxu0 %v2216
    %3933 = vmatprep.subr.bf16.mxu0 %v2201
    %3934 = vmatpush1.bf16.msra.mxu0 %v2200
    %3935 = vmatprep.subr.bf16.mxu0 %v2185
    %3936 = vmatpush1.bf16.msra.mxu0 %v2184
    %3937 = vmatprep.subr.bf16.mxu0 %v2169
    %3938 = vmatpush1.bf16.msra.mxu0 %v2168
    %3939 = vmatprep.subr.bf16.mxu0 %v2153
    %3940 = vmatpush1.bf16.msra.mxu0 %v2152
    %3941 = vmatprep.subr.bf16.mxu0 %v2137
    %3942 = vmatpush1.bf16.msra.mxu0 %v2136
    %3943 = vmatprep.subr.bf16.mxu0 %v2121
    %3944 = vmatpush1.bf16.msra.mxu0 %v2120
    %3945 = vmatprep.subr.bf16.mxu0 %v2105
    %3946 = vmatpush1.bf16.msra.mxu0 %v2104
    %3947 = vmatprep.subr.bf16.mxu0 %v2345
    %3948 = vmatpush2.bf16.msra.mxu0 %v2344
    %3949 = vmatprep.subr.bf16.mxu0 %v2329
    %3950 = vmatpush2.bf16.msra.mxu0 %v2328
    %3951 = vmatprep.subr.bf16.mxu0 %v2313
    %3952 = vmatpush2.bf16.msra.mxu0 %v2312
    %3953 = vmatprep.subr.bf16.mxu0 %v2297
    %3954 = vmatpush2.bf16.msra.mxu0 %v2296
    %3955 = vmatprep.subr.bf16.mxu0 %v2281
    %3956 = vmatpush2.bf16.msra.mxu0 %v2280
    %3957 = vmatprep.subr.bf16.mxu0 %v2265
    %3958 = vmatpush2.bf16.msra.mxu0 %v2264
    %3959 = vmatprep.subr.bf16.mxu0 %v2249
    %3960 = vmatpush2.bf16.msra.mxu0 %v2248
    %3961 = vmatprep.subr.bf16.mxu0 %v2233
    %3962 = vmatpush2.bf16.msra.mxu0 %v2232
    %3963 = vmatprep.mubr.bf16.mxu0 %v3928
    %3964 = vmatmul.mubr.bf16.gmra.mxu0 %v3927
    %v3965 = vpop.f32.mrf.mxu0
    %v3966 = vadd.f32 0.0, %v3965
    %v3967 = vpop.f32.mrf.mxu0
    %v3968 = vadd.f32 0.0, %v3967
    %v3969 = vpop.f32.mrf.mxu0
    %v3970 = vpop.f32.mrf.mxu0
    %3971 = vdwg.mxu0
    %3972 = vmatprep.subr.bf16.mxu0 %v2473
    %3973 = vmatpush1.bf16.msra.mxu0 %v2472
    %3974 = vmatprep.subr.bf16.mxu0 %v2457
    %3975 = vmatpush1.bf16.msra.mxu0 %v2456
    %3976 = vmatprep.subr.bf16.mxu0 %v2441
    %3977 = vmatpush1.bf16.msra.mxu0 %v2440
    %3978 = vmatprep.subr.bf16.mxu0 %v2425
    %3979 = vmatpush1.bf16.msra.mxu0 %v2424
    %3980 = vmatprep.subr.bf16.mxu0 %v2409
    %3981 = vmatpush1.bf16.msra.mxu0 %v2408
    %3982 = vmatprep.subr.bf16.mxu0 %v2393
    %3983 = vmatpush1.bf16.msra.mxu0 %v2392
    %3984 = vmatprep.subr.bf16.mxu0 %v2377
    %3985 = vmatpush1.bf16.msra.mxu0 %v2376
    %3986 = vmatprep.subr.bf16.mxu0 %v2361
    %3987 = vmatpush1.bf16.msra.mxu0 %v2360
    %3988 = vmatprep.subr.bf16.mxu0 %v2601
    %3989 = vmatpush2.bf16.msra.mxu0 %v2600
    %3990 = vmatprep.subr.bf16.mxu0 %v2585
    %3991 = vmatpush2.bf16.msra.mxu0 %v2584
    %3992 = vmatprep.subr.bf16.mxu0 %v2569
    %3993 = vmatpush2.bf16.msra.mxu0 %v2568
    %3994 = vmatprep.subr.bf16.mxu0 %v2553
    %3995 = vmatpush2.bf16.msra.mxu0 %v2552
    %3996 = vmatprep.subr.bf16.mxu0 %v2537
    %3997 = vmatpush2.bf16.msra.mxu0 %v2536
    %3998 = vmatprep.subr.bf16.mxu0 %v2521
    %3999 = vmatpush2.bf16.msra.mxu0 %v2520
    %4000 = vmatprep.subr.bf16.mxu0 %v2505
    %4001 = vmatpush2.bf16.msra.mxu0 %v2504
    %4002 = vmatprep.subr.bf16.mxu0 %v2489
    %4003 = vmatpush2.bf16.msra.mxu0 %v2488
    %4004 = vmatprep.mubr.bf16.mxu0 %v3930
    %4005 = vmatmul.mubr.bf16.gmra.mxu0 %v3929
    %v4006 = vpop.f32.mrf.mxu0
    %v4007 = vadd.f32 %v3966, %v4006
    %v4008 = vpop.f32.mrf.mxu0
    %v4009 = vadd.f32 %v3968, %v4008
    %v4010 = vpop.f32.mrf.mxu0
    %v4011 = vpop.f32.mrf.mxu0
    %4012 = vdwg.mxu0
    %4013 = vmatprep.subr.bf16.mxu0 %v2219
    %4014 = vmatpush1.bf16.msra.mxu0 %v2218
    %4015 = vmatprep.subr.bf16.mxu0 %v2203
    %4016 = vmatpush1.bf16.msra.mxu0 %v2202
    %4017 = vmatprep.subr.bf16.mxu0 %v2187
    %4018 = vmatpush1.bf16.msra.mxu0 %v2186
    %4019 = vmatprep.subr.bf16.mxu0 %v2171
    %4020 = vmatpush1.bf16.msra.mxu0 %v2170
    %4021 = vmatprep.subr.bf16.mxu0 %v2155
    %4022 = vmatpush1.bf16.msra.mxu0 %v2154
    %4023 = vmatprep.subr.bf16.mxu0 %v2139
    %4024 = vmatpush1.bf16.msra.mxu0 %v2138
    %4025 = vmatprep.subr.bf16.mxu0 %v2123
    %4026 = vmatpush1.bf16.msra.mxu0 %v2122
    %4027 = vmatprep.subr.bf16.mxu0 %v2107
    %4028 = vmatpush1.bf16.msra.mxu0 %v2106
    %4029 = vmatprep.subr.bf16.mxu0 %v2347
    %4030 = vmatpush2.bf16.msra.mxu0 %v2346
    %4031 = vmatprep.subr.bf16.mxu0 %v2331
    %4032 = vmatpush2.bf16.msra.mxu0 %v2330
    %4033 = vmatprep.subr.bf16.mxu0 %v2315
    %4034 = vmatpush2.bf16.msra.mxu0 %v2314
    %4035 = vmatprep.subr.bf16.mxu0 %v2299
    %4036 = vmatpush2.bf16.msra.mxu0 %v2298
    %4037 = vmatprep.subr.bf16.mxu0 %v2283
    %4038 = vmatpush2.bf16.msra.mxu0 %v2282
    %4039 = vmatprep.subr.bf16.mxu0 %v2267
    %4040 = vmatpush2.bf16.msra.mxu0 %v2266
    %4041 = vmatprep.subr.bf16.mxu0 %v2251
    %4042 = vmatpush2.bf16.msra.mxu0 %v2250
    %4043 = vmatprep.subr.bf16.mxu0 %v2235
    %4044 = vmatpush2.bf16.msra.mxu0 %v2234
    %4045 = vmatprep.mubr.bf16.mxu0 %v3928
    %4046 = vmatmul.mubr.bf16.gmra.mxu0 %v3927
    %v4047 = vpop.f32.mrf.mxu0
    %v4048 = vadd.f32 0.0, %v4047
    %v4049 = vpop.f32.mrf.mxu0
    %v4050 = vadd.f32 0.0, %v4049
    %v4051 = vpop.f32.mrf.mxu0
    %v4052 = vpop.f32.mrf.mxu0
    %4053 = vdwg.mxu0
    %4054 = vmatprep.subr.bf16.mxu0 %v2475
    %4055 = vmatpush1.bf16.msra.mxu0 %v2474
    %4056 = vmatprep.subr.bf16.mxu0 %v2459
    %4057 = vmatpush1.bf16.msra.mxu0 %v2458
    %4058 = vmatprep.subr.bf16.mxu0 %v2443
    %4059 = vmatpush1.bf16.msra.mxu0 %v2442
    %4060 = vmatprep.subr.bf16.mxu0 %v2427
    %4061 = vmatpush1.bf16.msra.mxu0 %v2426
    %4062 = vmatprep.subr.bf16.mxu0 %v2411
    %4063 = vmatpush1.bf16.msra.mxu0 %v2410
    %4064 = vmatprep.subr.bf16.mxu0 %v2395
    %4065 = vmatpush1.bf16.msra.mxu0 %v2394
    %4066 = vmatprep.subr.bf16.mxu0 %v2379
    %4067 = vmatpush1.bf16.msra.mxu0 %v2378
    %4068 = vmatprep.subr.bf16.mxu0 %v2363
    %4069 = vmatpush1.bf16.msra.mxu0 %v2362
    %4070 = vmatprep.subr.bf16.mxu0 %v2603
    %4071 = vmatpush2.bf16.msra.mxu0 %v2602
    %4072 = vmatprep.subr.bf16.mxu0 %v2587
    %4073 = vmatpush2.bf16.msra.mxu0 %v2586
    %4074 = vmatprep.subr.bf16.mxu0 %v2571
    %4075 = vmatpush2.bf16.msra.mxu0 %v2570
    %4076 = vmatprep.subr.bf16.mxu0 %v2555
    %4077 = vmatpush2.bf16.msra.mxu0 %v2554
    %4078 = vmatprep.subr.bf16.mxu0 %v2539
    %4079 = vmatpush2.bf16.msra.mxu0 %v2538
    %4080 = vmatprep.subr.bf16.mxu0 %v2523
    %4081 = vmatpush2.bf16.msra.mxu0 %v2522
    %4082 = vmatprep.subr.bf16.mxu0 %v2507
    %4083 = vmatpush2.bf16.msra.mxu0 %v2506
    %4084 = vmatprep.subr.bf16.mxu0 %v2491
    %4085 = vmatpush2.bf16.msra.mxu0 %v2490
    %4086 = vmatprep.mubr.bf16.mxu0 %v3930
    %4087 = vmatmul.mubr.bf16.gmra.mxu0 %v3929
    %v4088 = vpop.f32.mrf.mxu0
    %v4089 = vadd.f32 %v4048, %v4088
    %v4090 = vpop.f32.mrf.mxu0
    %v4091 = vadd.f32 %v4050, %v4090
    %v4092 = vpop.f32.mrf.mxu0
    %v4093 = vpop.f32.mrf.mxu0
    %4094 = vdwg.mxu0
    %4095 = vmatprep.subr.bf16.mxu0 %v2221
    %4096 = vmatpush1.bf16.msra.mxu0 %v2220
    %4097 = vmatprep.subr.bf16.mxu0 %v2205
    %4098 = vmatpush1.bf16.msra.mxu0 %v2204
    %4099 = vmatprep.subr.bf16.mxu0 %v2189
    %4100 = vmatpush1.bf16.msra.mxu0 %v2188
    %4101 = vmatprep.subr.bf16.mxu0 %v2173
    %4102 = vmatpush1.bf16.msra.mxu0 %v2172
    %4103 = vmatprep.subr.bf16.mxu0 %v2157
    %4104 = vmatpush1.bf16.msra.mxu0 %v2156
    %4105 = vmatprep.subr.bf16.mxu0 %v2141
    %4106 = vmatpush1.bf16.msra.mxu0 %v2140
    %4107 = vmatprep.subr.bf16.mxu0 %v2125
    %4108 = vmatpush1.bf16.msra.mxu0 %v2124
    %4109 = vmatprep.subr.bf16.mxu0 %v2109
    %4110 = vmatpush1.bf16.msra.mxu0 %v2108
    %4111 = vmatprep.subr.bf16.mxu0 %v2349
    %4112 = vmatpush2.bf16.msra.mxu0 %v2348
    %4113 = vmatprep.subr.bf16.mxu0 %v2333
    %4114 = vmatpush2.bf16.msra.mxu0 %v2332
    %4115 = vmatprep.subr.bf16.mxu0 %v2317
    %4116 = vmatpush2.bf16.msra.mxu0 %v2316
    %4117 = vmatprep.subr.bf16.mxu0 %v2301
    %4118 = vmatpush2.bf16.msra.mxu0 %v2300
    %4119 = vmatprep.subr.bf16.mxu0 %v2285
    %4120 = vmatpush2.bf16.msra.mxu0 %v2284
    %4121 = vmatprep.subr.bf16.mxu0 %v2269
    %4122 = vmatpush2.bf16.msra.mxu0 %v2268
    %4123 = vmatprep.subr.bf16.mxu0 %v2253
    %4124 = vmatpush2.bf16.msra.mxu0 %v2252
    %4125 = vmatprep.subr.bf16.mxu0 %v2237
    %4126 = vmatpush2.bf16.msra.mxu0 %v2236
    %4127 = vmatprep.mubr.bf16.mxu0 %v3928
    %4128 = vmatmul.mubr.bf16.gmra.mxu0 %v3927
    %v4129 = vpop.f32.mrf.mxu0
    %v4130 = vadd.f32 0.0, %v4129
    %v4131 = vpop.f32.mrf.mxu0
    %v4132 = vadd.f32 0.0, %v4131
    %v4133 = vpop.f32.mrf.mxu0
    %v4134 = vpop.f32.mrf.mxu0
    %4135 = vdwg.mxu0
    %4136 = vmatprep.subr.bf16.mxu0 %v2477
    %4137 = vmatpush1.bf16.msra.mxu0 %v2476
    %4138 = vmatprep.subr.bf16.mxu0 %v2461
    %4139 = vmatpush1.bf16.msra.mxu0 %v2460
    %4140 = vmatprep.subr.bf16.mxu0 %v2445
    %4141 = vmatpush1.bf16.msra.mxu0 %v2444
    %4142 = vmatprep.subr.bf16.mxu0 %v2429
    %4143 = vmatpush1.bf16.msra.mxu0 %v2428
    %4144 = vmatprep.subr.bf16.mxu0 %v2413
    %4145 = vmatpush1.bf16.msra.mxu0 %v2412
    %4146 = vmatprep.subr.bf16.mxu0 %v2397
    %4147 = vmatpush1.bf16.msra.mxu0 %v2396
    %4148 = vmatprep.subr.bf16.mxu0 %v2381
    %4149 = vmatpush1.bf16.msra.mxu0 %v2380
    %4150 = vmatprep.subr.bf16.mxu0 %v2365
    %4151 = vmatpush1.bf16.msra.mxu0 %v2364
    %4152 = vmatprep.subr.bf16.mxu0 %v2605
    %4153 = vmatpush2.bf16.msra.mxu0 %v2604
    %4154 = vmatprep.subr.bf16.mxu0 %v2589
    %4155 = vmatpush2.bf16.msra.mxu0 %v2588
    %4156 = vmatprep.subr.bf16.mxu0 %v2573
    %4157 = vmatpush2.bf16.msra.mxu0 %v2572
    %4158 = vmatprep.subr.bf16.mxu0 %v2557
    %4159 = vmatpush2.bf16.msra.mxu0 %v2556
    %4160 = vmatprep.subr.bf16.mxu0 %v2541
    %4161 = vmatpush2.bf16.msra.mxu0 %v2540
    %4162 = vmatprep.subr.bf16.mxu0 %v2525
    %4163 = vmatpush2.bf16.msra.mxu0 %v2524
    %4164 = vmatprep.subr.bf16.mxu0 %v2509
    %4165 = vmatpush2.bf16.msra.mxu0 %v2508
    %4166 = vmatprep.subr.bf16.mxu0 %v2493
    %4167 = vmatpush2.bf16.msra.mxu0 %v2492
    %4168 = vmatprep.mubr.bf16.mxu0 %v3930
    %4169 = vmatmul.mubr.bf16.gmra.mxu0 %v3929
    %v4170 = vpop.f32.mrf.mxu0
    %v4171 = vadd.f32 %v4130, %v4170
    %v4172 = vpop.f32.mrf.mxu0
    %v4173 = vadd.f32 %v4132, %v4172
    %v4174 = vpop.f32.mrf.mxu0
    %v4175 = vpop.f32.mrf.mxu0
    %4176 = vdwg.mxu0
    %4177 = vmatprep.subr.bf16.mxu0 %v2223
    %4178 = vmatpush1.bf16.msra.mxu0 %v2222
    %4179 = vmatprep.subr.bf16.mxu0 %v2207
    %4180 = vmatpush1.bf16.msra.mxu0 %v2206
    %4181 = vmatprep.subr.bf16.mxu0 %v2191
    %4182 = vmatpush1.bf16.msra.mxu0 %v2190
    %4183 = vmatprep.subr.bf16.mxu0 %v2175
    %4184 = vmatpush1.bf16.msra.mxu0 %v2174
    %4185 = vmatprep.subr.bf16.mxu0 %v2159
    %4186 = vmatpush1.bf16.msra.mxu0 %v2158
    %4187 = vmatprep.subr.bf16.mxu0 %v2143
    %4188 = vmatpush1.bf16.msra.mxu0 %v2142
    %4189 = vmatprep.subr.bf16.mxu0 %v2127
    %4190 = vmatpush1.bf16.msra.mxu0 %v2126
    %4191 = vmatprep.subr.bf16.mxu0 %v2111
    %4192 = vmatpush1.bf16.msra.mxu0 %v2110
    %4193 = vmatprep.subr.bf16.mxu0 %v2351
    %4194 = vmatpush2.bf16.msra.mxu0 %v2350
    %4195 = vmatprep.subr.bf16.mxu0 %v2335
    %4196 = vmatpush2.bf16.msra.mxu0 %v2334
    %4197 = vmatprep.subr.bf16.mxu0 %v2319
    %4198 = vmatpush2.bf16.msra.mxu0 %v2318
    %4199 = vmatprep.subr.bf16.mxu0 %v2303
    %4200 = vmatpush2.bf16.msra.mxu0 %v2302
    %4201 = vmatprep.subr.bf16.mxu0 %v2287
    %4202 = vmatpush2.bf16.msra.mxu0 %v2286
    %4203 = vmatprep.subr.bf16.mxu0 %v2271
    %4204 = vmatpush2.bf16.msra.mxu0 %v2270
    %4205 = vmatprep.subr.bf16.mxu0 %v2255
    %4206 = vmatpush2.bf16.msra.mxu0 %v2254
    %4207 = vmatprep.subr.bf16.mxu0 %v2239
    %4208 = vmatpush2.bf16.msra.mxu0 %v2238
    %4209 = vmatprep.mubr.bf16.mxu0 %v3928
    %4210 = vmatmul.mubr.bf16.gmra.mxu0 %v3927
    %v4211 = vpop.f32.mrf.mxu0
    %v4212 = vadd.f32 0.0, %v4211
    %v4213 = vpop.f32.mrf.mxu0
    %v4214 = vadd.f32 0.0, %v4213
    %v4215 = vpop.f32.mrf.mxu0
    %v4216 = vpop.f32.mrf.mxu0
    %4217 = vdwg.mxu0
    %4218 = vmatprep.subr.bf16.mxu0 %v2479
    %4219 = vmatpush1.bf16.msra.mxu0 %v2478
    %4220 = vmatprep.subr.bf16.mxu0 %v2463
    %4221 = vmatpush1.bf16.msra.mxu0 %v2462
    %4222 = vmatprep.subr.bf16.mxu0 %v2447
    %4223 = vmatpush1.bf16.msra.mxu0 %v2446
    %4224 = vmatprep.subr.bf16.mxu0 %v2431
    %4225 = vmatpush1.bf16.msra.mxu0 %v2430
    %4226 = vmatprep.subr.bf16.mxu0 %v2415
    %4227 = vmatpush1.bf16.msra.mxu0 %v2414
    %4228 = vmatprep.subr.bf16.mxu0 %v2399
    %4229 = vmatpush1.bf16.msra.mxu0 %v2398
    %4230 = vmatprep.subr.bf16.mxu0 %v2383
    %4231 = vmatpush1.bf16.msra.mxu0 %v2382
    %4232 = vmatprep.subr.bf16.mxu0 %v2367
    %4233 = vmatpush1.bf16.msra.mxu0 %v2366
    %4234 = vmatprep.subr.bf16.mxu0 %v2607
    %4235 = vmatpush2.bf16.msra.mxu0 %v2606
    %4236 = vmatprep.subr.bf16.mxu0 %v2591
    %4237 = vmatpush2.bf16.msra.mxu0 %v2590
    %4238 = vmatprep.subr.bf16.mxu0 %v2575
    %4239 = vmatpush2.bf16.msra.mxu0 %v2574
    %4240 = vmatprep.subr.bf16.mxu0 %v2559
    %4241 = vmatpush2.bf16.msra.mxu0 %v2558
    %4242 = vmatprep.subr.bf16.mxu0 %v2543
    %4243 = vmatpush2.bf16.msra.mxu0 %v2542
    %4244 = vmatprep.subr.bf16.mxu0 %v2527
    %4245 = vmatpush2.bf16.msra.mxu0 %v2526
    %4246 = vmatprep.subr.bf16.mxu0 %v2511
    %4247 = vmatpush2.bf16.msra.mxu0 %v2510
    %4248 = vmatprep.subr.bf16.mxu0 %v2495
    %4249 = vmatpush2.bf16.msra.mxu0 %v2494
    %4250 = vmatprep.mubr.bf16.mxu0 %v3930
    %4251 = vmatmul.mubr.bf16.gmra.mxu0 %v3929
    %v4252 = vpop.f32.mrf.mxu0
    %v4253 = vadd.f32 %v4212, %v4252
    %v4254 = vpop.f32.mrf.mxu0
    %v4255 = vadd.f32 %v4214, %v4254
    %v4256 = vpop.f32.mrf.mxu0
    %v4257 = vpop.f32.mrf.mxu0
    %4258 = vdwg.mxu0
    %4259 = vmatprep.subr.bf16.mxu0 %v2225
    %4260 = vmatpush1.bf16.msra.mxu0 %v2224
    %4261 = vmatprep.subr.bf16.mxu0 %v2209
    %4262 = vmatpush1.bf16.msra.mxu0 %v2208
    %4263 = vmatprep.subr.bf16.mxu0 %v2193
    %4264 = vmatpush1.bf16.msra.mxu0 %v2192
    %4265 = vmatprep.subr.bf16.mxu0 %v2177
    %4266 = vmatpush1.bf16.msra.mxu0 %v2176
    %4267 = vmatprep.subr.bf16.mxu0 %v2161
    %4268 = vmatpush1.bf16.msra.mxu0 %v2160
    %4269 = vmatprep.subr.bf16.mxu0 %v2145
    %4270 = vmatpush1.bf16.msra.mxu0 %v2144
    %4271 = vmatprep.subr.bf16.mxu0 %v2129
    %4272 = vmatpush1.bf16.msra.mxu0 %v2128
    %4273 = vmatprep.subr.bf16.mxu0 %v2113
    %4274 = vmatpush1.bf16.msra.mxu0 %v2112
    %4275 = vmatprep.subr.bf16.mxu0 %v2353
    %4276 = vmatpush2.bf16.msra.mxu0 %v2352
    %4277 = vmatprep.subr.bf16.mxu0 %v2337
    %4278 = vmatpush2.bf16.msra.mxu0 %v2336
    %4279 = vmatprep.subr.bf16.mxu0 %v2321
    %4280 = vmatpush2.bf16.msra.mxu0 %v2320
    %4281 = vmatprep.subr.bf16.mxu0 %v2305
    %4282 = vmatpush2.bf16.msra.mxu0 %v2304
    %4283 = vmatprep.subr.bf16.mxu0 %v2289
    %4284 = vmatpush2.bf16.msra.mxu0 %v2288
    %4285 = vmatprep.subr.bf16.mxu0 %v2273
    %4286 = vmatpush2.bf16.msra.mxu0 %v2272
    %4287 = vmatprep.subr.bf16.mxu0 %v2257
    %4288 = vmatpush2.bf16.msra.mxu0 %v2256
    %4289 = vmatprep.subr.bf16.mxu0 %v2241
    %4290 = vmatpush2.bf16.msra.mxu0 %v2240
    %4291 = vmatprep.mubr.bf16.mxu0 %v3928
    %4292 = vmatmul.mubr.bf16.gmra.mxu0 %v3927
    %v4293 = vpop.f32.mrf.mxu0
    %v4294 = vadd.f32 0.0, %v4293
    %v4295 = vpop.f32.mrf.mxu0
    %v4296 = vadd.f32 0.0, %v4295
    %v4297 = vpop.f32.mrf.mxu0
    %v4298 = vpop.f32.mrf.mxu0
    %4299 = vdwg.mxu0
    %4300 = vmatprep.subr.bf16.mxu0 %v2481
    %4301 = vmatpush1.bf16.msra.mxu0 %v2480
    %4302 = vmatprep.subr.bf16.mxu0 %v2465
    %4303 = vmatpush1.bf16.msra.mxu0 %v2464
    %4304 = vmatprep.subr.bf16.mxu0 %v2449
    %4305 = vmatpush1.bf16.msra.mxu0 %v2448
    %4306 = vmatprep.subr.bf16.mxu0 %v2433
    %4307 = vmatpush1.bf16.msra.mxu0 %v2432
    %4308 = vmatprep.subr.bf16.mxu0 %v2417
    %4309 = vmatpush1.bf16.msra.mxu0 %v2416
    %4310 = vmatprep.subr.bf16.mxu0 %v2401
    %4311 = vmatpush1.bf16.msra.mxu0 %v2400
    %4312 = vmatprep.subr.bf16.mxu0 %v2385
    %4313 = vmatpush1.bf16.msra.mxu0 %v2384
    %4314 = vmatprep.subr.bf16.mxu0 %v2369
    %4315 = vmatpush1.bf16.msra.mxu0 %v2368
    %4316 = vmatprep.subr.bf16.mxu0 %v2609
    %4317 = vmatpush2.bf16.msra.mxu0 %v2608
    %4318 = vmatprep.subr.bf16.mxu0 %v2593
    %4319 = vmatpush2.bf16.msra.mxu0 %v2592
    %4320 = vmatprep.subr.bf16.mxu0 %v2577
    %4321 = vmatpush2.bf16.msra.mxu0 %v2576
    %4322 = vmatprep.subr.bf16.mxu0 %v2561
    %4323 = vmatpush2.bf16.msra.mxu0 %v2560
    %4324 = vmatprep.subr.bf16.mxu0 %v2545
    %4325 = vmatpush2.bf16.msra.mxu0 %v2544
    %4326 = vmatprep.subr.bf16.mxu0 %v2529
    %4327 = vmatpush2.bf16.msra.mxu0 %v2528
    %4328 = vmatprep.subr.bf16.mxu0 %v2513
    %4329 = vmatpush2.bf16.msra.mxu0 %v2512
    %4330 = vmatprep.subr.bf16.mxu0 %v2497
    %4331 = vmatpush2.bf16.msra.mxu0 %v2496
    %4332 = vmatprep.mubr.bf16.mxu0 %v3930
    %4333 = vmatmul.mubr.bf16.gmra.mxu0 %v3929
    %v4334 = vpop.f32.mrf.mxu0
    %v4335 = vadd.f32 %v4294, %v4334
    %v4336 = vpop.f32.mrf.mxu0
    %v4337 = vadd.f32 %v4296, %v4336
    %v4338 = vpop.f32.mrf.mxu0
    %v4339 = vpop.f32.mrf.mxu0
    %4340 = vdwg.mxu0
    %4341 = vmatprep.subr.bf16.mxu0 %v2227
    %4342 = vmatpush1.bf16.msra.mxu0 %v2226
    %4343 = vmatprep.subr.bf16.mxu0 %v2211
    %4344 = vmatpush1.bf16.msra.mxu0 %v2210
    %4345 = vmatprep.subr.bf16.mxu0 %v2195
    %4346 = vmatpush1.bf16.msra.mxu0 %v2194
    %4347 = vmatprep.subr.bf16.mxu0 %v2179
    %4348 = vmatpush1.bf16.msra.mxu0 %v2178
    %4349 = vmatprep.subr.bf16.mxu0 %v2163
    %4350 = vmatpush1.bf16.msra.mxu0 %v2162
    %4351 = vmatprep.subr.bf16.mxu0 %v2147
    %4352 = vmatpush1.bf16.msra.mxu0 %v2146
    %4353 = vmatprep.subr.bf16.mxu0 %v2131
    %4354 = vmatpush1.bf16.msra.mxu0 %v2130
    %4355 = vmatprep.subr.bf16.mxu0 %v2115
    %4356 = vmatpush1.bf16.msra.mxu0 %v2114
    %4357 = vmatprep.subr.bf16.mxu0 %v2355
    %4358 = vmatpush2.bf16.msra.mxu0 %v2354
    %4359 = vmatprep.subr.bf16.mxu0 %v2339
    %4360 = vmatpush2.bf16.msra.mxu0 %v2338
    %4361 = vmatprep.subr.bf16.mxu0 %v2323
    %4362 = vmatpush2.bf16.msra.mxu0 %v2322
    %4363 = vmatprep.subr.bf16.mxu0 %v2307
    %4364 = vmatpush2.bf16.msra.mxu0 %v2306
    %4365 = vmatprep.subr.bf16.mxu0 %v2291
    %4366 = vmatpush2.bf16.msra.mxu0 %v2290
    %4367 = vmatprep.subr.bf16.mxu0 %v2275
    %4368 = vmatpush2.bf16.msra.mxu0 %v2274
    %4369 = vmatprep.subr.bf16.mxu0 %v2259
    %4370 = vmatpush2.bf16.msra.mxu0 %v2258
    %4371 = vmatprep.subr.bf16.mxu0 %v2243
    %4372 = vmatpush2.bf16.msra.mxu0 %v2242
    %4373 = vmatprep.mubr.bf16.mxu0 %v3928
    %4374 = vmatmul.mubr.bf16.gmra.mxu0 %v3927
    %v4375 = vpop.f32.mrf.mxu0
    %v4376 = vadd.f32 0.0, %v4375
    %v4377 = vpop.f32.mrf.mxu0
    %v4378 = vadd.f32 0.0, %v4377
    %v4379 = vpop.f32.mrf.mxu0
    %v4380 = vpop.f32.mrf.mxu0
    %4381 = vdwg.mxu0
    %4382 = vmatprep.subr.bf16.mxu0 %v2483
    %4383 = vmatpush1.bf16.msra.mxu0 %v2482
    %4384 = vmatprep.subr.bf16.mxu0 %v2467
    %4385 = vmatpush1.bf16.msra.mxu0 %v2466
    %4386 = vmatprep.subr.bf16.mxu0 %v2451
    %4387 = vmatpush1.bf16.msra.mxu0 %v2450
    %4388 = vmatprep.subr.bf16.mxu0 %v2435
    %4389 = vmatpush1.bf16.msra.mxu0 %v2434
    %4390 = vmatprep.subr.bf16.mxu0 %v2419
    %4391 = vmatpush1.bf16.msra.mxu0 %v2418
    %4392 = vmatprep.subr.bf16.mxu0 %v2403
    %4393 = vmatpush1.bf16.msra.mxu0 %v2402
    %4394 = vmatprep.subr.bf16.mxu0 %v2387
    %4395 = vmatpush1.bf16.msra.mxu0 %v2386
    %4396 = vmatprep.subr.bf16.mxu0 %v2371
    %4397 = vmatpush1.bf16.msra.mxu0 %v2370
    %4398 = vmatprep.subr.bf16.mxu0 %v2611
    %4399 = vmatpush2.bf16.msra.mxu0 %v2610
    %4400 = vmatprep.subr.bf16.mxu0 %v2595
    %4401 = vmatpush2.bf16.msra.mxu0 %v2594
    %4402 = vmatprep.subr.bf16.mxu0 %v2579
    %4403 = vmatpush2.bf16.msra.mxu0 %v2578
    %4404 = vmatprep.subr.bf16.mxu0 %v2563
    %4405 = vmatpush2.bf16.msra.mxu0 %v2562
    %4406 = vmatprep.subr.bf16.mxu0 %v2547
    %4407 = vmatpush2.bf16.msra.mxu0 %v2546
    %4408 = vmatprep.subr.bf16.mxu0 %v2531
    %4409 = vmatpush2.bf16.msra.mxu0 %v2530
    %4410 = vmatprep.subr.bf16.mxu0 %v2515
    %4411 = vmatpush2.bf16.msra.mxu0 %v2514
    %4412 = vmatprep.subr.bf16.mxu0 %v2499
    %4413 = vmatpush2.bf16.msra.mxu0 %v2498
    %4414 = vmatprep.mubr.bf16.mxu0 %v3930
    %4415 = vmatmul.mubr.bf16.gmra.mxu0 %v3929
    %v4416 = vpop.f32.mrf.mxu0
    %v4417 = vadd.f32 %v4376, %v4416
    %v4418 = vpop.f32.mrf.mxu0
    %v4419 = vadd.f32 %v4378, %v4418
    %v4420 = vpop.f32.mrf.mxu0
    %v4421 = vpop.f32.mrf.mxu0
    %4422 = vdwg.mxu0
    %4423 = vmatprep.subr.bf16.mxu0 %v2229
    %4424 = vmatpush1.bf16.msra.mxu0 %v2228
    %4425 = vmatprep.subr.bf16.mxu0 %v2213
    %4426 = vmatpush1.bf16.msra.mxu0 %v2212
    %4427 = vmatprep.subr.bf16.mxu0 %v2197
    %4428 = vmatpush1.bf16.msra.mxu0 %v2196
    %4429 = vmatprep.subr.bf16.mxu0 %v2181
    %4430 = vmatpush1.bf16.msra.mxu0 %v2180
    %4431 = vmatprep.subr.bf16.mxu0 %v2165
    %4432 = vmatpush1.bf16.msra.mxu0 %v2164
    %4433 = vmatprep.subr.bf16.mxu0 %v2149
    %4434 = vmatpush1.bf16.msra.mxu0 %v2148
    %4435 = vmatprep.subr.bf16.mxu0 %v2133
    %4436 = vmatpush1.bf16.msra.mxu0 %v2132
    %4437 = vmatprep.subr.bf16.mxu0 %v2117
    %4438 = vmatpush1.bf16.msra.mxu0 %v2116
    %4439 = vmatprep.subr.bf16.mxu0 %v2357
    %4440 = vmatpush2.bf16.msra.mxu0 %v2356
    %4441 = vmatprep.subr.bf16.mxu0 %v2341
    %4442 = vmatpush2.bf16.msra.mxu0 %v2340
    %4443 = vmatprep.subr.bf16.mxu0 %v2325
    %4444 = vmatpush2.bf16.msra.mxu0 %v2324
    %4445 = vmatprep.subr.bf16.mxu0 %v2309
    %4446 = vmatpush2.bf16.msra.mxu0 %v2308
    %4447 = vmatprep.subr.bf16.mxu0 %v2293
    %4448 = vmatpush2.bf16.msra.mxu0 %v2292
    %4449 = vmatprep.subr.bf16.mxu0 %v2277
    %4450 = vmatpush2.bf16.msra.mxu0 %v2276
    %4451 = vmatprep.subr.bf16.mxu0 %v2261
    %4452 = vmatpush2.bf16.msra.mxu0 %v2260
    %4453 = vmatprep.subr.bf16.mxu0 %v2245
    %4454 = vmatpush2.bf16.msra.mxu0 %v2244
    %4455 = vmatprep.mubr.bf16.mxu0 %v3928
    %4456 = vmatmul.mubr.bf16.gmra.mxu0 %v3927
    %v4457 = vpop.f32.mrf.mxu0
    %v4458 = vadd.f32 0.0, %v4457
    %v4459 = vpop.f32.mrf.mxu0
    %v4460 = vadd.f32 0.0, %v4459
    %v4461 = vpop.f32.mrf.mxu0
    %v4462 = vpop.f32.mrf.mxu0
    %4463 = vdwg.mxu0
    %4464 = vmatprep.subr.bf16.mxu0 %v2485
    %4465 = vmatpush1.bf16.msra.mxu0 %v2484
    %4466 = vmatprep.subr.bf16.mxu0 %v2469
    %4467 = vmatpush1.bf16.msra.mxu0 %v2468
    %4468 = vmatprep.subr.bf16.mxu0 %v2453
    %4469 = vmatpush1.bf16.msra.mxu0 %v2452
    %4470 = vmatprep.subr.bf16.mxu0 %v2437
    %4471 = vmatpush1.bf16.msra.mxu0 %v2436
    %4472 = vmatprep.subr.bf16.mxu0 %v2421
    %4473 = vmatpush1.bf16.msra.mxu0 %v2420
    %4474 = vmatprep.subr.bf16.mxu0 %v2405
    %4475 = vmatpush1.bf16.msra.mxu0 %v2404
    %4476 = vmatprep.subr.bf16.mxu0 %v2389
    %4477 = vmatpush1.bf16.msra.mxu0 %v2388
    %4478 = vmatprep.subr.bf16.mxu0 %v2373
    %4479 = vmatpush1.bf16.msra.mxu0 %v2372
    %4480 = vmatprep.subr.bf16.mxu0 %v2613
    %4481 = vmatpush2.bf16.msra.mxu0 %v2612
    %4482 = vmatprep.subr.bf16.mxu0 %v2597
    %4483 = vmatpush2.bf16.msra.mxu0 %v2596
    %4484 = vmatprep.subr.bf16.mxu0 %v2581
    %4485 = vmatpush2.bf16.msra.mxu0 %v2580
    %4486 = vmatprep.subr.bf16.mxu0 %v2565
    %4487 = vmatpush2.bf16.msra.mxu0 %v2564
    %4488 = vmatprep.subr.bf16.mxu0 %v2549
    %4489 = vmatpush2.bf16.msra.mxu0 %v2548
    %4490 = vmatprep.subr.bf16.mxu0 %v2533
    %4491 = vmatpush2.bf16.msra.mxu0 %v2532
    %4492 = vmatprep.subr.bf16.mxu0 %v2517
    %4493 = vmatpush2.bf16.msra.mxu0 %v2516
    %4494 = vmatprep.subr.bf16.mxu0 %v2501
    %4495 = vmatpush2.bf16.msra.mxu0 %v2500
    %4496 = vmatprep.mubr.bf16.mxu0 %v3930
    %4497 = vmatmul.mubr.bf16.gmra.mxu0 %v3929
    %v4498 = vpop.f32.mrf.mxu0
    %v4499 = vadd.f32 %v4458, %v4498
    %v4500 = vpop.f32.mrf.mxu0
    %v4501 = vadd.f32 %v4460, %v4500
    %v4502 = vpop.f32.mrf.mxu0
    %v4503 = vpop.f32.mrf.mxu0
    %4504 = vdwg.mxu0
    %4505 = vmatprep.subr.bf16.mxu0 %v2231
    %4506 = vmatpush1.bf16.msra.mxu0 %v2230
    %4507 = vmatprep.subr.bf16.mxu0 %v2215
    %4508 = vmatpush1.bf16.msra.mxu0 %v2214
    %4509 = vmatprep.subr.bf16.mxu0 %v2199
    %4510 = vmatpush1.bf16.msra.mxu0 %v2198
    %4511 = vmatprep.subr.bf16.mxu0 %v2183
    %4512 = vmatpush1.bf16.msra.mxu0 %v2182
    %4513 = vmatprep.subr.bf16.mxu0 %v2167
    %4514 = vmatpush1.bf16.msra.mxu0 %v2166
    %4515 = vmatprep.subr.bf16.mxu0 %v2151
    %4516 = vmatpush1.bf16.msra.mxu0 %v2150
    %4517 = vmatprep.subr.bf16.mxu0 %v2135
    %4518 = vmatpush1.bf16.msra.mxu0 %v2134
    %4519 = vmatprep.subr.bf16.mxu0 %v2119
    %4520 = vmatpush1.bf16.msra.mxu0 %v2118
    %4521 = vmatprep.subr.bf16.mxu0 %v2359
    %4522 = vmatpush2.bf16.msra.mxu0 %v2358
    %4523 = vmatprep.subr.bf16.mxu0 %v2343
    %4524 = vmatpush2.bf16.msra.mxu0 %v2342
    %4525 = vmatprep.subr.bf16.mxu0 %v2327
    %4526 = vmatpush2.bf16.msra.mxu0 %v2326
    %4527 = vmatprep.subr.bf16.mxu0 %v2311
    %4528 = vmatpush2.bf16.msra.mxu0 %v2310
    %4529 = vmatprep.subr.bf16.mxu0 %v2295
    %4530 = vmatpush2.bf16.msra.mxu0 %v2294
    %4531 = vmatprep.subr.bf16.mxu0 %v2279
    %4532 = vmatpush2.bf16.msra.mxu0 %v2278
    %4533 = vmatprep.subr.bf16.mxu0 %v2263
    %4534 = vmatpush2.bf16.msra.mxu0 %v2262
    %4535 = vmatprep.subr.bf16.mxu0 %v2247
    %4536 = vmatpush2.bf16.msra.mxu0 %v2246
    %4537 = vmatprep.mubr.bf16.mxu0 %v3928
    %4538 = vmatmul.mubr.bf16.gmra.mxu0 %v3927
    %v4539 = vpop.f32.mrf.mxu0
    %v4540 = vadd.f32 0.0, %v4539
    %v4541 = vpop.f32.mrf.mxu0
    %v4542 = vadd.f32 0.0, %v4541
    %v4543 = vpop.f32.mrf.mxu0
    %v4544 = vpop.f32.mrf.mxu0
    %4545 = vdwg.mxu0
    %4546 = vmatprep.subr.bf16.mxu0 %v2487
    %4547 = vmatpush1.bf16.msra.mxu0 %v2486
    %4548 = vmatprep.subr.bf16.mxu0 %v2471
    %4549 = vmatpush1.bf16.msra.mxu0 %v2470
    %4550 = vmatprep.subr.bf16.mxu0 %v2455
    %4551 = vmatpush1.bf16.msra.mxu0 %v2454
    %4552 = vmatprep.subr.bf16.mxu0 %v2439
    %4553 = vmatpush1.bf16.msra.mxu0 %v2438
    %4554 = vmatprep.subr.bf16.mxu0 %v2423
    %4555 = vmatpush1.bf16.msra.mxu0 %v2422
    %4556 = vmatprep.subr.bf16.mxu0 %v2407
    %4557 = vmatpush1.bf16.msra.mxu0 %v2406
    %4558 = vmatprep.subr.bf16.mxu0 %v2391
    %4559 = vmatpush1.bf16.msra.mxu0 %v2390
    %4560 = vmatprep.subr.bf16.mxu0 %v2375
    %4561 = vmatpush1.bf16.msra.mxu0 %v2374
    %4562 = vmatprep.subr.bf16.mxu0 %v2615
    %4563 = vmatpush2.bf16.msra.mxu0 %v2614
    %4564 = vmatprep.subr.bf16.mxu0 %v2599
    %4565 = vmatpush2.bf16.msra.mxu0 %v2598
    %4566 = vmatprep.subr.bf16.mxu0 %v2583
    %4567 = vmatpush2.bf16.msra.mxu0 %v2582
    %4568 = vmatprep.subr.bf16.mxu0 %v2567
    %4569 = vmatpush2.bf16.msra.mxu0 %v2566
    %4570 = vmatprep.subr.bf16.mxu0 %v2551
    %4571 = vmatpush2.bf16.msra.mxu0 %v2550
    %4572 = vmatprep.subr.bf16.mxu0 %v2535
    %4573 = vmatpush2.bf16.msra.mxu0 %v2534
    %4574 = vmatprep.subr.bf16.mxu0 %v2519
    %4575 = vmatpush2.bf16.msra.mxu0 %v2518
    %4576 = vmatprep.subr.bf16.mxu0 %v2503
    %4577 = vmatpush2.bf16.msra.mxu0 %v2502
    %4578 = vmatprep.mubr.bf16.mxu0 %v3930
    %4579 = vmatmul.mubr.bf16.gmra.mxu0 %v3929
    %v4580 = vpop.f32.mrf.mxu0
    %v4581 = vadd.f32 %v4540, %v4580
    %v4582 = vpop.f32.mrf.mxu0
    %v4583 = vadd.f32 %v4542, %v4582
    %v4584 = vpop.f32.mrf.mxu0
    %v4585 = vpop.f32.mrf.mxu0
    %4586 = vdwg.mxu0
    %v4603 = vcombine.low %v4007, %v4009
    %v4604 = vcombine.low %v4089, %v4091
    %v4606 = vunpack.c.l.s4 1983009808
    %v4607 = vunpack.c.0.s8 %v4606
    %v4608 = vlaneseq
    %v4609 = vshrl.u32 %v4608, 7
    %v4610 = vsub.s32 %v4607, %v4609
    %v4611 = vrot.slane %v4603, %v4610
    %v4613 = vunpack.c.l.s4 1983009808
    %v4614 = vunpack.c.0.s8 %v4613
    %v4615 = vlaneseq
    %v4616 = vshrl.u32 %v4615, 7
    %v4617 = vsub.s32 %v4614, %v4616
    %v4618 = vrot.slane %v4604, %v4617
    %v4619 = vcombine.low %v4611, %v4618
    %v4620 = vcombine.low %v4171, %v4173
    %v4621 = vcombine.low %v4253, %v4255
    %v4623 = vunpack.c.l.s4 1983009808
    %v4624 = vunpack.c.0.s8 %v4623
    %v4625 = vlaneseq
    %v4626 = vshrl.u32 %v4625, 7
    %v4627 = vsub.s32 %v4624, %v4626
    %v4628 = vrot.slane %v4620, %v4627
    %v4630 = vunpack.c.l.s4 1983009808
    %v4631 = vunpack.c.0.s8 %v4630
    %v4632 = vlaneseq
    %v4633 = vshrl.u32 %v4632, 7
    %v4634 = vsub.s32 %v4631, %v4633
    %v4635 = vrot.slane %v4621, %v4634
    %v4636 = vcombine.low %v4628, %v4635
    %v4637 = vcombine.low %v4335, %v4337
    %v4638 = vcombine.low %v4417, %v4419
    %v4640 = vunpack.c.l.s4 1983009808
    %v4641 = vunpack.c.0.s8 %v4640
    %v4642 = vlaneseq
    %v4643 = vshrl.u32 %v4642, 7
    %v4644 = vsub.s32 %v4641, %v4643
    %v4645 = vrot.slane %v4637, %v4644
    %v4647 = vunpack.c.l.s4 1983009808
    %v4648 = vunpack.c.0.s8 %v4647
    %v4649 = vlaneseq
    %v4650 = vshrl.u32 %v4649, 7
    %v4651 = vsub.s32 %v4648, %v4650
    %v4652 = vrot.slane %v4638, %v4651
    %v4653 = vcombine.low %v4645, %v4652
    %v4654 = vcombine.low %v4499, %v4501
    %v4655 = vcombine.low %v4581, %v4583
    %v4657 = vunpack.c.l.s4 1983009808
    %v4658 = vunpack.c.0.s8 %v4657
    %v4659 = vlaneseq
    %v4660 = vshrl.u32 %v4659, 7
    %v4661 = vsub.s32 %v4658, %v4660
    %v4662 = vrot.slane %v4654, %v4661
    %v4664 = vunpack.c.l.s4 1983009808
    %v4665 = vunpack.c.0.s8 %v4664
    %v4666 = vlaneseq
    %v4667 = vshrl.u32 %v4666, 7
    %v4668 = vsub.s32 %v4665, %v4667
    %v4669 = vrot.slane %v4655, %v4668
    %v4670 = vcombine.low %v4662, %v4669
    %v4675 = vadd.f32 %v3901, %v4619
    %v4676 = vadd.f32 %v3902, %v4636
    %v4677 = vadd.f32 %v3903, %v4653
    %v4678 = vadd.f32 %v3904, %v4670
    %v4679 = vxor.u32 %v4675, 2147483648
    %v4680 = vmul.f32 %v4679, 1.442695
    %v4681 = vpow.pop %v4680
    %v4682 = vadd.f32 %v4681, 1.0
    %v4683 = vrcp.pop %v4682
    %v4684 = vmul.f32 1.0, %v4683
    %v4685 = vxor.u32 %v4676, 2147483648
    %v4686 = vmul.f32 %v4685, 1.442695
    %v4687 = vpow.pop %v4686
    %v4688 = vadd.f32 %v4687, 1.0
    %v4689 = vrcp.pop %v4688
    %v4690 = vmul.f32 1.0, %v4689
    %v4691 = vtanh.pop %v4677
    %v4692 = vxor.u32 %v4678, 2147483648
    %v4693 = vmul.f32 %v4692, 1.442695
    %v4694 = vpow.pop %v4693
    %v4695 = vadd.f32 %v4694, 1.0
    %v4696 = vrcp.pop %v4695
    %v4697 = vmul.f32 1.0, %v4696
    %v4698 = vmul.f32 %v4690, %v3897
    %v4699 = vmul.f32 %v4684, %v4691
    %v4700 = vadd.f32 %v4698, %v4699
    %v4701 = vtanh.pop %v4700
    %v4702 = vmul.f32 %v4697, %v4701
    %s4703 = scalar_lea.vmem %s0, 64
    %v4704 = vld [vmem:[%s4703] sm:$0xff]
    %v4705 = vld [vmem:[%s4703 + $0x8] sm:$0xff]
    %v4706 = vld [vmem:[%s4703 + $0x10] sm:$0xff]
    %v4707 = vld [vmem:[%s4703 + $0x18] sm:$0xff]
    %v4709 = vcombine.high %v4702, %v4702
    %v4711 = vunpack.c.l.s4 1983009808
    %v4712 = vunpack.c.0.s8 %v4711
    %v4713 = vlaneseq
    %v4714 = vshrl.u32 %v4713, 7
    %v4715 = vsub.s32 %v4712, %v4714
    %v4716 = vrot.slane %v4702, %v4715
    %v4718 = vunpack.c.l.s4 1983009808
    %v4719 = vunpack.c.0.s8 %v4718
    %v4720 = vlaneseq
    %v4721 = vshrl.u32 %v4720, 7
    %v4722 = vsub.s32 %v4719, %v4721
    %v4723 = vrot.slane %v4709, %v4722
    %v4724 = vcombine.high %v4716, %v4716
    %v4725 = vcombine.high %v4723, %v4723
    %v4730 = vpack.c.bf16 %v4716, %v4716
    %v4731 = vpack.c.bf16 %v4724, %v4724
    %v4732 = vpack.c.bf16 %v4723, %v4723
    %v4733 = vpack.c.bf16 %v4725, %v4725
    %4734 = vmatprep.subr.bf16.mxu0 %v2217
    %4735 = vmatpush1.bf16.msra.mxu0 %v2216
    %4736 = vmatprep.subr.bf16.mxu0 %v2201
    %4737 = vmatpush1.bf16.msra.mxu0 %v2200
    %4738 = vmatprep.subr.bf16.mxu0 %v2185
    %4739 = vmatpush1.bf16.msra.mxu0 %v2184
    %4740 = vmatprep.subr.bf16.mxu0 %v2169
    %4741 = vmatpush1.bf16.msra.mxu0 %v2168
    %4742 = vmatprep.subr.bf16.mxu0 %v2153
    %4743 = vmatpush1.bf16.msra.mxu0 %v2152
    %4744 = vmatprep.subr.bf16.mxu0 %v2137
    %4745 = vmatpush1.bf16.msra.mxu0 %v2136
    %4746 = vmatprep.subr.bf16.mxu0 %v2121
    %4747 = vmatpush1.bf16.msra.mxu0 %v2120
    %4748 = vmatprep.subr.bf16.mxu0 %v2105
    %4749 = vmatpush1.bf16.msra.mxu0 %v2104
    %4750 = vmatprep.subr.bf16.mxu0 %v2345
    %4751 = vmatpush2.bf16.msra.mxu0 %v2344
    %4752 = vmatprep.subr.bf16.mxu0 %v2329
    %4753 = vmatpush2.bf16.msra.mxu0 %v2328
    %4754 = vmatprep.subr.bf16.mxu0 %v2313
    %4755 = vmatpush2.bf16.msra.mxu0 %v2312
    %4756 = vmatprep.subr.bf16.mxu0 %v2297
    %4757 = vmatpush2.bf16.msra.mxu0 %v2296
    %4758 = vmatprep.subr.bf16.mxu0 %v2281
    %4759 = vmatpush2.bf16.msra.mxu0 %v2280
    %4760 = vmatprep.subr.bf16.mxu0 %v2265
    %4761 = vmatpush2.bf16.msra.mxu0 %v2264
    %4762 = vmatprep.subr.bf16.mxu0 %v2249
    %4763 = vmatpush2.bf16.msra.mxu0 %v2248
    %4764 = vmatprep.subr.bf16.mxu0 %v2233
    %4765 = vmatpush2.bf16.msra.mxu0 %v2232
    %4766 = vmatprep.mubr.bf16.mxu0 %v4731
    %4767 = vmatmul.mubr.bf16.gmra.mxu0 %v4730
    %v4768 = vpop.f32.mrf.mxu0
    %v4769 = vadd.f32 0.0, %v4768
    %v4770 = vpop.f32.mrf.mxu0
    %v4771 = vadd.f32 0.0, %v4770
    %v4772 = vpop.f32.mrf.mxu0
    %v4773 = vpop.f32.mrf.mxu0
    %4774 = vdwg.mxu0
    %4775 = vmatprep.subr.bf16.mxu0 %v2473
    %4776 = vmatpush1.bf16.msra.mxu0 %v2472
    %4777 = vmatprep.subr.bf16.mxu0 %v2457
    %4778 = vmatpush1.bf16.msra.mxu0 %v2456
    %4779 = vmatprep.subr.bf16.mxu0 %v2441
    %4780 = vmatpush1.bf16.msra.mxu0 %v2440
    %4781 = vmatprep.subr.bf16.mxu0 %v2425
    %4782 = vmatpush1.bf16.msra.mxu0 %v2424
    %4783 = vmatprep.subr.bf16.mxu0 %v2409
    %4784 = vmatpush1.bf16.msra.mxu0 %v2408
    %4785 = vmatprep.subr.bf16.mxu0 %v2393
    %4786 = vmatpush1.bf16.msra.mxu0 %v2392
    %4787 = vmatprep.subr.bf16.mxu0 %v2377
    %4788 = vmatpush1.bf16.msra.mxu0 %v2376
    %4789 = vmatprep.subr.bf16.mxu0 %v2361
    %4790 = vmatpush1.bf16.msra.mxu0 %v2360
    %4791 = vmatprep.subr.bf16.mxu0 %v2601
    %4792 = vmatpush2.bf16.msra.mxu0 %v2600
    %4793 = vmatprep.subr.bf16.mxu0 %v2585
    %4794 = vmatpush2.bf16.msra.mxu0 %v2584
    %4795 = vmatprep.subr.bf16.mxu0 %v2569
    %4796 = vmatpush2.bf16.msra.mxu0 %v2568
    %4797 = vmatprep.subr.bf16.mxu0 %v2553
    %4798 = vmatpush2.bf16.msra.mxu0 %v2552
    %4799 = vmatprep.subr.bf16.mxu0 %v2537
    %4800 = vmatpush2.bf16.msra.mxu0 %v2536
    %4801 = vmatprep.subr.bf16.mxu0 %v2521
    %4802 = vmatpush2.bf16.msra.mxu0 %v2520
    %4803 = vmatprep.subr.bf16.mxu0 %v2505
    %4804 = vmatpush2.bf16.msra.mxu0 %v2504
    %4805 = vmatprep.subr.bf16.mxu0 %v2489
    %4806 = vmatpush2.bf16.msra.mxu0 %v2488
    %4807 = vmatprep.mubr.bf16.mxu0 %v4733
    %4808 = vmatmul.mubr.bf16.gmra.mxu0 %v4732
    %v4809 = vpop.f32.mrf.mxu0
    %v4810 = vadd.f32 %v4769, %v4809
    %v4811 = vpop.f32.mrf.mxu0
    %v4812 = vadd.f32 %v4771, %v4811
    %v4813 = vpop.f32.mrf.mxu0
    %v4814 = vpop.f32.mrf.mxu0
    %4815 = vdwg.mxu0
    %4816 = vmatprep.subr.bf16.mxu0 %v2219
    %4817 = vmatpush1.bf16.msra.mxu0 %v2218
    %4818 = vmatprep.subr.bf16.mxu0 %v2203
    %4819 = vmatpush1.bf16.msra.mxu0 %v2202
    %4820 = vmatprep.subr.bf16.mxu0 %v2187
    %4821 = vmatpush1.bf16.msra.mxu0 %v2186
    %4822 = vmatprep.subr.bf16.mxu0 %v2171
    %4823 = vmatpush1.bf16.msra.mxu0 %v2170
    %4824 = vmatprep.subr.bf16.mxu0 %v2155
    %4825 = vmatpush1.bf16.msra.mxu0 %v2154
    %4826 = vmatprep.subr.bf16.mxu0 %v2139
    %4827 = vmatpush1.bf16.msra.mxu0 %v2138
    %4828 = vmatprep.subr.bf16.mxu0 %v2123
    %4829 = vmatpush1.bf16.msra.mxu0 %v2122
    %4830 = vmatprep.subr.bf16.mxu0 %v2107
    %4831 = vmatpush1.bf16.msra.mxu0 %v2106
    %4832 = vmatprep.subr.bf16.mxu0 %v2347
    %4833 = vmatpush2.bf16.msra.mxu0 %v2346
    %4834 = vmatprep.subr.bf16.mxu0 %v2331
    %4835 = vmatpush2.bf16.msra.mxu0 %v2330
    %4836 = vmatprep.subr.bf16.mxu0 %v2315
    %4837 = vmatpush2.bf16.msra.mxu0 %v2314
    %4838 = vmatprep.subr.bf16.mxu0 %v2299
    %4839 = vmatpush2.bf16.msra.mxu0 %v2298
    %4840 = vmatprep.subr.bf16.mxu0 %v2283
    %4841 = vmatpush2.bf16.msra.mxu0 %v2282
    %4842 = vmatprep.subr.bf16.mxu0 %v2267
    %4843 = vmatpush2.bf16.msra.mxu0 %v2266
    %4844 = vmatprep.subr.bf16.mxu0 %v2251
    %4845 = vmatpush2.bf16.msra.mxu0 %v2250
    %4846 = vmatprep.subr.bf16.mxu0 %v2235
    %4847 = vmatpush2.bf16.msra.mxu0 %v2234
    %4848 = vmatprep.mubr.bf16.mxu0 %v4731
    %4849 = vmatmul.mubr.bf16.gmra.mxu0 %v4730
    %v4850 = vpop.f32.mrf.mxu0
    %v4851 = vadd.f32 0.0, %v4850
    %v4852 = vpop.f32.mrf.mxu0
    %v4853 = vadd.f32 0.0, %v4852
    %v4854 = vpop.f32.mrf.mxu0
    %v4855 = vpop.f32.mrf.mxu0
    %4856 = vdwg.mxu0
    %4857 = vmatprep.subr.bf16.mxu0 %v2475
    %4858 = vmatpush1.bf16.msra.mxu0 %v2474
    %4859 = vmatprep.subr.bf16.mxu0 %v2459
    %4860 = vmatpush1.bf16.msra.mxu0 %v2458
    %4861 = vmatprep.subr.bf16.mxu0 %v2443
    %4862 = vmatpush1.bf16.msra.mxu0 %v2442
    %4863 = vmatprep.subr.bf16.mxu0 %v2427
    %4864 = vmatpush1.bf16.msra.mxu0 %v2426
    %4865 = vmatprep.subr.bf16.mxu0 %v2411
    %4866 = vmatpush1.bf16.msra.mxu0 %v2410
    %4867 = vmatprep.subr.bf16.mxu0 %v2395
    %4868 = vmatpush1.bf16.msra.mxu0 %v2394
    %4869 = vmatprep.subr.bf16.mxu0 %v2379
    %4870 = vmatpush1.bf16.msra.mxu0 %v2378
    %4871 = vmatprep.subr.bf16.mxu0 %v2363
    %4872 = vmatpush1.bf16.msra.mxu0 %v2362
    %4873 = vmatprep.subr.bf16.mxu0 %v2603
    %4874 = vmatpush2.bf16.msra.mxu0 %v2602
    %4875 = vmatprep.subr.bf16.mxu0 %v2587
    %4876 = vmatpush2.bf16.msra.mxu0 %v2586
    %4877 = vmatprep.subr.bf16.mxu0 %v2571
    %4878 = vmatpush2.bf16.msra.mxu0 %v2570
    %4879 = vmatprep.subr.bf16.mxu0 %v2555
    %4880 = vmatpush2.bf16.msra.mxu0 %v2554
    %4881 = vmatprep.subr.bf16.mxu0 %v2539
    %4882 = vmatpush2.bf16.msra.mxu0 %v2538
    %4883 = vmatprep.subr.bf16.mxu0 %v2523
    %4884 = vmatpush2.bf16.msra.mxu0 %v2522
    %4885 = vmatprep.subr.bf16.mxu0 %v2507
    %4886 = vmatpush2.bf16.msra.mxu0 %v2506
    %4887 = vmatprep.subr.bf16.mxu0 %v2491
    %4888 = vmatpush2.bf16.msra.mxu0 %v2490
    %4889 = vmatprep.mubr.bf16.mxu0 %v4733
    %4890 = vmatmul.mubr.bf16.gmra.mxu0 %v4732
    %v4891 = vpop.f32.mrf.mxu0
    %v4892 = vadd.f32 %v4851, %v4891
    %v4893 = vpop.f32.mrf.mxu0
    %v4894 = vadd.f32 %v4853, %v4893
    %v4895 = vpop.f32.mrf.mxu0
    %v4896 = vpop.f32.mrf.mxu0
    %4897 = vdwg.mxu0
    %4898 = vmatprep.subr.bf16.mxu0 %v2221
    %4899 = vmatpush1.bf16.msra.mxu0 %v2220
    %4900 = vmatprep.subr.bf16.mxu0 %v2205
    %4901 = vmatpush1.bf16.msra.mxu0 %v2204
    %4902 = vmatprep.subr.bf16.mxu0 %v2189
    %4903 = vmatpush1.bf16.msra.mxu0 %v2188
    %4904 = vmatprep.subr.bf16.mxu0 %v2173
    %4905 = vmatpush1.bf16.msra.mxu0 %v2172
    %4906 = vmatprep.subr.bf16.mxu0 %v2157
    %4907 = vmatpush1.bf16.msra.mxu0 %v2156
    %4908 = vmatprep.subr.bf16.mxu0 %v2141
    %4909 = vmatpush1.bf16.msra.mxu0 %v2140
    %4910 = vmatprep.subr.bf16.mxu0 %v2125
    %4911 = vmatpush1.bf16.msra.mxu0 %v2124
    %4912 = vmatprep.subr.bf16.mxu0 %v2109
    %4913 = vmatpush1.bf16.msra.mxu0 %v2108
    %4914 = vmatprep.subr.bf16.mxu0 %v2349
    %4915 = vmatpush2.bf16.msra.mxu0 %v2348
    %4916 = vmatprep.subr.bf16.mxu0 %v2333
    %4917 = vmatpush2.bf16.msra.mxu0 %v2332
    %4918 = vmatprep.subr.bf16.mxu0 %v2317
    %4919 = vmatpush2.bf16.msra.mxu0 %v2316
    %4920 = vmatprep.subr.bf16.mxu0 %v2301
    %4921 = vmatpush2.bf16.msra.mxu0 %v2300
    %4922 = vmatprep.subr.bf16.mxu0 %v2285
    %4923 = vmatpush2.bf16.msra.mxu0 %v2284
    %4924 = vmatprep.subr.bf16.mxu0 %v2269
    %4925 = vmatpush2.bf16.msra.mxu0 %v2268
    %4926 = vmatprep.subr.bf16.mxu0 %v2253
    %4927 = vmatpush2.bf16.msra.mxu0 %v2252
    %4928 = vmatprep.subr.bf16.mxu0 %v2237
    %4929 = vmatpush2.bf16.msra.mxu0 %v2236
    %4930 = vmatprep.mubr.bf16.mxu0 %v4731
    %4931 = vmatmul.mubr.bf16.gmra.mxu0 %v4730
    %v4932 = vpop.f32.mrf.mxu0
    %v4933 = vadd.f32 0.0, %v4932
    %v4934 = vpop.f32.mrf.mxu0
    %v4935 = vadd.f32 0.0, %v4934
    %v4936 = vpop.f32.mrf.mxu0
    %v4937 = vpop.f32.mrf.mxu0
    %4938 = vdwg.mxu0
    %4939 = vmatprep.subr.bf16.mxu0 %v2477
    %4940 = vmatpush1.bf16.msra.mxu0 %v2476
    %4941 = vmatprep.subr.bf16.mxu0 %v2461
    %4942 = vmatpush1.bf16.msra.mxu0 %v2460
    %4943 = vmatprep.subr.bf16.mxu0 %v2445
    %4944 = vmatpush1.bf16.msra.mxu0 %v2444
    %4945 = vmatprep.subr.bf16.mxu0 %v2429
    %4946 = vmatpush1.bf16.msra.mxu0 %v2428
    %4947 = vmatprep.subr.bf16.mxu0 %v2413
    %4948 = vmatpush1.bf16.msra.mxu0 %v2412
    %4949 = vmatprep.subr.bf16.mxu0 %v2397
    %4950 = vmatpush1.bf16.msra.mxu0 %v2396
    %4951 = vmatprep.subr.bf16.mxu0 %v2381
    %4952 = vmatpush1.bf16.msra.mxu0 %v2380
    %4953 = vmatprep.subr.bf16.mxu0 %v2365
    %4954 = vmatpush1.bf16.msra.mxu0 %v2364
    %4955 = vmatprep.subr.bf16.mxu0 %v2605
    %4956 = vmatpush2.bf16.msra.mxu0 %v2604
    %4957 = vmatprep.subr.bf16.mxu0 %v2589
    %4958 = vmatpush2.bf16.msra.mxu0 %v2588
    %4959 = vmatprep.subr.bf16.mxu0 %v2573
    %4960 = vmatpush2.bf16.msra.mxu0 %v2572
    %4961 = vmatprep.subr.bf16.mxu0 %v2557
    %4962 = vmatpush2.bf16.msra.mxu0 %v2556
    %4963 = vmatprep.subr.bf16.mxu0 %v2541
    %4964 = vmatpush2.bf16.msra.mxu0 %v2540
    %4965 = vmatprep.subr.bf16.mxu0 %v2525
    %4966 = vmatpush2.bf16.msra.mxu0 %v2524
    %4967 = vmatprep.subr.bf16.mxu0 %v2509
    %4968 = vmatpush2.bf16.msra.mxu0 %v2508
    %4969 = vmatprep.subr.bf16.mxu0 %v2493
    %4970 = vmatpush2.bf16.msra.mxu0 %v2492
    %4971 = vmatprep.mubr.bf16.mxu0 %v4733
    %4972 = vmatmul.mubr.bf16.gmra.mxu0 %v4732
    %v4973 = vpop.f32.mrf.mxu0
    %v4974 = vadd.f32 %v4933, %v4973
    %v4975 = vpop.f32.mrf.mxu0
    %v4976 = vadd.f32 %v4935, %v4975
    %v4977 = vpop.f32.mrf.mxu0
    %v4978 = vpop.f32.mrf.mxu0
    %4979 = vdwg.mxu0
    %4980 = vmatprep.subr.bf16.mxu0 %v2223
    %4981 = vmatpush1.bf16.msra.mxu0 %v2222
    %4982 = vmatprep.subr.bf16.mxu0 %v2207
    %4983 = vmatpush1.bf16.msra.mxu0 %v2206
    %4984 = vmatprep.subr.bf16.mxu0 %v2191
    %4985 = vmatpush1.bf16.msra.mxu0 %v2190
    %4986 = vmatprep.subr.bf16.mxu0 %v2175
    %4987 = vmatpush1.bf16.msra.mxu0 %v2174
    %4988 = vmatprep.subr.bf16.mxu0 %v2159
    %4989 = vmatpush1.bf16.msra.mxu0 %v2158
    %4990 = vmatprep.subr.bf16.mxu0 %v2143
    %4991 = vmatpush1.bf16.msra.mxu0 %v2142
    %4992 = vmatprep.subr.bf16.mxu0 %v2127
    %4993 = vmatpush1.bf16.msra.mxu0 %v2126
    %4994 = vmatprep.subr.bf16.mxu0 %v2111
    %4995 = vmatpush1.bf16.msra.mxu0 %v2110
    %4996 = vmatprep.subr.bf16.mxu0 %v2351
    %4997 = vmatpush2.bf16.msra.mxu0 %v2350
    %4998 = vmatprep.subr.bf16.mxu0 %v2335
    %4999 = vmatpush2.bf16.msra.mxu0 %v2334
    %5000 = vmatprep.subr.bf16.mxu0 %v2319
    %5001 = vmatpush2.bf16.msra.mxu0 %v2318
    %5002 = vmatprep.subr.bf16.mxu0 %v2303
    %5003 = vmatpush2.bf16.msra.mxu0 %v2302
    %5004 = vmatprep.subr.bf16.mxu0 %v2287
    %5005 = vmatpush2.bf16.msra.mxu0 %v2286
    %5006 = vmatprep.subr.bf16.mxu0 %v2271
    %5007 = vmatpush2.bf16.msra.mxu0 %v2270
    %5008 = vmatprep.subr.bf16.mxu0 %v2255
    %5009 = vmatpush2.bf16.msra.mxu0 %v2254
    %5010 = vmatprep.subr.bf16.mxu0 %v2239
    %5011 = vmatpush2.bf16.msra.mxu0 %v2238
    %5012 = vmatprep.mubr.bf16.mxu0 %v4731
    %5013 = vmatmul.mubr.bf16.gmra.mxu0 %v4730
    %v5014 = vpop.f32.mrf.mxu0
    %v5015 = vadd.f32 0.0, %v5014
    %v5016 = vpop.f32.mrf.mxu0
    %v5017 = vadd.f32 0.0, %v5016
    %v5018 = vpop.f32.mrf.mxu0
    %v5019 = vpop.f32.mrf.mxu0
    %5020 = vdwg.mxu0
    %5021 = vmatprep.subr.bf16.mxu0 %v2479
    %5022 = vmatpush1.bf16.msra.mxu0 %v2478
    %5023 = vmatprep.subr.bf16.mxu0 %v2463
    %5024 = vmatpush1.bf16.msra.mxu0 %v2462
    %5025 = vmatprep.subr.bf16.mxu0 %v2447
    %5026 = vmatpush1.bf16.msra.mxu0 %v2446
    %5027 = vmatprep.subr.bf16.mxu0 %v2431
    %5028 = vmatpush1.bf16.msra.mxu0 %v2430
    %5029 = vmatprep.subr.bf16.mxu0 %v2415
    %5030 = vmatpush1.bf16.msra.mxu0 %v2414
    %5031 = vmatprep.subr.bf16.mxu0 %v2399
    %5032 = vmatpush1.bf16.msra.mxu0 %v2398
    %5033 = vmatprep.subr.bf16.mxu0 %v2383
    %5034 = vmatpush1.bf16.msra.mxu0 %v2382
    %5035 = vmatprep.subr.bf16.mxu0 %v2367
    %5036 = vmatpush1.bf16.msra.mxu0 %v2366
    %5037 = vmatprep.subr.bf16.mxu0 %v2607
    %5038 = vmatpush2.bf16.msra.mxu0 %v2606
    %5039 = vmatprep.subr.bf16.mxu0 %v2591
    %5040 = vmatpush2.bf16.msra.mxu0 %v2590
    %5041 = vmatprep.subr.bf16.mxu0 %v2575
    %5042 = vmatpush2.bf16.msra.mxu0 %v2574
    %5043 = vmatprep.subr.bf16.mxu0 %v2559
    %5044 = vmatpush2.bf16.msra.mxu0 %v2558
    %5045 = vmatprep.subr.bf16.mxu0 %v2543
    %5046 = vmatpush2.bf16.msra.mxu0 %v2542
    %5047 = vmatprep.subr.bf16.mxu0 %v2527
    %5048 = vmatpush2.bf16.msra.mxu0 %v2526
    %5049 = vmatprep.subr.bf16.mxu0 %v2511
    %5050 = vmatpush2.bf16.msra.mxu0 %v2510
    %5051 = vmatprep.subr.bf16.mxu0 %v2495
    %5052 = vmatpush2.bf16.msra.mxu0 %v2494
    %5053 = vmatprep.mubr.bf16.mxu0 %v4733
    %5054 = vmatmul.mubr.bf16.gmra.mxu0 %v4732
    %v5055 = vpop.f32.mrf.mxu0
    %v5056 = vadd.f32 %v5015, %v5055
    %v5057 = vpop.f32.mrf.mxu0
    %v5058 = vadd.f32 %v5017, %v5057
    %v5059 = vpop.f32.mrf.mxu0
    %v5060 = vpop.f32.mrf.mxu0
    %5061 = vdwg.mxu0
    %5062 = vmatprep.subr.bf16.mxu0 %v2225
    %5063 = vmatpush1.bf16.msra.mxu0 %v2224
    %5064 = vmatprep.subr.bf16.mxu0 %v2209
    %5065 = vmatpush1.bf16.msra.mxu0 %v2208
    %5066 = vmatprep.subr.bf16.mxu0 %v2193
    %5067 = vmatpush1.bf16.msra.mxu0 %v2192
    %5068 = vmatprep.subr.bf16.mxu0 %v2177
    %5069 = vmatpush1.bf16.msra.mxu0 %v2176
    %5070 = vmatprep.subr.bf16.mxu0 %v2161
    %5071 = vmatpush1.bf16.msra.mxu0 %v2160
    %5072 = vmatprep.subr.bf16.mxu0 %v2145
    %5073 = vmatpush1.bf16.msra.mxu0 %v2144
    %5074 = vmatprep.subr.bf16.mxu0 %v2129
    %5075 = vmatpush1.bf16.msra.mxu0 %v2128
    %5076 = vmatprep.subr.bf16.mxu0 %v2113
    %5077 = vmatpush1.bf16.msra.mxu0 %v2112
    %5078 = vmatprep.subr.bf16.mxu0 %v2353
    %5079 = vmatpush2.bf16.msra.mxu0 %v2352
    %5080 = vmatprep.subr.bf16.mxu0 %v2337
    %5081 = vmatpush2.bf16.msra.mxu0 %v2336
    %5082 = vmatprep.subr.bf16.mxu0 %v2321
    %5083 = vmatpush2.bf16.msra.mxu0 %v2320
    %5084 = vmatprep.subr.bf16.mxu0 %v2305
    %5085 = vmatpush2.bf16.msra.mxu0 %v2304
    %5086 = vmatprep.subr.bf16.mxu0 %v2289
    %5087 = vmatpush2.bf16.msra.mxu0 %v2288
    %5088 = vmatprep.subr.bf16.mxu0 %v2273
    %5089 = vmatpush2.bf16.msra.mxu0 %v2272
    %5090 = vmatprep.subr.bf16.mxu0 %v2257
    %5091 = vmatpush2.bf16.msra.mxu0 %v2256
    %5092 = vmatprep.subr.bf16.mxu0 %v2241
    %5093 = vmatpush2.bf16.msra.mxu0 %v2240
    %5094 = vmatprep.mubr.bf16.mxu0 %v4731
    %5095 = vmatmul.mubr.bf16.gmra.mxu0 %v4730
    %v5096 = vpop.f32.mrf.mxu0
    %v5097 = vadd.f32 0.0, %v5096
    %v5098 = vpop.f32.mrf.mxu0
    %v5099 = vadd.f32 0.0, %v5098
    %v5100 = vpop.f32.mrf.mxu0
    %v5101 = vpop.f32.mrf.mxu0
    %5102 = vdwg.mxu0
    %5103 = vmatprep.subr.bf16.mxu0 %v2481
    %5104 = vmatpush1.bf16.msra.mxu0 %v2480
    %5105 = vmatprep.subr.bf16.mxu0 %v2465
    %5106 = vmatpush1.bf16.msra.mxu0 %v2464
    %5107 = vmatprep.subr.bf16.mxu0 %v2449
    %5108 = vmatpush1.bf16.msra.mxu0 %v2448
    %5109 = vmatprep.subr.bf16.mxu0 %v2433
    %5110 = vmatpush1.bf16.msra.mxu0 %v2432
    %5111 = vmatprep.subr.bf16.mxu0 %v2417
    %5112 = vmatpush1.bf16.msra.mxu0 %v2416
    %5113 = vmatprep.subr.bf16.mxu0 %v2401
    %5114 = vmatpush1.bf16.msra.mxu0 %v2400
    %5115 = vmatprep.subr.bf16.mxu0 %v2385
    %5116 = vmatpush1.bf16.msra.mxu0 %v2384
    %5117 = vmatprep.subr.bf16.mxu0 %v2369
    %5118 = vmatpush1.bf16.msra.mxu0 %v2368
    %5119 = vmatprep.subr.bf16.mxu0 %v2609
    %5120 = vmatpush2.bf16.msra.mxu0 %v2608
    %5121 = vmatprep.subr.bf16.mxu0 %v2593
    %5122 = vmatpush2.bf16.msra.mxu0 %v2592
    %5123 = vmatprep.subr.bf16.mxu0 %v2577
    %5124 = vmatpush2.bf16.msra.mxu0 %v2576
    %5125 = vmatprep.subr.bf16.mxu0 %v2561
    %5126 = vmatpush2.bf16.msra.mxu0 %v2560
    %5127 = vmatprep.subr.bf16.mxu0 %v2545
    %5128 = vmatpush2.bf16.msra.mxu0 %v2544
    %5129 = vmatprep.subr.bf16.mxu0 %v2529
    %5130 = vmatpush2.bf16.msra.mxu0 %v2528
    %5131 = vmatprep.subr.bf16.mxu0 %v2513
    %5132 = vmatpush2.bf16.msra.mxu0 %v2512
    %5133 = vmatprep.subr.bf16.mxu0 %v2497
    %5134 = vmatpush2.bf16.msra.mxu0 %v2496
    %5135 = vmatprep.mubr.bf16.mxu0 %v4733
    %5136 = vmatmul.mubr.bf16.gmra.mxu0 %v4732
    %v5137 = vpop.f32.mrf.mxu0
    %v5138 = vadd.f32 %v5097, %v5137
    %v5139 = vpop.f32.mrf.mxu0
    %v5140 = vadd.f32 %v5099, %v5139
    %v5141 = vpop.f32.mrf.mxu0
    %v5142 = vpop.f32.mrf.mxu0
    %5143 = vdwg.mxu0
    %5144 = vmatprep.subr.bf16.mxu0 %v2227
    %5145 = vmatpush1.bf16.msra.mxu0 %v2226
    %5146 = vmatprep.subr.bf16.mxu0 %v2211
    %5147 = vmatpush1.bf16.msra.mxu0 %v2210
    %5148 = vmatprep.subr.bf16.mxu0 %v2195
    %5149 = vmatpush1.bf16.msra.mxu0 %v2194
    %5150 = vmatprep.subr.bf16.mxu0 %v2179
    %5151 = vmatpush1.bf16.msra.mxu0 %v2178
    %5152 = vmatprep.subr.bf16.mxu0 %v2163
    %5153 = vmatpush1.bf16.msra.mxu0 %v2162
    %5154 = vmatprep.subr.bf16.mxu0 %v2147
    %5155 = vmatpush1.bf16.msra.mxu0 %v2146
    %5156 = vmatprep.subr.bf16.mxu0 %v2131
    %5157 = vmatpush1.bf16.msra.mxu0 %v2130
    %5158 = vmatprep.subr.bf16.mxu0 %v2115
    %5159 = vmatpush1.bf16.msra.mxu0 %v2114
    %5160 = vmatprep.subr.bf16.mxu0 %v2355
    %5161 = vmatpush2.bf16.msra.mxu0 %v2354
    %5162 = vmatprep.subr.bf16.mxu0 %v2339
    %5163 = vmatpush2.bf16.msra.mxu0 %v2338
    %5164 = vmatprep.subr.bf16.mxu0 %v2323
    %5165 = vmatpush2.bf16.msra.mxu0 %v2322
    %5166 = vmatprep.subr.bf16.mxu0 %v2307
    %5167 = vmatpush2.bf16.msra.mxu0 %v2306
    %5168 = vmatprep.subr.bf16.mxu0 %v2291
    %5169 = vmatpush2.bf16.msra.mxu0 %v2290
    %5170 = vmatprep.subr.bf16.mxu0 %v2275
    %5171 = vmatpush2.bf16.msra.mxu0 %v2274
    %5172 = vmatprep.subr.bf16.mxu0 %v2259
    %5173 = vmatpush2.bf16.msra.mxu0 %v2258
    %5174 = vmatprep.subr.bf16.mxu0 %v2243
    %5175 = vmatpush2.bf16.msra.mxu0 %v2242
    %5176 = vmatprep.mubr.bf16.mxu0 %v4731
    %5177 = vmatmul.mubr.bf16.gmra.mxu0 %v4730
    %v5178 = vpop.f32.mrf.mxu0
    %v5179 = vadd.f32 0.0, %v5178
    %v5180 = vpop.f32.mrf.mxu0
    %v5181 = vadd.f32 0.0, %v5180
    %v5182 = vpop.f32.mrf.mxu0
    %v5183 = vpop.f32.mrf.mxu0
    %5184 = vdwg.mxu0
    %5185 = vmatprep.subr.bf16.mxu0 %v2483
    %5186 = vmatpush1.bf16.msra.mxu0 %v2482
    %5187 = vmatprep.subr.bf16.mxu0 %v2467
    %5188 = vmatpush1.bf16.msra.mxu0 %v2466
    %5189 = vmatprep.subr.bf16.mxu0 %v2451
    %5190 = vmatpush1.bf16.msra.mxu0 %v2450
    %5191 = vmatprep.subr.bf16.mxu0 %v2435
    %5192 = vmatpush1.bf16.msra.mxu0 %v2434
    %5193 = vmatprep.subr.bf16.mxu0 %v2419
    %5194 = vmatpush1.bf16.msra.mxu0 %v2418
    %5195 = vmatprep.subr.bf16.mxu0 %v2403
    %5196 = vmatpush1.bf16.msra.mxu0 %v2402
    %5197 = vmatprep.subr.bf16.mxu0 %v2387
    %5198 = vmatpush1.bf16.msra.mxu0 %v2386
    %5199 = vmatprep.subr.bf16.mxu0 %v2371
    %5200 = vmatpush1.bf16.msra.mxu0 %v2370
    %5201 = vmatprep.subr.bf16.mxu0 %v2611
    %5202 = vmatpush2.bf16.msra.mxu0 %v2610
    %5203 = vmatprep.subr.bf16.mxu0 %v2595
    %5204 = vmatpush2.bf16.msra.mxu0 %v2594
    %5205 = vmatprep.subr.bf16.mxu0 %v2579
    %5206 = vmatpush2.bf16.msra.mxu0 %v2578
    %5207 = vmatprep.subr.bf16.mxu0 %v2563
    %5208 = vmatpush2.bf16.msra.mxu0 %v2562
    %5209 = vmatprep.subr.bf16.mxu0 %v2547
    %5210 = vmatpush2.bf16.msra.mxu0 %v2546
    %5211 = vmatprep.subr.bf16.mxu0 %v2531
    %5212 = vmatpush2.bf16.msra.mxu0 %v2530
    %5213 = vmatprep.subr.bf16.mxu0 %v2515
    %5214 = vmatpush2.bf16.msra.mxu0 %v2514
    %5215 = vmatprep.subr.bf16.mxu0 %v2499
    %5216 = vmatpush2.bf16.msra.mxu0 %v2498
    %5217 = vmatprep.mubr.bf16.mxu0 %v4733
    %5218 = vmatmul.mubr.bf16.gmra.mxu0 %v4732
    %v5219 = vpop.f32.mrf.mxu0
    %v5220 = vadd.f32 %v5179, %v5219
    %v5221 = vpop.f32.mrf.mxu0
    %v5222 = vadd.f32 %v5181, %v5221
    %v5223 = vpop.f32.mrf.mxu0
    %v5224 = vpop.f32.mrf.mxu0
    %5225 = vdwg.mxu0
    %5226 = vmatprep.subr.bf16.mxu0 %v2229
    %5227 = vmatpush1.bf16.msra.mxu0 %v2228
    %5228 = vmatprep.subr.bf16.mxu0 %v2213
    %5229 = vmatpush1.bf16.msra.mxu0 %v2212
    %5230 = vmatprep.subr.bf16.mxu0 %v2197
    %5231 = vmatpush1.bf16.msra.mxu0 %v2196
    %5232 = vmatprep.subr.bf16.mxu0 %v2181
    %5233 = vmatpush1.bf16.msra.mxu0 %v2180
    %5234 = vmatprep.subr.bf16.mxu0 %v2165
    %5235 = vmatpush1.bf16.msra.mxu0 %v2164
    %5236 = vmatprep.subr.bf16.mxu0 %v2149
    %5237 = vmatpush1.bf16.msra.mxu0 %v2148
    %5238 = vmatprep.subr.bf16.mxu0 %v2133
    %5239 = vmatpush1.bf16.msra.mxu0 %v2132
    %5240 = vmatprep.subr.bf16.mxu0 %v2117
    %5241 = vmatpush1.bf16.msra.mxu0 %v2116
    %5242 = vmatprep.subr.bf16.mxu0 %v2357
    %5243 = vmatpush2.bf16.msra.mxu0 %v2356
    %5244 = vmatprep.subr.bf16.mxu0 %v2341
    %5245 = vmatpush2.bf16.msra.mxu0 %v2340
    %5246 = vmatprep.subr.bf16.mxu0 %v2325
    %5247 = vmatpush2.bf16.msra.mxu0 %v2324
    %5248 = vmatprep.subr.bf16.mxu0 %v2309
    %5249 = vmatpush2.bf16.msra.mxu0 %v2308
    %5250 = vmatprep.subr.bf16.mxu0 %v2293
    %5251 = vmatpush2.bf16.msra.mxu0 %v2292
    %5252 = vmatprep.subr.bf16.mxu0 %v2277
    %5253 = vmatpush2.bf16.msra.mxu0 %v2276
    %5254 = vmatprep.subr.bf16.mxu0 %v2261
    %5255 = vmatpush2.bf16.msra.mxu0 %v2260
    %5256 = vmatprep.subr.bf16.mxu0 %v2245
    %5257 = vmatpush2.bf16.msra.mxu0 %v2244
    %5258 = vmatprep.mubr.bf16.mxu0 %v4731
    %5259 = vmatmul.mubr.bf16.gmra.mxu0 %v4730
    %v5260 = vpop.f32.mrf.mxu0
    %v5261 = vadd.f32 0.0, %v5260
    %v5262 = vpop.f32.mrf.mxu0
    %v5263 = vadd.f32 0.0, %v5262
    %v5264 = vpop.f32.mrf.mxu0
    %v5265 = vpop.f32.mrf.mxu0
    %5266 = vdwg.mxu0
    %5267 = vmatprep.subr.bf16.mxu0 %v2485
    %5268 = vmatpush1.bf16.msra.mxu0 %v2484
    %5269 = vmatprep.subr.bf16.mxu0 %v2469
    %5270 = vmatpush1.bf16.msra.mxu0 %v2468
    %5271 = vmatprep.subr.bf16.mxu0 %v2453
    %5272 = vmatpush1.bf16.msra.mxu0 %v2452
    %5273 = vmatprep.subr.bf16.mxu0 %v2437
    %5274 = vmatpush1.bf16.msra.mxu0 %v2436
    %5275 = vmatprep.subr.bf16.mxu0 %v2421
    %5276 = vmatpush1.bf16.msra.mxu0 %v2420
    %5277 = vmatprep.subr.bf16.mxu0 %v2405
    %5278 = vmatpush1.bf16.msra.mxu0 %v2404
    %5279 = vmatprep.subr.bf16.mxu0 %v2389
    %5280 = vmatpush1.bf16.msra.mxu0 %v2388
    %5281 = vmatprep.subr.bf16.mxu0 %v2373
    %5282 = vmatpush1.bf16.msra.mxu0 %v2372
    %5283 = vmatprep.subr.bf16.mxu0 %v2613
    %5284 = vmatpush2.bf16.msra.mxu0 %v2612
    %5285 = vmatprep.subr.bf16.mxu0 %v2597
    %5286 = vmatpush2.bf16.msra.mxu0 %v2596
    %5287 = vmatprep.subr.bf16.mxu0 %v2581
    %5288 = vmatpush2.bf16.msra.mxu0 %v2580
    %5289 = vmatprep.subr.bf16.mxu0 %v2565
    %5290 = vmatpush2.bf16.msra.mxu0 %v2564
    %5291 = vmatprep.subr.bf16.mxu0 %v2549
    %5292 = vmatpush2.bf16.msra.mxu0 %v2548
    %5293 = vmatprep.subr.bf16.mxu0 %v2533
    %5294 = vmatpush2.bf16.msra.mxu0 %v2532
    %5295 = vmatprep.subr.bf16.mxu0 %v2517
    %5296 = vmatpush2.bf16.msra.mxu0 %v2516
    %5297 = vmatprep.subr.bf16.mxu0 %v2501
    %5298 = vmatpush2.bf16.msra.mxu0 %v2500
    %5299 = vmatprep.mubr.bf16.mxu0 %v4733
    %5300 = vmatmul.mubr.bf16.gmra.mxu0 %v4732
    %v5301 = vpop.f32.mrf.mxu0
    %v5302 = vadd.f32 %v5261, %v5301
    %v5303 = vpop.f32.mrf.mxu0
    %v5304 = vadd.f32 %v5263, %v5303
    %v5305 = vpop.f32.mrf.mxu0
    %v5306 = vpop.f32.mrf.mxu0
    %5307 = vdwg.mxu0
    %5308 = vmatprep.subr.bf16.mxu0 %v2231
    %5309 = vmatpush1.bf16.msra.mxu0 %v2230
    %5310 = vmatprep.subr.bf16.mxu0 %v2215
    %5311 = vmatpush1.bf16.msra.mxu0 %v2214
    %5312 = vmatprep.subr.bf16.mxu0 %v2199
    %5313 = vmatpush1.bf16.msra.mxu0 %v2198
    %5314 = vmatprep.subr.bf16.mxu0 %v2183
    %5315 = vmatpush1.bf16.msra.mxu0 %v2182
    %5316 = vmatprep.subr.bf16.mxu0 %v2167
    %5317 = vmatpush1.bf16.msra.mxu0 %v2166
    %5318 = vmatprep.subr.bf16.mxu0 %v2151
    %5319 = vmatpush1.bf16.msra.mxu0 %v2150
    %5320 = vmatprep.subr.bf16.mxu0 %v2135
    %5321 = vmatpush1.bf16.msra.mxu0 %v2134
    %5322 = vmatprep.subr.bf16.mxu0 %v2119
    %5323 = vmatpush1.bf16.msra.mxu0 %v2118
    %5324 = vmatprep.subr.bf16.mxu0 %v2359
    %5325 = vmatpush2.bf16.msra.mxu0 %v2358
    %5326 = vmatprep.subr.bf16.mxu0 %v2343
    %5327 = vmatpush2.bf16.msra.mxu0 %v2342
    %5328 = vmatprep.subr.bf16.mxu0 %v2327
    %5329 = vmatpush2.bf16.msra.mxu0 %v2326
    %5330 = vmatprep.subr.bf16.mxu0 %v2311
    %5331 = vmatpush2.bf16.msra.mxu0 %v2310
    %5332 = vmatprep.subr.bf16.mxu0 %v2295
    %5333 = vmatpush2.bf16.msra.mxu0 %v2294
    %5334 = vmatprep.subr.bf16.mxu0 %v2279
    %5335 = vmatpush2.bf16.msra.mxu0 %v2278
    %5336 = vmatprep.subr.bf16.mxu0 %v2263
    %5337 = vmatpush2.bf16.msra.mxu0 %v2262
    %5338 = vmatprep.subr.bf16.mxu0 %v2247
    %5339 = vmatpush2.bf16.msra.mxu0 %v2246
    %5340 = vmatprep.mubr.bf16.mxu0 %v4731
    %5341 = vmatmul.mubr.bf16.gmra.mxu0 %v4730
    %v5342 = vpop.f32.mrf.mxu0
    %v5343 = vadd.f32 0.0, %v5342
    %v5344 = vpop.f32.mrf.mxu0
    %v5345 = vadd.f32 0.0, %v5344
    %v5346 = vpop.f32.mrf.mxu0
    %v5347 = vpop.f32.mrf.mxu0
    %5348 = vdwg.mxu0
    %5349 = vmatprep.subr.bf16.mxu0 %v2487
    %5350 = vmatpush1.bf16.msra.mxu0 %v2486
    %5351 = vmatprep.subr.bf16.mxu0 %v2471
    %5352 = vmatpush1.bf16.msra.mxu0 %v2470
    %5353 = vmatprep.subr.bf16.mxu0 %v2455
    %5354 = vmatpush1.bf16.msra.mxu0 %v2454
    %5355 = vmatprep.subr.bf16.mxu0 %v2439
    %5356 = vmatpush1.bf16.msra.mxu0 %v2438
    %5357 = vmatprep.subr.bf16.mxu0 %v2423
    %5358 = vmatpush1.bf16.msra.mxu0 %v2422
    %5359 = vmatprep.subr.bf16.mxu0 %v2407
    %5360 = vmatpush1.bf16.msra.mxu0 %v2406
    %5361 = vmatprep.subr.bf16.mxu0 %v2391
    %5362 = vmatpush1.bf16.msra.mxu0 %v2390
    %5363 = vmatprep.subr.bf16.mxu0 %v2375
    %5364 = vmatpush1.bf16.msra.mxu0 %v2374
    %5365 = vmatprep.subr.bf16.mxu0 %v2615
    %5366 = vmatpush2.bf16.msra.mxu0 %v2614
    %5367 = vmatprep.subr.bf16.mxu0 %v2599
    %5368 = vmatpush2.bf16.msra.mxu0 %v2598
    %5369 = vmatprep.subr.bf16.mxu0 %v2583
    %5370 = vmatpush2.bf16.msra.mxu0 %v2582
    %5371 = vmatprep.subr.bf16.mxu0 %v2567
    %5372 = vmatpush2.bf16.msra.mxu0 %v2566
    %5373 = vmatprep.subr.bf16.mxu0 %v2551
    %5374 = vmatpush2.bf16.msra.mxu0 %v2550
    %5375 = vmatprep.subr.bf16.mxu0 %v2535
    %5376 = vmatpush2.bf16.msra.mxu0 %v2534
    %5377 = vmatprep.subr.bf16.mxu0 %v2519
    %5378 = vmatpush2.bf16.msra.mxu0 %v2518
    %5379 = vmatprep.subr.bf16.mxu0 %v2503
    %5380 = vmatpush2.bf16.msra.mxu0 %v2502
    %5381 = vmatprep.mubr.bf16.mxu0 %v4733
    %5382 = vmatmul.mubr.bf16.gmra.mxu0 %v4732
    %v5383 = vpop.f32.mrf.mxu0
    %v5384 = vadd.f32 %v5343, %v5383
    %v5385 = vpop.f32.mrf.mxu0
    %v5386 = vadd.f32 %v5345, %v5385
    %v5387 = vpop.f32.mrf.mxu0
    %v5388 = vpop.f32.mrf.mxu0
    %5389 = vdwg.mxu0
    %v5406 = vcombine.low %v4810, %v4812
    %v5407 = vcombine.low %v4892, %v4894
    %v5409 = vunpack.c.l.s4 1983009808
    %v5410 = vunpack.c.0.s8 %v5409
    %v5411 = vlaneseq
    %v5412 = vshrl.u32 %v5411, 7
    %v5413 = vsub.s32 %v5410, %v5412
    %v5414 = vrot.slane %v5406, %v5413
    %v5416 = vunpack.c.l.s4 1983009808
    %v5417 = vunpack.c.0.s8 %v5416
    %v5418 = vlaneseq
    %v5419 = vshrl.u32 %v5418, 7
    %v5420 = vsub.s32 %v5417, %v5419
    %v5421 = vrot.slane %v5407, %v5420
    %v5422 = vcombine.low %v5414, %v5421
    %v5423 = vcombine.low %v4974, %v4976
    %v5424 = vcombine.low %v5056, %v5058
    %v5426 = vunpack.c.l.s4 1983009808
    %v5427 = vunpack.c.0.s8 %v5426
    %v5428 = vlaneseq
    %v5429 = vshrl.u32 %v5428, 7
    %v5430 = vsub.s32 %v5427, %v5429
    %v5431 = vrot.slane %v5423, %v5430
    %v5433 = vunpack.c.l.s4 1983009808
    %v5434 = vunpack.c.0.s8 %v5433
    %v5435 = vlaneseq
    %v5436 = vshrl.u32 %v5435, 7
    %v5437 = vsub.s32 %v5434, %v5436
    %v5438 = vrot.slane %v5424, %v5437
    %v5439 = vcombine.low %v5431, %v5438
    %v5440 = vcombine.low %v5138, %v5140
    %v5441 = vcombine.low %v5220, %v5222
    %v5443 = vunpack.c.l.s4 1983009808
    %v5444 = vunpack.c.0.s8 %v5443
    %v5445 = vlaneseq
    %v5446 = vshrl.u32 %v5445, 7
    %v5447 = vsub.s32 %v5444, %v5446
    %v5448 = vrot.slane %v5440, %v5447
    %v5450 = vunpack.c.l.s4 1983009808
    %v5451 = vunpack.c.0.s8 %v5450
    %v5452 = vlaneseq
    %v5453 = vshrl.u32 %v5452, 7
    %v5454 = vsub.s32 %v5451, %v5453
    %v5455 = vrot.slane %v5441, %v5454
    %v5456 = vcombine.low %v5448, %v5455
    %v5457 = vcombine.low %v5302, %v5304
    %v5458 = vcombine.low %v5384, %v5386
    %v5460 = vunpack.c.l.s4 1983009808
    %v5461 = vunpack.c.0.s8 %v5460
    %v5462 = vlaneseq
    %v5463 = vshrl.u32 %v5462, 7
    %v5464 = vsub.s32 %v5461, %v5463
    %v5465 = vrot.slane %v5457, %v5464
    %v5467 = vunpack.c.l.s4 1983009808
    %v5468 = vunpack.c.0.s8 %v5467
    %v5469 = vlaneseq
    %v5470 = vshrl.u32 %v5469, 7
    %v5471 = vsub.s32 %v5468, %v5470
    %v5472 = vrot.slane %v5458, %v5471
    %v5473 = vcombine.low %v5465, %v5472
    %v5478 = vadd.f32 %v4704, %v5422
    %v5479 = vadd.f32 %v4705, %v5439
    %v5480 = vadd.f32 %v4706, %v5456
    %v5481 = vadd.f32 %v4707, %v5473
    %v5482 = vxor.u32 %v5478, 2147483648
    %v5483 = vmul.f32 %v5482, 1.442695
    %v5484 = vpow.pop %v5483
    %v5485 = vadd.f32 %v5484, 1.0
    %v5486 = vrcp.pop %v5485
    %v5487 = vmul.f32 1.0, %v5486
    %v5488 = vxor.u32 %v5479, 2147483648
    %v5489 = vmul.f32 %v5488, 1.442695
    %v5490 = vpow.pop %v5489
    %v5491 = vadd.f32 %v5490, 1.0
    %v5492 = vrcp.pop %v5491
    %v5493 = vmul.f32 1.0, %v5492
    %v5494 = vtanh.pop %v5480
    %v5495 = vxor.u32 %v5481, 2147483648
    %v5496 = vmul.f32 %v5495, 1.442695
    %v5497 = vpow.pop %v5496
    %v5498 = vadd.f32 %v5497, 1.0
    %v5499 = vrcp.pop %v5498
    %v5500 = vmul.f32 1.0, %v5499
    %v5501 = vmul.f32 %v5493, %v4700
    %v5502 = vmul.f32 %v5487, %v5494
    %v5503 = vadd.f32 %v5501, %v5502
    %v5504 = vtanh.pop %v5503
    %v5505 = vmul.f32 %v5500, %v5504
    %s5506 = scalar_lea.vmem %s0, 96
    %v5507 = vld [vmem:[%s5506] sm:$0xff]
    %v5508 = vld [vmem:[%s5506 + $0x8] sm:$0xff]
    %v5509 = vld [vmem:[%s5506 + $0x10] sm:$0xff]
    %v5510 = vld [vmem:[%s5506 + $0x18] sm:$0xff]
    %v5512 = vcombine.high %v5505, %v5505
    %v5514 = vunpack.c.l.s4 1983009808
    %v5515 = vunpack.c.0.s8 %v5514
    %v5516 = vlaneseq
    %v5517 = vshrl.u32 %v5516, 7
    %v5518 = vsub.s32 %v5515, %v5517
    %v5519 = vrot.slane %v5505, %v5518
    %v5521 = vunpack.c.l.s4 1983009808
    %v5522 = vunpack.c.0.s8 %v5521
    %v5523 = vlaneseq
    %v5524 = vshrl.u32 %v5523, 7
    %v5525 = vsub.s32 %v5522, %v5524
    %v5526 = vrot.slane %v5512, %v5525
    %v5527 = vcombine.high %v5519, %v5519
    %v5528 = vcombine.high %v5526, %v5526
    %v5533 = vpack.c.bf16 %v5519, %v5519
    %v5534 = vpack.c.bf16 %v5527, %v5527
    %v5535 = vpack.c.bf16 %v5526, %v5526
    %v5536 = vpack.c.bf16 %v5528, %v5528
    %5537 = vmatprep.subr.bf16.mxu0 %v2217
    %5538 = vmatpush1.bf16.msra.mxu0 %v2216
    %5539 = vmatprep.subr.bf16.mxu0 %v2201
    %5540 = vmatpush1.bf16.msra.mxu0 %v2200
    %5541 = vmatprep.subr.bf16.mxu0 %v2185
    %5542 = vmatpush1.bf16.msra.mxu0 %v2184
    %5543 = vmatprep.subr.bf16.mxu0 %v2169
    %5544 = vmatpush1.bf16.msra.mxu0 %v2168
    %5545 = vmatprep.subr.bf16.mxu0 %v2153
    %5546 = vmatpush1.bf16.msra.mxu0 %v2152
    %5547 = vmatprep.subr.bf16.mxu0 %v2137
    %5548 = vmatpush1.bf16.msra.mxu0 %v2136
    %5549 = vmatprep.subr.bf16.mxu0 %v2121
    %5550 = vmatpush1.bf16.msra.mxu0 %v2120
    %5551 = vmatprep.subr.bf16.mxu0 %v2105
    %5552 = vmatpush1.bf16.msra.mxu0 %v2104
    %5553 = vmatprep.subr.bf16.mxu0 %v2345
    %5554 = vmatpush2.bf16.msra.mxu0 %v2344
    %5555 = vmatprep.subr.bf16.mxu0 %v2329
    %5556 = vmatpush2.bf16.msra.mxu0 %v2328
    %5557 = vmatprep.subr.bf16.mxu0 %v2313
    %5558 = vmatpush2.bf16.msra.mxu0 %v2312
    %5559 = vmatprep.subr.bf16.mxu0 %v2297
    %5560 = vmatpush2.bf16.msra.mxu0 %v2296
    %5561 = vmatprep.subr.bf16.mxu0 %v2281
    %5562 = vmatpush2.bf16.msra.mxu0 %v2280
    %5563 = vmatprep.subr.bf16.mxu0 %v2265
    %5564 = vmatpush2.bf16.msra.mxu0 %v2264
    %5565 = vmatprep.subr.bf16.mxu0 %v2249
    %5566 = vmatpush2.bf16.msra.mxu0 %v2248
    %5567 = vmatprep.subr.bf16.mxu0 %v2233
    %5568 = vmatpush2.bf16.msra.mxu0 %v2232
    %5569 = vmatprep.mubr.bf16.mxu0 %v5534
    %5570 = vmatmul.mubr.bf16.gmra.mxu0 %v5533
    %v5571 = vpop.f32.mrf.mxu0
    %v5572 = vadd.f32 0.0, %v5571
    %v5573 = vpop.f32.mrf.mxu0
    %v5574 = vadd.f32 0.0, %v5573
    %v5575 = vpop.f32.mrf.mxu0
    %v5576 = vpop.f32.mrf.mxu0
    %5577 = vdwg.mxu0
    %5578 = vmatprep.subr.bf16.mxu0 %v2473
    %5579 = vmatpush1.bf16.msra.mxu0 %v2472
    %5580 = vmatprep.subr.bf16.mxu0 %v2457
    %5581 = vmatpush1.bf16.msra.mxu0 %v2456
    %5582 = vmatprep.subr.bf16.mxu0 %v2441
    %5583 = vmatpush1.bf16.msra.mxu0 %v2440
    %5584 = vmatprep.subr.bf16.mxu0 %v2425
    %5585 = vmatpush1.bf16.msra.mxu0 %v2424
    %5586 = vmatprep.subr.bf16.mxu0 %v2409
    %5587 = vmatpush1.bf16.msra.mxu0 %v2408
    %5588 = vmatprep.subr.bf16.mxu0 %v2393
    %5589 = vmatpush1.bf16.msra.mxu0 %v2392
    %5590 = vmatprep.subr.bf16.mxu0 %v2377
    %5591 = vmatpush1.bf16.msra.mxu0 %v2376
    %5592 = vmatprep.subr.bf16.mxu0 %v2361
    %5593 = vmatpush1.bf16.msra.mxu0 %v2360
    %5594 = vmatprep.subr.bf16.mxu0 %v2601
    %5595 = vmatpush2.bf16.msra.mxu0 %v2600
    %5596 = vmatprep.subr.bf16.mxu0 %v2585
    %5597 = vmatpush2.bf16.msra.mxu0 %v2584
    %5598 = vmatprep.subr.bf16.mxu0 %v2569
    %5599 = vmatpush2.bf16.msra.mxu0 %v2568
    %5600 = vmatprep.subr.bf16.mxu0 %v2553
    %5601 = vmatpush2.bf16.msra.mxu0 %v2552
    %5602 = vmatprep.subr.bf16.mxu0 %v2537
    %5603 = vmatpush2.bf16.msra.mxu0 %v2536
    %5604 = vmatprep.subr.bf16.mxu0 %v2521
    %5605 = vmatpush2.bf16.msra.mxu0 %v2520
    %5606 = vmatprep.subr.bf16.mxu0 %v2505
    %5607 = vmatpush2.bf16.msra.mxu0 %v2504
    %5608 = vmatprep.subr.bf16.mxu0 %v2489
    %5609 = vmatpush2.bf16.msra.mxu0 %v2488
    %5610 = vmatprep.mubr.bf16.mxu0 %v5536
    %5611 = vmatmul.mubr.bf16.gmra.mxu0 %v5535
    %v5612 = vpop.f32.mrf.mxu0
    %v5613 = vadd.f32 %v5572, %v5612
    %v5614 = vpop.f32.mrf.mxu0
    %v5615 = vadd.f32 %v5574, %v5614
    %v5616 = vpop.f32.mrf.mxu0
    %v5617 = vpop.f32.mrf.mxu0
    %5618 = vdwg.mxu0
    %5619 = vmatprep.subr.bf16.mxu0 %v2219
    %5620 = vmatpush1.bf16.msra.mxu0 %v2218
    %5621 = vmatprep.subr.bf16.mxu0 %v2203
    %5622 = vmatpush1.bf16.msra.mxu0 %v2202
    %5623 = vmatprep.subr.bf16.mxu0 %v2187
    %5624 = vmatpush1.bf16.msra.mxu0 %v2186
    %5625 = vmatprep.subr.bf16.mxu0 %v2171
    %5626 = vmatpush1.bf16.msra.mxu0 %v2170
    %5627 = vmatprep.subr.bf16.mxu0 %v2155
    %5628 = vmatpush1.bf16.msra.mxu0 %v2154
    %5629 = vmatprep.subr.bf16.mxu0 %v2139
    %5630 = vmatpush1.bf16.msra.mxu0 %v2138
    %5631 = vmatprep.subr.bf16.mxu0 %v2123
    %5632 = vmatpush1.bf16.msra.mxu0 %v2122
    %5633 = vmatprep.subr.bf16.mxu0 %v2107
    %5634 = vmatpush1.bf16.msra.mxu0 %v2106
    %5635 = vmatprep.subr.bf16.mxu0 %v2347
    %5636 = vmatpush2.bf16.msra.mxu0 %v2346
    %5637 = vmatprep.subr.bf16.mxu0 %v2331
    %5638 = vmatpush2.bf16.msra.mxu0 %v2330
    %5639 = vmatprep.subr.bf16.mxu0 %v2315
    %5640 = vmatpush2.bf16.msra.mxu0 %v2314
    %5641 = vmatprep.subr.bf16.mxu0 %v2299
    %5642 = vmatpush2.bf16.msra.mxu0 %v2298
    %5643 = vmatprep.subr.bf16.mxu0 %v2283
    %5644 = vmatpush2.bf16.msra.mxu0 %v2282
    %5645 = vmatprep.subr.bf16.mxu0 %v2267
    %5646 = vmatpush2.bf16.msra.mxu0 %v2266
    %5647 = vmatprep.subr.bf16.mxu0 %v2251
    %5648 = vmatpush2.bf16.msra.mxu0 %v2250
    %5649 = vmatprep.subr.bf16.mxu0 %v2235
    %5650 = vmatpush2.bf16.msra.mxu0 %v2234
    %5651 = vmatprep.mubr.bf16.mxu0 %v5534
    %5652 = vmatmul.mubr.bf16.gmra.mxu0 %v5533
    %v5653 = vpop.f32.mrf.mxu0
    %v5654 = vadd.f32 0.0, %v5653
    %v5655 = vpop.f32.mrf.mxu0
    %v5656 = vadd.f32 0.0, %v5655
    %v5657 = vpop.f32.mrf.mxu0
    %v5658 = vpop.f32.mrf.mxu0
    %5659 = vdwg.mxu0
    %5660 = vmatprep.subr.bf16.mxu0 %v2475
    %5661 = vmatpush1.bf16.msra.mxu0 %v2474
    %5662 = vmatprep.subr.bf16.mxu0 %v2459
    %5663 = vmatpush1.bf16.msra.mxu0 %v2458
    %5664 = vmatprep.subr.bf16.mxu0 %v2443
    %5665 = vmatpush1.bf16.msra.mxu0 %v2442
    %5666 = vmatprep.subr.bf16.mxu0 %v2427
    %5667 = vmatpush1.bf16.msra.mxu0 %v2426
    %5668 = vmatprep.subr.bf16.mxu0 %v2411
    %5669 = vmatpush1.bf16.msra.mxu0 %v2410
    %5670 = vmatprep.subr.bf16.mxu0 %v2395
    %5671 = vmatpush1.bf16.msra.mxu0 %v2394
    %5672 = vmatprep.subr.bf16.mxu0 %v2379
    %5673 = vmatpush1.bf16.msra.mxu0 %v2378
    %5674 = vmatprep.subr.bf16.mxu0 %v2363
    %5675 = vmatpush1.bf16.msra.mxu0 %v2362
    %5676 = vmatprep.subr.bf16.mxu0 %v2603
    %5677 = vmatpush2.bf16.msra.mxu0 %v2602
    %5678 = vmatprep.subr.bf16.mxu0 %v2587
    %5679 = vmatpush2.bf16.msra.mxu0 %v2586
    %5680 = vmatprep.subr.bf16.mxu0 %v2571
    %5681 = vmatpush2.bf16.msra.mxu0 %v2570
    %5682 = vmatprep.subr.bf16.mxu0 %v2555
    %5683 = vmatpush2.bf16.msra.mxu0 %v2554
    %5684 = vmatprep.subr.bf16.mxu0 %v2539
    %5685 = vmatpush2.bf16.msra.mxu0 %v2538
    %5686 = vmatprep.subr.bf16.mxu0 %v2523
    %5687 = vmatpush2.bf16.msra.mxu0 %v2522
    %5688 = vmatprep.subr.bf16.mxu0 %v2507
    %5689 = vmatpush2.bf16.msra.mxu0 %v2506
    %5690 = vmatprep.subr.bf16.mxu0 %v2491
    %5691 = vmatpush2.bf16.msra.mxu0 %v2490
    %5692 = vmatprep.mubr.bf16.mxu0 %v5536
    %5693 = vmatmul.mubr.bf16.gmra.mxu0 %v5535
    %v5694 = vpop.f32.mrf.mxu0
    %v5695 = vadd.f32 %v5654, %v5694
    %v5696 = vpop.f32.mrf.mxu0
    %v5697 = vadd.f32 %v5656, %v5696
    %v5698 = vpop.f32.mrf.mxu0
    %v5699 = vpop.f32.mrf.mxu0
    %5700 = vdwg.mxu0
    %5701 = vmatprep.subr.bf16.mxu0 %v2221
    %5702 = vmatpush1.bf16.msra.mxu0 %v2220
    %5703 = vmatprep.subr.bf16.mxu0 %v2205
    %5704 = vmatpush1.bf16.msra.mxu0 %v2204
    %5705 = vmatprep.subr.bf16.mxu0 %v2189
    %5706 = vmatpush1.bf16.msra.mxu0 %v2188
    %5707 = vmatprep.subr.bf16.mxu0 %v2173
    %5708 = vmatpush1.bf16.msra.mxu0 %v2172
    %5709 = vmatprep.subr.bf16.mxu0 %v2157
    %5710 = vmatpush1.bf16.msra.mxu0 %v2156
    %5711 = vmatprep.subr.bf16.mxu0 %v2141
    %5712 = vmatpush1.bf16.msra.mxu0 %v2140
    %5713 = vmatprep.subr.bf16.mxu0 %v2125
    %5714 = vmatpush1.bf16.msra.mxu0 %v2124
    %5715 = vmatprep.subr.bf16.mxu0 %v2109
    %5716 = vmatpush1.bf16.msra.mxu0 %v2108
    %5717 = vmatprep.subr.bf16.mxu0 %v2349
    %5718 = vmatpush2.bf16.msra.mxu0 %v2348
    %5719 = vmatprep.subr.bf16.mxu0 %v2333
    %5720 = vmatpush2.bf16.msra.mxu0 %v2332
    %5721 = vmatprep.subr.bf16.mxu0 %v2317
    %5722 = vmatpush2.bf16.msra.mxu0 %v2316
    %5723 = vmatprep.subr.bf16.mxu0 %v2301
    %5724 = vmatpush2.bf16.msra.mxu0 %v2300
    %5725 = vmatprep.subr.bf16.mxu0 %v2285
    %5726 = vmatpush2.bf16.msra.mxu0 %v2284
    %5727 = vmatprep.subr.bf16.mxu0 %v2269
    %5728 = vmatpush2.bf16.msra.mxu0 %v2268
    %5729 = vmatprep.subr.bf16.mxu0 %v2253
    %5730 = vmatpush2.bf16.msra.mxu0 %v2252
    %5731 = vmatprep.subr.bf16.mxu0 %v2237
    %5732 = vmatpush2.bf16.msra.mxu0 %v2236
    %5733 = vmatprep.mubr.bf16.mxu0 %v5534
    %5734 = vmatmul.mubr.bf16.gmra.mxu0 %v5533
    %v5735 = vpop.f32.mrf.mxu0
    %v5736 = vadd.f32 0.0, %v5735
    %v5737 = vpop.f32.mrf.mxu0
    %v5738 = vadd.f32 0.0, %v5737
    %v5739 = vpop.f32.mrf.mxu0
    %v5740 = vpop.f32.mrf.mxu0
    %5741 = vdwg.mxu0
    %5742 = vmatprep.subr.bf16.mxu0 %v2477
    %5743 = vmatpush1.bf16.msra.mxu0 %v2476
    %5744 = vmatprep.subr.bf16.mxu0 %v2461
    %5745 = vmatpush1.bf16.msra.mxu0 %v2460
    %5746 = vmatprep.subr.bf16.mxu0 %v2445
    %5747 = vmatpush1.bf16.msra.mxu0 %v2444
    %5748 = vmatprep.subr.bf16.mxu0 %v2429
    %5749 = vmatpush1.bf16.msra.mxu0 %v2428
    %5750 = vmatprep.subr.bf16.mxu0 %v2413
    %5751 = vmatpush1.bf16.msra.mxu0 %v2412
    %5752 = vmatprep.subr.bf16.mxu0 %v2397
    %5753 = vmatpush1.bf16.msra.mxu0 %v2396
    %5754 = vmatprep.subr.bf16.mxu0 %v2381
    %5755 = vmatpush1.bf16.msra.mxu0 %v2380
    %5756 = vmatprep.subr.bf16.mxu0 %v2365
    %5757 = vmatpush1.bf16.msra.mxu0 %v2364
    %5758 = vmatprep.subr.bf16.mxu0 %v2605
    %5759 = vmatpush2.bf16.msra.mxu0 %v2604
    %5760 = vmatprep.subr.bf16.mxu0 %v2589
    %5761 = vmatpush2.bf16.msra.mxu0 %v2588
    %5762 = vmatprep.subr.bf16.mxu0 %v2573
    %5763 = vmatpush2.bf16.msra.mxu0 %v2572
    %5764 = vmatprep.subr.bf16.mxu0 %v2557
    %5765 = vmatpush2.bf16.msra.mxu0 %v2556
    %5766 = vmatprep.subr.bf16.mxu0 %v2541
    %5767 = vmatpush2.bf16.msra.mxu0 %v2540
    %5768 = vmatprep.subr.bf16.mxu0 %v2525
    %5769 = vmatpush2.bf16.msra.mxu0 %v2524
    %5770 = vmatprep.subr.bf16.mxu0 %v2509
    %5771 = vmatpush2.bf16.msra.mxu0 %v2508
    %5772 = vmatprep.subr.bf16.mxu0 %v2493
    %5773 = vmatpush2.bf16.msra.mxu0 %v2492
    %5774 = vmatprep.mubr.bf16.mxu0 %v5536
    %5775 = vmatmul.mubr.bf16.gmra.mxu0 %v5535
    %v5776 = vpop.f32.mrf.mxu0
    %v5777 = vadd.f32 %v5736, %v5776
    %v5778 = vpop.f32.mrf.mxu0
    %v5779 = vadd.f32 %v5738, %v5778
    %v5780 = vpop.f32.mrf.mxu0
    %v5781 = vpop.f32.mrf.mxu0
    %5782 = vdwg.mxu0
    %5783 = vmatprep.subr.bf16.mxu0 %v2223
    %5784 = vmatpush1.bf16.msra.mxu0 %v2222
    %5785 = vmatprep.subr.bf16.mxu0 %v2207
    %5786 = vmatpush1.bf16.msra.mxu0 %v2206
    %5787 = vmatprep.subr.bf16.mxu0 %v2191
    %5788 = vmatpush1.bf16.msra.mxu0 %v2190
    %5789 = vmatprep.subr.bf16.mxu0 %v2175
    %5790 = vmatpush1.bf16.msra.mxu0 %v2174
    %5791 = vmatprep.subr.bf16.mxu0 %v2159
    %5792 = vmatpush1.bf16.msra.mxu0 %v2158
    %5793 = vmatprep.subr.bf16.mxu0 %v2143
    %5794 = vmatpush1.bf16.msra.mxu0 %v2142
    %5795 = vmatprep.subr.bf16.mxu0 %v2127
    %5796 = vmatpush1.bf16.msra.mxu0 %v2126
    %5797 = vmatprep.subr.bf16.mxu0 %v2111
    %5798 = vmatpush1.bf16.msra.mxu0 %v2110
    %5799 = vmatprep.subr.bf16.mxu0 %v2351
    %5800 = vmatpush2.bf16.msra.mxu0 %v2350
    %5801 = vmatprep.subr.bf16.mxu0 %v2335
    %5802 = vmatpush2.bf16.msra.mxu0 %v2334
    %5803 = vmatprep.subr.bf16.mxu0 %v2319
    %5804 = vmatpush2.bf16.msra.mxu0 %v2318
    %5805 = vmatprep.subr.bf16.mxu0 %v2303
    %5806 = vmatpush2.bf16.msra.mxu0 %v2302
    %5807 = vmatprep.subr.bf16.mxu0 %v2287
    %5808 = vmatpush2.bf16.msra.mxu0 %v2286
    %5809 = vmatprep.subr.bf16.mxu0 %v2271
    %5810 = vmatpush2.bf16.msra.mxu0 %v2270
    %5811 = vmatprep.subr.bf16.mxu0 %v2255
    %5812 = vmatpush2.bf16.msra.mxu0 %v2254
    %5813 = vmatprep.subr.bf16.mxu0 %v2239
    %5814 = vmatpush2.bf16.msra.mxu0 %v2238
    %5815 = vmatprep.mubr.bf16.mxu0 %v5534
    %5816 = vmatmul.mubr.bf16.gmra.mxu0 %v5533
    %v5817 = vpop.f32.mrf.mxu0
    %v5818 = vadd.f32 0.0, %v5817
    %v5819 = vpop.f32.mrf.mxu0
    %v5820 = vadd.f32 0.0, %v5819
    %v5821 = vpop.f32.mrf.mxu0
    %v5822 = vpop.f32.mrf.mxu0
    %5823 = vdwg.mxu0
    %5824 = vmatprep.subr.bf16.mxu0 %v2479
    %5825 = vmatpush1.bf16.msra.mxu0 %v2478
    %5826 = vmatprep.subr.bf16.mxu0 %v2463
    %5827 = vmatpush1.bf16.msra.mxu0 %v2462
    %5828 = vmatprep.subr.bf16.mxu0 %v2447
    %5829 = vmatpush1.bf16.msra.mxu0 %v2446
    %5830 = vmatprep.subr.bf16.mxu0 %v2431
    %5831 = vmatpush1.bf16.msra.mxu0 %v2430
    %5832 = vmatprep.subr.bf16.mxu0 %v2415
    %5833 = vmatpush1.bf16.msra.mxu0 %v2414
    %5834 = vmatprep.subr.bf16.mxu0 %v2399
    %5835 = vmatpush1.bf16.msra.mxu0 %v2398
    %5836 = vmatprep.subr.bf16.mxu0 %v2383
    %5837 = vmatpush1.bf16.msra.mxu0 %v2382
    %5838 = vmatprep.subr.bf16.mxu0 %v2367
    %5839 = vmatpush1.bf16.msra.mxu0 %v2366
    %5840 = vmatprep.subr.bf16.mxu0 %v2607
    %5841 = vmatpush2.bf16.msra.mxu0 %v2606
    %5842 = vmatprep.subr.bf16.mxu0 %v2591
    %5843 = vmatpush2.bf16.msra.mxu0 %v2590
    %5844 = vmatprep.subr.bf16.mxu0 %v2575
    %5845 = vmatpush2.bf16.msra.mxu0 %v2574
    %5846 = vmatprep.subr.bf16.mxu0 %v2559
    %5847 = vmatpush2.bf16.msra.mxu0 %v2558
    %5848 = vmatprep.subr.bf16.mxu0 %v2543
    %5849 = vmatpush2.bf16.msra.mxu0 %v2542
    %5850 = vmatprep.subr.bf16.mxu0 %v2527
    %5851 = vmatpush2.bf16.msra.mxu0 %v2526
    %5852 = vmatprep.subr.bf16.mxu0 %v2511
    %5853 = vmatpush2.bf16.msra.mxu0 %v2510
    %5854 = vmatprep.subr.bf16.mxu0 %v2495
    %5855 = vmatpush2.bf16.msra.mxu0 %v2494
    %5856 = vmatprep.mubr.bf16.mxu0 %v5536
    %5857 = vmatmul.mubr.bf16.gmra.mxu0 %v5535
    %v5858 = vpop.f32.mrf.mxu0
    %v5859 = vadd.f32 %v5818, %v5858
    %v5860 = vpop.f32.mrf.mxu0
    %v5861 = vadd.f32 %v5820, %v5860
    %v5862 = vpop.f32.mrf.mxu0
    %v5863 = vpop.f32.mrf.mxu0
    %5864 = vdwg.mxu0
    %5865 = vmatprep.subr.bf16.mxu0 %v2225
    %5866 = vmatpush1.bf16.msra.mxu0 %v2224
    %5867 = vmatprep.subr.bf16.mxu0 %v2209
    %5868 = vmatpush1.bf16.msra.mxu0 %v2208
    %5869 = vmatprep.subr.bf16.mxu0 %v2193
    %5870 = vmatpush1.bf16.msra.mxu0 %v2192
    %5871 = vmatprep.subr.bf16.mxu0 %v2177
    %5872 = vmatpush1.bf16.msra.mxu0 %v2176
    %5873 = vmatprep.subr.bf16.mxu0 %v2161
    %5874 = vmatpush1.bf16.msra.mxu0 %v2160
    %5875 = vmatprep.subr.bf16.mxu0 %v2145
    %5876 = vmatpush1.bf16.msra.mxu0 %v2144
    %5877 = vmatprep.subr.bf16.mxu0 %v2129
    %5878 = vmatpush1.bf16.msra.mxu0 %v2128
    %5879 = vmatprep.subr.bf16.mxu0 %v2113
    %5880 = vmatpush1.bf16.msra.mxu0 %v2112
    %5881 = vmatprep.subr.bf16.mxu0 %v2353
    %5882 = vmatpush2.bf16.msra.mxu0 %v2352
    %5883 = vmatprep.subr.bf16.mxu0 %v2337
    %5884 = vmatpush2.bf16.msra.mxu0 %v2336
    %5885 = vmatprep.subr.bf16.mxu0 %v2321
    %5886 = vmatpush2.bf16.msra.mxu0 %v2320
    %5887 = vmatprep.subr.bf16.mxu0 %v2305
    %5888 = vmatpush2.bf16.msra.mxu0 %v2304
    %5889 = vmatprep.subr.bf16.mxu0 %v2289
    %5890 = vmatpush2.bf16.msra.mxu0 %v2288
    %5891 = vmatprep.subr.bf16.mxu0 %v2273
    %5892 = vmatpush2.bf16.msra.mxu0 %v2272
    %5893 = vmatprep.subr.bf16.mxu0 %v2257
    %5894 = vmatpush2.bf16.msra.mxu0 %v2256
    %5895 = vmatprep.subr.bf16.mxu0 %v2241
    %5896 = vmatpush2.bf16.msra.mxu0 %v2240
    %5897 = vmatprep.mubr.bf16.mxu0 %v5534
    %5898 = vmatmul.mubr.bf16.gmra.mxu0 %v5533
    %v5899 = vpop.f32.mrf.mxu0
    %v5900 = vadd.f32 0.0, %v5899
    %v5901 = vpop.f32.mrf.mxu0
    %v5902 = vadd.f32 0.0, %v5901
    %v5903 = vpop.f32.mrf.mxu0
    %v5904 = vpop.f32.mrf.mxu0
    %5905 = vdwg.mxu0
    %5906 = vmatprep.subr.bf16.mxu0 %v2481
    %5907 = vmatpush1.bf16.msra.mxu0 %v2480
    %5908 = vmatprep.subr.bf16.mxu0 %v2465
    %5909 = vmatpush1.bf16.msra.mxu0 %v2464
    %5910 = vmatprep.subr.bf16.mxu0 %v2449
    %5911 = vmatpush1.bf16.msra.mxu0 %v2448
    %5912 = vmatprep.subr.bf16.mxu0 %v2433
    %5913 = vmatpush1.bf16.msra.mxu0 %v2432
    %5914 = vmatprep.subr.bf16.mxu0 %v2417
    %5915 = vmatpush1.bf16.msra.mxu0 %v2416
    %5916 = vmatprep.subr.bf16.mxu0 %v2401
    %5917 = vmatpush1.bf16.msra.mxu0 %v2400
    %5918 = vmatprep.subr.bf16.mxu0 %v2385
    %5919 = vmatpush1.bf16.msra.mxu0 %v2384
    %5920 = vmatprep.subr.bf16.mxu0 %v2369
    %5921 = vmatpush1.bf16.msra.mxu0 %v2368
    %5922 = vmatprep.subr.bf16.mxu0 %v2609
    %5923 = vmatpush2.bf16.msra.mxu0 %v2608
    %5924 = vmatprep.subr.bf16.mxu0 %v2593
    %5925 = vmatpush2.bf16.msra.mxu0 %v2592
    %5926 = vmatprep.subr.bf16.mxu0 %v2577
    %5927 = vmatpush2.bf16.msra.mxu0 %v2576
    %5928 = vmatprep.subr.bf16.mxu0 %v2561
    %5929 = vmatpush2.bf16.msra.mxu0 %v2560
    %5930 = vmatprep.subr.bf16.mxu0 %v2545
    %5931 = vmatpush2.bf16.msra.mxu0 %v2544
    %5932 = vmatprep.subr.bf16.mxu0 %v2529
    %5933 = vmatpush2.bf16.msra.mxu0 %v2528
    %5934 = vmatprep.subr.bf16.mxu0 %v2513
    %5935 = vmatpush2.bf16.msra.mxu0 %v2512
    %5936 = vmatprep.subr.bf16.mxu0 %v2497
    %5937 = vmatpush2.bf16.msra.mxu0 %v2496
    %5938 = vmatprep.mubr.bf16.mxu0 %v5536
    %5939 = vmatmul.mubr.bf16.gmra.mxu0 %v5535
    %v5940 = vpop.f32.mrf.mxu0
    %v5941 = vadd.f32 %v5900, %v5940
    %v5942 = vpop.f32.mrf.mxu0
    %v5943 = vadd.f32 %v5902, %v5942
    %v5944 = vpop.f32.mrf.mxu0
    %v5945 = vpop.f32.mrf.mxu0
    %5946 = vdwg.mxu0
    %5947 = vmatprep.subr.bf16.mxu0 %v2227
    %5948 = vmatpush1.bf16.msra.mxu0 %v2226
    %5949 = vmatprep.subr.bf16.mxu0 %v2211
    %5950 = vmatpush1.bf16.msra.mxu0 %v2210
    %5951 = vmatprep.subr.bf16.mxu0 %v2195
    %5952 = vmatpush1.bf16.msra.mxu0 %v2194
    %5953 = vmatprep.subr.bf16.mxu0 %v2179
    %5954 = vmatpush1.bf16.msra.mxu0 %v2178
    %5955 = vmatprep.subr.bf16.mxu0 %v2163
    %5956 = vmatpush1.bf16.msra.mxu0 %v2162
    %5957 = vmatprep.subr.bf16.mxu0 %v2147
    %5958 = vmatpush1.bf16.msra.mxu0 %v2146
    %5959 = vmatprep.subr.bf16.mxu0 %v2131
    %5960 = vmatpush1.bf16.msra.mxu0 %v2130
    %5961 = vmatprep.subr.bf16.mxu0 %v2115
    %5962 = vmatpush1.bf16.msra.mxu0 %v2114
    %5963 = vmatprep.subr.bf16.mxu0 %v2355
    %5964 = vmatpush2.bf16.msra.mxu0 %v2354
    %5965 = vmatprep.subr.bf16.mxu0 %v2339
    %5966 = vmatpush2.bf16.msra.mxu0 %v2338
    %5967 = vmatprep.subr.bf16.mxu0 %v2323
    %5968 = vmatpush2.bf16.msra.mxu0 %v2322
    %5969 = vmatprep.subr.bf16.mxu0 %v2307
    %5970 = vmatpush2.bf16.msra.mxu0 %v2306
    %5971 = vmatprep.subr.bf16.mxu0 %v2291
    %5972 = vmatpush2.bf16.msra.mxu0 %v2290
    %5973 = vmatprep.subr.bf16.mxu0 %v2275
    %5974 = vmatpush2.bf16.msra.mxu0 %v2274
    %5975 = vmatprep.subr.bf16.mxu0 %v2259
    %5976 = vmatpush2.bf16.msra.mxu0 %v2258
    %5977 = vmatprep.subr.bf16.mxu0 %v2243
    %5978 = vmatpush2.bf16.msra.mxu0 %v2242
    %5979 = vmatprep.mubr.bf16.mxu0 %v5534
    %5980 = vmatmul.mubr.bf16.gmra.mxu0 %v5533
    %v5981 = vpop.f32.mrf.mxu0
    %v5982 = vadd.f32 0.0, %v5981
    %v5983 = vpop.f32.mrf.mxu0
    %v5984 = vadd.f32 0.0, %v5983
    %v5985 = vpop.f32.mrf.mxu0
    %v5986 = vpop.f32.mrf.mxu0
    %5987 = vdwg.mxu0
    %5988 = vmatprep.subr.bf16.mxu0 %v2483
    %5989 = vmatpush1.bf16.msra.mxu0 %v2482
    %5990 = vmatprep.subr.bf16.mxu0 %v2467
    %5991 = vmatpush1.bf16.msra.mxu0 %v2466
    %5992 = vmatprep.subr.bf16.mxu0 %v2451
    %5993 = vmatpush1.bf16.msra.mxu0 %v2450
    %5994 = vmatprep.subr.bf16.mxu0 %v2435
    %5995 = vmatpush1.bf16.msra.mxu0 %v2434
    %5996 = vmatprep.subr.bf16.mxu0 %v2419
    %5997 = vmatpush1.bf16.msra.mxu0 %v2418
    %5998 = vmatprep.subr.bf16.mxu0 %v2403
    %5999 = vmatpush1.bf16.msra.mxu0 %v2402
    %6000 = vmatprep.subr.bf16.mxu0 %v2387
    %6001 = vmatpush1.bf16.msra.mxu0 %v2386
    %6002 = vmatprep.subr.bf16.mxu0 %v2371
    %6003 = vmatpush1.bf16.msra.mxu0 %v2370
    %6004 = vmatprep.subr.bf16.mxu0 %v2611
    %6005 = vmatpush2.bf16.msra.mxu0 %v2610
    %6006 = vmatprep.subr.bf16.mxu0 %v2595
    %6007 = vmatpush2.bf16.msra.mxu0 %v2594
    %6008 = vmatprep.subr.bf16.mxu0 %v2579
    %6009 = vmatpush2.bf16.msra.mxu0 %v2578
    %6010 = vmatprep.subr.bf16.mxu0 %v2563
    %6011 = vmatpush2.bf16.msra.mxu0 %v2562
    %6012 = vmatprep.subr.bf16.mxu0 %v2547
    %6013 = vmatpush2.bf16.msra.mxu0 %v2546
    %6014 = vmatprep.subr.bf16.mxu0 %v2531
    %6015 = vmatpush2.bf16.msra.mxu0 %v2530
    %6016 = vmatprep.subr.bf16.mxu0 %v2515
    %6017 = vmatpush2.bf16.msra.mxu0 %v2514
    %6018 = vmatprep.subr.bf16.mxu0 %v2499
    %6019 = vmatpush2.bf16.msra.mxu0 %v2498
    %6020 = vmatprep.mubr.bf16.mxu0 %v5536
    %6021 = vmatmul.mubr.bf16.gmra.mxu0 %v5535
    %v6022 = vpop.f32.mrf.mxu0
    %v6023 = vadd.f32 %v5982, %v6022
    %v6024 = vpop.f32.mrf.mxu0
    %v6025 = vadd.f32 %v5984, %v6024
    %v6026 = vpop.f32.mrf.mxu0
    %v6027 = vpop.f32.mrf.mxu0
    %6028 = vdwg.mxu0
    %6029 = vmatprep.subr.bf16.mxu0 %v2229
    %6030 = vmatpush1.bf16.msra.mxu0 %v2228
    %6031 = vmatprep.subr.bf16.mxu0 %v2213
    %6032 = vmatpush1.bf16.msra.mxu0 %v2212
    %6033 = vmatprep.subr.bf16.mxu0 %v2197
    %6034 = vmatpush1.bf16.msra.mxu0 %v2196
    %6035 = vmatprep.subr.bf16.mxu0 %v2181
    %6036 = vmatpush1.bf16.msra.mxu0 %v2180
    %6037 = vmatprep.subr.bf16.mxu0 %v2165
    %6038 = vmatpush1.bf16.msra.mxu0 %v2164
    %6039 = vmatprep.subr.bf16.mxu0 %v2149
    %6040 = vmatpush1.bf16.msra.mxu0 %v2148
    %6041 = vmatprep.subr.bf16.mxu0 %v2133
    %6042 = vmatpush1.bf16.msra.mxu0 %v2132
    %6043 = vmatprep.subr.bf16.mxu0 %v2117
    %6044 = vmatpush1.bf16.msra.mxu0 %v2116
    %6045 = vmatprep.subr.bf16.mxu0 %v2357
    %6046 = vmatpush2.bf16.msra.mxu0 %v2356
    %6047 = vmatprep.subr.bf16.mxu0 %v2341
    %6048 = vmatpush2.bf16.msra.mxu0 %v2340
    %6049 = vmatprep.subr.bf16.mxu0 %v2325
    %6050 = vmatpush2.bf16.msra.mxu0 %v2324
    %6051 = vmatprep.subr.bf16.mxu0 %v2309
    %6052 = vmatpush2.bf16.msra.mxu0 %v2308
    %6053 = vmatprep.subr.bf16.mxu0 %v2293
    %6054 = vmatpush2.bf16.msra.mxu0 %v2292
    %6055 = vmatprep.subr.bf16.mxu0 %v2277
    %6056 = vmatpush2.bf16.msra.mxu0 %v2276
    %6057 = vmatprep.subr.bf16.mxu0 %v2261
    %6058 = vmatpush2.bf16.msra.mxu0 %v2260
    %6059 = vmatprep.subr.bf16.mxu0 %v2245
    %6060 = vmatpush2.bf16.msra.mxu0 %v2244
    %6061 = vmatprep.mubr.bf16.mxu0 %v5534
    %6062 = vmatmul.mubr.bf16.gmra.mxu0 %v5533
    %v6063 = vpop.f32.mrf.mxu0
    %v6064 = vadd.f32 0.0, %v6063
    %v6065 = vpop.f32.mrf.mxu0
    %v6066 = vadd.f32 0.0, %v6065
    %v6067 = vpop.f32.mrf.mxu0
    %v6068 = vpop.f32.mrf.mxu0
    %6069 = vdwg.mxu0
    %6070 = vmatprep.subr.bf16.mxu0 %v2485
    %6071 = vmatpush1.bf16.msra.mxu0 %v2484
    %6072 = vmatprep.subr.bf16.mxu0 %v2469
    %6073 = vmatpush1.bf16.msra.mxu0 %v2468
    %6074 = vmatprep.subr.bf16.mxu0 %v2453
    %6075 = vmatpush1.bf16.msra.mxu0 %v2452
    %6076 = vmatprep.subr.bf16.mxu0 %v2437
    %6077 = vmatpush1.bf16.msra.mxu0 %v2436
    %6078 = vmatprep.subr.bf16.mxu0 %v2421
    %6079 = vmatpush1.bf16.msra.mxu0 %v2420
    %6080 = vmatprep.subr.bf16.mxu0 %v2405
    %6081 = vmatpush1.bf16.msra.mxu0 %v2404
    %6082 = vmatprep.subr.bf16.mxu0 %v2389
    %6083 = vmatpush1.bf16.msra.mxu0 %v2388
    %6084 = vmatprep.subr.bf16.mxu0 %v2373
    %6085 = vmatpush1.bf16.msra.mxu0 %v2372
    %6086 = vmatprep.subr.bf16.mxu0 %v2613
    %6087 = vmatpush2.bf16.msra.mxu0 %v2612
    %6088 = vmatprep.subr.bf16.mxu0 %v2597
    %6089 = vmatpush2.bf16.msra.mxu0 %v2596
    %6090 = vmatprep.subr.bf16.mxu0 %v2581
    %6091 = vmatpush2.bf16.msra.mxu0 %v2580
    %6092 = vmatprep.subr.bf16.mxu0 %v2565
    %6093 = vmatpush2.bf16.msra.mxu0 %v2564
    %6094 = vmatprep.subr.bf16.mxu0 %v2549
    %6095 = vmatpush2.bf16.msra.mxu0 %v2548
    %6096 = vmatprep.subr.bf16.mxu0 %v2533
    %6097 = vmatpush2.bf16.msra.mxu0 %v2532
    %6098 = vmatprep.subr.bf16.mxu0 %v2517
    %6099 = vmatpush2.bf16.msra.mxu0 %v2516
    %6100 = vmatprep.subr.bf16.mxu0 %v2501
    %6101 = vmatpush2.bf16.msra.mxu0 %v2500
    %6102 = vmatprep.mubr.bf16.mxu0 %v5536
    %6103 = vmatmul.mubr.bf16.gmra.mxu0 %v5535
    %v6104 = vpop.f32.mrf.mxu0
    %v6105 = vadd.f32 %v6064, %v6104
    %v6106 = vpop.f32.mrf.mxu0
    %v6107 = vadd.f32 %v6066, %v6106
    %v6108 = vpop.f32.mrf.mxu0
    %v6109 = vpop.f32.mrf.mxu0
    %6110 = vdwg.mxu0
    %6111 = vmatprep.subr.bf16.mxu0 %v2231
    %6112 = vmatpush1.bf16.msra.mxu0 %v2230
    %6113 = vmatprep.subr.bf16.mxu0 %v2215
    %6114 = vmatpush1.bf16.msra.mxu0 %v2214
    %6115 = vmatprep.subr.bf16.mxu0 %v2199
    %6116 = vmatpush1.bf16.msra.mxu0 %v2198
    %6117 = vmatprep.subr.bf16.mxu0 %v2183
    %6118 = vmatpush1.bf16.msra.mxu0 %v2182
    %6119 = vmatprep.subr.bf16.mxu0 %v2167
    %6120 = vmatpush1.bf16.msra.mxu0 %v2166
    %6121 = vmatprep.subr.bf16.mxu0 %v2151
    %6122 = vmatpush1.bf16.msra.mxu0 %v2150
    %6123 = vmatprep.subr.bf16.mxu0 %v2135
    %6124 = vmatpush1.bf16.msra.mxu0 %v2134
    %6125 = vmatprep.subr.bf16.mxu0 %v2119
    %6126 = vmatpush1.bf16.msra.mxu0 %v2118
    %6127 = vmatprep.subr.bf16.mxu0 %v2359
    %6128 = vmatpush2.bf16.msra.mxu0 %v2358
    %6129 = vmatprep.subr.bf16.mxu0 %v2343
    %6130 = vmatpush2.bf16.msra.mxu0 %v2342
    %6131 = vmatprep.subr.bf16.mxu0 %v2327
    %6132 = vmatpush2.bf16.msra.mxu0 %v2326
    %6133 = vmatprep.subr.bf16.mxu0 %v2311
    %6134 = vmatpush2.bf16.msra.mxu0 %v2310
    %6135 = vmatprep.subr.bf16.mxu0 %v2295
    %6136 = vmatpush2.bf16.msra.mxu0 %v2294
    %6137 = vmatprep.subr.bf16.mxu0 %v2279
    %6138 = vmatpush2.bf16.msra.mxu0 %v2278
    %6139 = vmatprep.subr.bf16.mxu0 %v2263
    %6140 = vmatpush2.bf16.msra.mxu0 %v2262
    %6141 = vmatprep.subr.bf16.mxu0 %v2247
    %6142 = vmatpush2.bf16.msra.mxu0 %v2246
    %6143 = vmatprep.mubr.bf16.mxu0 %v5534
    %6144 = vmatmul.mubr.bf16.gmra.mxu0 %v5533
    %v6145 = vpop.f32.mrf.mxu0
    %v6146 = vadd.f32 0.0, %v6145
    %v6147 = vpop.f32.mrf.mxu0
    %v6148 = vadd.f32 0.0, %v6147
    %v6149 = vpop.f32.mrf.mxu0
    %v6150 = vpop.f32.mrf.mxu0
    %6151 = vdwg.mxu0
    %6152 = vmatprep.subr.bf16.mxu0 %v2487
    %6153 = vmatpush1.bf16.msra.mxu0 %v2486
    %6154 = vmatprep.subr.bf16.mxu0 %v2471
    %6155 = vmatpush1.bf16.msra.mxu0 %v2470
    %6156 = vmatprep.subr.bf16.mxu0 %v2455
    %6157 = vmatpush1.bf16.msra.mxu0 %v2454
    %6158 = vmatprep.subr.bf16.mxu0 %v2439
    %6159 = vmatpush1.bf16.msra.mxu0 %v2438
    %6160 = vmatprep.subr.bf16.mxu0 %v2423
    %6161 = vmatpush1.bf16.msra.mxu0 %v2422
    %6162 = vmatprep.subr.bf16.mxu0 %v2407
    %6163 = vmatpush1.bf16.msra.mxu0 %v2406
    %6164 = vmatprep.subr.bf16.mxu0 %v2391
    %6165 = vmatpush1.bf16.msra.mxu0 %v2390
    %6166 = vmatprep.subr.bf16.mxu0 %v2375
    %6167 = vmatpush1.bf16.msra.mxu0 %v2374
    %6168 = vmatprep.subr.bf16.mxu0 %v2615
    %6169 = vmatpush2.bf16.msra.mxu0 %v2614
    %6170 = vmatprep.subr.bf16.mxu0 %v2599
    %6171 = vmatpush2.bf16.msra.mxu0 %v2598
    %6172 = vmatprep.subr.bf16.mxu0 %v2583
    %6173 = vmatpush2.bf16.msra.mxu0 %v2582
    %6174 = vmatprep.subr.bf16.mxu0 %v2567
    %6175 = vmatpush2.bf16.msra.mxu0 %v2566
    %6176 = vmatprep.subr.bf16.mxu0 %v2551
    %6177 = vmatpush2.bf16.msra.mxu0 %v2550
    %6178 = vmatprep.subr.bf16.mxu0 %v2535
    %6179 = vmatpush2.bf16.msra.mxu0 %v2534
    %6180 = vmatprep.subr.bf16.mxu0 %v2519
    %6181 = vmatpush2.bf16.msra.mxu0 %v2518
    %6182 = vmatprep.subr.bf16.mxu0 %v2503
    %6183 = vmatpush2.bf16.msra.mxu0 %v2502
    %6184 = vmatprep.mubr.bf16.mxu0 %v5536
    %6185 = vmatmul.mubr.bf16.gmra.mxu0 %v5535
    %v6186 = vpop.f32.mrf.mxu0
    %v6187 = vadd.f32 %v6146, %v6186
    %v6188 = vpop.f32.mrf.mxu0
    %v6189 = vadd.f32 %v6148, %v6188
    %v6190 = vpop.f32.mrf.mxu0
    %v6191 = vpop.f32.mrf.mxu0
    %6192 = vdwg.mxu0
    %v6209 = vcombine.low %v5613, %v5615
    %v6210 = vcombine.low %v5695, %v5697
    %v6212 = vunpack.c.l.s4 1983009808
    %v6213 = vunpack.c.0.s8 %v6212
    %v6214 = vlaneseq
    %v6215 = vshrl.u32 %v6214, 7
    %v6216 = vsub.s32 %v6213, %v6215
    %v6217 = vrot.slane %v6209, %v6216
    %v6219 = vunpack.c.l.s4 1983009808
    %v6220 = vunpack.c.0.s8 %v6219
    %v6221 = vlaneseq
    %v6222 = vshrl.u32 %v6221, 7
    %v6223 = vsub.s32 %v6220, %v6222
    %v6224 = vrot.slane %v6210, %v6223
    %v6225 = vcombine.low %v6217, %v6224
    %v6226 = vcombine.low %v5777, %v5779
    %v6227 = vcombine.low %v5859, %v5861
    %v6229 = vunpack.c.l.s4 1983009808
    %v6230 = vunpack.c.0.s8 %v6229
    %v6231 = vlaneseq
    %v6232 = vshrl.u32 %v6231, 7
    %v6233 = vsub.s32 %v6230, %v6232
    %v6234 = vrot.slane %v6226, %v6233
    %v6236 = vunpack.c.l.s4 1983009808
    %v6237 = vunpack.c.0.s8 %v6236
    %v6238 = vlaneseq
    %v6239 = vshrl.u32 %v6238, 7
    %v6240 = vsub.s32 %v6237, %v6239
    %v6241 = vrot.slane %v6227, %v6240
    %v6242 = vcombine.low %v6234, %v6241
    %v6243 = vcombine.low %v5941, %v5943
    %v6244 = vcombine.low %v6023, %v6025
    %v6246 = vunpack.c.l.s4 1983009808
    %v6247 = vunpack.c.0.s8 %v6246
    %v6248 = vlaneseq
    %v6249 = vshrl.u32 %v6248, 7
    %v6250 = vsub.s32 %v6247, %v6249
    %v6251 = vrot.slane %v6243, %v6250
    %v6253 = vunpack.c.l.s4 1983009808
    %v6254 = vunpack.c.0.s8 %v6253
    %v6255 = vlaneseq
    %v6256 = vshrl.u32 %v6255, 7
    %v6257 = vsub.s32 %v6254, %v6256
    %v6258 = vrot.slane %v6244, %v6257
    %v6259 = vcombine.low %v6251, %v6258
    %v6260 = vcombine.low %v6105, %v6107
    %v6261 = vcombine.low %v6187, %v6189
    %v6263 = vunpack.c.l.s4 1983009808
    %v6264 = vunpack.c.0.s8 %v6263
    %v6265 = vlaneseq
    %v6266 = vshrl.u32 %v6265, 7
    %v6267 = vsub.s32 %v6264, %v6266
    %v6268 = vrot.slane %v6260, %v6267
    %v6270 = vunpack.c.l.s4 1983009808
    %v6271 = vunpack.c.0.s8 %v6270
    %v6272 = vlaneseq
    %v6273 = vshrl.u32 %v6272, 7
    %v6274 = vsub.s32 %v6271, %v6273
    %v6275 = vrot.slane %v6261, %v6274
    %v6276 = vcombine.low %v6268, %v6275
    %v6281 = vadd.f32 %v5507, %v6225
    %v6282 = vadd.f32 %v5508, %v6242
    %v6283 = vadd.f32 %v5509, %v6259
    %v6284 = vadd.f32 %v5510, %v6276
    %v6285 = vxor.u32 %v6281, 2147483648
    %v6286 = vmul.f32 %v6285, 1.442695
    %v6287 = vpow.pop %v6286
    %v6288 = vadd.f32 %v6287, 1.0
    %v6289 = vrcp.pop %v6288
    %v6290 = vmul.f32 1.0, %v6289
    %v6291 = vxor.u32 %v6282, 2147483648
    %v6292 = vmul.f32 %v6291, 1.442695
    %v6293 = vpow.pop %v6292
    %v6294 = vadd.f32 %v6293, 1.0
    %v6295 = vrcp.pop %v6294
    %v6296 = vmul.f32 1.0, %v6295
    %v6297 = vtanh.pop %v6283
    %v6298 = vxor.u32 %v6284, 2147483648
    %v6299 = vmul.f32 %v6298, 1.442695
    %v6300 = vpow.pop %v6299
    %v6301 = vadd.f32 %v6300, 1.0
    %v6302 = vrcp.pop %v6301
    %v6303 = vmul.f32 1.0, %v6302
    %v6304 = vmul.f32 %v6296, %v5503
    %v6305 = vmul.f32 %v6290, %v6297
    %v6306 = vadd.f32 %v6304, %v6305
    %v6307 = vtanh.pop %v6306
    %v6308 = vmul.f32 %v6303, %v6307
    %s6309 = scalar_lea.vmem %s0, 128
    %v6310 = vld [vmem:[%s6309] sm:$0xff]
    %v6311 = vld [vmem:[%s6309 + $0x8] sm:$0xff]
    %v6312 = vld [vmem:[%s6309 + $0x10] sm:$0xff]
    %v6313 = vld [vmem:[%s6309 + $0x18] sm:$0xff]
    %v6315 = vcombine.high %v6308, %v6308
    %v6317 = vunpack.c.l.s4 1983009808
    %v6318 = vunpack.c.0.s8 %v6317
    %v6319 = vlaneseq
    %v6320 = vshrl.u32 %v6319, 7
    %v6321 = vsub.s32 %v6318, %v6320
    %v6322 = vrot.slane %v6308, %v6321
    %v6324 = vunpack.c.l.s4 1983009808
    %v6325 = vunpack.c.0.s8 %v6324
    %v6326 = vlaneseq
    %v6327 = vshrl.u32 %v6326, 7
    %v6328 = vsub.s32 %v6325, %v6327
    %v6329 = vrot.slane %v6315, %v6328
    %v6330 = vcombine.high %v6322, %v6322
    %v6331 = vcombine.high %v6329, %v6329
    %v6336 = vpack.c.bf16 %v6322, %v6322
    %v6337 = vpack.c.bf16 %v6330, %v6330
    %v6338 = vpack.c.bf16 %v6329, %v6329
    %v6339 = vpack.c.bf16 %v6331, %v6331
    %6340 = vmatprep.subr.bf16.mxu0 %v2217
    %6341 = vmatpush1.bf16.msra.mxu0 %v2216
    %6342 = vmatprep.subr.bf16.mxu0 %v2201
    %6343 = vmatpush1.bf16.msra.mxu0 %v2200
    %6344 = vmatprep.subr.bf16.mxu0 %v2185
    %6345 = vmatpush1.bf16.msra.mxu0 %v2184
    %6346 = vmatprep.subr.bf16.mxu0 %v2169
    %6347 = vmatpush1.bf16.msra.mxu0 %v2168
    %6348 = vmatprep.subr.bf16.mxu0 %v2153
    %6349 = vmatpush1.bf16.msra.mxu0 %v2152
    %6350 = vmatprep.subr.bf16.mxu0 %v2137
    %6351 = vmatpush1.bf16.msra.mxu0 %v2136
    %6352 = vmatprep.subr.bf16.mxu0 %v2121
    %6353 = vmatpush1.bf16.msra.mxu0 %v2120
    %6354 = vmatprep.subr.bf16.mxu0 %v2105
    %6355 = vmatpush1.bf16.msra.mxu0 %v2104
    %6356 = vmatprep.subr.bf16.mxu0 %v2345
    %6357 = vmatpush2.bf16.msra.mxu0 %v2344
    %6358 = vmatprep.subr.bf16.mxu0 %v2329
    %6359 = vmatpush2.bf16.msra.mxu0 %v2328
    %6360 = vmatprep.subr.bf16.mxu0 %v2313
    %6361 = vmatpush2.bf16.msra.mxu0 %v2312
    %6362 = vmatprep.subr.bf16.mxu0 %v2297
    %6363 = vmatpush2.bf16.msra.mxu0 %v2296
    %6364 = vmatprep.subr.bf16.mxu0 %v2281
    %6365 = vmatpush2.bf16.msra.mxu0 %v2280
    %6366 = vmatprep.subr.bf16.mxu0 %v2265
    %6367 = vmatpush2.bf16.msra.mxu0 %v2264
    %6368 = vmatprep.subr.bf16.mxu0 %v2249
    %6369 = vmatpush2.bf16.msra.mxu0 %v2248
    %6370 = vmatprep.subr.bf16.mxu0 %v2233
    %6371 = vmatpush2.bf16.msra.mxu0 %v2232
    %6372 = vmatprep.mubr.bf16.mxu0 %v6337
    %6373 = vmatmul.mubr.bf16.gmra.mxu0 %v6336
    %v6374 = vpop.f32.mrf.mxu0
    %v6375 = vadd.f32 0.0, %v6374
    %v6376 = vpop.f32.mrf.mxu0
    %v6377 = vadd.f32 0.0, %v6376
    %v6378 = vpop.f32.mrf.mxu0
    %v6379 = vpop.f32.mrf.mxu0
    %6380 = vdwg.mxu0
    %6381 = vmatprep.subr.bf16.mxu0 %v2473
    %6382 = vmatpush1.bf16.msra.mxu0 %v2472
    %6383 = vmatprep.subr.bf16.mxu0 %v2457
    %6384 = vmatpush1.bf16.msra.mxu0 %v2456
    %6385 = vmatprep.subr.bf16.mxu0 %v2441
    %6386 = vmatpush1.bf16.msra.mxu0 %v2440
    %6387 = vmatprep.subr.bf16.mxu0 %v2425
    %6388 = vmatpush1.bf16.msra.mxu0 %v2424
    %6389 = vmatprep.subr.bf16.mxu0 %v2409
    %6390 = vmatpush1.bf16.msra.mxu0 %v2408
    %6391 = vmatprep.subr.bf16.mxu0 %v2393
    %6392 = vmatpush1.bf16.msra.mxu0 %v2392
    %6393 = vmatprep.subr.bf16.mxu0 %v2377
    %6394 = vmatpush1.bf16.msra.mxu0 %v2376
    %6395 = vmatprep.subr.bf16.mxu0 %v2361
    %6396 = vmatpush1.bf16.msra.mxu0 %v2360
    %6397 = vmatprep.subr.bf16.mxu0 %v2601
    %6398 = vmatpush2.bf16.msra.mxu0 %v2600
    %6399 = vmatprep.subr.bf16.mxu0 %v2585
    %6400 = vmatpush2.bf16.msra.mxu0 %v2584
    %6401 = vmatprep.subr.bf16.mxu0 %v2569
    %6402 = vmatpush2.bf16.msra.mxu0 %v2568
    %6403 = vmatprep.subr.bf16.mxu0 %v2553
    %6404 = vmatpush2.bf16.msra.mxu0 %v2552
    %6405 = vmatprep.subr.bf16.mxu0 %v2537
    %6406 = vmatpush2.bf16.msra.mxu0 %v2536
    %6407 = vmatprep.subr.bf16.mxu0 %v2521
    %6408 = vmatpush2.bf16.msra.mxu0 %v2520
    %6409 = vmatprep.subr.bf16.mxu0 %v2505
    %6410 = vmatpush2.bf16.msra.mxu0 %v2504
    %6411 = vmatprep.subr.bf16.mxu0 %v2489
    %6412 = vmatpush2.bf16.msra.mxu0 %v2488
    %6413 = vmatprep.mubr.bf16.mxu0 %v6339
    %6414 = vmatmul.mubr.bf16.gmra.mxu0 %v6338
    %v6415 = vpop.f32.mrf.mxu0
    %v6416 = vadd.f32 %v6375, %v6415
    %v6417 = vpop.f32.mrf.mxu0
    %v6418 = vadd.f32 %v6377, %v6417
    %v6419 = vpop.f32.mrf.mxu0
    %v6420 = vpop.f32.mrf.mxu0
    %6421 = vdwg.mxu0
    %6422 = vmatprep.subr.bf16.mxu0 %v2219
    %6423 = vmatpush1.bf16.msra.mxu0 %v2218
    %6424 = vmatprep.subr.bf16.mxu0 %v2203
    %6425 = vmatpush1.bf16.msra.mxu0 %v2202
    %6426 = vmatprep.subr.bf16.mxu0 %v2187
    %6427 = vmatpush1.bf16.msra.mxu0 %v2186
    %6428 = vmatprep.subr.bf16.mxu0 %v2171
    %6429 = vmatpush1.bf16.msra.mxu0 %v2170
    %6430 = vmatprep.subr.bf16.mxu0 %v2155
    %6431 = vmatpush1.bf16.msra.mxu0 %v2154
    %6432 = vmatprep.subr.bf16.mxu0 %v2139
    %6433 = vmatpush1.bf16.msra.mxu0 %v2138
    %6434 = vmatprep.subr.bf16.mxu0 %v2123
    %6435 = vmatpush1.bf16.msra.mxu0 %v2122
    %6436 = vmatprep.subr.bf16.mxu0 %v2107
    %6437 = vmatpush1.bf16.msra.mxu0 %v2106
    %6438 = vmatprep.subr.bf16.mxu0 %v2347
    %6439 = vmatpush2.bf16.msra.mxu0 %v2346
    %6440 = vmatprep.subr.bf16.mxu0 %v2331
    %6441 = vmatpush2.bf16.msra.mxu0 %v2330
    %6442 = vmatprep.subr.bf16.mxu0 %v2315
    %6443 = vmatpush2.bf16.msra.mxu0 %v2314
    %6444 = vmatprep.subr.bf16.mxu0 %v2299
    %6445 = vmatpush2.bf16.msra.mxu0 %v2298
    %6446 = vmatprep.subr.bf16.mxu0 %v2283
    %6447 = vmatpush2.bf16.msra.mxu0 %v2282
    %6448 = vmatprep.subr.bf16.mxu0 %v2267
    %6449 = vmatpush2.bf16.msra.mxu0 %v2266
    %6450 = vmatprep.subr.bf16.mxu0 %v2251
    %6451 = vmatpush2.bf16.msra.mxu0 %v2250
    %6452 = vmatprep.subr.bf16.mxu0 %v2235
    %6453 = vmatpush2.bf16.msra.mxu0 %v2234
    %6454 = vmatprep.mubr.bf16.mxu0 %v6337
    %6455 = vmatmul.mubr.bf16.gmra.mxu0 %v6336
    %v6456 = vpop.f32.mrf.mxu0
    %v6457 = vadd.f32 0.0, %v6456
    %v6458 = vpop.f32.mrf.mxu0
    %v6459 = vadd.f32 0.0, %v6458
    %v6460 = vpop.f32.mrf.mxu0
    %v6461 = vpop.f32.mrf.mxu0
    %6462 = vdwg.mxu0
    %6463 = vmatprep.subr.bf16.mxu0 %v2475
    %6464 = vmatpush1.bf16.msra.mxu0 %v2474
    %6465 = vmatprep.subr.bf16.mxu0 %v2459
    %6466 = vmatpush1.bf16.msra.mxu0 %v2458
    %6467 = vmatprep.subr.bf16.mxu0 %v2443
    %6468 = vmatpush1.bf16.msra.mxu0 %v2442
    %6469 = vmatprep.subr.bf16.mxu0 %v2427
    %6470 = vmatpush1.bf16.msra.mxu0 %v2426
    %6471 = vmatprep.subr.bf16.mxu0 %v2411
    %6472 = vmatpush1.bf16.msra.mxu0 %v2410
    %6473 = vmatprep.subr.bf16.mxu0 %v2395
    %6474 = vmatpush1.bf16.msra.mxu0 %v2394
    %6475 = vmatprep.subr.bf16.mxu0 %v2379
    %6476 = vmatpush1.bf16.msra.mxu0 %v2378
    %6477 = vmatprep.subr.bf16.mxu0 %v2363
    %6478 = vmatpush1.bf16.msra.mxu0 %v2362
    %6479 = vmatprep.subr.bf16.mxu0 %v2603
    %6480 = vmatpush2.bf16.msra.mxu0 %v2602
    %6481 = vmatprep.subr.bf16.mxu0 %v2587
    %6482 = vmatpush2.bf16.msra.mxu0 %v2586
    %6483 = vmatprep.subr.bf16.mxu0 %v2571
    %6484 = vmatpush2.bf16.msra.mxu0 %v2570
    %6485 = vmatprep.subr.bf16.mxu0 %v2555
    %6486 = vmatpush2.bf16.msra.mxu0 %v2554
    %6487 = vmatprep.subr.bf16.mxu0 %v2539
    %6488 = vmatpush2.bf16.msra.mxu0 %v2538
    %6489 = vmatprep.subr.bf16.mxu0 %v2523
    %6490 = vmatpush2.bf16.msra.mxu0 %v2522
    %6491 = vmatprep.subr.bf16.mxu0 %v2507
    %6492 = vmatpush2.bf16.msra.mxu0 %v2506
    %6493 = vmatprep.subr.bf16.mxu0 %v2491
    %6494 = vmatpush2.bf16.msra.mxu0 %v2490
    %6495 = vmatprep.mubr.bf16.mxu0 %v6339
    %6496 = vmatmul.mubr.bf16.gmra.mxu0 %v6338
    %v6497 = vpop.f32.mrf.mxu0
    %v6498 = vadd.f32 %v6457, %v6497
    %v6499 = vpop.f32.mrf.mxu0
    %v6500 = vadd.f32 %v6459, %v6499
    %v6501 = vpop.f32.mrf.mxu0
    %v6502 = vpop.f32.mrf.mxu0
    %6503 = vdwg.mxu0
    %6504 = vmatprep.subr.bf16.mxu0 %v2221
    %6505 = vmatpush1.bf16.msra.mxu0 %v2220
    %6506 = vmatprep.subr.bf16.mxu0 %v2205
    %6507 = vmatpush1.bf16.msra.mxu0 %v2204
    %6508 = vmatprep.subr.bf16.mxu0 %v2189
    %6509 = vmatpush1.bf16.msra.mxu0 %v2188
    %6510 = vmatprep.subr.bf16.mxu0 %v2173
    %6511 = vmatpush1.bf16.msra.mxu0 %v2172
    %6512 = vmatprep.subr.bf16.mxu0 %v2157
    %6513 = vmatpush1.bf16.msra.mxu0 %v2156
    %6514 = vmatprep.subr.bf16.mxu0 %v2141
    %6515 = vmatpush1.bf16.msra.mxu0 %v2140
    %6516 = vmatprep.subr.bf16.mxu0 %v2125
    %6517 = vmatpush1.bf16.msra.mxu0 %v2124
    %6518 = vmatprep.subr.bf16.mxu0 %v2109
    %6519 = vmatpush1.bf16.msra.mxu0 %v2108
    %6520 = vmatprep.subr.bf16.mxu0 %v2349
    %6521 = vmatpush2.bf16.msra.mxu0 %v2348
    %6522 = vmatprep.subr.bf16.mxu0 %v2333
    %6523 = vmatpush2.bf16.msra.mxu0 %v2332
    %6524 = vmatprep.subr.bf16.mxu0 %v2317
    %6525 = vmatpush2.bf16.msra.mxu0 %v2316
    %6526 = vmatprep.subr.bf16.mxu0 %v2301
    %6527 = vmatpush2.bf16.msra.mxu0 %v2300
    %6528 = vmatprep.subr.bf16.mxu0 %v2285
    %6529 = vmatpush2.bf16.msra.mxu0 %v2284
    %6530 = vmatprep.subr.bf16.mxu0 %v2269
    %6531 = vmatpush2.bf16.msra.mxu0 %v2268
    %6532 = vmatprep.subr.bf16.mxu0 %v2253
    %6533 = vmatpush2.bf16.msra.mxu0 %v2252
    %6534 = vmatprep.subr.bf16.mxu0 %v2237
    %6535 = vmatpush2.bf16.msra.mxu0 %v2236
    %6536 = vmatprep.mubr.bf16.mxu0 %v6337
    %6537 = vmatmul.mubr.bf16.gmra.mxu0 %v6336
    %v6538 = vpop.f32.mrf.mxu0
    %v6539 = vadd.f32 0.0, %v6538
    %v6540 = vpop.f32.mrf.mxu0
    %v6541 = vadd.f32 0.0, %v6540
    %v6542 = vpop.f32.mrf.mxu0
    %v6543 = vpop.f32.mrf.mxu0
    %6544 = vdwg.mxu0
    %6545 = vmatprep.subr.bf16.mxu0 %v2477
    %6546 = vmatpush1.bf16.msra.mxu0 %v2476
    %6547 = vmatprep.subr.bf16.mxu0 %v2461
    %6548 = vmatpush1.bf16.msra.mxu0 %v2460
    %6549 = vmatprep.subr.bf16.mxu0 %v2445
    %6550 = vmatpush1.bf16.msra.mxu0 %v2444
    %6551 = vmatprep.subr.bf16.mxu0 %v2429
    %6552 = vmatpush1.bf16.msra.mxu0 %v2428
    %6553 = vmatprep.subr.bf16.mxu0 %v2413
    %6554 = vmatpush1.bf16.msra.mxu0 %v2412
    %6555 = vmatprep.subr.bf16.mxu0 %v2397
    %6556 = vmatpush1.bf16.msra.mxu0 %v2396
    %6557 = vmatprep.subr.bf16.mxu0 %v2381
    %6558 = vmatpush1.bf16.msra.mxu0 %v2380
    %6559 = vmatprep.subr.bf16.mxu0 %v2365
    %6560 = vmatpush1.bf16.msra.mxu0 %v2364
    %6561 = vmatprep.subr.bf16.mxu0 %v2605
    %6562 = vmatpush2.bf16.msra.mxu0 %v2604
    %6563 = vmatprep.subr.bf16.mxu0 %v2589
    %6564 = vmatpush2.bf16.msra.mxu0 %v2588
    %6565 = vmatprep.subr.bf16.mxu0 %v2573
    %6566 = vmatpush2.bf16.msra.mxu0 %v2572
    %6567 = vmatprep.subr.bf16.mxu0 %v2557
    %6568 = vmatpush2.bf16.msra.mxu0 %v2556
    %6569 = vmatprep.subr.bf16.mxu0 %v2541
    %6570 = vmatpush2.bf16.msra.mxu0 %v2540
    %6571 = vmatprep.subr.bf16.mxu0 %v2525
    %6572 = vmatpush2.bf16.msra.mxu0 %v2524
    %6573 = vmatprep.subr.bf16.mxu0 %v2509
    %6574 = vmatpush2.bf16.msra.mxu0 %v2508
    %6575 = vmatprep.subr.bf16.mxu0 %v2493
    %6576 = vmatpush2.bf16.msra.mxu0 %v2492
    %6577 = vmatprep.mubr.bf16.mxu0 %v6339
    %6578 = vmatmul.mubr.bf16.gmra.mxu0 %v6338
    %v6579 = vpop.f32.mrf.mxu0
    %v6580 = vadd.f32 %v6539, %v6579
    %v6581 = vpop.f32.mrf.mxu0
    %v6582 = vadd.f32 %v6541, %v6581
    %v6583 = vpop.f32.mrf.mxu0
    %v6584 = vpop.f32.mrf.mxu0
    %6585 = vdwg.mxu0
    %6586 = vmatprep.subr.bf16.mxu0 %v2223
    %6587 = vmatpush1.bf16.msra.mxu0 %v2222
    %6588 = vmatprep.subr.bf16.mxu0 %v2207
    %6589 = vmatpush1.bf16.msra.mxu0 %v2206
    %6590 = vmatprep.subr.bf16.mxu0 %v2191
    %6591 = vmatpush1.bf16.msra.mxu0 %v2190
    %6592 = vmatprep.subr.bf16.mxu0 %v2175
    %6593 = vmatpush1.bf16.msra.mxu0 %v2174
    %6594 = vmatprep.subr.bf16.mxu0 %v2159
    %6595 = vmatpush1.bf16.msra.mxu0 %v2158
    %6596 = vmatprep.subr.bf16.mxu0 %v2143
    %6597 = vmatpush1.bf16.msra.mxu0 %v2142
    %6598 = vmatprep.subr.bf16.mxu0 %v2127
    %6599 = vmatpush1.bf16.msra.mxu0 %v2126
    %6600 = vmatprep.subr.bf16.mxu0 %v2111
    %6601 = vmatpush1.bf16.msra.mxu0 %v2110
    %6602 = vmatprep.subr.bf16.mxu0 %v2351
    %6603 = vmatpush2.bf16.msra.mxu0 %v2350
    %6604 = vmatprep.subr.bf16.mxu0 %v2335
    %6605 = vmatpush2.bf16.msra.mxu0 %v2334
    %6606 = vmatprep.subr.bf16.mxu0 %v2319
    %6607 = vmatpush2.bf16.msra.mxu0 %v2318
    %6608 = vmatprep.subr.bf16.mxu0 %v2303
    %6609 = vmatpush2.bf16.msra.mxu0 %v2302
    %6610 = vmatprep.subr.bf16.mxu0 %v2287
    %6611 = vmatpush2.bf16.msra.mxu0 %v2286
    %6612 = vmatprep.subr.bf16.mxu0 %v2271
    %6613 = vmatpush2.bf16.msra.mxu0 %v2270
    %6614 = vmatprep.subr.bf16.mxu0 %v2255
    %6615 = vmatpush2.bf16.msra.mxu0 %v2254
    %6616 = vmatprep.subr.bf16.mxu0 %v2239
    %6617 = vmatpush2.bf16.msra.mxu0 %v2238
    %6618 = vmatprep.mubr.bf16.mxu0 %v6337
    %6619 = vmatmul.mubr.bf16.gmra.mxu0 %v6336
    %v6620 = vpop.f32.mrf.mxu0
    %v6621 = vadd.f32 0.0, %v6620
    %v6622 = vpop.f32.mrf.mxu0
    %v6623 = vadd.f32 0.0, %v6622
    %v6624 = vpop.f32.mrf.mxu0
    %v6625 = vpop.f32.mrf.mxu0
    %6626 = vdwg.mxu0
    %6627 = vmatprep.subr.bf16.mxu0 %v2479
    %6628 = vmatpush1.bf16.msra.mxu0 %v2478
    %6629 = vmatprep.subr.bf16.mxu0 %v2463
    %6630 = vmatpush1.bf16.msra.mxu0 %v2462
    %6631 = vmatprep.subr.bf16.mxu0 %v2447
    %6632 = vmatpush1.bf16.msra.mxu0 %v2446
    %6633 = vmatprep.subr.bf16.mxu0 %v2431
    %6634 = vmatpush1.bf16.msra.mxu0 %v2430
    %6635 = vmatprep.subr.bf16.mxu0 %v2415
    %6636 = vmatpush1.bf16.msra.mxu0 %v2414
    %6637 = vmatprep.subr.bf16.mxu0 %v2399
    %6638 = vmatpush1.bf16.msra.mxu0 %v2398
    %6639 = vmatprep.subr.bf16.mxu0 %v2383
    %6640 = vmatpush1.bf16.msra.mxu0 %v2382
    %6641 = vmatprep.subr.bf16.mxu0 %v2367
    %6642 = vmatpush1.bf16.msra.mxu0 %v2366
    %6643 = vmatprep.subr.bf16.mxu0 %v2607
    %6644 = vmatpush2.bf16.msra.mxu0 %v2606
    %6645 = vmatprep.subr.bf16.mxu0 %v2591
    %6646 = vmatpush2.bf16.msra.mxu0 %v2590
    %6647 = vmatprep.subr.bf16.mxu0 %v2575
    %6648 = vmatpush2.bf16.msra.mxu0 %v2574
    %6649 = vmatprep.subr.bf16.mxu0 %v2559
    %6650 = vmatpush2.bf16.msra.mxu0 %v2558
    %6651 = vmatprep.subr.bf16.mxu0 %v2543
    %6652 = vmatpush2.bf16.msra.mxu0 %v2542
    %6653 = vmatprep.subr.bf16.mxu0 %v2527
    %6654 = vmatpush2.bf16.msra.mxu0 %v2526
    %6655 = vmatprep.subr.bf16.mxu0 %v2511
    %6656 = vmatpush2.bf16.msra.mxu0 %v2510
    %6657 = vmatprep.subr.bf16.mxu0 %v2495
    %6658 = vmatpush2.bf16.msra.mxu0 %v2494
    %6659 = vmatprep.mubr.bf16.mxu0 %v6339
    %6660 = vmatmul.mubr.bf16.gmra.mxu0 %v6338
    %v6661 = vpop.f32.mrf.mxu0
    %v6662 = vadd.f32 %v6621, %v6661
    %v6663 = vpop.f32.mrf.mxu0
    %v6664 = vadd.f32 %v6623, %v6663
    %v6665 = vpop.f32.mrf.mxu0
    %v6666 = vpop.f32.mrf.mxu0
    %6667 = vdwg.mxu0
    %6668 = vmatprep.subr.bf16.mxu0 %v2225
    %6669 = vmatpush1.bf16.msra.mxu0 %v2224
    %6670 = vmatprep.subr.bf16.mxu0 %v2209
    %6671 = vmatpush1.bf16.msra.mxu0 %v2208
    %6672 = vmatprep.subr.bf16.mxu0 %v2193
    %6673 = vmatpush1.bf16.msra.mxu0 %v2192
    %6674 = vmatprep.subr.bf16.mxu0 %v2177
    %6675 = vmatpush1.bf16.msra.mxu0 %v2176
    %6676 = vmatprep.subr.bf16.mxu0 %v2161
    %6677 = vmatpush1.bf16.msra.mxu0 %v2160
    %6678 = vmatprep.subr.bf16.mxu0 %v2145
    %6679 = vmatpush1.bf16.msra.mxu0 %v2144
    %6680 = vmatprep.subr.bf16.mxu0 %v2129
    %6681 = vmatpush1.bf16.msra.mxu0 %v2128
    %6682 = vmatprep.subr.bf16.mxu0 %v2113
    %6683 = vmatpush1.bf16.msra.mxu0 %v2112
    %6684 = vmatprep.subr.bf16.mxu0 %v2353
    %6685 = vmatpush2.bf16.msra.mxu0 %v2352
    %6686 = vmatprep.subr.bf16.mxu0 %v2337
    %6687 = vmatpush2.bf16.msra.mxu0 %v2336
    %6688 = vmatprep.subr.bf16.mxu0 %v2321
    %6689 = vmatpush2.bf16.msra.mxu0 %v2320
    %6690 = vmatprep.subr.bf16.mxu0 %v2305
    %6691 = vmatpush2.bf16.msra.mxu0 %v2304
    %6692 = vmatprep.subr.bf16.mxu0 %v2289
    %6693 = vmatpush2.bf16.msra.mxu0 %v2288
    %6694 = vmatprep.subr.bf16.mxu0 %v2273
    %6695 = vmatpush2.bf16.msra.mxu0 %v2272
    %6696 = vmatprep.subr.bf16.mxu0 %v2257
    %6697 = vmatpush2.bf16.msra.mxu0 %v2256
    %6698 = vmatprep.subr.bf16.mxu0 %v2241
    %6699 = vmatpush2.bf16.msra.mxu0 %v2240
    %6700 = vmatprep.mubr.bf16.mxu0 %v6337
    %6701 = vmatmul.mubr.bf16.gmra.mxu0 %v6336
    %v6702 = vpop.f32.mrf.mxu0
    %v6703 = vadd.f32 0.0, %v6702
    %v6704 = vpop.f32.mrf.mxu0
    %v6705 = vadd.f32 0.0, %v6704
    %v6706 = vpop.f32.mrf.mxu0
    %v6707 = vpop.f32.mrf.mxu0
    %6708 = vdwg.mxu0
    %6709 = vmatprep.subr.bf16.mxu0 %v2481
    %6710 = vmatpush1.bf16.msra.mxu0 %v2480
    %6711 = vmatprep.subr.bf16.mxu0 %v2465
    %6712 = vmatpush1.bf16.msra.mxu0 %v2464
    %6713 = vmatprep.subr.bf16.mxu0 %v2449
    %6714 = vmatpush1.bf16.msra.mxu0 %v2448
    %6715 = vmatprep.subr.bf16.mxu0 %v2433
    %6716 = vmatpush1.bf16.msra.mxu0 %v2432
    %6717 = vmatprep.subr.bf16.mxu0 %v2417
    %6718 = vmatpush1.bf16.msra.mxu0 %v2416
    %6719 = vmatprep.subr.bf16.mxu0 %v2401
    %6720 = vmatpush1.bf16.msra.mxu0 %v2400
    %6721 = vmatprep.subr.bf16.mxu0 %v2385
    %6722 = vmatpush1.bf16.msra.mxu0 %v2384
    %6723 = vmatprep.subr.bf16.mxu0 %v2369
    %6724 = vmatpush1.bf16.msra.mxu0 %v2368
    %6725 = vmatprep.subr.bf16.mxu0 %v2609
    %6726 = vmatpush2.bf16.msra.mxu0 %v2608
    %6727 = vmatprep.subr.bf16.mxu0 %v2593
    %6728 = vmatpush2.bf16.msra.mxu0 %v2592
    %6729 = vmatprep.subr.bf16.mxu0 %v2577
    %6730 = vmatpush2.bf16.msra.mxu0 %v2576
    %6731 = vmatprep.subr.bf16.mxu0 %v2561
    %6732 = vmatpush2.bf16.msra.mxu0 %v2560
    %6733 = vmatprep.subr.bf16.mxu0 %v2545
    %6734 = vmatpush2.bf16.msra.mxu0 %v2544
    %6735 = vmatprep.subr.bf16.mxu0 %v2529
    %6736 = vmatpush2.bf16.msra.mxu0 %v2528
    %6737 = vmatprep.subr.bf16.mxu0 %v2513
    %6738 = vmatpush2.bf16.msra.mxu0 %v2512
    %6739 = vmatprep.subr.bf16.mxu0 %v2497
    %6740 = vmatpush2.bf16.msra.mxu0 %v2496
    %6741 = vmatprep.mubr.bf16.mxu0 %v6339
    %6742 = vmatmul.mubr.bf16.gmra.mxu0 %v6338
    %v6743 = vpop.f32.mrf.mxu0
    %v6744 = vadd.f32 %v6703, %v6743
    %v6745 = vpop.f32.mrf.mxu0
    %v6746 = vadd.f32 %v6705, %v6745
    %v6747 = vpop.f32.mrf.mxu0
    %v6748 = vpop.f32.mrf.mxu0
    %6749 = vdwg.mxu0
    %6750 = vmatprep.subr.bf16.mxu0 %v2227
    %6751 = vmatpush1.bf16.msra.mxu0 %v2226
    %6752 = vmatprep.subr.bf16.mxu0 %v2211
    %6753 = vmatpush1.bf16.msra.mxu0 %v2210
    %6754 = vmatprep.subr.bf16.mxu0 %v2195
    %6755 = vmatpush1.bf16.msra.mxu0 %v2194
    %6756 = vmatprep.subr.bf16.mxu0 %v2179
    %6757 = vmatpush1.bf16.msra.mxu0 %v2178
    %6758 = vmatprep.subr.bf16.mxu0 %v2163
    %6759 = vmatpush1.bf16.msra.mxu0 %v2162
    %6760 = vmatprep.subr.bf16.mxu0 %v2147
    %6761 = vmatpush1.bf16.msra.mxu0 %v2146
    %6762 = vmatprep.subr.bf16.mxu0 %v2131
    %6763 = vmatpush1.bf16.msra.mxu0 %v2130
    %6764 = vmatprep.subr.bf16.mxu0 %v2115
    %6765 = vmatpush1.bf16.msra.mxu0 %v2114
    %6766 = vmatprep.subr.bf16.mxu0 %v2355
    %6767 = vmatpush2.bf16.msra.mxu0 %v2354
    %6768 = vmatprep.subr.bf16.mxu0 %v2339
    %6769 = vmatpush2.bf16.msra.mxu0 %v2338
    %6770 = vmatprep.subr.bf16.mxu0 %v2323
    %6771 = vmatpush2.bf16.msra.mxu0 %v2322
    %6772 = vmatprep.subr.bf16.mxu0 %v2307
    %6773 = vmatpush2.bf16.msra.mxu0 %v2306
    %6774 = vmatprep.subr.bf16.mxu0 %v2291
    %6775 = vmatpush2.bf16.msra.mxu0 %v2290
    %6776 = vmatprep.subr.bf16.mxu0 %v2275
    %6777 = vmatpush2.bf16.msra.mxu0 %v2274
    %6778 = vmatprep.subr.bf16.mxu0 %v2259
    %6779 = vmatpush2.bf16.msra.mxu0 %v2258
    %6780 = vmatprep.subr.bf16.mxu0 %v2243
    %6781 = vmatpush2.bf16.msra.mxu0 %v2242
    %6782 = vmatprep.mubr.bf16.mxu0 %v6337
    %6783 = vmatmul.mubr.bf16.gmra.mxu0 %v6336
    %v6784 = vpop.f32.mrf.mxu0
    %v6785 = vadd.f32 0.0, %v6784
    %v6786 = vpop.f32.mrf.mxu0
    %v6787 = vadd.f32 0.0, %v6786
    %v6788 = vpop.f32.mrf.mxu0
    %v6789 = vpop.f32.mrf.mxu0
    %6790 = vdwg.mxu0
    %6791 = vmatprep.subr.bf16.mxu0 %v2483
    %6792 = vmatpush1.bf16.msra.mxu0 %v2482
    %6793 = vmatprep.subr.bf16.mxu0 %v2467
    %6794 = vmatpush1.bf16.msra.mxu0 %v2466
    %6795 = vmatprep.subr.bf16.mxu0 %v2451
    %6796 = vmatpush1.bf16.msra.mxu0 %v2450
    %6797 = vmatprep.subr.bf16.mxu0 %v2435
    %6798 = vmatpush1.bf16.msra.mxu0 %v2434
    %6799 = vmatprep.subr.bf16.mxu0 %v2419
    %6800 = vmatpush1.bf16.msra.mxu0 %v2418
    %6801 = vmatprep.subr.bf16.mxu0 %v2403
    %6802 = vmatpush1.bf16.msra.mxu0 %v2402
    %6803 = vmatprep.subr.bf16.mxu0 %v2387
    %6804 = vmatpush1.bf16.msra.mxu0 %v2386
    %6805 = vmatprep.subr.bf16.mxu0 %v2371
    %6806 = vmatpush1.bf16.msra.mxu0 %v2370
    %6807 = vmatprep.subr.bf16.mxu0 %v2611
    %6808 = vmatpush2.bf16.msra.mxu0 %v2610
    %6809 = vmatprep.subr.bf16.mxu0 %v2595
    %6810 = vmatpush2.bf16.msra.mxu0 %v2594
    %6811 = vmatprep.subr.bf16.mxu0 %v2579
    %6812 = vmatpush2.bf16.msra.mxu0 %v2578
    %6813 = vmatprep.subr.bf16.mxu0 %v2563
    %6814 = vmatpush2.bf16.msra.mxu0 %v2562
    %6815 = vmatprep.subr.bf16.mxu0 %v2547
    %6816 = vmatpush2.bf16.msra.mxu0 %v2546
    %6817 = vmatprep.subr.bf16.mxu0 %v2531
    %6818 = vmatpush2.bf16.msra.mxu0 %v2530
    %6819 = vmatprep.subr.bf16.mxu0 %v2515
    %6820 = vmatpush2.bf16.msra.mxu0 %v2514
    %6821 = vmatprep.subr.bf16.mxu0 %v2499
    %6822 = vmatpush2.bf16.msra.mxu0 %v2498
    %6823 = vmatprep.mubr.bf16.mxu0 %v6339
    %6824 = vmatmul.mubr.bf16.gmra.mxu0 %v6338
    %v6825 = vpop.f32.mrf.mxu0
    %v6826 = vadd.f32 %v6785, %v6825
    %v6827 = vpop.f32.mrf.mxu0
    %v6828 = vadd.f32 %v6787, %v6827
    %v6829 = vpop.f32.mrf.mxu0
    %v6830 = vpop.f32.mrf.mxu0
    %6831 = vdwg.mxu0
    %6832 = vmatprep.subr.bf16.mxu0 %v2229
    %6833 = vmatpush1.bf16.msra.mxu0 %v2228
    %6834 = vmatprep.subr.bf16.mxu0 %v2213
    %6835 = vmatpush1.bf16.msra.mxu0 %v2212
    %6836 = vmatprep.subr.bf16.mxu0 %v2197
    %6837 = vmatpush1.bf16.msra.mxu0 %v2196
    %6838 = vmatprep.subr.bf16.mxu0 %v2181
    %6839 = vmatpush1.bf16.msra.mxu0 %v2180
    %6840 = vmatprep.subr.bf16.mxu0 %v2165
    %6841 = vmatpush1.bf16.msra.mxu0 %v2164
    %6842 = vmatprep.subr.bf16.mxu0 %v2149
    %6843 = vmatpush1.bf16.msra.mxu0 %v2148
    %6844 = vmatprep.subr.bf16.mxu0 %v2133
    %6845 = vmatpush1.bf16.msra.mxu0 %v2132
    %6846 = vmatprep.subr.bf16.mxu0 %v2117
    %6847 = vmatpush1.bf16.msra.mxu0 %v2116
    %6848 = vmatprep.subr.bf16.mxu0 %v2357
    %6849 = vmatpush2.bf16.msra.mxu0 %v2356
    %6850 = vmatprep.subr.bf16.mxu0 %v2341
    %6851 = vmatpush2.bf16.msra.mxu0 %v2340
    %6852 = vmatprep.subr.bf16.mxu0 %v2325
    %6853 = vmatpush2.bf16.msra.mxu0 %v2324
    %6854 = vmatprep.subr.bf16.mxu0 %v2309
    %6855 = vmatpush2.bf16.msra.mxu0 %v2308
    %6856 = vmatprep.subr.bf16.mxu0 %v2293
    %6857 = vmatpush2.bf16.msra.mxu0 %v2292
    %6858 = vmatprep.subr.bf16.mxu0 %v2277
    %6859 = vmatpush2.bf16.msra.mxu0 %v2276
    %6860 = vmatprep.subr.bf16.mxu0 %v2261
    %6861 = vmatpush2.bf16.msra.mxu0 %v2260
    %6862 = vmatprep.subr.bf16.mxu0 %v2245
    %6863 = vmatpush2.bf16.msra.mxu0 %v2244
    %6864 = vmatprep.mubr.bf16.mxu0 %v6337
    %6865 = vmatmul.mubr.bf16.gmra.mxu0 %v6336
    %v6866 = vpop.f32.mrf.mxu0
    %v6867 = vadd.f32 0.0, %v6866
    %v6868 = vpop.f32.mrf.mxu0
    %v6869 = vadd.f32 0.0, %v6868
    %v6870 = vpop.f32.mrf.mxu0
    %v6871 = vpop.f32.mrf.mxu0
    %6872 = vdwg.mxu0
    %6873 = vmatprep.subr.bf16.mxu0 %v2485
    %6874 = vmatpush1.bf16.msra.mxu0 %v2484
    %6875 = vmatprep.subr.bf16.mxu0 %v2469
    %6876 = vmatpush1.bf16.msra.mxu0 %v2468
    %6877 = vmatprep.subr.bf16.mxu0 %v2453
    %6878 = vmatpush1.bf16.msra.mxu0 %v2452
    %6879 = vmatprep.subr.bf16.mxu0 %v2437
    %6880 = vmatpush1.bf16.msra.mxu0 %v2436
    %6881 = vmatprep.subr.bf16.mxu0 %v2421
    %6882 = vmatpush1.bf16.msra.mxu0 %v2420
    %6883 = vmatprep.subr.bf16.mxu0 %v2405
    %6884 = vmatpush1.bf16.msra.mxu0 %v2404
    %6885 = vmatprep.subr.bf16.mxu0 %v2389
    %6886 = vmatpush1.bf16.msra.mxu0 %v2388
    %6887 = vmatprep.subr.bf16.mxu0 %v2373
    %6888 = vmatpush1.bf16.msra.mxu0 %v2372
    %6889 = vmatprep.subr.bf16.mxu0 %v2613
    %6890 = vmatpush2.bf16.msra.mxu0 %v2612
    %6891 = vmatprep.subr.bf16.mxu0 %v2597
    %6892 = vmatpush2.bf16.msra.mxu0 %v2596
    %6893 = vmatprep.subr.bf16.mxu0 %v2581
    %6894 = vmatpush2.bf16.msra.mxu0 %v2580
    %6895 = vmatprep.subr.bf16.mxu0 %v2565
    %6896 = vmatpush2.bf16.msra.mxu0 %v2564
    %6897 = vmatprep.subr.bf16.mxu0 %v2549
    %6898 = vmatpush2.bf16.msra.mxu0 %v2548
    %6899 = vmatprep.subr.bf16.mxu0 %v2533
    %6900 = vmatpush2.bf16.msra.mxu0 %v2532
    %6901 = vmatprep.subr.bf16.mxu0 %v2517
    %6902 = vmatpush2.bf16.msra.mxu0 %v2516
    %6903 = vmatprep.subr.bf16.mxu0 %v2501
    %6904 = vmatpush2.bf16.msra.mxu0 %v2500
    %6905 = vmatprep.mubr.bf16.mxu0 %v6339
    %6906 = vmatmul.mubr.bf16.gmra.mxu0 %v6338
    %v6907 = vpop.f32.mrf.mxu0
    %v6908 = vadd.f32 %v6867, %v6907
    %v6909 = vpop.f32.mrf.mxu0
    %v6910 = vadd.f32 %v6869, %v6909
    %v6911 = vpop.f32.mrf.mxu0
    %v6912 = vpop.f32.mrf.mxu0
    %6913 = vdwg.mxu0
    %6914 = vmatprep.subr.bf16.mxu0 %v2231
    %6915 = vmatpush1.bf16.msra.mxu0 %v2230
    %6916 = vmatprep.subr.bf16.mxu0 %v2215
    %6917 = vmatpush1.bf16.msra.mxu0 %v2214
    %6918 = vmatprep.subr.bf16.mxu0 %v2199
    %6919 = vmatpush1.bf16.msra.mxu0 %v2198
    %6920 = vmatprep.subr.bf16.mxu0 %v2183
    %6921 = vmatpush1.bf16.msra.mxu0 %v2182
    %6922 = vmatprep.subr.bf16.mxu0 %v2167
    %6923 = vmatpush1.bf16.msra.mxu0 %v2166
    %6924 = vmatprep.subr.bf16.mxu0 %v2151
    %6925 = vmatpush1.bf16.msra.mxu0 %v2150
    %6926 = vmatprep.subr.bf16.mxu0 %v2135
    %6927 = vmatpush1.bf16.msra.mxu0 %v2134
    %6928 = vmatprep.subr.bf16.mxu0 %v2119
    %6929 = vmatpush1.bf16.msra.mxu0 %v2118
    %6930 = vmatprep.subr.bf16.mxu0 %v2359
    %6931 = vmatpush2.bf16.msra.mxu0 %v2358
    %6932 = vmatprep.subr.bf16.mxu0 %v2343
    %6933 = vmatpush2.bf16.msra.mxu0 %v2342
    %6934 = vmatprep.subr.bf16.mxu0 %v2327
    %6935 = vmatpush2.bf16.msra.mxu0 %v2326
    %6936 = vmatprep.subr.bf16.mxu0 %v2311
    %6937 = vmatpush2.bf16.msra.mxu0 %v2310
    %6938 = vmatprep.subr.bf16.mxu0 %v2295
    %6939 = vmatpush2.bf16.msra.mxu0 %v2294
    %6940 = vmatprep.subr.bf16.mxu0 %v2279
    %6941 = vmatpush2.bf16.msra.mxu0 %v2278
    %6942 = vmatprep.subr.bf16.mxu0 %v2263
    %6943 = vmatpush2.bf16.msra.mxu0 %v2262
    %6944 = vmatprep.subr.bf16.mxu0 %v2247
    %6945 = vmatpush2.bf16.msra.mxu0 %v2246
    %6946 = vmatprep.mubr.bf16.mxu0 %v6337
    %6947 = vmatmul.mubr.bf16.gmra.mxu0 %v6336
    %v6948 = vpop.f32.mrf.mxu0
    %v6949 = vadd.f32 0.0, %v6948
    %v6950 = vpop.f32.mrf.mxu0
    %v6951 = vadd.f32 0.0, %v6950
    %v6952 = vpop.f32.mrf.mxu0
    %v6953 = vpop.f32.mrf.mxu0
    %6954 = vdwg.mxu0
    %6955 = vmatprep.subr.bf16.mxu0 %v2487
    %6956 = vmatpush1.bf16.msra.mxu0 %v2486
    %6957 = vmatprep.subr.bf16.mxu0 %v2471
    %6958 = vmatpush1.bf16.msra.mxu0 %v2470
    %6959 = vmatprep.subr.bf16.mxu0 %v2455
    %6960 = vmatpush1.bf16.msra.mxu0 %v2454
    %6961 = vmatprep.subr.bf16.mxu0 %v2439
    %6962 = vmatpush1.bf16.msra.mxu0 %v2438
    %6963 = vmatprep.subr.bf16.mxu0 %v2423
    %6964 = vmatpush1.bf16.msra.mxu0 %v2422
    %6965 = vmatprep.subr.bf16.mxu0 %v2407
    %6966 = vmatpush1.bf16.msra.mxu0 %v2406
    %6967 = vmatprep.subr.bf16.mxu0 %v2391
    %6968 = vmatpush1.bf16.msra.mxu0 %v2390
    %6969 = vmatprep.subr.bf16.mxu0 %v2375
    %6970 = vmatpush1.bf16.msra.mxu0 %v2374
    %6971 = vmatprep.subr.bf16.mxu0 %v2615
    %6972 = vmatpush2.bf16.msra.mxu0 %v2614
    %6973 = vmatprep.subr.bf16.mxu0 %v2599
    %6974 = vmatpush2.bf16.msra.mxu0 %v2598
    %6975 = vmatprep.subr.bf16.mxu0 %v2583
    %6976 = vmatpush2.bf16.msra.mxu0 %v2582
    %6977 = vmatprep.subr.bf16.mxu0 %v2567
    %6978 = vmatpush2.bf16.msra.mxu0 %v2566
    %6979 = vmatprep.subr.bf16.mxu0 %v2551
    %6980 = vmatpush2.bf16.msra.mxu0 %v2550
    %6981 = vmatprep.subr.bf16.mxu0 %v2535
    %6982 = vmatpush2.bf16.msra.mxu0 %v2534
    %6983 = vmatprep.subr.bf16.mxu0 %v2519
    %6984 = vmatpush2.bf16.msra.mxu0 %v2518
    %6985 = vmatprep.subr.bf16.mxu0 %v2503
    %6986 = vmatpush2.bf16.msra.mxu0 %v2502
    %6987 = vmatprep.mubr.bf16.mxu0 %v6339
    %6988 = vmatmul.mubr.bf16.gmra.mxu0 %v6338
    %v6989 = vpop.f32.mrf.mxu0
    %v6990 = vadd.f32 %v6949, %v6989
    %v6991 = vpop.f32.mrf.mxu0
    %v6992 = vadd.f32 %v6951, %v6991
    %v6993 = vpop.f32.mrf.mxu0
    %v6994 = vpop.f32.mrf.mxu0
    %6995 = vdwg.mxu0
    %v7012 = vcombine.low %v6416, %v6418
    %v7013 = vcombine.low %v6498, %v6500
    %v7015 = vunpack.c.l.s4 1983009808
    %v7016 = vunpack.c.0.s8 %v7015
    %v7017 = vlaneseq
    %v7018 = vshrl.u32 %v7017, 7
    %v7019 = vsub.s32 %v7016, %v7018
    %v7020 = vrot.slane %v7012, %v7019
    %v7022 = vunpack.c.l.s4 1983009808
    %v7023 = vunpack.c.0.s8 %v7022
    %v7024 = vlaneseq
    %v7025 = vshrl.u32 %v7024, 7
    %v7026 = vsub.s32 %v7023, %v7025
    %v7027 = vrot.slane %v7013, %v7026
    %v7028 = vcombine.low %v7020, %v7027
    %v7029 = vcombine.low %v6580, %v6582
    %v7030 = vcombine.low %v6662, %v6664
    %v7032 = vunpack.c.l.s4 1983009808
    %v7033 = vunpack.c.0.s8 %v7032
    %v7034 = vlaneseq
    %v7035 = vshrl.u32 %v7034, 7
    %v7036 = vsub.s32 %v7033, %v7035
    %v7037 = vrot.slane %v7029, %v7036
    %v7039 = vunpack.c.l.s4 1983009808
    %v7040 = vunpack.c.0.s8 %v7039
    %v7041 = vlaneseq
    %v7042 = vshrl.u32 %v7041, 7
    %v7043 = vsub.s32 %v7040, %v7042
    %v7044 = vrot.slane %v7030, %v7043
    %v7045 = vcombine.low %v7037, %v7044
    %v7046 = vcombine.low %v6744, %v6746
    %v7047 = vcombine.low %v6826, %v6828
    %v7049 = vunpack.c.l.s4 1983009808
    %v7050 = vunpack.c.0.s8 %v7049
    %v7051 = vlaneseq
    %v7052 = vshrl.u32 %v7051, 7
    %v7053 = vsub.s32 %v7050, %v7052
    %v7054 = vrot.slane %v7046, %v7053
    %v7056 = vunpack.c.l.s4 1983009808
    %v7057 = vunpack.c.0.s8 %v7056
    %v7058 = vlaneseq
    %v7059 = vshrl.u32 %v7058, 7
    %v7060 = vsub.s32 %v7057, %v7059
    %v7061 = vrot.slane %v7047, %v7060
    %v7062 = vcombine.low %v7054, %v7061
    %v7063 = vcombine.low %v6908, %v6910
    %v7064 = vcombine.low %v6990, %v6992
    %v7066 = vunpack.c.l.s4 1983009808
    %v7067 = vunpack.c.0.s8 %v7066
    %v7068 = vlaneseq
    %v7069 = vshrl.u32 %v7068, 7
    %v7070 = vsub.s32 %v7067, %v7069
    %v7071 = vrot.slane %v7063, %v7070
    %v7073 = vunpack.c.l.s4 1983009808
    %v7074 = vunpack.c.0.s8 %v7073
    %v7075 = vlaneseq
    %v7076 = vshrl.u32 %v7075, 7
    %v7077 = vsub.s32 %v7074, %v7076
    %v7078 = vrot.slane %v7064, %v7077
    %v7079 = vcombine.low %v7071, %v7078
    %v7084 = vadd.f32 %v6310, %v7028
    %v7085 = vadd.f32 %v6311, %v7045
    %v7086 = vadd.f32 %v6312, %v7062
    %v7087 = vadd.f32 %v6313, %v7079
    %v7088 = vxor.u32 %v7084, 2147483648
    %v7089 = vmul.f32 %v7088, 1.442695
    %v7090 = vpow.pop %v7089
    %v7091 = vadd.f32 %v7090, 1.0
    %v7092 = vrcp.pop %v7091
    %v7093 = vmul.f32 1.0, %v7092
    %v7094 = vxor.u32 %v7085, 2147483648
    %v7095 = vmul.f32 %v7094, 1.442695
    %v7096 = vpow.pop %v7095
    %v7097 = vadd.f32 %v7096, 1.0
    %v7098 = vrcp.pop %v7097
    %v7099 = vmul.f32 1.0, %v7098
    %v7100 = vtanh.pop %v7086
    %v7101 = vxor.u32 %v7087, 2147483648
    %v7102 = vmul.f32 %v7101, 1.442695
    %v7103 = vpow.pop %v7102
    %v7104 = vadd.f32 %v7103, 1.0
    %v7105 = vrcp.pop %v7104
    %v7106 = vmul.f32 1.0, %v7105
    %v7107 = vmul.f32 %v7099, %v6306
    %v7108 = vmul.f32 %v7093, %v7100
    %v7109 = vadd.f32 %v7107, %v7108
    %v7110 = vtanh.pop %v7109
    %v7111 = vmul.f32 %v7106, %v7110
    %s7112 = scalar_lea.vmem %s0, 160
    %v7113 = vld [vmem:[%s7112] sm:$0xff]
    %v7114 = vld [vmem:[%s7112 + $0x8] sm:$0xff]
    %v7115 = vld [vmem:[%s7112 + $0x10] sm:$0xff]
    %v7116 = vld [vmem:[%s7112 + $0x18] sm:$0xff]
    %v7118 = vcombine.high %v7111, %v7111
    %v7120 = vunpack.c.l.s4 1983009808
    %v7121 = vunpack.c.0.s8 %v7120
    %v7122 = vlaneseq
    %v7123 = vshrl.u32 %v7122, 7
    %v7124 = vsub.s32 %v7121, %v7123
    %v7125 = vrot.slane %v7111, %v7124
    %v7127 = vunpack.c.l.s4 1983009808
    %v7128 = vunpack.c.0.s8 %v7127
    %v7129 = vlaneseq
    %v7130 = vshrl.u32 %v7129, 7
    %v7131 = vsub.s32 %v7128, %v7130
    %v7132 = vrot.slane %v7118, %v7131
    %v7133 = vcombine.high %v7125, %v7125
    %v7134 = vcombine.high %v7132, %v7132
    %v7139 = vpack.c.bf16 %v7125, %v7125
    %v7140 = vpack.c.bf16 %v7133, %v7133
    %v7141 = vpack.c.bf16 %v7132, %v7132
    %v7142 = vpack.c.bf16 %v7134, %v7134
    %7143 = vmatprep.subr.bf16.mxu0 %v2217
    %7144 = vmatpush1.bf16.msra.mxu0 %v2216
    %7145 = vmatprep.subr.bf16.mxu0 %v2201
    %7146 = vmatpush1.bf16.msra.mxu0 %v2200
    %7147 = vmatprep.subr.bf16.mxu0 %v2185
    %7148 = vmatpush1.bf16.msra.mxu0 %v2184
    %7149 = vmatprep.subr.bf16.mxu0 %v2169
    %7150 = vmatpush1.bf16.msra.mxu0 %v2168
    %7151 = vmatprep.subr.bf16.mxu0 %v2153
    %7152 = vmatpush1.bf16.msra.mxu0 %v2152
    %7153 = vmatprep.subr.bf16.mxu0 %v2137
    %7154 = vmatpush1.bf16.msra.mxu0 %v2136
    %7155 = vmatprep.subr.bf16.mxu0 %v2121
    %7156 = vmatpush1.bf16.msra.mxu0 %v2120
    %7157 = vmatprep.subr.bf16.mxu0 %v2105
    %7158 = vmatpush1.bf16.msra.mxu0 %v2104
    %7159 = vmatprep.subr.bf16.mxu0 %v2345
    %7160 = vmatpush2.bf16.msra.mxu0 %v2344
    %7161 = vmatprep.subr.bf16.mxu0 %v2329
    %7162 = vmatpush2.bf16.msra.mxu0 %v2328
    %7163 = vmatprep.subr.bf16.mxu0 %v2313
    %7164 = vmatpush2.bf16.msra.mxu0 %v2312
    %7165 = vmatprep.subr.bf16.mxu0 %v2297
    %7166 = vmatpush2.bf16.msra.mxu0 %v2296
    %7167 = vmatprep.subr.bf16.mxu0 %v2281
    %7168 = vmatpush2.bf16.msra.mxu0 %v2280
    %7169 = vmatprep.subr.bf16.mxu0 %v2265
    %7170 = vmatpush2.bf16.msra.mxu0 %v2264
    %7171 = vmatprep.subr.bf16.mxu0 %v2249
    %7172 = vmatpush2.bf16.msra.mxu0 %v2248
    %7173 = vmatprep.subr.bf16.mxu0 %v2233
    %7174 = vmatpush2.bf16.msra.mxu0 %v2232
    %7175 = vmatprep.mubr.bf16.mxu0 %v7140
    %7176 = vmatmul.mubr.bf16.gmra.mxu0 %v7139
    %v7177 = vpop.f32.mrf.mxu0
    %v7178 = vadd.f32 0.0, %v7177
    %v7179 = vpop.f32.mrf.mxu0
    %v7180 = vadd.f32 0.0, %v7179
    %v7181 = vpop.f32.mrf.mxu0
    %v7182 = vpop.f32.mrf.mxu0
    %7183 = vdwg.mxu0
    %7184 = vmatprep.subr.bf16.mxu0 %v2473
    %7185 = vmatpush1.bf16.msra.mxu0 %v2472
    %7186 = vmatprep.subr.bf16.mxu0 %v2457
    %7187 = vmatpush1.bf16.msra.mxu0 %v2456
    %7188 = vmatprep.subr.bf16.mxu0 %v2441
    %7189 = vmatpush1.bf16.msra.mxu0 %v2440
    %7190 = vmatprep.subr.bf16.mxu0 %v2425
    %7191 = vmatpush1.bf16.msra.mxu0 %v2424
    %7192 = vmatprep.subr.bf16.mxu0 %v2409
    %7193 = vmatpush1.bf16.msra.mxu0 %v2408
    %7194 = vmatprep.subr.bf16.mxu0 %v2393
    %7195 = vmatpush1.bf16.msra.mxu0 %v2392
    %7196 = vmatprep.subr.bf16.mxu0 %v2377
    %7197 = vmatpush1.bf16.msra.mxu0 %v2376
    %7198 = vmatprep.subr.bf16.mxu0 %v2361
    %7199 = vmatpush1.bf16.msra.mxu0 %v2360
    %7200 = vmatprep.subr.bf16.mxu0 %v2601
    %7201 = vmatpush2.bf16.msra.mxu0 %v2600
    %7202 = vmatprep.subr.bf16.mxu0 %v2585
    %7203 = vmatpush2.bf16.msra.mxu0 %v2584
    %7204 = vmatprep.subr.bf16.mxu0 %v2569
    %7205 = vmatpush2.bf16.msra.mxu0 %v2568
    %7206 = vmatprep.subr.bf16.mxu0 %v2553
    %7207 = vmatpush2.bf16.msra.mxu0 %v2552
    %7208 = vmatprep.subr.bf16.mxu0 %v2537
    %7209 = vmatpush2.bf16.msra.mxu0 %v2536
    %7210 = vmatprep.subr.bf16.mxu0 %v2521
    %7211 = vmatpush2.bf16.msra.mxu0 %v2520
    %7212 = vmatprep.subr.bf16.mxu0 %v2505
    %7213 = vmatpush2.bf16.msra.mxu0 %v2504
    %7214 = vmatprep.subr.bf16.mxu0 %v2489
    %7215 = vmatpush2.bf16.msra.mxu0 %v2488
    %7216 = vmatprep.mubr.bf16.mxu0 %v7142
    %7217 = vmatmul.mubr.bf16.gmra.mxu0 %v7141
    %v7218 = vpop.f32.mrf.mxu0
    %v7219 = vadd.f32 %v7178, %v7218
    %v7220 = vpop.f32.mrf.mxu0
    %v7221 = vadd.f32 %v7180, %v7220
    %v7222 = vpop.f32.mrf.mxu0
    %v7223 = vpop.f32.mrf.mxu0
    %7224 = vdwg.mxu0
    %7225 = vmatprep.subr.bf16.mxu0 %v2219
    %7226 = vmatpush1.bf16.msra.mxu0 %v2218
    %7227 = vmatprep.subr.bf16.mxu0 %v2203
    %7228 = vmatpush1.bf16.msra.mxu0 %v2202
    %7229 = vmatprep.subr.bf16.mxu0 %v2187
    %7230 = vmatpush1.bf16.msra.mxu0 %v2186
    %7231 = vmatprep.subr.bf16.mxu0 %v2171
    %7232 = vmatpush1.bf16.msra.mxu0 %v2170
    %7233 = vmatprep.subr.bf16.mxu0 %v2155
    %7234 = vmatpush1.bf16.msra.mxu0 %v2154
    %7235 = vmatprep.subr.bf16.mxu0 %v2139
    %7236 = vmatpush1.bf16.msra.mxu0 %v2138
    %7237 = vmatprep.subr.bf16.mxu0 %v2123
    %7238 = vmatpush1.bf16.msra.mxu0 %v2122
    %7239 = vmatprep.subr.bf16.mxu0 %v2107
    %7240 = vmatpush1.bf16.msra.mxu0 %v2106
    %7241 = vmatprep.subr.bf16.mxu0 %v2347
    %7242 = vmatpush2.bf16.msra.mxu0 %v2346
    %7243 = vmatprep.subr.bf16.mxu0 %v2331
    %7244 = vmatpush2.bf16.msra.mxu0 %v2330
    %7245 = vmatprep.subr.bf16.mxu0 %v2315
    %7246 = vmatpush2.bf16.msra.mxu0 %v2314
    %7247 = vmatprep.subr.bf16.mxu0 %v2299
    %7248 = vmatpush2.bf16.msra.mxu0 %v2298
    %7249 = vmatprep.subr.bf16.mxu0 %v2283
    %7250 = vmatpush2.bf16.msra.mxu0 %v2282
    %7251 = vmatprep.subr.bf16.mxu0 %v2267
    %7252 = vmatpush2.bf16.msra.mxu0 %v2266
    %7253 = vmatprep.subr.bf16.mxu0 %v2251
    %7254 = vmatpush2.bf16.msra.mxu0 %v2250
    %7255 = vmatprep.subr.bf16.mxu0 %v2235
    %7256 = vmatpush2.bf16.msra.mxu0 %v2234
    %7257 = vmatprep.mubr.bf16.mxu0 %v7140
    %7258 = vmatmul.mubr.bf16.gmra.mxu0 %v7139
    %v7259 = vpop.f32.mrf.mxu0
    %v7260 = vadd.f32 0.0, %v7259
    %v7261 = vpop.f32.mrf.mxu0
    %v7262 = vadd.f32 0.0, %v7261
    %v7263 = vpop.f32.mrf.mxu0
    %v7264 = vpop.f32.mrf.mxu0
    %7265 = vdwg.mxu0
    %7266 = vmatprep.subr.bf16.mxu0 %v2475
    %7267 = vmatpush1.bf16.msra.mxu0 %v2474
    %7268 = vmatprep.subr.bf16.mxu0 %v2459
    %7269 = vmatpush1.bf16.msra.mxu0 %v2458
    %7270 = vmatprep.subr.bf16.mxu0 %v2443
    %7271 = vmatpush1.bf16.msra.mxu0 %v2442
    %7272 = vmatprep.subr.bf16.mxu0 %v2427
    %7273 = vmatpush1.bf16.msra.mxu0 %v2426
    %7274 = vmatprep.subr.bf16.mxu0 %v2411
    %7275 = vmatpush1.bf16.msra.mxu0 %v2410
    %7276 = vmatprep.subr.bf16.mxu0 %v2395
    %7277 = vmatpush1.bf16.msra.mxu0 %v2394
    %7278 = vmatprep.subr.bf16.mxu0 %v2379
    %7279 = vmatpush1.bf16.msra.mxu0 %v2378
    %7280 = vmatprep.subr.bf16.mxu0 %v2363
    %7281 = vmatpush1.bf16.msra.mxu0 %v2362
    %7282 = vmatprep.subr.bf16.mxu0 %v2603
    %7283 = vmatpush2.bf16.msra.mxu0 %v2602
    %7284 = vmatprep.subr.bf16.mxu0 %v2587
    %7285 = vmatpush2.bf16.msra.mxu0 %v2586
    %7286 = vmatprep.subr.bf16.mxu0 %v2571
    %7287 = vmatpush2.bf16.msra.mxu0 %v2570
    %7288 = vmatprep.subr.bf16.mxu0 %v2555
    %7289 = vmatpush2.bf16.msra.mxu0 %v2554
    %7290 = vmatprep.subr.bf16.mxu0 %v2539
    %7291 = vmatpush2.bf16.msra.mxu0 %v2538
    %7292 = vmatprep.subr.bf16.mxu0 %v2523
    %7293 = vmatpush2.bf16.msra.mxu0 %v2522
    %7294 = vmatprep.subr.bf16.mxu0 %v2507
    %7295 = vmatpush2.bf16.msra.mxu0 %v2506
    %7296 = vmatprep.subr.bf16.mxu0 %v2491
    %7297 = vmatpush2.bf16.msra.mxu0 %v2490
    %7298 = vmatprep.mubr.bf16.mxu0 %v7142
    %7299 = vmatmul.mubr.bf16.gmra.mxu0 %v7141
    %v7300 = vpop.f32.mrf.mxu0
    %v7301 = vadd.f32 %v7260, %v7300
    %v7302 = vpop.f32.mrf.mxu0
    %v7303 = vadd.f32 %v7262, %v7302
    %v7304 = vpop.f32.mrf.mxu0
    %v7305 = vpop.f32.mrf.mxu0
    %7306 = vdwg.mxu0
    %7307 = vmatprep.subr.bf16.mxu0 %v2221
    %7308 = vmatpush1.bf16.msra.mxu0 %v2220
    %7309 = vmatprep.subr.bf16.mxu0 %v2205
    %7310 = vmatpush1.bf16.msra.mxu0 %v2204
    %7311 = vmatprep.subr.bf16.mxu0 %v2189
    %7312 = vmatpush1.bf16.msra.mxu0 %v2188
    %7313 = vmatprep.subr.bf16.mxu0 %v2173
    %7314 = vmatpush1.bf16.msra.mxu0 %v2172
    %7315 = vmatprep.subr.bf16.mxu0 %v2157
    %7316 = vmatpush1.bf16.msra.mxu0 %v2156
    %7317 = vmatprep.subr.bf16.mxu0 %v2141
    %7318 = vmatpush1.bf16.msra.mxu0 %v2140
    %7319 = vmatprep.subr.bf16.mxu0 %v2125
    %7320 = vmatpush1.bf16.msra.mxu0 %v2124
    %7321 = vmatprep.subr.bf16.mxu0 %v2109
    %7322 = vmatpush1.bf16.msra.mxu0 %v2108
    %7323 = vmatprep.subr.bf16.mxu0 %v2349
    %7324 = vmatpush2.bf16.msra.mxu0 %v2348
    %7325 = vmatprep.subr.bf16.mxu0 %v2333
    %7326 = vmatpush2.bf16.msra.mxu0 %v2332
    %7327 = vmatprep.subr.bf16.mxu0 %v2317
    %7328 = vmatpush2.bf16.msra.mxu0 %v2316
    %7329 = vmatprep.subr.bf16.mxu0 %v2301
    %7330 = vmatpush2.bf16.msra.mxu0 %v2300
    %7331 = vmatprep.subr.bf16.mxu0 %v2285
    %7332 = vmatpush2.bf16.msra.mxu0 %v2284
    %7333 = vmatprep.subr.bf16.mxu0 %v2269
    %7334 = vmatpush2.bf16.msra.mxu0 %v2268
    %7335 = vmatprep.subr.bf16.mxu0 %v2253
    %7336 = vmatpush2.bf16.msra.mxu0 %v2252
    %7337 = vmatprep.subr.bf16.mxu0 %v2237
    %7338 = vmatpush2.bf16.msra.mxu0 %v2236
    %7339 = vmatprep.mubr.bf16.mxu0 %v7140
    %7340 = vmatmul.mubr.bf16.gmra.mxu0 %v7139
    %v7341 = vpop.f32.mrf.mxu0
    %v7342 = vadd.f32 0.0, %v7341
    %v7343 = vpop.f32.mrf.mxu0
    %v7344 = vadd.f32 0.0, %v7343
    %v7345 = vpop.f32.mrf.mxu0
    %v7346 = vpop.f32.mrf.mxu0
    %7347 = vdwg.mxu0
    %7348 = vmatprep.subr.bf16.mxu0 %v2477
    %7349 = vmatpush1.bf16.msra.mxu0 %v2476
    %7350 = vmatprep.subr.bf16.mxu0 %v2461
    %7351 = vmatpush1.bf16.msra.mxu0 %v2460
    %7352 = vmatprep.subr.bf16.mxu0 %v2445
    %7353 = vmatpush1.bf16.msra.mxu0 %v2444
    %7354 = vmatprep.subr.bf16.mxu0 %v2429
    %7355 = vmatpush1.bf16.msra.mxu0 %v2428
    %7356 = vmatprep.subr.bf16.mxu0 %v2413
    %7357 = vmatpush1.bf16.msra.mxu0 %v2412
    %7358 = vmatprep.subr.bf16.mxu0 %v2397
    %7359 = vmatpush1.bf16.msra.mxu0 %v2396
    %7360 = vmatprep.subr.bf16.mxu0 %v2381
    %7361 = vmatpush1.bf16.msra.mxu0 %v2380
    %7362 = vmatprep.subr.bf16.mxu0 %v2365
    %7363 = vmatpush1.bf16.msra.mxu0 %v2364
    %7364 = vmatprep.subr.bf16.mxu0 %v2605
    %7365 = vmatpush2.bf16.msra.mxu0 %v2604
    %7366 = vmatprep.subr.bf16.mxu0 %v2589
    %7367 = vmatpush2.bf16.msra.mxu0 %v2588
    %7368 = vmatprep.subr.bf16.mxu0 %v2573
    %7369 = vmatpush2.bf16.msra.mxu0 %v2572
    %7370 = vmatprep.subr.bf16.mxu0 %v2557
    %7371 = vmatpush2.bf16.msra.mxu0 %v2556
    %7372 = vmatprep.subr.bf16.mxu0 %v2541
    %7373 = vmatpush2.bf16.msra.mxu0 %v2540
    %7374 = vmatprep.subr.bf16.mxu0 %v2525
    %7375 = vmatpush2.bf16.msra.mxu0 %v2524
    %7376 = vmatprep.subr.bf16.mxu0 %v2509
    %7377 = vmatpush2.bf16.msra.mxu0 %v2508
    %7378 = vmatprep.subr.bf16.mxu0 %v2493
    %7379 = vmatpush2.bf16.msra.mxu0 %v2492
    %7380 = vmatprep.mubr.bf16.mxu0 %v7142
    %7381 = vmatmul.mubr.bf16.gmra.mxu0 %v7141
    %v7382 = vpop.f32.mrf.mxu0
    %v7383 = vadd.f32 %v7342, %v7382
    %v7384 = vpop.f32.mrf.mxu0
    %v7385 = vadd.f32 %v7344, %v7384
    %v7386 = vpop.f32.mrf.mxu0
    %v7387 = vpop.f32.mrf.mxu0
    %7388 = vdwg.mxu0
    %7389 = vmatprep.subr.bf16.mxu0 %v2223
    %7390 = vmatpush1.bf16.msra.mxu0 %v2222
    %7391 = vmatprep.subr.bf16.mxu0 %v2207
    %7392 = vmatpush1.bf16.msra.mxu0 %v2206
    %7393 = vmatprep.subr.bf16.mxu0 %v2191
    %7394 = vmatpush1.bf16.msra.mxu0 %v2190
    %7395 = vmatprep.subr.bf16.mxu0 %v2175
    %7396 = vmatpush1.bf16.msra.mxu0 %v2174
    %7397 = vmatprep.subr.bf16.mxu0 %v2159
    %7398 = vmatpush1.bf16.msra.mxu0 %v2158
    %7399 = vmatprep.subr.bf16.mxu0 %v2143
    %7400 = vmatpush1.bf16.msra.mxu0 %v2142
    %7401 = vmatprep.subr.bf16.mxu0 %v2127
    %7402 = vmatpush1.bf16.msra.mxu0 %v2126
    %7403 = vmatprep.subr.bf16.mxu0 %v2111
    %7404 = vmatpush1.bf16.msra.mxu0 %v2110
    %7405 = vmatprep.subr.bf16.mxu0 %v2351
    %7406 = vmatpush2.bf16.msra.mxu0 %v2350
    %7407 = vmatprep.subr.bf16.mxu0 %v2335
    %7408 = vmatpush2.bf16.msra.mxu0 %v2334
    %7409 = vmatprep.subr.bf16.mxu0 %v2319
    %7410 = vmatpush2.bf16.msra.mxu0 %v2318
    %7411 = vmatprep.subr.bf16.mxu0 %v2303
    %7412 = vmatpush2.bf16.msra.mxu0 %v2302
    %7413 = vmatprep.subr.bf16.mxu0 %v2287
    %7414 = vmatpush2.bf16.msra.mxu0 %v2286
    %7415 = vmatprep.subr.bf16.mxu0 %v2271
    %7416 = vmatpush2.bf16.msra.mxu0 %v2270
    %7417 = vmatprep.subr.bf16.mxu0 %v2255
    %7418 = vmatpush2.bf16.msra.mxu0 %v2254
    %7419 = vmatprep.subr.bf16.mxu0 %v2239
    %7420 = vmatpush2.bf16.msra.mxu0 %v2238
    %7421 = vmatprep.mubr.bf16.mxu0 %v7140
    %7422 = vmatmul.mubr.bf16.gmra.mxu0 %v7139
    %v7423 = vpop.f32.mrf.mxu0
    %v7424 = vadd.f32 0.0, %v7423
    %v7425 = vpop.f32.mrf.mxu0
    %v7426 = vadd.f32 0.0, %v7425
    %v7427 = vpop.f32.mrf.mxu0
    %v7428 = vpop.f32.mrf.mxu0
    %7429 = vdwg.mxu0
    %7430 = vmatprep.subr.bf16.mxu0 %v2479
    %7431 = vmatpush1.bf16.msra.mxu0 %v2478
    %7432 = vmatprep.subr.bf16.mxu0 %v2463
    %7433 = vmatpush1.bf16.msra.mxu0 %v2462
    %7434 = vmatprep.subr.bf16.mxu0 %v2447
    %7435 = vmatpush1.bf16.msra.mxu0 %v2446
    %7436 = vmatprep.subr.bf16.mxu0 %v2431
    %7437 = vmatpush1.bf16.msra.mxu0 %v2430
    %7438 = vmatprep.subr.bf16.mxu0 %v2415
    %7439 = vmatpush1.bf16.msra.mxu0 %v2414
    %7440 = vmatprep.subr.bf16.mxu0 %v2399
    %7441 = vmatpush1.bf16.msra.mxu0 %v2398
    %7442 = vmatprep.subr.bf16.mxu0 %v2383
    %7443 = vmatpush1.bf16.msra.mxu0 %v2382
    %7444 = vmatprep.subr.bf16.mxu0 %v2367
    %7445 = vmatpush1.bf16.msra.mxu0 %v2366
    %7446 = vmatprep.subr.bf16.mxu0 %v2607
    %7447 = vmatpush2.bf16.msra.mxu0 %v2606
    %7448 = vmatprep.subr.bf16.mxu0 %v2591
    %7449 = vmatpush2.bf16.msra.mxu0 %v2590
    %7450 = vmatprep.subr.bf16.mxu0 %v2575
    %7451 = vmatpush2.bf16.msra.mxu0 %v2574
    %7452 = vmatprep.subr.bf16.mxu0 %v2559
    %7453 = vmatpush2.bf16.msra.mxu0 %v2558
    %7454 = vmatprep.subr.bf16.mxu0 %v2543
    %7455 = vmatpush2.bf16.msra.mxu0 %v2542
    %7456 = vmatprep.subr.bf16.mxu0 %v2527
    %7457 = vmatpush2.bf16.msra.mxu0 %v2526
    %7458 = vmatprep.subr.bf16.mxu0 %v2511
    %7459 = vmatpush2.bf16.msra.mxu0 %v2510
    %7460 = vmatprep.subr.bf16.mxu0 %v2495
    %7461 = vmatpush2.bf16.msra.mxu0 %v2494
    %7462 = vmatprep.mubr.bf16.mxu0 %v7142
    %7463 = vmatmul.mubr.bf16.gmra.mxu0 %v7141
    %v7464 = vpop.f32.mrf.mxu0
    %v7465 = vadd.f32 %v7424, %v7464
    %v7466 = vpop.f32.mrf.mxu0
    %v7467 = vadd.f32 %v7426, %v7466
    %v7468 = vpop.f32.mrf.mxu0
    %v7469 = vpop.f32.mrf.mxu0
    %7470 = vdwg.mxu0
    %7471 = vmatprep.subr.bf16.mxu0 %v2225
    %7472 = vmatpush1.bf16.msra.mxu0 %v2224
    %7473 = vmatprep.subr.bf16.mxu0 %v2209
    %7474 = vmatpush1.bf16.msra.mxu0 %v2208
    %7475 = vmatprep.subr.bf16.mxu0 %v2193
    %7476 = vmatpush1.bf16.msra.mxu0 %v2192
    %7477 = vmatprep.subr.bf16.mxu0 %v2177
    %7478 = vmatpush1.bf16.msra.mxu0 %v2176
    %7479 = vmatprep.subr.bf16.mxu0 %v2161
    %7480 = vmatpush1.bf16.msra.mxu0 %v2160
    %7481 = vmatprep.subr.bf16.mxu0 %v2145
    %7482 = vmatpush1.bf16.msra.mxu0 %v2144
    %7483 = vmatprep.subr.bf16.mxu0 %v2129
    %7484 = vmatpush1.bf16.msra.mxu0 %v2128
    %7485 = vmatprep.subr.bf16.mxu0 %v2113
    %7486 = vmatpush1.bf16.msra.mxu0 %v2112
    %7487 = vmatprep.subr.bf16.mxu0 %v2353
    %7488 = vmatpush2.bf16.msra.mxu0 %v2352
    %7489 = vmatprep.subr.bf16.mxu0 %v2337
    %7490 = vmatpush2.bf16.msra.mxu0 %v2336
    %7491 = vmatprep.subr.bf16.mxu0 %v2321
    %7492 = vmatpush2.bf16.msra.mxu0 %v2320
    %7493 = vmatprep.subr.bf16.mxu0 %v2305
    %7494 = vmatpush2.bf16.msra.mxu0 %v2304
    %7495 = vmatprep.subr.bf16.mxu0 %v2289
    %7496 = vmatpush2.bf16.msra.mxu0 %v2288
    %7497 = vmatprep.subr.bf16.mxu0 %v2273
    %7498 = vmatpush2.bf16.msra.mxu0 %v2272
    %7499 = vmatprep.subr.bf16.mxu0 %v2257
    %7500 = vmatpush2.bf16.msra.mxu0 %v2256
    %7501 = vmatprep.subr.bf16.mxu0 %v2241
    %7502 = vmatpush2.bf16.msra.mxu0 %v2240
    %7503 = vmatprep.mubr.bf16.mxu0 %v7140
    %7504 = vmatmul.mubr.bf16.gmra.mxu0 %v7139
    %v7505 = vpop.f32.mrf.mxu0
    %v7506 = vadd.f32 0.0, %v7505
    %v7507 = vpop.f32.mrf.mxu0
    %v7508 = vadd.f32 0.0, %v7507
    %v7509 = vpop.f32.mrf.mxu0
    %v7510 = vpop.f32.mrf.mxu0
    %7511 = vdwg.mxu0
    %7512 = vmatprep.subr.bf16.mxu0 %v2481
    %7513 = vmatpush1.bf16.msra.mxu0 %v2480
    %7514 = vmatprep.subr.bf16.mxu0 %v2465
    %7515 = vmatpush1.bf16.msra.mxu0 %v2464
    %7516 = vmatprep.subr.bf16.mxu0 %v2449
    %7517 = vmatpush1.bf16.msra.mxu0 %v2448
    %7518 = vmatprep.subr.bf16.mxu0 %v2433
    %7519 = vmatpush1.bf16.msra.mxu0 %v2432
    %7520 = vmatprep.subr.bf16.mxu0 %v2417
    %7521 = vmatpush1.bf16.msra.mxu0 %v2416
    %7522 = vmatprep.subr.bf16.mxu0 %v2401
    %7523 = vmatpush1.bf16.msra.mxu0 %v2400
    %7524 = vmatprep.subr.bf16.mxu0 %v2385
    %7525 = vmatpush1.bf16.msra.mxu0 %v2384
    %7526 = vmatprep.subr.bf16.mxu0 %v2369
    %7527 = vmatpush1.bf16.msra.mxu0 %v2368
    %7528 = vmatprep.subr.bf16.mxu0 %v2609
    %7529 = vmatpush2.bf16.msra.mxu0 %v2608
    %7530 = vmatprep.subr.bf16.mxu0 %v2593
    %7531 = vmatpush2.bf16.msra.mxu0 %v2592
    %7532 = vmatprep.subr.bf16.mxu0 %v2577
    %7533 = vmatpush2.bf16.msra.mxu0 %v2576
    %7534 = vmatprep.subr.bf16.mxu0 %v2561
    %7535 = vmatpush2.bf16.msra.mxu0 %v2560
    %7536 = vmatprep.subr.bf16.mxu0 %v2545
    %7537 = vmatpush2.bf16.msra.mxu0 %v2544
    %7538 = vmatprep.subr.bf16.mxu0 %v2529
    %7539 = vmatpush2.bf16.msra.mxu0 %v2528
    %7540 = vmatprep.subr.bf16.mxu0 %v2513
    %7541 = vmatpush2.bf16.msra.mxu0 %v2512
    %7542 = vmatprep.subr.bf16.mxu0 %v2497
    %7543 = vmatpush2.bf16.msra.mxu0 %v2496
    %7544 = vmatprep.mubr.bf16.mxu0 %v7142
    %7545 = vmatmul.mubr.bf16.gmra.mxu0 %v7141
    %v7546 = vpop.f32.mrf.mxu0
    %v7547 = vadd.f32 %v7506, %v7546
    %v7548 = vpop.f32.mrf.mxu0
    %v7549 = vadd.f32 %v7508, %v7548
    %v7550 = vpop.f32.mrf.mxu0
    %v7551 = vpop.f32.mrf.mxu0
    %7552 = vdwg.mxu0
    %7553 = vmatprep.subr.bf16.mxu0 %v2227
    %7554 = vmatpush1.bf16.msra.mxu0 %v2226
    %7555 = vmatprep.subr.bf16.mxu0 %v2211
    %7556 = vmatpush1.bf16.msra.mxu0 %v2210
    %7557 = vmatprep.subr.bf16.mxu0 %v2195
    %7558 = vmatpush1.bf16.msra.mxu0 %v2194
    %7559 = vmatprep.subr.bf16.mxu0 %v2179
    %7560 = vmatpush1.bf16.msra.mxu0 %v2178
    %7561 = vmatprep.subr.bf16.mxu0 %v2163
    %7562 = vmatpush1.bf16.msra.mxu0 %v2162
    %7563 = vmatprep.subr.bf16.mxu0 %v2147
    %7564 = vmatpush1.bf16.msra.mxu0 %v2146
    %7565 = vmatprep.subr.bf16.mxu0 %v2131
    %7566 = vmatpush1.bf16.msra.mxu0 %v2130
    %7567 = vmatprep.subr.bf16.mxu0 %v2115
    %7568 = vmatpush1.bf16.msra.mxu0 %v2114
    %7569 = vmatprep.subr.bf16.mxu0 %v2355
    %7570 = vmatpush2.bf16.msra.mxu0 %v2354
    %7571 = vmatprep.subr.bf16.mxu0 %v2339
    %7572 = vmatpush2.bf16.msra.mxu0 %v2338
    %7573 = vmatprep.subr.bf16.mxu0 %v2323
    %7574 = vmatpush2.bf16.msra.mxu0 %v2322
    %7575 = vmatprep.subr.bf16.mxu0 %v2307
    %7576 = vmatpush2.bf16.msra.mxu0 %v2306
    %7577 = vmatprep.subr.bf16.mxu0 %v2291
    %7578 = vmatpush2.bf16.msra.mxu0 %v2290
    %7579 = vmatprep.subr.bf16.mxu0 %v2275
    %7580 = vmatpush2.bf16.msra.mxu0 %v2274
    %7581 = vmatprep.subr.bf16.mxu0 %v2259
    %7582 = vmatpush2.bf16.msra.mxu0 %v2258
    %7583 = vmatprep.subr.bf16.mxu0 %v2243
    %7584 = vmatpush2.bf16.msra.mxu0 %v2242
    %7585 = vmatprep.mubr.bf16.mxu0 %v7140
    %7586 = vmatmul.mubr.bf16.gmra.mxu0 %v7139
    %v7587 = vpop.f32.mrf.mxu0
    %v7588 = vadd.f32 0.0, %v7587
    %v7589 = vpop.f32.mrf.mxu0
    %v7590 = vadd.f32 0.0, %v7589
    %v7591 = vpop.f32.mrf.mxu0
    %v7592 = vpop.f32.mrf.mxu0
    %7593 = vdwg.mxu0
    %7594 = vmatprep.subr.bf16.mxu0 %v2483
    %7595 = vmatpush1.bf16.msra.mxu0 %v2482
    %7596 = vmatprep.subr.bf16.mxu0 %v2467
    %7597 = vmatpush1.bf16.msra.mxu0 %v2466
    %7598 = vmatprep.subr.bf16.mxu0 %v2451
    %7599 = vmatpush1.bf16.msra.mxu0 %v2450
    %7600 = vmatprep.subr.bf16.mxu0 %v2435
    %7601 = vmatpush1.bf16.msra.mxu0 %v2434
    %7602 = vmatprep.subr.bf16.mxu0 %v2419
    %7603 = vmatpush1.bf16.msra.mxu0 %v2418
    %7604 = vmatprep.subr.bf16.mxu0 %v2403
    %7605 = vmatpush1.bf16.msra.mxu0 %v2402
    %7606 = vmatprep.subr.bf16.mxu0 %v2387
    %7607 = vmatpush1.bf16.msra.mxu0 %v2386
    %7608 = vmatprep.subr.bf16.mxu0 %v2371
    %7609 = vmatpush1.bf16.msra.mxu0 %v2370
    %7610 = vmatprep.subr.bf16.mxu0 %v2611
    %7611 = vmatpush2.bf16.msra.mxu0 %v2610
    %7612 = vmatprep.subr.bf16.mxu0 %v2595
    %7613 = vmatpush2.bf16.msra.mxu0 %v2594
    %7614 = vmatprep.subr.bf16.mxu0 %v2579
    %7615 = vmatpush2.bf16.msra.mxu0 %v2578
    %7616 = vmatprep.subr.bf16.mxu0 %v2563
    %7617 = vmatpush2.bf16.msra.mxu0 %v2562
    %7618 = vmatprep.subr.bf16.mxu0 %v2547
    %7619 = vmatpush2.bf16.msra.mxu0 %v2546
    %7620 = vmatprep.subr.bf16.mxu0 %v2531
    %7621 = vmatpush2.bf16.msra.mxu0 %v2530
    %7622 = vmatprep.subr.bf16.mxu0 %v2515
    %7623 = vmatpush2.bf16.msra.mxu0 %v2514
    %7624 = vmatprep.subr.bf16.mxu0 %v2499
    %7625 = vmatpush2.bf16.msra.mxu0 %v2498
    %7626 = vmatprep.mubr.bf16.mxu0 %v7142
    %7627 = vmatmul.mubr.bf16.gmra.mxu0 %v7141
    %v7628 = vpop.f32.mrf.mxu0
    %v7629 = vadd.f32 %v7588, %v7628
    %v7630 = vpop.f32.mrf.mxu0
    %v7631 = vadd.f32 %v7590, %v7630
    %v7632 = vpop.f32.mrf.mxu0
    %v7633 = vpop.f32.mrf.mxu0
    %7634 = vdwg.mxu0
    %7635 = vmatprep.subr.bf16.mxu0 %v2229
    %7636 = vmatpush1.bf16.msra.mxu0 %v2228
    %7637 = vmatprep.subr.bf16.mxu0 %v2213
    %7638 = vmatpush1.bf16.msra.mxu0 %v2212
    %7639 = vmatprep.subr.bf16.mxu0 %v2197
    %7640 = vmatpush1.bf16.msra.mxu0 %v2196
    %7641 = vmatprep.subr.bf16.mxu0 %v2181
    %7642 = vmatpush1.bf16.msra.mxu0 %v2180
    %7643 = vmatprep.subr.bf16.mxu0 %v2165
    %7644 = vmatpush1.bf16.msra.mxu0 %v2164
    %7645 = vmatprep.subr.bf16.mxu0 %v2149
    %7646 = vmatpush1.bf16.msra.mxu0 %v2148
    %7647 = vmatprep.subr.bf16.mxu0 %v2133
    %7648 = vmatpush1.bf16.msra.mxu0 %v2132
    %7649 = vmatprep.subr.bf16.mxu0 %v2117
    %7650 = vmatpush1.bf16.msra.mxu0 %v2116
    %7651 = vmatprep.subr.bf16.mxu0 %v2357
    %7652 = vmatpush2.bf16.msra.mxu0 %v2356
    %7653 = vmatprep.subr.bf16.mxu0 %v2341
    %7654 = vmatpush2.bf16.msra.mxu0 %v2340
    %7655 = vmatprep.subr.bf16.mxu0 %v2325
    %7656 = vmatpush2.bf16.msra.mxu0 %v2324
    %7657 = vmatprep.subr.bf16.mxu0 %v2309
    %7658 = vmatpush2.bf16.msra.mxu0 %v2308
    %7659 = vmatprep.subr.bf16.mxu0 %v2293
    %7660 = vmatpush2.bf16.msra.mxu0 %v2292
    %7661 = vmatprep.subr.bf16.mxu0 %v2277
    %7662 = vmatpush2.bf16.msra.mxu0 %v2276
    %7663 = vmatprep.subr.bf16.mxu0 %v2261
    %7664 = vmatpush2.bf16.msra.mxu0 %v2260
    %7665 = vmatprep.subr.bf16.mxu0 %v2245
    %7666 = vmatpush2.bf16.msra.mxu0 %v2244
    %7667 = vmatprep.mubr.bf16.mxu0 %v7140
    %7668 = vmatmul.mubr.bf16.gmra.mxu0 %v7139
    %v7669 = vpop.f32.mrf.mxu0
    %v7670 = vadd.f32 0.0, %v7669
    %v7671 = vpop.f32.mrf.mxu0
    %v7672 = vadd.f32 0.0, %v7671
    %v7673 = vpop.f32.mrf.mxu0
    %v7674 = vpop.f32.mrf.mxu0
    %7675 = vdwg.mxu0
    %7676 = vmatprep.subr.bf16.mxu0 %v2485
    %7677 = vmatpush1.bf16.msra.mxu0 %v2484
    %7678 = vmatprep.subr.bf16.mxu0 %v2469
    %7679 = vmatpush1.bf16.msra.mxu0 %v2468
    %7680 = vmatprep.subr.bf16.mxu0 %v2453
    %7681 = vmatpush1.bf16.msra.mxu0 %v2452
    %7682 = vmatprep.subr.bf16.mxu0 %v2437
    %7683 = vmatpush1.bf16.msra.mxu0 %v2436
    %7684 = vmatprep.subr.bf16.mxu0 %v2421
    %7685 = vmatpush1.bf16.msra.mxu0 %v2420
    %7686 = vmatprep.subr.bf16.mxu0 %v2405
    %7687 = vmatpush1.bf16.msra.mxu0 %v2404
    %7688 = vmatprep.subr.bf16.mxu0 %v2389
    %7689 = vmatpush1.bf16.msra.mxu0 %v2388
    %7690 = vmatprep.subr.bf16.mxu0 %v2373
    %7691 = vmatpush1.bf16.msra.mxu0 %v2372
    %7692 = vmatprep.subr.bf16.mxu0 %v2613
    %7693 = vmatpush2.bf16.msra.mxu0 %v2612
    %7694 = vmatprep.subr.bf16.mxu0 %v2597
    %7695 = vmatpush2.bf16.msra.mxu0 %v2596
    %7696 = vmatprep.subr.bf16.mxu0 %v2581
    %7697 = vmatpush2.bf16.msra.mxu0 %v2580
    %7698 = vmatprep.subr.bf16.mxu0 %v2565
    %7699 = vmatpush2.bf16.msra.mxu0 %v2564
    %7700 = vmatprep.subr.bf16.mxu0 %v2549
    %7701 = vmatpush2.bf16.msra.mxu0 %v2548
    %7702 = vmatprep.subr.bf16.mxu0 %v2533
    %7703 = vmatpush2.bf16.msra.mxu0 %v2532
    %7704 = vmatprep.subr.bf16.mxu0 %v2517
    %7705 = vmatpush2.bf16.msra.mxu0 %v2516
    %7706 = vmatprep.subr.bf16.mxu0 %v2501
    %7707 = vmatpush2.bf16.msra.mxu0 %v2500
    %7708 = vmatprep.mubr.bf16.mxu0 %v7142
    %7709 = vmatmul.mubr.bf16.gmra.mxu0 %v7141
    %v7710 = vpop.f32.mrf.mxu0
    %v7711 = vadd.f32 %v7670, %v7710
    %v7712 = vpop.f32.mrf.mxu0
    %v7713 = vadd.f32 %v7672, %v7712
    %v7714 = vpop.f32.mrf.mxu0
    %v7715 = vpop.f32.mrf.mxu0
    %7716 = vdwg.mxu0
    %7717 = vmatprep.subr.bf16.mxu0 %v2231
    %7718 = vmatpush1.bf16.msra.mxu0 %v2230
    %7719 = vmatprep.subr.bf16.mxu0 %v2215
    %7720 = vmatpush1.bf16.msra.mxu0 %v2214
    %7721 = vmatprep.subr.bf16.mxu0 %v2199
    %7722 = vmatpush1.bf16.msra.mxu0 %v2198
    %7723 = vmatprep.subr.bf16.mxu0 %v2183
    %7724 = vmatpush1.bf16.msra.mxu0 %v2182
    %7725 = vmatprep.subr.bf16.mxu0 %v2167
    %7726 = vmatpush1.bf16.msra.mxu0 %v2166
    %7727 = vmatprep.subr.bf16.mxu0 %v2151
    %7728 = vmatpush1.bf16.msra.mxu0 %v2150
    %7729 = vmatprep.subr.bf16.mxu0 %v2135
    %7730 = vmatpush1.bf16.msra.mxu0 %v2134
    %7731 = vmatprep.subr.bf16.mxu0 %v2119
    %7732 = vmatpush1.bf16.msra.mxu0 %v2118
    %7733 = vmatprep.subr.bf16.mxu0 %v2359
    %7734 = vmatpush2.bf16.msra.mxu0 %v2358
    %7735 = vmatprep.subr.bf16.mxu0 %v2343
    %7736 = vmatpush2.bf16.msra.mxu0 %v2342
    %7737 = vmatprep.subr.bf16.mxu0 %v2327
    %7738 = vmatpush2.bf16.msra.mxu0 %v2326
    %7739 = vmatprep.subr.bf16.mxu0 %v2311
    %7740 = vmatpush2.bf16.msra.mxu0 %v2310
    %7741 = vmatprep.subr.bf16.mxu0 %v2295
    %7742 = vmatpush2.bf16.msra.mxu0 %v2294
    %7743 = vmatprep.subr.bf16.mxu0 %v2279
    %7744 = vmatpush2.bf16.msra.mxu0 %v2278
    %7745 = vmatprep.subr.bf16.mxu0 %v2263
    %7746 = vmatpush2.bf16.msra.mxu0 %v2262
    %7747 = vmatprep.subr.bf16.mxu0 %v2247
    %7748 = vmatpush2.bf16.msra.mxu0 %v2246
    %7749 = vmatprep.mubr.bf16.mxu0 %v7140
    %7750 = vmatmul.mubr.bf16.gmra.mxu0 %v7139
    %v7751 = vpop.f32.mrf.mxu0
    %v7752 = vadd.f32 0.0, %v7751
    %v7753 = vpop.f32.mrf.mxu0
    %v7754 = vadd.f32 0.0, %v7753
    %v7755 = vpop.f32.mrf.mxu0
    %v7756 = vpop.f32.mrf.mxu0
    %7757 = vdwg.mxu0
    %7758 = vmatprep.subr.bf16.mxu0 %v2487
    %7759 = vmatpush1.bf16.msra.mxu0 %v2486
    %7760 = vmatprep.subr.bf16.mxu0 %v2471
    %7761 = vmatpush1.bf16.msra.mxu0 %v2470
    %7762 = vmatprep.subr.bf16.mxu0 %v2455
    %7763 = vmatpush1.bf16.msra.mxu0 %v2454
    %7764 = vmatprep.subr.bf16.mxu0 %v2439
    %7765 = vmatpush1.bf16.msra.mxu0 %v2438
    %7766 = vmatprep.subr.bf16.mxu0 %v2423
    %7767 = vmatpush1.bf16.msra.mxu0 %v2422
    %7768 = vmatprep.subr.bf16.mxu0 %v2407
    %7769 = vmatpush1.bf16.msra.mxu0 %v2406
    %7770 = vmatprep.subr.bf16.mxu0 %v2391
    %7771 = vmatpush1.bf16.msra.mxu0 %v2390
    %7772 = vmatprep.subr.bf16.mxu0 %v2375
    %7773 = vmatpush1.bf16.msra.mxu0 %v2374
    %7774 = vmatprep.subr.bf16.mxu0 %v2615
    %7775 = vmatpush2.bf16.msra.mxu0 %v2614
    %7776 = vmatprep.subr.bf16.mxu0 %v2599
    %7777 = vmatpush2.bf16.msra.mxu0 %v2598
    %7778 = vmatprep.subr.bf16.mxu0 %v2583
    %7779 = vmatpush2.bf16.msra.mxu0 %v2582
    %7780 = vmatprep.subr.bf16.mxu0 %v2567
    %7781 = vmatpush2.bf16.msra.mxu0 %v2566
    %7782 = vmatprep.subr.bf16.mxu0 %v2551
    %7783 = vmatpush2.bf16.msra.mxu0 %v2550
    %7784 = vmatprep.subr.bf16.mxu0 %v2535
    %7785 = vmatpush2.bf16.msra.mxu0 %v2534
    %7786 = vmatprep.subr.bf16.mxu0 %v2519
    %7787 = vmatpush2.bf16.msra.mxu0 %v2518
    %7788 = vmatprep.subr.bf16.mxu0 %v2503
    %7789 = vmatpush2.bf16.msra.mxu0 %v2502
    %7790 = vmatprep.mubr.bf16.mxu0 %v7142
    %7791 = vmatmul.mubr.bf16.gmra.mxu0 %v7141
    %v7792 = vpop.f32.mrf.mxu0
    %v7793 = vadd.f32 %v7752, %v7792
    %v7794 = vpop.f32.mrf.mxu0
    %v7795 = vadd.f32 %v7754, %v7794
    %v7796 = vpop.f32.mrf.mxu0
    %v7797 = vpop.f32.mrf.mxu0
    %7798 = vdwg.mxu0
    %v7815 = vcombine.low %v7219, %v7221
    %v7816 = vcombine.low %v7301, %v7303
    %v7818 = vunpack.c.l.s4 1983009808
    %v7819 = vunpack.c.0.s8 %v7818
    %v7820 = vlaneseq
    %v7821 = vshrl.u32 %v7820, 7
    %v7822 = vsub.s32 %v7819, %v7821
    %v7823 = vrot.slane %v7815, %v7822
    %v7825 = vunpack.c.l.s4 1983009808
    %v7826 = vunpack.c.0.s8 %v7825
    %v7827 = vlaneseq
    %v7828 = vshrl.u32 %v7827, 7
    %v7829 = vsub.s32 %v7826, %v7828
    %v7830 = vrot.slane %v7816, %v7829
    %v7831 = vcombine.low %v7823, %v7830
    %v7832 = vcombine.low %v7383, %v7385
    %v7833 = vcombine.low %v7465, %v7467
    %v7835 = vunpack.c.l.s4 1983009808
    %v7836 = vunpack.c.0.s8 %v7835
    %v7837 = vlaneseq
    %v7838 = vshrl.u32 %v7837, 7
    %v7839 = vsub.s32 %v7836, %v7838
    %v7840 = vrot.slane %v7832, %v7839
    %v7842 = vunpack.c.l.s4 1983009808
    %v7843 = vunpack.c.0.s8 %v7842
    %v7844 = vlaneseq
    %v7845 = vshrl.u32 %v7844, 7
    %v7846 = vsub.s32 %v7843, %v7845
    %v7847 = vrot.slane %v7833, %v7846
    %v7848 = vcombine.low %v7840, %v7847
    %v7849 = vcombine.low %v7547, %v7549
    %v7850 = vcombine.low %v7629, %v7631
    %v7852 = vunpack.c.l.s4 1983009808
    %v7853 = vunpack.c.0.s8 %v7852
    %v7854 = vlaneseq
    %v7855 = vshrl.u32 %v7854, 7
    %v7856 = vsub.s32 %v7853, %v7855
    %v7857 = vrot.slane %v7849, %v7856
    %v7859 = vunpack.c.l.s4 1983009808
    %v7860 = vunpack.c.0.s8 %v7859
    %v7861 = vlaneseq
    %v7862 = vshrl.u32 %v7861, 7
    %v7863 = vsub.s32 %v7860, %v7862
    %v7864 = vrot.slane %v7850, %v7863
    %v7865 = vcombine.low %v7857, %v7864
    %v7866 = vcombine.low %v7711, %v7713
    %v7867 = vcombine.low %v7793, %v7795
    %v7869 = vunpack.c.l.s4 1983009808
    %v7870 = vunpack.c.0.s8 %v7869
    %v7871 = vlaneseq
    %v7872 = vshrl.u32 %v7871, 7
    %v7873 = vsub.s32 %v7870, %v7872
    %v7874 = vrot.slane %v7866, %v7873
    %v7876 = vunpack.c.l.s4 1983009808
    %v7877 = vunpack.c.0.s8 %v7876
    %v7878 = vlaneseq
    %v7879 = vshrl.u32 %v7878, 7
    %v7880 = vsub.s32 %v7877, %v7879
    %v7881 = vrot.slane %v7867, %v7880
    %v7882 = vcombine.low %v7874, %v7881
    %v7887 = vadd.f32 %v7113, %v7831
    %v7888 = vadd.f32 %v7114, %v7848
    %v7889 = vadd.f32 %v7115, %v7865
    %v7890 = vadd.f32 %v7116, %v7882
    %v7891 = vxor.u32 %v7887, 2147483648
    %v7892 = vmul.f32 %v7891, 1.442695
    %v7893 = vpow.pop %v7892
    %v7894 = vadd.f32 %v7893, 1.0
    %v7895 = vrcp.pop %v7894
    %v7896 = vmul.f32 1.0, %v7895
    %v7897 = vxor.u32 %v7888, 2147483648
    %v7898 = vmul.f32 %v7897, 1.442695
    %v7899 = vpow.pop %v7898
    %v7900 = vadd.f32 %v7899, 1.0
    %v7901 = vrcp.pop %v7900
    %v7902 = vmul.f32 1.0, %v7901
    %v7903 = vtanh.pop %v7889
    %v7904 = vxor.u32 %v7890, 2147483648
    %v7905 = vmul.f32 %v7904, 1.442695
    %v7906 = vpow.pop %v7905
    %v7907 = vadd.f32 %v7906, 1.0
    %v7908 = vrcp.pop %v7907
    %v7909 = vmul.f32 1.0, %v7908
    %v7910 = vmul.f32 %v7902, %v7109
    %v7911 = vmul.f32 %v7896, %v7903
    %v7912 = vadd.f32 %v7910, %v7911
    %v7913 = vtanh.pop %v7912
    %v7914 = vmul.f32 %v7909, %v7913
    %s7915 = scalar_lea.vmem %s0, 192
    %v7916 = vld [vmem:[%s7915] sm:$0xff]
    %v7917 = vld [vmem:[%s7915 + $0x8] sm:$0xff]
    %v7918 = vld [vmem:[%s7915 + $0x10] sm:$0xff]
    %v7919 = vld [vmem:[%s7915 + $0x18] sm:$0xff]
    %v7921 = vcombine.high %v7914, %v7914
    %v7923 = vunpack.c.l.s4 1983009808
    %v7924 = vunpack.c.0.s8 %v7923
    %v7925 = vlaneseq
    %v7926 = vshrl.u32 %v7925, 7
    %v7927 = vsub.s32 %v7924, %v7926
    %v7928 = vrot.slane %v7914, %v7927
    %v7930 = vunpack.c.l.s4 1983009808
    %v7931 = vunpack.c.0.s8 %v7930
    %v7932 = vlaneseq
    %v7933 = vshrl.u32 %v7932, 7
    %v7934 = vsub.s32 %v7931, %v7933
    %v7935 = vrot.slane %v7921, %v7934
    %v7936 = vcombine.high %v7928, %v7928
    %v7937 = vcombine.high %v7935, %v7935
    %v7942 = vpack.c.bf16 %v7928, %v7928
    %v7943 = vpack.c.bf16 %v7936, %v7936
    %v7944 = vpack.c.bf16 %v7935, %v7935
    %v7945 = vpack.c.bf16 %v7937, %v7937
    %7946 = vmatprep.subr.bf16.mxu0 %v2217
    %7947 = vmatpush1.bf16.msra.mxu0 %v2216
    %7948 = vmatprep.subr.bf16.mxu0 %v2201
    %7949 = vmatpush1.bf16.msra.mxu0 %v2200
    %7950 = vmatprep.subr.bf16.mxu0 %v2185
    %7951 = vmatpush1.bf16.msra.mxu0 %v2184
    %7952 = vmatprep.subr.bf16.mxu0 %v2169
    %7953 = vmatpush1.bf16.msra.mxu0 %v2168
    %7954 = vmatprep.subr.bf16.mxu0 %v2153
    %7955 = vmatpush1.bf16.msra.mxu0 %v2152
    %7956 = vmatprep.subr.bf16.mxu0 %v2137
    %7957 = vmatpush1.bf16.msra.mxu0 %v2136
    %7958 = vmatprep.subr.bf16.mxu0 %v2121
    %7959 = vmatpush1.bf16.msra.mxu0 %v2120
    %7960 = vmatprep.subr.bf16.mxu0 %v2105
    %7961 = vmatpush1.bf16.msra.mxu0 %v2104
    %7962 = vmatprep.subr.bf16.mxu0 %v2345
    %7963 = vmatpush2.bf16.msra.mxu0 %v2344
    %7964 = vmatprep.subr.bf16.mxu0 %v2329
    %7965 = vmatpush2.bf16.msra.mxu0 %v2328
    %7966 = vmatprep.subr.bf16.mxu0 %v2313
    %7967 = vmatpush2.bf16.msra.mxu0 %v2312
    %7968 = vmatprep.subr.bf16.mxu0 %v2297
    %7969 = vmatpush2.bf16.msra.mxu0 %v2296
    %7970 = vmatprep.subr.bf16.mxu0 %v2281
    %7971 = vmatpush2.bf16.msra.mxu0 %v2280
    %7972 = vmatprep.subr.bf16.mxu0 %v2265
    %7973 = vmatpush2.bf16.msra.mxu0 %v2264
    %7974 = vmatprep.subr.bf16.mxu0 %v2249
    %7975 = vmatpush2.bf16.msra.mxu0 %v2248
    %7976 = vmatprep.subr.bf16.mxu0 %v2233
    %7977 = vmatpush2.bf16.msra.mxu0 %v2232
    %7978 = vmatprep.mubr.bf16.mxu0 %v7943
    %7979 = vmatmul.mubr.bf16.gmra.mxu0 %v7942
    %v7980 = vpop.f32.mrf.mxu0
    %v7981 = vadd.f32 0.0, %v7980
    %v7982 = vpop.f32.mrf.mxu0
    %v7983 = vadd.f32 0.0, %v7982
    %v7984 = vpop.f32.mrf.mxu0
    %v7985 = vpop.f32.mrf.mxu0
    %7986 = vdwg.mxu0
    %7987 = vmatprep.subr.bf16.mxu0 %v2473
    %7988 = vmatpush1.bf16.msra.mxu0 %v2472
    %7989 = vmatprep.subr.bf16.mxu0 %v2457
    %7990 = vmatpush1.bf16.msra.mxu0 %v2456
    %7991 = vmatprep.subr.bf16.mxu0 %v2441
    %7992 = vmatpush1.bf16.msra.mxu0 %v2440
    %7993 = vmatprep.subr.bf16.mxu0 %v2425
    %7994 = vmatpush1.bf16.msra.mxu0 %v2424
    %7995 = vmatprep.subr.bf16.mxu0 %v2409
    %7996 = vmatpush1.bf16.msra.mxu0 %v2408
    %7997 = vmatprep.subr.bf16.mxu0 %v2393
    %7998 = vmatpush1.bf16.msra.mxu0 %v2392
    %7999 = vmatprep.subr.bf16.mxu0 %v2377
    %8000 = vmatpush1.bf16.msra.mxu0 %v2376
    %8001 = vmatprep.subr.bf16.mxu0 %v2361
    %8002 = vmatpush1.bf16.msra.mxu0 %v2360
    %8003 = vmatprep.subr.bf16.mxu0 %v2601
    %8004 = vmatpush2.bf16.msra.mxu0 %v2600
    %8005 = vmatprep.subr.bf16.mxu0 %v2585
    %8006 = vmatpush2.bf16.msra.mxu0 %v2584
    %8007 = vmatprep.subr.bf16.mxu0 %v2569
    %8008 = vmatpush2.bf16.msra.mxu0 %v2568
    %8009 = vmatprep.subr.bf16.mxu0 %v2553
    %8010 = vmatpush2.bf16.msra.mxu0 %v2552
    %8011 = vmatprep.subr.bf16.mxu0 %v2537
    %8012 = vmatpush2.bf16.msra.mxu0 %v2536
    %8013 = vmatprep.subr.bf16.mxu0 %v2521
    %8014 = vmatpush2.bf16.msra.mxu0 %v2520
    %8015 = vmatprep.subr.bf16.mxu0 %v2505
    %8016 = vmatpush2.bf16.msra.mxu0 %v2504
    %8017 = vmatprep.subr.bf16.mxu0 %v2489
    %8018 = vmatpush2.bf16.msra.mxu0 %v2488
    %8019 = vmatprep.mubr.bf16.mxu0 %v7945
    %8020 = vmatmul.mubr.bf16.gmra.mxu0 %v7944
    %v8021 = vpop.f32.mrf.mxu0
    %v8022 = vadd.f32 %v7981, %v8021
    %v8023 = vpop.f32.mrf.mxu0
    %v8024 = vadd.f32 %v7983, %v8023
    %v8025 = vpop.f32.mrf.mxu0
    %v8026 = vpop.f32.mrf.mxu0
    %8027 = vdwg.mxu0
    %8028 = vmatprep.subr.bf16.mxu0 %v2219
    %8029 = vmatpush1.bf16.msra.mxu0 %v2218
    %8030 = vmatprep.subr.bf16.mxu0 %v2203
    %8031 = vmatpush1.bf16.msra.mxu0 %v2202
    %8032 = vmatprep.subr.bf16.mxu0 %v2187
    %8033 = vmatpush1.bf16.msra.mxu0 %v2186
    %8034 = vmatprep.subr.bf16.mxu0 %v2171
    %8035 = vmatpush1.bf16.msra.mxu0 %v2170
    %8036 = vmatprep.subr.bf16.mxu0 %v2155
    %8037 = vmatpush1.bf16.msra.mxu0 %v2154
    %8038 = vmatprep.subr.bf16.mxu0 %v2139
    %8039 = vmatpush1.bf16.msra.mxu0 %v2138
    %8040 = vmatprep.subr.bf16.mxu0 %v2123
    %8041 = vmatpush1.bf16.msra.mxu0 %v2122
    %8042 = vmatprep.subr.bf16.mxu0 %v2107
    %8043 = vmatpush1.bf16.msra.mxu0 %v2106
    %8044 = vmatprep.subr.bf16.mxu0 %v2347
    %8045 = vmatpush2.bf16.msra.mxu0 %v2346
    %8046 = vmatprep.subr.bf16.mxu0 %v2331
    %8047 = vmatpush2.bf16.msra.mxu0 %v2330
    %8048 = vmatprep.subr.bf16.mxu0 %v2315
    %8049 = vmatpush2.bf16.msra.mxu0 %v2314
    %8050 = vmatprep.subr.bf16.mxu0 %v2299
    %8051 = vmatpush2.bf16.msra.mxu0 %v2298
    %8052 = vmatprep.subr.bf16.mxu0 %v2283
    %8053 = vmatpush2.bf16.msra.mxu0 %v2282
    %8054 = vmatprep.subr.bf16.mxu0 %v2267
    %8055 = vmatpush2.bf16.msra.mxu0 %v2266
    %8056 = vmatprep.subr.bf16.mxu0 %v2251
    %8057 = vmatpush2.bf16.msra.mxu0 %v2250
    %8058 = vmatprep.subr.bf16.mxu0 %v2235
    %8059 = vmatpush2.bf16.msra.mxu0 %v2234
    %8060 = vmatprep.mubr.bf16.mxu0 %v7943
    %8061 = vmatmul.mubr.bf16.gmra.mxu0 %v7942
    %v8062 = vpop.f32.mrf.mxu0
    %v8063 = vadd.f32 0.0, %v8062
    %v8064 = vpop.f32.mrf.mxu0
    %v8065 = vadd.f32 0.0, %v8064
    %v8066 = vpop.f32.mrf.mxu0
    %v8067 = vpop.f32.mrf.mxu0
    %8068 = vdwg.mxu0
    %8069 = vmatprep.subr.bf16.mxu0 %v2475
    %8070 = vmatpush1.bf16.msra.mxu0 %v2474
    %8071 = vmatprep.subr.bf16.mxu0 %v2459
    %8072 = vmatpush1.bf16.msra.mxu0 %v2458
    %8073 = vmatprep.subr.bf16.mxu0 %v2443
    %8074 = vmatpush1.bf16.msra.mxu0 %v2442
    %8075 = vmatprep.subr.bf16.mxu0 %v2427
    %8076 = vmatpush1.bf16.msra.mxu0 %v2426
    %8077 = vmatprep.subr.bf16.mxu0 %v2411
    %8078 = vmatpush1.bf16.msra.mxu0 %v2410
    %8079 = vmatprep.subr.bf16.mxu0 %v2395
    %8080 = vmatpush1.bf16.msra.mxu0 %v2394
    %8081 = vmatprep.subr.bf16.mxu0 %v2379
    %8082 = vmatpush1.bf16.msra.mxu0 %v2378
    %8083 = vmatprep.subr.bf16.mxu0 %v2363
    %8084 = vmatpush1.bf16.msra.mxu0 %v2362
    %8085 = vmatprep.subr.bf16.mxu0 %v2603
    %8086 = vmatpush2.bf16.msra.mxu0 %v2602
    %8087 = vmatprep.subr.bf16.mxu0 %v2587
    %8088 = vmatpush2.bf16.msra.mxu0 %v2586
    %8089 = vmatprep.subr.bf16.mxu0 %v2571
    %8090 = vmatpush2.bf16.msra.mxu0 %v2570
    %8091 = vmatprep.subr.bf16.mxu0 %v2555
    %8092 = vmatpush2.bf16.msra.mxu0 %v2554
    %8093 = vmatprep.subr.bf16.mxu0 %v2539
    %8094 = vmatpush2.bf16.msra.mxu0 %v2538
    %8095 = vmatprep.subr.bf16.mxu0 %v2523
    %8096 = vmatpush2.bf16.msra.mxu0 %v2522
    %8097 = vmatprep.subr.bf16.mxu0 %v2507
    %8098 = vmatpush2.bf16.msra.mxu0 %v2506
    %8099 = vmatprep.subr.bf16.mxu0 %v2491
    %8100 = vmatpush2.bf16.msra.mxu0 %v2490
    %8101 = vmatprep.mubr.bf16.mxu0 %v7945
    %8102 = vmatmul.mubr.bf16.gmra.mxu0 %v7944
    %v8103 = vpop.f32.mrf.mxu0
    %v8104 = vadd.f32 %v8063, %v8103
    %v8105 = vpop.f32.mrf.mxu0
    %v8106 = vadd.f32 %v8065, %v8105
    %v8107 = vpop.f32.mrf.mxu0
    %v8108 = vpop.f32.mrf.mxu0
    %8109 = vdwg.mxu0
    %8110 = vmatprep.subr.bf16.mxu0 %v2221
    %8111 = vmatpush1.bf16.msra.mxu0 %v2220
    %8112 = vmatprep.subr.bf16.mxu0 %v2205
    %8113 = vmatpush1.bf16.msra.mxu0 %v2204
    %8114 = vmatprep.subr.bf16.mxu0 %v2189
    %8115 = vmatpush1.bf16.msra.mxu0 %v2188
    %8116 = vmatprep.subr.bf16.mxu0 %v2173
    %8117 = vmatpush1.bf16.msra.mxu0 %v2172
    %8118 = vmatprep.subr.bf16.mxu0 %v2157
    %8119 = vmatpush1.bf16.msra.mxu0 %v2156
    %8120 = vmatprep.subr.bf16.mxu0 %v2141
    %8121 = vmatpush1.bf16.msra.mxu0 %v2140
    %8122 = vmatprep.subr.bf16.mxu0 %v2125
    %8123 = vmatpush1.bf16.msra.mxu0 %v2124
    %8124 = vmatprep.subr.bf16.mxu0 %v2109
    %8125 = vmatpush1.bf16.msra.mxu0 %v2108
    %8126 = vmatprep.subr.bf16.mxu0 %v2349
    %8127 = vmatpush2.bf16.msra.mxu0 %v2348
    %8128 = vmatprep.subr.bf16.mxu0 %v2333
    %8129 = vmatpush2.bf16.msra.mxu0 %v2332
    %8130 = vmatprep.subr.bf16.mxu0 %v2317
    %8131 = vmatpush2.bf16.msra.mxu0 %v2316
    %8132 = vmatprep.subr.bf16.mxu0 %v2301
    %8133 = vmatpush2.bf16.msra.mxu0 %v2300
    %8134 = vmatprep.subr.bf16.mxu0 %v2285
    %8135 = vmatpush2.bf16.msra.mxu0 %v2284
    %8136 = vmatprep.subr.bf16.mxu0 %v2269
    %8137 = vmatpush2.bf16.msra.mxu0 %v2268
    %8138 = vmatprep.subr.bf16.mxu0 %v2253
    %8139 = vmatpush2.bf16.msra.mxu0 %v2252
    %8140 = vmatprep.subr.bf16.mxu0 %v2237
    %8141 = vmatpush2.bf16.msra.mxu0 %v2236
    %8142 = vmatprep.mubr.bf16.mxu0 %v7943
    %8143 = vmatmul.mubr.bf16.gmra.mxu0 %v7942
    %v8144 = vpop.f32.mrf.mxu0
    %v8145 = vadd.f32 0.0, %v8144
    %v8146 = vpop.f32.mrf.mxu0
    %v8147 = vadd.f32 0.0, %v8146
    %v8148 = vpop.f32.mrf.mxu0
    %v8149 = vpop.f32.mrf.mxu0
    %8150 = vdwg.mxu0
    %8151 = vmatprep.subr.bf16.mxu0 %v2477
    %8152 = vmatpush1.bf16.msra.mxu0 %v2476
    %8153 = vmatprep.subr.bf16.mxu0 %v2461
    %8154 = vmatpush1.bf16.msra.mxu0 %v2460
    %8155 = vmatprep.subr.bf16.mxu0 %v2445
    %8156 = vmatpush1.bf16.msra.mxu0 %v2444
    %8157 = vmatprep.subr.bf16.mxu0 %v2429
    %8158 = vmatpush1.bf16.msra.mxu0 %v2428
    %8159 = vmatprep.subr.bf16.mxu0 %v2413
    %8160 = vmatpush1.bf16.msra.mxu0 %v2412
    %8161 = vmatprep.subr.bf16.mxu0 %v2397
    %8162 = vmatpush1.bf16.msra.mxu0 %v2396
    %8163 = vmatprep.subr.bf16.mxu0 %v2381
    %8164 = vmatpush1.bf16.msra.mxu0 %v2380
    %8165 = vmatprep.subr.bf16.mxu0 %v2365
    %8166 = vmatpush1.bf16.msra.mxu0 %v2364
    %8167 = vmatprep.subr.bf16.mxu0 %v2605
    %8168 = vmatpush2.bf16.msra.mxu0 %v2604
    %8169 = vmatprep.subr.bf16.mxu0 %v2589
    %8170 = vmatpush2.bf16.msra.mxu0 %v2588
    %8171 = vmatprep.subr.bf16.mxu0 %v2573
    %8172 = vmatpush2.bf16.msra.mxu0 %v2572
    %8173 = vmatprep.subr.bf16.mxu0 %v2557
    %8174 = vmatpush2.bf16.msra.mxu0 %v2556
    %8175 = vmatprep.subr.bf16.mxu0 %v2541
    %8176 = vmatpush2.bf16.msra.mxu0 %v2540
    %8177 = vmatprep.subr.bf16.mxu0 %v2525
    %8178 = vmatpush2.bf16.msra.mxu0 %v2524
    %8179 = vmatprep.subr.bf16.mxu0 %v2509
    %8180 = vmatpush2.bf16.msra.mxu0 %v2508
    %8181 = vmatprep.subr.bf16.mxu0 %v2493
    %8182 = vmatpush2.bf16.msra.mxu0 %v2492
    %8183 = vmatprep.mubr.bf16.mxu0 %v7945
    %8184 = vmatmul.mubr.bf16.gmra.mxu0 %v7944
    %v8185 = vpop.f32.mrf.mxu0
    %v8186 = vadd.f32 %v8145, %v8185
    %v8187 = vpop.f32.mrf.mxu0
    %v8188 = vadd.f32 %v8147, %v8187
    %v8189 = vpop.f32.mrf.mxu0
    %v8190 = vpop.f32.mrf.mxu0
    %8191 = vdwg.mxu0
    %8192 = vmatprep.subr.bf16.mxu0 %v2223
    %8193 = vmatpush1.bf16.msra.mxu0 %v2222
    %8194 = vmatprep.subr.bf16.mxu0 %v2207
    %8195 = vmatpush1.bf16.msra.mxu0 %v2206
    %8196 = vmatprep.subr.bf16.mxu0 %v2191
    %8197 = vmatpush1.bf16.msra.mxu0 %v2190
    %8198 = vmatprep.subr.bf16.mxu0 %v2175
    %8199 = vmatpush1.bf16.msra.mxu0 %v2174
    %8200 = vmatprep.subr.bf16.mxu0 %v2159
    %8201 = vmatpush1.bf16.msra.mxu0 %v2158
    %8202 = vmatprep.subr.bf16.mxu0 %v2143
    %8203 = vmatpush1.bf16.msra.mxu0 %v2142
    %8204 = vmatprep.subr.bf16.mxu0 %v2127
    %8205 = vmatpush1.bf16.msra.mxu0 %v2126
    %8206 = vmatprep.subr.bf16.mxu0 %v2111
    %8207 = vmatpush1.bf16.msra.mxu0 %v2110
    %8208 = vmatprep.subr.bf16.mxu0 %v2351
    %8209 = vmatpush2.bf16.msra.mxu0 %v2350
    %8210 = vmatprep.subr.bf16.mxu0 %v2335
    %8211 = vmatpush2.bf16.msra.mxu0 %v2334
    %8212 = vmatprep.subr.bf16.mxu0 %v2319
    %8213 = vmatpush2.bf16.msra.mxu0 %v2318
    %8214 = vmatprep.subr.bf16.mxu0 %v2303
    %8215 = vmatpush2.bf16.msra.mxu0 %v2302
    %8216 = vmatprep.subr.bf16.mxu0 %v2287
    %8217 = vmatpush2.bf16.msra.mxu0 %v2286
    %8218 = vmatprep.subr.bf16.mxu0 %v2271
    %8219 = vmatpush2.bf16.msra.mxu0 %v2270
    %8220 = vmatprep.subr.bf16.mxu0 %v2255
    %8221 = vmatpush2.bf16.msra.mxu0 %v2254
    %8222 = vmatprep.subr.bf16.mxu0 %v2239
    %8223 = vmatpush2.bf16.msra.mxu0 %v2238
    %8224 = vmatprep.mubr.bf16.mxu0 %v7943
    %8225 = vmatmul.mubr.bf16.gmra.mxu0 %v7942
    %v8226 = vpop.f32.mrf.mxu0
    %v8227 = vadd.f32 0.0, %v8226
    %v8228 = vpop.f32.mrf.mxu0
    %v8229 = vadd.f32 0.0, %v8228
    %v8230 = vpop.f32.mrf.mxu0
    %v8231 = vpop.f32.mrf.mxu0
    %8232 = vdwg.mxu0
    %8233 = vmatprep.subr.bf16.mxu0 %v2479
    %8234 = vmatpush1.bf16.msra.mxu0 %v2478
    %8235 = vmatprep.subr.bf16.mxu0 %v2463
    %8236 = vmatpush1.bf16.msra.mxu0 %v2462
    %8237 = vmatprep.subr.bf16.mxu0 %v2447
    %8238 = vmatpush1.bf16.msra.mxu0 %v2446
    %8239 = vmatprep.subr.bf16.mxu0 %v2431
    %8240 = vmatpush1.bf16.msra.mxu0 %v2430
    %8241 = vmatprep.subr.bf16.mxu0 %v2415
    %8242 = vmatpush1.bf16.msra.mxu0 %v2414
    %8243 = vmatprep.subr.bf16.mxu0 %v2399
    %8244 = vmatpush1.bf16.msra.mxu0 %v2398
    %8245 = vmatprep.subr.bf16.mxu0 %v2383
    %8246 = vmatpush1.bf16.msra.mxu0 %v2382
    %8247 = vmatprep.subr.bf16.mxu0 %v2367
    %8248 = vmatpush1.bf16.msra.mxu0 %v2366
    %8249 = vmatprep.subr.bf16.mxu0 %v2607
    %8250 = vmatpush2.bf16.msra.mxu0 %v2606
    %8251 = vmatprep.subr.bf16.mxu0 %v2591
    %8252 = vmatpush2.bf16.msra.mxu0 %v2590
    %8253 = vmatprep.subr.bf16.mxu0 %v2575
    %8254 = vmatpush2.bf16.msra.mxu0 %v2574
    %8255 = vmatprep.subr.bf16.mxu0 %v2559
    %8256 = vmatpush2.bf16.msra.mxu0 %v2558
    %8257 = vmatprep.subr.bf16.mxu0 %v2543
    %8258 = vmatpush2.bf16.msra.mxu0 %v2542
    %8259 = vmatprep.subr.bf16.mxu0 %v2527
    %8260 = vmatpush2.bf16.msra.mxu0 %v2526
    %8261 = vmatprep.subr.bf16.mxu0 %v2511
    %8262 = vmatpush2.bf16.msra.mxu0 %v2510
    %8263 = vmatprep.subr.bf16.mxu0 %v2495
    %8264 = vmatpush2.bf16.msra.mxu0 %v2494
    %8265 = vmatprep.mubr.bf16.mxu0 %v7945
    %8266 = vmatmul.mubr.bf16.gmra.mxu0 %v7944
    %v8267 = vpop.f32.mrf.mxu0
    %v8268 = vadd.f32 %v8227, %v8267
    %v8269 = vpop.f32.mrf.mxu0
    %v8270 = vadd.f32 %v8229, %v8269
    %v8271 = vpop.f32.mrf.mxu0
    %v8272 = vpop.f32.mrf.mxu0
    %8273 = vdwg.mxu0
    %8274 = vmatprep.subr.bf16.mxu0 %v2225
    %8275 = vmatpush1.bf16.msra.mxu0 %v2224
    %8276 = vmatprep.subr.bf16.mxu0 %v2209
    %8277 = vmatpush1.bf16.msra.mxu0 %v2208
    %8278 = vmatprep.subr.bf16.mxu0 %v2193
    %8279 = vmatpush1.bf16.msra.mxu0 %v2192
    %8280 = vmatprep.subr.bf16.mxu0 %v2177
    %8281 = vmatpush1.bf16.msra.mxu0 %v2176
    %8282 = vmatprep.subr.bf16.mxu0 %v2161
    %8283 = vmatpush1.bf16.msra.mxu0 %v2160
    %8284 = vmatprep.subr.bf16.mxu0 %v2145
    %8285 = vmatpush1.bf16.msra.mxu0 %v2144
    %8286 = vmatprep.subr.bf16.mxu0 %v2129
    %8287 = vmatpush1.bf16.msra.mxu0 %v2128
    %8288 = vmatprep.subr.bf16.mxu0 %v2113
    %8289 = vmatpush1.bf16.msra.mxu0 %v2112
    %8290 = vmatprep.subr.bf16.mxu0 %v2353
    %8291 = vmatpush2.bf16.msra.mxu0 %v2352
    %8292 = vmatprep.subr.bf16.mxu0 %v2337
    %8293 = vmatpush2.bf16.msra.mxu0 %v2336
    %8294 = vmatprep.subr.bf16.mxu0 %v2321
    %8295 = vmatpush2.bf16.msra.mxu0 %v2320
    %8296 = vmatprep.subr.bf16.mxu0 %v2305
    %8297 = vmatpush2.bf16.msra.mxu0 %v2304
    %8298 = vmatprep.subr.bf16.mxu0 %v2289
    %8299 = vmatpush2.bf16.msra.mxu0 %v2288
    %8300 = vmatprep.subr.bf16.mxu0 %v2273
    %8301 = vmatpush2.bf16.msra.mxu0 %v2272
    %8302 = vmatprep.subr.bf16.mxu0 %v2257
    %8303 = vmatpush2.bf16.msra.mxu0 %v2256
    %8304 = vmatprep.subr.bf16.mxu0 %v2241
    %8305 = vmatpush2.bf16.msra.mxu0 %v2240
    %8306 = vmatprep.mubr.bf16.mxu0 %v7943
    %8307 = vmatmul.mubr.bf16.gmra.mxu0 %v7942
    %v8308 = vpop.f32.mrf.mxu0
    %v8309 = vadd.f32 0.0, %v8308
    %v8310 = vpop.f32.mrf.mxu0
    %v8311 = vadd.f32 0.0, %v8310
    %v8312 = vpop.f32.mrf.mxu0
    %v8313 = vpop.f32.mrf.mxu0
    %8314 = vdwg.mxu0
    %8315 = vmatprep.subr.bf16.mxu0 %v2481
    %8316 = vmatpush1.bf16.msra.mxu0 %v2480
    %8317 = vmatprep.subr.bf16.mxu0 %v2465
    %8318 = vmatpush1.bf16.msra.mxu0 %v2464
    %8319 = vmatprep.subr.bf16.mxu0 %v2449
    %8320 = vmatpush1.bf16.msra.mxu0 %v2448
    %8321 = vmatprep.subr.bf16.mxu0 %v2433
    %8322 = vmatpush1.bf16.msra.mxu0 %v2432
    %8323 = vmatprep.subr.bf16.mxu0 %v2417
    %8324 = vmatpush1.bf16.msra.mxu0 %v2416
    %8325 = vmatprep.subr.bf16.mxu0 %v2401
    %8326 = vmatpush1.bf16.msra.mxu0 %v2400
    %8327 = vmatprep.subr.bf16.mxu0 %v2385
    %8328 = vmatpush1.bf16.msra.mxu0 %v2384
    %8329 = vmatprep.subr.bf16.mxu0 %v2369
    %8330 = vmatpush1.bf16.msra.mxu0 %v2368
    %8331 = vmatprep.subr.bf16.mxu0 %v2609
    %8332 = vmatpush2.bf16.msra.mxu0 %v2608
    %8333 = vmatprep.subr.bf16.mxu0 %v2593
    %8334 = vmatpush2.bf16.msra.mxu0 %v2592
    %8335 = vmatprep.subr.bf16.mxu0 %v2577
    %8336 = vmatpush2.bf16.msra.mxu0 %v2576
    %8337 = vmatprep.subr.bf16.mxu0 %v2561
    %8338 = vmatpush2.bf16.msra.mxu0 %v2560
    %8339 = vmatprep.subr.bf16.mxu0 %v2545
    %8340 = vmatpush2.bf16.msra.mxu0 %v2544
    %8341 = vmatprep.subr.bf16.mxu0 %v2529
    %8342 = vmatpush2.bf16.msra.mxu0 %v2528
    %8343 = vmatprep.subr.bf16.mxu0 %v2513
    %8344 = vmatpush2.bf16.msra.mxu0 %v2512
    %8345 = vmatprep.subr.bf16.mxu0 %v2497
    %8346 = vmatpush2.bf16.msra.mxu0 %v2496
    %8347 = vmatprep.mubr.bf16.mxu0 %v7945
    %8348 = vmatmul.mubr.bf16.gmra.mxu0 %v7944
    %v8349 = vpop.f32.mrf.mxu0
    %v8350 = vadd.f32 %v8309, %v8349
    %v8351 = vpop.f32.mrf.mxu0
    %v8352 = vadd.f32 %v8311, %v8351
    %v8353 = vpop.f32.mrf.mxu0
    %v8354 = vpop.f32.mrf.mxu0
    %8355 = vdwg.mxu0
    %8356 = vmatprep.subr.bf16.mxu0 %v2227
    %8357 = vmatpush1.bf16.msra.mxu0 %v2226
    %8358 = vmatprep.subr.bf16.mxu0 %v2211
    %8359 = vmatpush1.bf16.msra.mxu0 %v2210
    %8360 = vmatprep.subr.bf16.mxu0 %v2195
    %8361 = vmatpush1.bf16.msra.mxu0 %v2194
    %8362 = vmatprep.subr.bf16.mxu0 %v2179
    %8363 = vmatpush1.bf16.msra.mxu0 %v2178
    %8364 = vmatprep.subr.bf16.mxu0 %v2163
    %8365 = vmatpush1.bf16.msra.mxu0 %v2162
    %8366 = vmatprep.subr.bf16.mxu0 %v2147
    %8367 = vmatpush1.bf16.msra.mxu0 %v2146
    %8368 = vmatprep.subr.bf16.mxu0 %v2131
    %8369 = vmatpush1.bf16.msra.mxu0 %v2130
    %8370 = vmatprep.subr.bf16.mxu0 %v2115
    %8371 = vmatpush1.bf16.msra.mxu0 %v2114
    %8372 = vmatprep.subr.bf16.mxu0 %v2355
    %8373 = vmatpush2.bf16.msra.mxu0 %v2354
    %8374 = vmatprep.subr.bf16.mxu0 %v2339
    %8375 = vmatpush2.bf16.msra.mxu0 %v2338
    %8376 = vmatprep.subr.bf16.mxu0 %v2323
    %8377 = vmatpush2.bf16.msra.mxu0 %v2322
    %8378 = vmatprep.subr.bf16.mxu0 %v2307
    %8379 = vmatpush2.bf16.msra.mxu0 %v2306
    %8380 = vmatprep.subr.bf16.mxu0 %v2291
    %8381 = vmatpush2.bf16.msra.mxu0 %v2290
    %8382 = vmatprep.subr.bf16.mxu0 %v2275
    %8383 = vmatpush2.bf16.msra.mxu0 %v2274
    %8384 = vmatprep.subr.bf16.mxu0 %v2259
    %8385 = vmatpush2.bf16.msra.mxu0 %v2258
    %8386 = vmatprep.subr.bf16.mxu0 %v2243
    %8387 = vmatpush2.bf16.msra.mxu0 %v2242
    %8388 = vmatprep.mubr.bf16.mxu0 %v7943
    %8389 = vmatmul.mubr.bf16.gmra.mxu0 %v7942
    %v8390 = vpop.f32.mrf.mxu0
    %v8391 = vadd.f32 0.0, %v8390
    %v8392 = vpop.f32.mrf.mxu0
    %v8393 = vadd.f32 0.0, %v8392
    %v8394 = vpop.f32.mrf.mxu0
    %v8395 = vpop.f32.mrf.mxu0
    %8396 = vdwg.mxu0
    %8397 = vmatprep.subr.bf16.mxu0 %v2483
    %8398 = vmatpush1.bf16.msra.mxu0 %v2482
    %8399 = vmatprep.subr.bf16.mxu0 %v2467
    %8400 = vmatpush1.bf16.msra.mxu0 %v2466
    %8401 = vmatprep.subr.bf16.mxu0 %v2451
    %8402 = vmatpush1.bf16.msra.mxu0 %v2450
    %8403 = vmatprep.subr.bf16.mxu0 %v2435
    %8404 = vmatpush1.bf16.msra.mxu0 %v2434
    %8405 = vmatprep.subr.bf16.mxu0 %v2419
    %8406 = vmatpush1.bf16.msra.mxu0 %v2418
    %8407 = vmatprep.subr.bf16.mxu0 %v2403
    %8408 = vmatpush1.bf16.msra.mxu0 %v2402
    %8409 = vmatprep.subr.bf16.mxu0 %v2387
    %8410 = vmatpush1.bf16.msra.mxu0 %v2386
    %8411 = vmatprep.subr.bf16.mxu0 %v2371
    %8412 = vmatpush1.bf16.msra.mxu0 %v2370
    %8413 = vmatprep.subr.bf16.mxu0 %v2611
    %8414 = vmatpush2.bf16.msra.mxu0 %v2610
    %8415 = vmatprep.subr.bf16.mxu0 %v2595
    %8416 = vmatpush2.bf16.msra.mxu0 %v2594
    %8417 = vmatprep.subr.bf16.mxu0 %v2579
    %8418 = vmatpush2.bf16.msra.mxu0 %v2578
    %8419 = vmatprep.subr.bf16.mxu0 %v2563
    %8420 = vmatpush2.bf16.msra.mxu0 %v2562
    %8421 = vmatprep.subr.bf16.mxu0 %v2547
    %8422 = vmatpush2.bf16.msra.mxu0 %v2546
    %8423 = vmatprep.subr.bf16.mxu0 %v2531
    %8424 = vmatpush2.bf16.msra.mxu0 %v2530
    %8425 = vmatprep.subr.bf16.mxu0 %v2515
    %8426 = vmatpush2.bf16.msra.mxu0 %v2514
    %8427 = vmatprep.subr.bf16.mxu0 %v2499
    %8428 = vmatpush2.bf16.msra.mxu0 %v2498
    %8429 = vmatprep.mubr.bf16.mxu0 %v7945
    %8430 = vmatmul.mubr.bf16.gmra.mxu0 %v7944
    %v8431 = vpop.f32.mrf.mxu0
    %v8432 = vadd.f32 %v8391, %v8431
    %v8433 = vpop.f32.mrf.mxu0
    %v8434 = vadd.f32 %v8393, %v8433
    %v8435 = vpop.f32.mrf.mxu0
    %v8436 = vpop.f32.mrf.mxu0
    %8437 = vdwg.mxu0
    %8438 = vmatprep.subr.bf16.mxu0 %v2229
    %8439 = vmatpush1.bf16.msra.mxu0 %v2228
    %8440 = vmatprep.subr.bf16.mxu0 %v2213
    %8441 = vmatpush1.bf16.msra.mxu0 %v2212
    %8442 = vmatprep.subr.bf16.mxu0 %v2197
    %8443 = vmatpush1.bf16.msra.mxu0 %v2196
    %8444 = vmatprep.subr.bf16.mxu0 %v2181
    %8445 = vmatpush1.bf16.msra.mxu0 %v2180
    %8446 = vmatprep.subr.bf16.mxu0 %v2165
    %8447 = vmatpush1.bf16.msra.mxu0 %v2164
    %8448 = vmatprep.subr.bf16.mxu0 %v2149
    %8449 = vmatpush1.bf16.msra.mxu0 %v2148
    %8450 = vmatprep.subr.bf16.mxu0 %v2133
    %8451 = vmatpush1.bf16.msra.mxu0 %v2132
    %8452 = vmatprep.subr.bf16.mxu0 %v2117
    %8453 = vmatpush1.bf16.msra.mxu0 %v2116
    %8454 = vmatprep.subr.bf16.mxu0 %v2357
    %8455 = vmatpush2.bf16.msra.mxu0 %v2356
    %8456 = vmatprep.subr.bf16.mxu0 %v2341
    %8457 = vmatpush2.bf16.msra.mxu0 %v2340
    %8458 = vmatprep.subr.bf16.mxu0 %v2325
    %8459 = vmatpush2.bf16.msra.mxu0 %v2324
    %8460 = vmatprep.subr.bf16.mxu0 %v2309
    %8461 = vmatpush2.bf16.msra.mxu0 %v2308
    %8462 = vmatprep.subr.bf16.mxu0 %v2293
    %8463 = vmatpush2.bf16.msra.mxu0 %v2292
    %8464 = vmatprep.subr.bf16.mxu0 %v2277
    %8465 = vmatpush2.bf16.msra.mxu0 %v2276
    %8466 = vmatprep.subr.bf16.mxu0 %v2261
    %8467 = vmatpush2.bf16.msra.mxu0 %v2260
    %8468 = vmatprep.subr.bf16.mxu0 %v2245
    %8469 = vmatpush2.bf16.msra.mxu0 %v2244
    %8470 = vmatprep.mubr.bf16.mxu0 %v7943
    %8471 = vmatmul.mubr.bf16.gmra.mxu0 %v7942
    %v8472 = vpop.f32.mrf.mxu0
    %v8473 = vadd.f32 0.0, %v8472
    %v8474 = vpop.f32.mrf.mxu0
    %v8475 = vadd.f32 0.0, %v8474
    %v8476 = vpop.f32.mrf.mxu0
    %v8477 = vpop.f32.mrf.mxu0
    %8478 = vdwg.mxu0
    %8479 = vmatprep.subr.bf16.mxu0 %v2485
    %8480 = vmatpush1.bf16.msra.mxu0 %v2484
    %8481 = vmatprep.subr.bf16.mxu0 %v2469
    %8482 = vmatpush1.bf16.msra.mxu0 %v2468
    %8483 = vmatprep.subr.bf16.mxu0 %v2453
    %8484 = vmatpush1.bf16.msra.mxu0 %v2452
    %8485 = vmatprep.subr.bf16.mxu0 %v2437
    %8486 = vmatpush1.bf16.msra.mxu0 %v2436
    %8487 = vmatprep.subr.bf16.mxu0 %v2421
    %8488 = vmatpush1.bf16.msra.mxu0 %v2420
    %8489 = vmatprep.subr.bf16.mxu0 %v2405
    %8490 = vmatpush1.bf16.msra.mxu0 %v2404
    %8491 = vmatprep.subr.bf16.mxu0 %v2389
    %8492 = vmatpush1.bf16.msra.mxu0 %v2388
    %8493 = vmatprep.subr.bf16.mxu0 %v2373
    %8494 = vmatpush1.bf16.msra.mxu0 %v2372
    %8495 = vmatprep.subr.bf16.mxu0 %v2613
    %8496 = vmatpush2.bf16.msra.mxu0 %v2612
    %8497 = vmatprep.subr.bf16.mxu0 %v2597
    %8498 = vmatpush2.bf16.msra.mxu0 %v2596
    %8499 = vmatprep.subr.bf16.mxu0 %v2581
    %8500 = vmatpush2.bf16.msra.mxu0 %v2580
    %8501 = vmatprep.subr.bf16.mxu0 %v2565
    %8502 = vmatpush2.bf16.msra.mxu0 %v2564
    %8503 = vmatprep.subr.bf16.mxu0 %v2549
    %8504 = vmatpush2.bf16.msra.mxu0 %v2548
    %8505 = vmatprep.subr.bf16.mxu0 %v2533
    %8506 = vmatpush2.bf16.msra.mxu0 %v2532
    %8507 = vmatprep.subr.bf16.mxu0 %v2517
    %8508 = vmatpush2.bf16.msra.mxu0 %v2516
    %8509 = vmatprep.subr.bf16.mxu0 %v2501
    %8510 = vmatpush2.bf16.msra.mxu0 %v2500
    %8511 = vmatprep.mubr.bf16.mxu0 %v7945
    %8512 = vmatmul.mubr.bf16.gmra.mxu0 %v7944
    %v8513 = vpop.f32.mrf.mxu0
    %v8514 = vadd.f32 %v8473, %v8513
    %v8515 = vpop.f32.mrf.mxu0
    %v8516 = vadd.f32 %v8475, %v8515
    %v8517 = vpop.f32.mrf.mxu0
    %v8518 = vpop.f32.mrf.mxu0
    %8519 = vdwg.mxu0
    %8520 = vmatprep.subr.bf16.mxu0 %v2231
    %8521 = vmatpush1.bf16.msra.mxu0 %v2230
    %8522 = vmatprep.subr.bf16.mxu0 %v2215
    %8523 = vmatpush1.bf16.msra.mxu0 %v2214
    %8524 = vmatprep.subr.bf16.mxu0 %v2199
    %8525 = vmatpush1.bf16.msra.mxu0 %v2198
    %8526 = vmatprep.subr.bf16.mxu0 %v2183
    %8527 = vmatpush1.bf16.msra.mxu0 %v2182
    %8528 = vmatprep.subr.bf16.mxu0 %v2167
    %8529 = vmatpush1.bf16.msra.mxu0 %v2166
    %8530 = vmatprep.subr.bf16.mxu0 %v2151
    %8531 = vmatpush1.bf16.msra.mxu0 %v2150
    %8532 = vmatprep.subr.bf16.mxu0 %v2135
    %8533 = vmatpush1.bf16.msra.mxu0 %v2134
    %8534 = vmatprep.subr.bf16.mxu0 %v2119
    %8535 = vmatpush1.bf16.msra.mxu0 %v2118
    %8536 = vmatprep.subr.bf16.mxu0 %v2359
    %8537 = vmatpush2.bf16.msra.mxu0 %v2358
    %8538 = vmatprep.subr.bf16.mxu0 %v2343
    %8539 = vmatpush2.bf16.msra.mxu0 %v2342
    %8540 = vmatprep.subr.bf16.mxu0 %v2327
    %8541 = vmatpush2.bf16.msra.mxu0 %v2326
    %8542 = vmatprep.subr.bf16.mxu0 %v2311
    %8543 = vmatpush2.bf16.msra.mxu0 %v2310
    %8544 = vmatprep.subr.bf16.mxu0 %v2295
    %8545 = vmatpush2.bf16.msra.mxu0 %v2294
    %8546 = vmatprep.subr.bf16.mxu0 %v2279
    %8547 = vmatpush2.bf16.msra.mxu0 %v2278
    %8548 = vmatprep.subr.bf16.mxu0 %v2263
    %8549 = vmatpush2.bf16.msra.mxu0 %v2262
    %8550 = vmatprep.subr.bf16.mxu0 %v2247
    %8551 = vmatpush2.bf16.msra.mxu0 %v2246
    %8552 = vmatprep.mubr.bf16.mxu0 %v7943
    %8553 = vmatmul.mubr.bf16.gmra.mxu0 %v7942
    %v8554 = vpop.f32.mrf.mxu0
    %v8555 = vadd.f32 0.0, %v8554
    %v8556 = vpop.f32.mrf.mxu0
    %v8557 = vadd.f32 0.0, %v8556
    %v8558 = vpop.f32.mrf.mxu0
    %v8559 = vpop.f32.mrf.mxu0
    %8560 = vdwg.mxu0
    %8561 = vmatprep.subr.bf16.mxu0 %v2487
    %8562 = vmatpush1.bf16.msra.mxu0 %v2486
    %8563 = vmatprep.subr.bf16.mxu0 %v2471
    %8564 = vmatpush1.bf16.msra.mxu0 %v2470
    %8565 = vmatprep.subr.bf16.mxu0 %v2455
    %8566 = vmatpush1.bf16.msra.mxu0 %v2454
    %8567 = vmatprep.subr.bf16.mxu0 %v2439
    %8568 = vmatpush1.bf16.msra.mxu0 %v2438
    %8569 = vmatprep.subr.bf16.mxu0 %v2423
    %8570 = vmatpush1.bf16.msra.mxu0 %v2422
    %8571 = vmatprep.subr.bf16.mxu0 %v2407
    %8572 = vmatpush1.bf16.msra.mxu0 %v2406
    %8573 = vmatprep.subr.bf16.mxu0 %v2391
    %8574 = vmatpush1.bf16.msra.mxu0 %v2390
    %8575 = vmatprep.subr.bf16.mxu0 %v2375
    %8576 = vmatpush1.bf16.msra.mxu0 %v2374
    %8577 = vmatprep.subr.bf16.mxu0 %v2615
    %8578 = vmatpush2.bf16.msra.mxu0 %v2614
    %8579 = vmatprep.subr.bf16.mxu0 %v2599
    %8580 = vmatpush2.bf16.msra.mxu0 %v2598
    %8581 = vmatprep.subr.bf16.mxu0 %v2583
    %8582 = vmatpush2.bf16.msra.mxu0 %v2582
    %8583 = vmatprep.subr.bf16.mxu0 %v2567
    %8584 = vmatpush2.bf16.msra.mxu0 %v2566
    %8585 = vmatprep.subr.bf16.mxu0 %v2551
    %8586 = vmatpush2.bf16.msra.mxu0 %v2550
    %8587 = vmatprep.subr.bf16.mxu0 %v2535
    %8588 = vmatpush2.bf16.msra.mxu0 %v2534
    %8589 = vmatprep.subr.bf16.mxu0 %v2519
    %8590 = vmatpush2.bf16.msra.mxu0 %v2518
    %8591 = vmatprep.subr.bf16.mxu0 %v2503
    %8592 = vmatpush2.bf16.msra.mxu0 %v2502
    %8593 = vmatprep.mubr.bf16.mxu0 %v7945
    %8594 = vmatmul.mubr.bf16.gmra.mxu0 %v7944
    %v8595 = vpop.f32.mrf.mxu0
    %v8596 = vadd.f32 %v8555, %v8595
    %v8597 = vpop.f32.mrf.mxu0
    %v8598 = vadd.f32 %v8557, %v8597
    %v8599 = vpop.f32.mrf.mxu0
    %v8600 = vpop.f32.mrf.mxu0
    %8601 = vdwg.mxu0
    %v8618 = vcombine.low %v8022, %v8024
    %v8619 = vcombine.low %v8104, %v8106
    %v8621 = vunpack.c.l.s4 1983009808
    %v8622 = vunpack.c.0.s8 %v8621
    %v8623 = vlaneseq
    %v8624 = vshrl.u32 %v8623, 7
    %v8625 = vsub.s32 %v8622, %v8624
    %v8626 = vrot.slane %v8618, %v8625
    %v8628 = vunpack.c.l.s4 1983009808
    %v8629 = vunpack.c.0.s8 %v8628
    %v8630 = vlaneseq
    %v8631 = vshrl.u32 %v8630, 7
    %v8632 = vsub.s32 %v8629, %v8631
    %v8633 = vrot.slane %v8619, %v8632
    %v8634 = vcombine.low %v8626, %v8633
    %v8635 = vcombine.low %v8186, %v8188
    %v8636 = vcombine.low %v8268, %v8270
    %v8638 = vunpack.c.l.s4 1983009808
    %v8639 = vunpack.c.0.s8 %v8638
    %v8640 = vlaneseq
    %v8641 = vshrl.u32 %v8640, 7
    %v8642 = vsub.s32 %v8639, %v8641
    %v8643 = vrot.slane %v8635, %v8642
    %v8645 = vunpack.c.l.s4 1983009808
    %v8646 = vunpack.c.0.s8 %v8645
    %v8647 = vlaneseq
    %v8648 = vshrl.u32 %v8647, 7
    %v8649 = vsub.s32 %v8646, %v8648
    %v8650 = vrot.slane %v8636, %v8649
    %v8651 = vcombine.low %v8643, %v8650
    %v8652 = vcombine.low %v8350, %v8352
    %v8653 = vcombine.low %v8432, %v8434
    %v8655 = vunpack.c.l.s4 1983009808
    %v8656 = vunpack.c.0.s8 %v8655
    %v8657 = vlaneseq
    %v8658 = vshrl.u32 %v8657, 7
    %v8659 = vsub.s32 %v8656, %v8658
    %v8660 = vrot.slane %v8652, %v8659
    %v8662 = vunpack.c.l.s4 1983009808
    %v8663 = vunpack.c.0.s8 %v8662
    %v8664 = vlaneseq
    %v8665 = vshrl.u32 %v8664, 7
    %v8666 = vsub.s32 %v8663, %v8665
    %v8667 = vrot.slane %v8653, %v8666
    %v8668 = vcombine.low %v8660, %v8667
    %v8669 = vcombine.low %v8514, %v8516
    %v8670 = vcombine.low %v8596, %v8598
    %v8672 = vunpack.c.l.s4 1983009808
    %v8673 = vunpack.c.0.s8 %v8672
    %v8674 = vlaneseq
    %v8675 = vshrl.u32 %v8674, 7
    %v8676 = vsub.s32 %v8673, %v8675
    %v8677 = vrot.slane %v8669, %v8676
    %v8679 = vunpack.c.l.s4 1983009808
    %v8680 = vunpack.c.0.s8 %v8679
    %v8681 = vlaneseq
    %v8682 = vshrl.u32 %v8681, 7
    %v8683 = vsub.s32 %v8680, %v8682
    %v8684 = vrot.slane %v8670, %v8683
    %v8685 = vcombine.low %v8677, %v8684
    %v8690 = vadd.f32 %v7916, %v8634
    %v8691 = vadd.f32 %v7917, %v8651
    %v8692 = vadd.f32 %v7918, %v8668
    %v8693 = vadd.f32 %v7919, %v8685
    %v8694 = vxor.u32 %v8690, 2147483648
    %v8695 = vmul.f32 %v8694, 1.442695
    %v8696 = vpow.pop %v8695
    %v8697 = vadd.f32 %v8696, 1.0
    %v8698 = vrcp.pop %v8697
    %v8699 = vmul.f32 1.0, %v8698
    %v8700 = vxor.u32 %v8691, 2147483648
    %v8701 = vmul.f32 %v8700, 1.442695
    %v8702 = vpow.pop %v8701
    %v8703 = vadd.f32 %v8702, 1.0
    %v8704 = vrcp.pop %v8703
    %v8705 = vmul.f32 1.0, %v8704
    %v8706 = vtanh.pop %v8692
    %v8707 = vxor.u32 %v8693, 2147483648
    %v8708 = vmul.f32 %v8707, 1.442695
    %v8709 = vpow.pop %v8708
    %v8710 = vadd.f32 %v8709, 1.0
    %v8711 = vrcp.pop %v8710
    %v8712 = vmul.f32 1.0, %v8711
    %v8713 = vmul.f32 %v8705, %v7912
    %v8714 = vmul.f32 %v8699, %v8706
    %v8715 = vadd.f32 %v8713, %v8714
    %v8716 = vtanh.pop %v8715
    %v8717 = vmul.f32 %v8712, %v8716
    %s8718 = scalar_lea.vmem %s0, 224
    %v8719 = vld [vmem:[%s8718] sm:$0xff]
    %v8720 = vld [vmem:[%s8718 + $0x8] sm:$0xff]
    %v8721 = vld [vmem:[%s8718 + $0x10] sm:$0xff]
    %v8722 = vld [vmem:[%s8718 + $0x18] sm:$0xff]
    %v8724 = vcombine.high %v8717, %v8717
    %v8726 = vunpack.c.l.s4 1983009808
    %v8727 = vunpack.c.0.s8 %v8726
    %v8728 = vlaneseq
    %v8729 = vshrl.u32 %v8728, 7
    %v8730 = vsub.s32 %v8727, %v8729
    %v8731 = vrot.slane %v8717, %v8730
    %v8733 = vunpack.c.l.s4 1983009808
    %v8734 = vunpack.c.0.s8 %v8733
    %v8735 = vlaneseq
    %v8736 = vshrl.u32 %v8735, 7
    %v8737 = vsub.s32 %v8734, %v8736
    %v8738 = vrot.slane %v8724, %v8737
    %v8739 = vcombine.high %v8731, %v8731
    %v8740 = vcombine.high %v8738, %v8738
    %v8745 = vpack.c.bf16 %v8731, %v8731
    %v8746 = vpack.c.bf16 %v8739, %v8739
    %v8747 = vpack.c.bf16 %v8738, %v8738
    %v8748 = vpack.c.bf16 %v8740, %v8740
    %8749 = vmatprep.subr.bf16.mxu0 %v2217
    %8750 = vmatpush1.bf16.msra.mxu0 %v2216
    %8751 = vmatprep.subr.bf16.mxu0 %v2201
    %8752 = vmatpush1.bf16.msra.mxu0 %v2200
    %8753 = vmatprep.subr.bf16.mxu0 %v2185
    %8754 = vmatpush1.bf16.msra.mxu0 %v2184
    %8755 = vmatprep.subr.bf16.mxu0 %v2169
    %8756 = vmatpush1.bf16.msra.mxu0 %v2168
    %8757 = vmatprep.subr.bf16.mxu0 %v2153
    %8758 = vmatpush1.bf16.msra.mxu0 %v2152
    %8759 = vmatprep.subr.bf16.mxu0 %v2137
    %8760 = vmatpush1.bf16.msra.mxu0 %v2136
    %8761 = vmatprep.subr.bf16.mxu0 %v2121
    %8762 = vmatpush1.bf16.msra.mxu0 %v2120
    %8763 = vmatprep.subr.bf16.mxu0 %v2105
    %8764 = vmatpush1.bf16.msra.mxu0 %v2104
    %8765 = vmatprep.subr.bf16.mxu0 %v2345
    %8766 = vmatpush2.bf16.msra.mxu0 %v2344
    %8767 = vmatprep.subr.bf16.mxu0 %v2329
    %8768 = vmatpush2.bf16.msra.mxu0 %v2328
    %8769 = vmatprep.subr.bf16.mxu0 %v2313
    %8770 = vmatpush2.bf16.msra.mxu0 %v2312
    %8771 = vmatprep.subr.bf16.mxu0 %v2297
    %8772 = vmatpush2.bf16.msra.mxu0 %v2296
    %8773 = vmatprep.subr.bf16.mxu0 %v2281
    %8774 = vmatpush2.bf16.msra.mxu0 %v2280
    %8775 = vmatprep.subr.bf16.mxu0 %v2265
    %8776 = vmatpush2.bf16.msra.mxu0 %v2264
    %8777 = vmatprep.subr.bf16.mxu0 %v2249
    %8778 = vmatpush2.bf16.msra.mxu0 %v2248
    %8779 = vmatprep.subr.bf16.mxu0 %v2233
    %8780 = vmatpush2.bf16.msra.mxu0 %v2232
    %8781 = vmatprep.mubr.bf16.mxu0 %v8746
    %8782 = vmatmul.mubr.bf16.gmra.mxu0 %v8745
    %v8783 = vpop.f32.mrf.mxu0
    %v8784 = vadd.f32 0.0, %v8783
    %v8785 = vpop.f32.mrf.mxu0
    %v8786 = vadd.f32 0.0, %v8785
    %v8787 = vpop.f32.mrf.mxu0
    %v8788 = vpop.f32.mrf.mxu0
    %8789 = vdwg.mxu0
    %8790 = vmatprep.subr.bf16.mxu0 %v2473
    %8791 = vmatpush1.bf16.msra.mxu0 %v2472
    %8792 = vmatprep.subr.bf16.mxu0 %v2457
    %8793 = vmatpush1.bf16.msra.mxu0 %v2456
    %8794 = vmatprep.subr.bf16.mxu0 %v2441
    %8795 = vmatpush1.bf16.msra.mxu0 %v2440
    %8796 = vmatprep.subr.bf16.mxu0 %v2425
    %8797 = vmatpush1.bf16.msra.mxu0 %v2424
    %8798 = vmatprep.subr.bf16.mxu0 %v2409
    %8799 = vmatpush1.bf16.msra.mxu0 %v2408
    %8800 = vmatprep.subr.bf16.mxu0 %v2393
    %8801 = vmatpush1.bf16.msra.mxu0 %v2392
    %8802 = vmatprep.subr.bf16.mxu0 %v2377
    %8803 = vmatpush1.bf16.msra.mxu0 %v2376
    %8804 = vmatprep.subr.bf16.mxu0 %v2361
    %8805 = vmatpush1.bf16.msra.mxu0 %v2360
    %8806 = vmatprep.subr.bf16.mxu0 %v2601
    %8807 = vmatpush2.bf16.msra.mxu0 %v2600
    %8808 = vmatprep.subr.bf16.mxu0 %v2585
    %8809 = vmatpush2.bf16.msra.mxu0 %v2584
    %8810 = vmatprep.subr.bf16.mxu0 %v2569
    %8811 = vmatpush2.bf16.msra.mxu0 %v2568
    %8812 = vmatprep.subr.bf16.mxu0 %v2553
    %8813 = vmatpush2.bf16.msra.mxu0 %v2552
    %8814 = vmatprep.subr.bf16.mxu0 %v2537
    %8815 = vmatpush2.bf16.msra.mxu0 %v2536
    %8816 = vmatprep.subr.bf16.mxu0 %v2521
    %8817 = vmatpush2.bf16.msra.mxu0 %v2520
    %8818 = vmatprep.subr.bf16.mxu0 %v2505
    %8819 = vmatpush2.bf16.msra.mxu0 %v2504
    %8820 = vmatprep.subr.bf16.mxu0 %v2489
    %8821 = vmatpush2.bf16.msra.mxu0 %v2488
    %8822 = vmatprep.mubr.bf16.mxu0 %v8748
    %8823 = vmatmul.mubr.bf16.gmra.mxu0 %v8747
    %v8824 = vpop.f32.mrf.mxu0
    %v8825 = vadd.f32 %v8784, %v8824
    %v8826 = vpop.f32.mrf.mxu0
    %v8827 = vadd.f32 %v8786, %v8826
    %v8828 = vpop.f32.mrf.mxu0
    %v8829 = vpop.f32.mrf.mxu0
    %8830 = vdwg.mxu0
    %8831 = vmatprep.subr.bf16.mxu0 %v2219
    %8832 = vmatpush1.bf16.msra.mxu0 %v2218
    %8833 = vmatprep.subr.bf16.mxu0 %v2203
    %8834 = vmatpush1.bf16.msra.mxu0 %v2202
    %8835 = vmatprep.subr.bf16.mxu0 %v2187
    %8836 = vmatpush1.bf16.msra.mxu0 %v2186
    %8837 = vmatprep.subr.bf16.mxu0 %v2171
    %8838 = vmatpush1.bf16.msra.mxu0 %v2170
    %8839 = vmatprep.subr.bf16.mxu0 %v2155
    %8840 = vmatpush1.bf16.msra.mxu0 %v2154
    %8841 = vmatprep.subr.bf16.mxu0 %v2139
    %8842 = vmatpush1.bf16.msra.mxu0 %v2138
    %8843 = vmatprep.subr.bf16.mxu0 %v2123
    %8844 = vmatpush1.bf16.msra.mxu0 %v2122
    %8845 = vmatprep.subr.bf16.mxu0 %v2107
    %8846 = vmatpush1.bf16.msra.mxu0 %v2106
    %8847 = vmatprep.subr.bf16.mxu0 %v2347
    %8848 = vmatpush2.bf16.msra.mxu0 %v2346
    %8849 = vmatprep.subr.bf16.mxu0 %v2331
    %8850 = vmatpush2.bf16.msra.mxu0 %v2330
    %8851 = vmatprep.subr.bf16.mxu0 %v2315
    %8852 = vmatpush2.bf16.msra.mxu0 %v2314
    %8853 = vmatprep.subr.bf16.mxu0 %v2299
    %8854 = vmatpush2.bf16.msra.mxu0 %v2298
    %8855 = vmatprep.subr.bf16.mxu0 %v2283
    %8856 = vmatpush2.bf16.msra.mxu0 %v2282
    %8857 = vmatprep.subr.bf16.mxu0 %v2267
    %8858 = vmatpush2.bf16.msra.mxu0 %v2266
    %8859 = vmatprep.subr.bf16.mxu0 %v2251
    %8860 = vmatpush2.bf16.msra.mxu0 %v2250
    %8861 = vmatprep.subr.bf16.mxu0 %v2235
    %8862 = vmatpush2.bf16.msra.mxu0 %v2234
    %8863 = vmatprep.mubr.bf16.mxu0 %v8746
    %8864 = vmatmul.mubr.bf16.gmra.mxu0 %v8745
    %v8865 = vpop.f32.mrf.mxu0
    %v8866 = vadd.f32 0.0, %v8865
    %v8867 = vpop.f32.mrf.mxu0
    %v8868 = vadd.f32 0.0, %v8867
    %v8869 = vpop.f32.mrf.mxu0
    %v8870 = vpop.f32.mrf.mxu0
    %8871 = vdwg.mxu0
    %8872 = vmatprep.subr.bf16.mxu0 %v2475
    %8873 = vmatpush1.bf16.msra.mxu0 %v2474
    %8874 = vmatprep.subr.bf16.mxu0 %v2459
    %8875 = vmatpush1.bf16.msra.mxu0 %v2458
    %8876 = vmatprep.subr.bf16.mxu0 %v2443
    %8877 = vmatpush1.bf16.msra.mxu0 %v2442
    %8878 = vmatprep.subr.bf16.mxu0 %v2427
    %8879 = vmatpush1.bf16.msra.mxu0 %v2426
    %8880 = vmatprep.subr.bf16.mxu0 %v2411
    %8881 = vmatpush1.bf16.msra.mxu0 %v2410
    %8882 = vmatprep.subr.bf16.mxu0 %v2395
    %8883 = vmatpush1.bf16.msra.mxu0 %v2394
    %8884 = vmatprep.subr.bf16.mxu0 %v2379
    %8885 = vmatpush1.bf16.msra.mxu0 %v2378
    %8886 = vmatprep.subr.bf16.mxu0 %v2363
    %8887 = vmatpush1.bf16.msra.mxu0 %v2362
    %8888 = vmatprep.subr.bf16.mxu0 %v2603
    %8889 = vmatpush2.bf16.msra.mxu0 %v2602
    %8890 = vmatprep.subr.bf16.mxu0 %v2587
    %8891 = vmatpush2.bf16.msra.mxu0 %v2586
    %8892 = vmatprep.subr.bf16.mxu0 %v2571
    %8893 = vmatpush2.bf16.msra.mxu0 %v2570
    %8894 = vmatprep.subr.bf16.mxu0 %v2555
    %8895 = vmatpush2.bf16.msra.mxu0 %v2554
    %8896 = vmatprep.subr.bf16.mxu0 %v2539
    %8897 = vmatpush2.bf16.msra.mxu0 %v2538
    %8898 = vmatprep.subr.bf16.mxu0 %v2523
    %8899 = vmatpush2.bf16.msra.mxu0 %v2522
    %8900 = vmatprep.subr.bf16.mxu0 %v2507
    %8901 = vmatpush2.bf16.msra.mxu0 %v2506
    %8902 = vmatprep.subr.bf16.mxu0 %v2491
    %8903 = vmatpush2.bf16.msra.mxu0 %v2490
    %8904 = vmatprep.mubr.bf16.mxu0 %v8748
    %8905 = vmatmul.mubr.bf16.gmra.mxu0 %v8747
    %v8906 = vpop.f32.mrf.mxu0
    %v8907 = vadd.f32 %v8866, %v8906
    %v8908 = vpop.f32.mrf.mxu0
    %v8909 = vadd.f32 %v8868, %v8908
    %v8910 = vpop.f32.mrf.mxu0
    %v8911 = vpop.f32.mrf.mxu0
    %8912 = vdwg.mxu0
    %8913 = vmatprep.subr.bf16.mxu0 %v2221
    %8914 = vmatpush1.bf16.msra.mxu0 %v2220
    %8915 = vmatprep.subr.bf16.mxu0 %v2205
    %8916 = vmatpush1.bf16.msra.mxu0 %v2204
    %8917 = vmatprep.subr.bf16.mxu0 %v2189
    %8918 = vmatpush1.bf16.msra.mxu0 %v2188
    %8919 = vmatprep.subr.bf16.mxu0 %v2173
    %8920 = vmatpush1.bf16.msra.mxu0 %v2172
    %8921 = vmatprep.subr.bf16.mxu0 %v2157
    %8922 = vmatpush1.bf16.msra.mxu0 %v2156
    %8923 = vmatprep.subr.bf16.mxu0 %v2141
    %8924 = vmatpush1.bf16.msra.mxu0 %v2140
    %8925 = vmatprep.subr.bf16.mxu0 %v2125
    %8926 = vmatpush1.bf16.msra.mxu0 %v2124
    %8927 = vmatprep.subr.bf16.mxu0 %v2109
    %8928 = vmatpush1.bf16.msra.mxu0 %v2108
    %8929 = vmatprep.subr.bf16.mxu0 %v2349
    %8930 = vmatpush2.bf16.msra.mxu0 %v2348
    %8931 = vmatprep.subr.bf16.mxu0 %v2333
    %8932 = vmatpush2.bf16.msra.mxu0 %v2332
    %8933 = vmatprep.subr.bf16.mxu0 %v2317
    %8934 = vmatpush2.bf16.msra.mxu0 %v2316
    %8935 = vmatprep.subr.bf16.mxu0 %v2301
    %8936 = vmatpush2.bf16.msra.mxu0 %v2300
    %8937 = vmatprep.subr.bf16.mxu0 %v2285
    %8938 = vmatpush2.bf16.msra.mxu0 %v2284
    %8939 = vmatprep.subr.bf16.mxu0 %v2269
    %8940 = vmatpush2.bf16.msra.mxu0 %v2268
    %8941 = vmatprep.subr.bf16.mxu0 %v2253
    %8942 = vmatpush2.bf16.msra.mxu0 %v2252
    %8943 = vmatprep.subr.bf16.mxu0 %v2237
    %8944 = vmatpush2.bf16.msra.mxu0 %v2236
    %8945 = vmatprep.mubr.bf16.mxu0 %v8746
    %8946 = vmatmul.mubr.bf16.gmra.mxu0 %v8745
    %v8947 = vpop.f32.mrf.mxu0
    %v8948 = vadd.f32 0.0, %v8947
    %v8949 = vpop.f32.mrf.mxu0
    %v8950 = vadd.f32 0.0, %v8949
    %v8951 = vpop.f32.mrf.mxu0
    %v8952 = vpop.f32.mrf.mxu0
    %8953 = vdwg.mxu0
    %8954 = vmatprep.subr.bf16.mxu0 %v2477
    %8955 = vmatpush1.bf16.msra.mxu0 %v2476
    %8956 = vmatprep.subr.bf16.mxu0 %v2461
    %8957 = vmatpush1.bf16.msra.mxu0 %v2460
    %8958 = vmatprep.subr.bf16.mxu0 %v2445
    %8959 = vmatpush1.bf16.msra.mxu0 %v2444
    %8960 = vmatprep.subr.bf16.mxu0 %v2429
    %8961 = vmatpush1.bf16.msra.mxu0 %v2428
    %8962 = vmatprep.subr.bf16.mxu0 %v2413
    %8963 = vmatpush1.bf16.msra.mxu0 %v2412
    %8964 = vmatprep.subr.bf16.mxu0 %v2397
    %8965 = vmatpush1.bf16.msra.mxu0 %v2396
    %8966 = vmatprep.subr.bf16.mxu0 %v2381
    %8967 = vmatpush1.bf16.msra.mxu0 %v2380
    %8968 = vmatprep.subr.bf16.mxu0 %v2365
    %8969 = vmatpush1.bf16.msra.mxu0 %v2364
    %8970 = vmatprep.subr.bf16.mxu0 %v2605
    %8971 = vmatpush2.bf16.msra.mxu0 %v2604
    %8972 = vmatprep.subr.bf16.mxu0 %v2589
    %8973 = vmatpush2.bf16.msra.mxu0 %v2588
    %8974 = vmatprep.subr.bf16.mxu0 %v2573
    %8975 = vmatpush2.bf16.msra.mxu0 %v2572
    %8976 = vmatprep.subr.bf16.mxu0 %v2557
    %8977 = vmatpush2.bf16.msra.mxu0 %v2556
    %8978 = vmatprep.subr.bf16.mxu0 %v2541
    %8979 = vmatpush2.bf16.msra.mxu0 %v2540
    %8980 = vmatprep.subr.bf16.mxu0 %v2525
    %8981 = vmatpush2.bf16.msra.mxu0 %v2524
    %8982 = vmatprep.subr.bf16.mxu0 %v2509
    %8983 = vmatpush2.bf16.msra.mxu0 %v2508
    %8984 = vmatprep.subr.bf16.mxu0 %v2493
    %8985 = vmatpush2.bf16.msra.mxu0 %v2492
    %8986 = vmatprep.mubr.bf16.mxu0 %v8748
    %8987 = vmatmul.mubr.bf16.gmra.mxu0 %v8747
    %v8988 = vpop.f32.mrf.mxu0
    %v8989 = vadd.f32 %v8948, %v8988
    %v8990 = vpop.f32.mrf.mxu0
    %v8991 = vadd.f32 %v8950, %v8990
    %v8992 = vpop.f32.mrf.mxu0
    %v8993 = vpop.f32.mrf.mxu0
    %8994 = vdwg.mxu0
    %8995 = vmatprep.subr.bf16.mxu0 %v2223
    %8996 = vmatpush1.bf16.msra.mxu0 %v2222
    %8997 = vmatprep.subr.bf16.mxu0 %v2207
    %8998 = vmatpush1.bf16.msra.mxu0 %v2206
    %8999 = vmatprep.subr.bf16.mxu0 %v2191
    %9000 = vmatpush1.bf16.msra.mxu0 %v2190
    %9001 = vmatprep.subr.bf16.mxu0 %v2175
    %9002 = vmatpush1.bf16.msra.mxu0 %v2174
    %9003 = vmatprep.subr.bf16.mxu0 %v2159
    %9004 = vmatpush1.bf16.msra.mxu0 %v2158
    %9005 = vmatprep.subr.bf16.mxu0 %v2143
    %9006 = vmatpush1.bf16.msra.mxu0 %v2142
    %9007 = vmatprep.subr.bf16.mxu0 %v2127
    %9008 = vmatpush1.bf16.msra.mxu0 %v2126
    %9009 = vmatprep.subr.bf16.mxu0 %v2111
    %9010 = vmatpush1.bf16.msra.mxu0 %v2110
    %9011 = vmatprep.subr.bf16.mxu0 %v2351
    %9012 = vmatpush2.bf16.msra.mxu0 %v2350
    %9013 = vmatprep.subr.bf16.mxu0 %v2335
    %9014 = vmatpush2.bf16.msra.mxu0 %v2334
    %9015 = vmatprep.subr.bf16.mxu0 %v2319
    %9016 = vmatpush2.bf16.msra.mxu0 %v2318
    %9017 = vmatprep.subr.bf16.mxu0 %v2303
    %9018 = vmatpush2.bf16.msra.mxu0 %v2302
    %9019 = vmatprep.subr.bf16.mxu0 %v2287
    %9020 = vmatpush2.bf16.msra.mxu0 %v2286
    %9021 = vmatprep.subr.bf16.mxu0 %v2271
    %9022 = vmatpush2.bf16.msra.mxu0 %v2270
    %9023 = vmatprep.subr.bf16.mxu0 %v2255
    %9024 = vmatpush2.bf16.msra.mxu0 %v2254
    %9025 = vmatprep.subr.bf16.mxu0 %v2239
    %9026 = vmatpush2.bf16.msra.mxu0 %v2238
    %9027 = vmatprep.mubr.bf16.mxu0 %v8746
    %9028 = vmatmul.mubr.bf16.gmra.mxu0 %v8745
    %v9029 = vpop.f32.mrf.mxu0
    %v9030 = vadd.f32 0.0, %v9029
    %v9031 = vpop.f32.mrf.mxu0
    %v9032 = vadd.f32 0.0, %v9031
    %v9033 = vpop.f32.mrf.mxu0
    %v9034 = vpop.f32.mrf.mxu0
    %9035 = vdwg.mxu0
    %9036 = vmatprep.subr.bf16.mxu0 %v2479
    %9037 = vmatpush1.bf16.msra.mxu0 %v2478
    %9038 = vmatprep.subr.bf16.mxu0 %v2463
    %9039 = vmatpush1.bf16.msra.mxu0 %v2462
    %9040 = vmatprep.subr.bf16.mxu0 %v2447
    %9041 = vmatpush1.bf16.msra.mxu0 %v2446
    %9042 = vmatprep.subr.bf16.mxu0 %v2431
    %9043 = vmatpush1.bf16.msra.mxu0 %v2430
    %9044 = vmatprep.subr.bf16.mxu0 %v2415
    %9045 = vmatpush1.bf16.msra.mxu0 %v2414
    %9046 = vmatprep.subr.bf16.mxu0 %v2399
    %9047 = vmatpush1.bf16.msra.mxu0 %v2398
    %9048 = vmatprep.subr.bf16.mxu0 %v2383
    %9049 = vmatpush1.bf16.msra.mxu0 %v2382
    %9050 = vmatprep.subr.bf16.mxu0 %v2367
    %9051 = vmatpush1.bf16.msra.mxu0 %v2366
    %9052 = vmatprep.subr.bf16.mxu0 %v2607
    %9053 = vmatpush2.bf16.msra.mxu0 %v2606
    %9054 = vmatprep.subr.bf16.mxu0 %v2591
    %9055 = vmatpush2.bf16.msra.mxu0 %v2590
    %9056 = vmatprep.subr.bf16.mxu0 %v2575
    %9057 = vmatpush2.bf16.msra.mxu0 %v2574
    %9058 = vmatprep.subr.bf16.mxu0 %v2559
    %9059 = vmatpush2.bf16.msra.mxu0 %v2558
    %9060 = vmatprep.subr.bf16.mxu0 %v2543
    %9061 = vmatpush2.bf16.msra.mxu0 %v2542
    %9062 = vmatprep.subr.bf16.mxu0 %v2527
    %9063 = vmatpush2.bf16.msra.mxu0 %v2526
    %9064 = vmatprep.subr.bf16.mxu0 %v2511
    %9065 = vmatpush2.bf16.msra.mxu0 %v2510
    %9066 = vmatprep.subr.bf16.mxu0 %v2495
    %9067 = vmatpush2.bf16.msra.mxu0 %v2494
    %9068 = vmatprep.mubr.bf16.mxu0 %v8748
    %9069 = vmatmul.mubr.bf16.gmra.mxu0 %v8747
    %v9070 = vpop.f32.mrf.mxu0
    %v9071 = vadd.f32 %v9030, %v9070
    %v9072 = vpop.f32.mrf.mxu0
    %v9073 = vadd.f32 %v9032, %v9072
    %v9074 = vpop.f32.mrf.mxu0
    %v9075 = vpop.f32.mrf.mxu0
    %9076 = vdwg.mxu0
    %9077 = vmatprep.subr.bf16.mxu0 %v2225
    %9078 = vmatpush1.bf16.msra.mxu0 %v2224
    %9079 = vmatprep.subr.bf16.mxu0 %v2209
    %9080 = vmatpush1.bf16.msra.mxu0 %v2208
    %9081 = vmatprep.subr.bf16.mxu0 %v2193
    %9082 = vmatpush1.bf16.msra.mxu0 %v2192
    %9083 = vmatprep.subr.bf16.mxu0 %v2177
    %9084 = vmatpush1.bf16.msra.mxu0 %v2176
    %9085 = vmatprep.subr.bf16.mxu0 %v2161
    %9086 = vmatpush1.bf16.msra.mxu0 %v2160
    %9087 = vmatprep.subr.bf16.mxu0 %v2145
    %9088 = vmatpush1.bf16.msra.mxu0 %v2144
    %9089 = vmatprep.subr.bf16.mxu0 %v2129
    %9090 = vmatpush1.bf16.msra.mxu0 %v2128
    %9091 = vmatprep.subr.bf16.mxu0 %v2113
    %9092 = vmatpush1.bf16.msra.mxu0 %v2112
    %9093 = vmatprep.subr.bf16.mxu0 %v2353
    %9094 = vmatpush2.bf16.msra.mxu0 %v2352
    %9095 = vmatprep.subr.bf16.mxu0 %v2337
    %9096 = vmatpush2.bf16.msra.mxu0 %v2336
    %9097 = vmatprep.subr.bf16.mxu0 %v2321
    %9098 = vmatpush2.bf16.msra.mxu0 %v2320
    %9099 = vmatprep.subr.bf16.mxu0 %v2305
    %9100 = vmatpush2.bf16.msra.mxu0 %v2304
    %9101 = vmatprep.subr.bf16.mxu0 %v2289
    %9102 = vmatpush2.bf16.msra.mxu0 %v2288
    %9103 = vmatprep.subr.bf16.mxu0 %v2273
    %9104 = vmatpush2.bf16.msra.mxu0 %v2272
    %9105 = vmatprep.subr.bf16.mxu0 %v2257
    %9106 = vmatpush2.bf16.msra.mxu0 %v2256
    %9107 = vmatprep.subr.bf16.mxu0 %v2241
    %9108 = vmatpush2.bf16.msra.mxu0 %v2240
    %9109 = vmatprep.mubr.bf16.mxu0 %v8746
    %9110 = vmatmul.mubr.bf16.gmra.mxu0 %v8745
    %v9111 = vpop.f32.mrf.mxu0
    %v9112 = vadd.f32 0.0, %v9111
    %v9113 = vpop.f32.mrf.mxu0
    %v9114 = vadd.f32 0.0, %v9113
    %v9115 = vpop.f32.mrf.mxu0
    %v9116 = vpop.f32.mrf.mxu0
    %9117 = vdwg.mxu0
    %9118 = vmatprep.subr.bf16.mxu0 %v2481
    %9119 = vmatpush1.bf16.msra.mxu0 %v2480
    %9120 = vmatprep.subr.bf16.mxu0 %v2465
    %9121 = vmatpush1.bf16.msra.mxu0 %v2464
    %9122 = vmatprep.subr.bf16.mxu0 %v2449
    %9123 = vmatpush1.bf16.msra.mxu0 %v2448
    %9124 = vmatprep.subr.bf16.mxu0 %v2433
    %9125 = vmatpush1.bf16.msra.mxu0 %v2432
    %9126 = vmatprep.subr.bf16.mxu0 %v2417
    %9127 = vmatpush1.bf16.msra.mxu0 %v2416
    %9128 = vmatprep.subr.bf16.mxu0 %v2401
    %9129 = vmatpush1.bf16.msra.mxu0 %v2400
    %9130 = vmatprep.subr.bf16.mxu0 %v2385
    %9131 = vmatpush1.bf16.msra.mxu0 %v2384
    %9132 = vmatprep.subr.bf16.mxu0 %v2369
    %9133 = vmatpush1.bf16.msra.mxu0 %v2368
    %9134 = vmatprep.subr.bf16.mxu0 %v2609
    %9135 = vmatpush2.bf16.msra.mxu0 %v2608
    %9136 = vmatprep.subr.bf16.mxu0 %v2593
    %9137 = vmatpush2.bf16.msra.mxu0 %v2592
    %9138 = vmatprep.subr.bf16.mxu0 %v2577
    %9139 = vmatpush2.bf16.msra.mxu0 %v2576
    %9140 = vmatprep.subr.bf16.mxu0 %v2561
    %9141 = vmatpush2.bf16.msra.mxu0 %v2560
    %9142 = vmatprep.subr.bf16.mxu0 %v2545
    %9143 = vmatpush2.bf16.msra.mxu0 %v2544
    %9144 = vmatprep.subr.bf16.mxu0 %v2529
    %9145 = vmatpush2.bf16.msra.mxu0 %v2528
    %9146 = vmatprep.subr.bf16.mxu0 %v2513
    %9147 = vmatpush2.bf16.msra.mxu0 %v2512
    %9148 = vmatprep.subr.bf16.mxu0 %v2497
    %9149 = vmatpush2.bf16.msra.mxu0 %v2496
    %9150 = vmatprep.mubr.bf16.mxu0 %v8748
    %9151 = vmatmul.mubr.bf16.gmra.mxu0 %v8747
    %v9152 = vpop.f32.mrf.mxu0
    %v9153 = vadd.f32 %v9112, %v9152
    %v9154 = vpop.f32.mrf.mxu0
    %v9155 = vadd.f32 %v9114, %v9154
    %v9156 = vpop.f32.mrf.mxu0
    %v9157 = vpop.f32.mrf.mxu0
    %9158 = vdwg.mxu0
    %9159 = vmatprep.subr.bf16.mxu0 %v2227
    %9160 = vmatpush1.bf16.msra.mxu0 %v2226
    %9161 = vmatprep.subr.bf16.mxu0 %v2211
    %9162 = vmatpush1.bf16.msra.mxu0 %v2210
    %9163 = vmatprep.subr.bf16.mxu0 %v2195
    %9164 = vmatpush1.bf16.msra.mxu0 %v2194
    %9165 = vmatprep.subr.bf16.mxu0 %v2179
    %9166 = vmatpush1.bf16.msra.mxu0 %v2178
    %9167 = vmatprep.subr.bf16.mxu0 %v2163
    %9168 = vmatpush1.bf16.msra.mxu0 %v2162
    %9169 = vmatprep.subr.bf16.mxu0 %v2147
    %9170 = vmatpush1.bf16.msra.mxu0 %v2146
    %9171 = vmatprep.subr.bf16.mxu0 %v2131
    %9172 = vmatpush1.bf16.msra.mxu0 %v2130
    %9173 = vmatprep.subr.bf16.mxu0 %v2115
    %9174 = vmatpush1.bf16.msra.mxu0 %v2114
    %9175 = vmatprep.subr.bf16.mxu0 %v2355
    %9176 = vmatpush2.bf16.msra.mxu0 %v2354
    %9177 = vmatprep.subr.bf16.mxu0 %v2339
    %9178 = vmatpush2.bf16.msra.mxu0 %v2338
    %9179 = vmatprep.subr.bf16.mxu0 %v2323
    %9180 = vmatpush2.bf16.msra.mxu0 %v2322
    %9181 = vmatprep.subr.bf16.mxu0 %v2307
    %9182 = vmatpush2.bf16.msra.mxu0 %v2306
    %9183 = vmatprep.subr.bf16.mxu0 %v2291
    %9184 = vmatpush2.bf16.msra.mxu0 %v2290
    %9185 = vmatprep.subr.bf16.mxu0 %v2275
    %9186 = vmatpush2.bf16.msra.mxu0 %v2274
    %9187 = vmatprep.subr.bf16.mxu0 %v2259
    %9188 = vmatpush2.bf16.msra.mxu0 %v2258
    %9189 = vmatprep.subr.bf16.mxu0 %v2243
    %9190 = vmatpush2.bf16.msra.mxu0 %v2242
    %9191 = vmatprep.mubr.bf16.mxu0 %v8746
    %9192 = vmatmul.mubr.bf16.gmra.mxu0 %v8745
    %v9193 = vpop.f32.mrf.mxu0
    %v9194 = vadd.f32 0.0, %v9193
    %v9195 = vpop.f32.mrf.mxu0
    %v9196 = vadd.f32 0.0, %v9195
    %v9197 = vpop.f32.mrf.mxu0
    %v9198 = vpop.f32.mrf.mxu0
    %9199 = vdwg.mxu0
    %9200 = vmatprep.subr.bf16.mxu0 %v2483
    %9201 = vmatpush1.bf16.msra.mxu0 %v2482
    %9202 = vmatprep.subr.bf16.mxu0 %v2467
    %9203 = vmatpush1.bf16.msra.mxu0 %v2466
    %9204 = vmatprep.subr.bf16.mxu0 %v2451
    %9205 = vmatpush1.bf16.msra.mxu0 %v2450
    %9206 = vmatprep.subr.bf16.mxu0 %v2435
    %9207 = vmatpush1.bf16.msra.mxu0 %v2434
    %9208 = vmatprep.subr.bf16.mxu0 %v2419
    %9209 = vmatpush1.bf16.msra.mxu0 %v2418
    %9210 = vmatprep.subr.bf16.mxu0 %v2403
    %9211 = vmatpush1.bf16.msra.mxu0 %v2402
    %9212 = vmatprep.subr.bf16.mxu0 %v2387
    %9213 = vmatpush1.bf16.msra.mxu0 %v2386
    %9214 = vmatprep.subr.bf16.mxu0 %v2371
    %9215 = vmatpush1.bf16.msra.mxu0 %v2370
    %9216 = vmatprep.subr.bf16.mxu0 %v2611
    %9217 = vmatpush2.bf16.msra.mxu0 %v2610
    %9218 = vmatprep.subr.bf16.mxu0 %v2595
    %9219 = vmatpush2.bf16.msra.mxu0 %v2594
    %9220 = vmatprep.subr.bf16.mxu0 %v2579
    %9221 = vmatpush2.bf16.msra.mxu0 %v2578
    %9222 = vmatprep.subr.bf16.mxu0 %v2563
    %9223 = vmatpush2.bf16.msra.mxu0 %v2562
    %9224 = vmatprep.subr.bf16.mxu0 %v2547
    %9225 = vmatpush2.bf16.msra.mxu0 %v2546
    %9226 = vmatprep.subr.bf16.mxu0 %v2531
    %9227 = vmatpush2.bf16.msra.mxu0 %v2530
    %9228 = vmatprep.subr.bf16.mxu0 %v2515
    %9229 = vmatpush2.bf16.msra.mxu0 %v2514
    %9230 = vmatprep.subr.bf16.mxu0 %v2499
    %9231 = vmatpush2.bf16.msra.mxu0 %v2498
    %9232 = vmatprep.mubr.bf16.mxu0 %v8748
    %9233 = vmatmul.mubr.bf16.gmra.mxu0 %v8747
    %v9234 = vpop.f32.mrf.mxu0
    %v9235 = vadd.f32 %v9194, %v9234
    %v9236 = vpop.f32.mrf.mxu0
    %v9237 = vadd.f32 %v9196, %v9236
    %v9238 = vpop.f32.mrf.mxu0
    %v9239 = vpop.f32.mrf.mxu0
    %9240 = vdwg.mxu0
    %9241 = vmatprep.subr.bf16.mxu0 %v2229
    %9242 = vmatpush1.bf16.msra.mxu0 %v2228
    %9243 = vmatprep.subr.bf16.mxu0 %v2213
    %9244 = vmatpush1.bf16.msra.mxu0 %v2212
    %9245 = vmatprep.subr.bf16.mxu0 %v2197
    %9246 = vmatpush1.bf16.msra.mxu0 %v2196
    %9247 = vmatprep.subr.bf16.mxu0 %v2181
    %9248 = vmatpush1.bf16.msra.mxu0 %v2180
    %9249 = vmatprep.subr.bf16.mxu0 %v2165
    %9250 = vmatpush1.bf16.msra.mxu0 %v2164
    %9251 = vmatprep.subr.bf16.mxu0 %v2149
    %9252 = vmatpush1.bf16.msra.mxu0 %v2148
    %9253 = vmatprep.subr.bf16.mxu0 %v2133
    %9254 = vmatpush1.bf16.msra.mxu0 %v2132
    %9255 = vmatprep.subr.bf16.mxu0 %v2117
    %9256 = vmatpush1.bf16.msra.mxu0 %v2116
    %9257 = vmatprep.subr.bf16.mxu0 %v2357
    %9258 = vmatpush2.bf16.msra.mxu0 %v2356
    %9259 = vmatprep.subr.bf16.mxu0 %v2341
    %9260 = vmatpush2.bf16.msra.mxu0 %v2340
    %9261 = vmatprep.subr.bf16.mxu0 %v2325
    %9262 = vmatpush2.bf16.msra.mxu0 %v2324
    %9263 = vmatprep.subr.bf16.mxu0 %v2309
    %9264 = vmatpush2.bf16.msra.mxu0 %v2308
    %9265 = vmatprep.subr.bf16.mxu0 %v2293
    %9266 = vmatpush2.bf16.msra.mxu0 %v2292
    %9267 = vmatprep.subr.bf16.mxu0 %v2277
    %9268 = vmatpush2.bf16.msra.mxu0 %v2276
    %9269 = vmatprep.subr.bf16.mxu0 %v2261
    %9270 = vmatpush2.bf16.msra.mxu0 %v2260
    %9271 = vmatprep.subr.bf16.mxu0 %v2245
    %9272 = vmatpush2.bf16.msra.mxu0 %v2244
    %9273 = vmatprep.mubr.bf16.mxu0 %v8746
    %9274 = vmatmul.mubr.bf16.gmra.mxu0 %v8745
    %v9275 = vpop.f32.mrf.mxu0
    %v9276 = vadd.f32 0.0, %v9275
    %v9277 = vpop.f32.mrf.mxu0
    %v9278 = vadd.f32 0.0, %v9277
    %v9279 = vpop.f32.mrf.mxu0
    %v9280 = vpop.f32.mrf.mxu0
    %9281 = vdwg.mxu0
    %9282 = vmatprep.subr.bf16.mxu0 %v2485
    %9283 = vmatpush1.bf16.msra.mxu0 %v2484
    %9284 = vmatprep.subr.bf16.mxu0 %v2469
    %9285 = vmatpush1.bf16.msra.mxu0 %v2468
    %9286 = vmatprep.subr.bf16.mxu0 %v2453
    %9287 = vmatpush1.bf16.msra.mxu0 %v2452
    %9288 = vmatprep.subr.bf16.mxu0 %v2437
    %9289 = vmatpush1.bf16.msra.mxu0 %v2436
    %9290 = vmatprep.subr.bf16.mxu0 %v2421
    %9291 = vmatpush1.bf16.msra.mxu0 %v2420
    %9292 = vmatprep.subr.bf16.mxu0 %v2405
    %9293 = vmatpush1.bf16.msra.mxu0 %v2404
    %9294 = vmatprep.subr.bf16.mxu0 %v2389
    %9295 = vmatpush1.bf16.msra.mxu0 %v2388
    %9296 = vmatprep.subr.bf16.mxu0 %v2373
    %9297 = vmatpush1.bf16.msra.mxu0 %v2372
    %9298 = vmatprep.subr.bf16.mxu0 %v2613
    %9299 = vmatpush2.bf16.msra.mxu0 %v2612
    %9300 = vmatprep.subr.bf16.mxu0 %v2597
    %9301 = vmatpush2.bf16.msra.mxu0 %v2596
    %9302 = vmatprep.subr.bf16.mxu0 %v2581
    %9303 = vmatpush2.bf16.msra.mxu0 %v2580
    %9304 = vmatprep.subr.bf16.mxu0 %v2565
    %9305 = vmatpush2.bf16.msra.mxu0 %v2564
    %9306 = vmatprep.subr.bf16.mxu0 %v2549
    %9307 = vmatpush2.bf16.msra.mxu0 %v2548
    %9308 = vmatprep.subr.bf16.mxu0 %v2533
    %9309 = vmatpush2.bf16.msra.mxu0 %v2532
    %9310 = vmatprep.subr.bf16.mxu0 %v2517
    %9311 = vmatpush2.bf16.msra.mxu0 %v2516
    %9312 = vmatprep.subr.bf16.mxu0 %v2501
    %9313 = vmatpush2.bf16.msra.mxu0 %v2500
    %9314 = vmatprep.mubr.bf16.mxu0 %v8748
    %9315 = vmatmul.mubr.bf16.gmra.mxu0 %v8747
    %v9316 = vpop.f32.mrf.mxu0
    %v9317 = vadd.f32 %v9276, %v9316
    %v9318 = vpop.f32.mrf.mxu0
    %v9319 = vadd.f32 %v9278, %v9318
    %v9320 = vpop.f32.mrf.mxu0
    %v9321 = vpop.f32.mrf.mxu0
    %9322 = vdwg.mxu0
    %9323 = vmatprep.subr.bf16.mxu0 %v2231
    %9324 = vmatpush1.bf16.msra.mxu0 %v2230
    %9325 = vmatprep.subr.bf16.mxu0 %v2215
    %9326 = vmatpush1.bf16.msra.mxu0 %v2214
    %9327 = vmatprep.subr.bf16.mxu0 %v2199
    %9328 = vmatpush1.bf16.msra.mxu0 %v2198
    %9329 = vmatprep.subr.bf16.mxu0 %v2183
    %9330 = vmatpush1.bf16.msra.mxu0 %v2182
    %9331 = vmatprep.subr.bf16.mxu0 %v2167
    %9332 = vmatpush1.bf16.msra.mxu0 %v2166
    %9333 = vmatprep.subr.bf16.mxu0 %v2151
    %9334 = vmatpush1.bf16.msra.mxu0 %v2150
    %9335 = vmatprep.subr.bf16.mxu0 %v2135
    %9336 = vmatpush1.bf16.msra.mxu0 %v2134
    %9337 = vmatprep.subr.bf16.mxu0 %v2119
    %9338 = vmatpush1.bf16.msra.mxu0 %v2118
    %9339 = vmatprep.subr.bf16.mxu0 %v2359
    %9340 = vmatpush2.bf16.msra.mxu0 %v2358
    %9341 = vmatprep.subr.bf16.mxu0 %v2343
    %9342 = vmatpush2.bf16.msra.mxu0 %v2342
    %9343 = vmatprep.subr.bf16.mxu0 %v2327
    %9344 = vmatpush2.bf16.msra.mxu0 %v2326
    %9345 = vmatprep.subr.bf16.mxu0 %v2311
    %9346 = vmatpush2.bf16.msra.mxu0 %v2310
    %9347 = vmatprep.subr.bf16.mxu0 %v2295
    %9348 = vmatpush2.bf16.msra.mxu0 %v2294
    %9349 = vmatprep.subr.bf16.mxu0 %v2279
    %9350 = vmatpush2.bf16.msra.mxu0 %v2278
    %9351 = vmatprep.subr.bf16.mxu0 %v2263
    %9352 = vmatpush2.bf16.msra.mxu0 %v2262
    %9353 = vmatprep.subr.bf16.mxu0 %v2247
    %9354 = vmatpush2.bf16.msra.mxu0 %v2246
    %9355 = vmatprep.mubr.bf16.mxu0 %v8746
    %9356 = vmatmul.mubr.bf16.gmra.mxu0 %v8745
    %v9357 = vpop.f32.mrf.mxu0
    %v9358 = vadd.f32 0.0, %v9357
    %v9359 = vpop.f32.mrf.mxu0
    %v9360 = vadd.f32 0.0, %v9359
    %v9361 = vpop.f32.mrf.mxu0
    %v9362 = vpop.f32.mrf.mxu0
    %9363 = vdwg.mxu0
    %9364 = vmatprep.subr.bf16.mxu0 %v2487
    %9365 = vmatpush1.bf16.msra.mxu0 %v2486
    %9366 = vmatprep.subr.bf16.mxu0 %v2471
    %9367 = vmatpush1.bf16.msra.mxu0 %v2470
    %9368 = vmatprep.subr.bf16.mxu0 %v2455
    %9369 = vmatpush1.bf16.msra.mxu0 %v2454
    %9370 = vmatprep.subr.bf16.mxu0 %v2439
    %9371 = vmatpush1.bf16.msra.mxu0 %v2438
    %9372 = vmatprep.subr.bf16.mxu0 %v2423
    %9373 = vmatpush1.bf16.msra.mxu0 %v2422
    %9374 = vmatprep.subr.bf16.mxu0 %v2407
    %9375 = vmatpush1.bf16.msra.mxu0 %v2406
    %9376 = vmatprep.subr.bf16.mxu0 %v2391
    %9377 = vmatpush1.bf16.msra.mxu0 %v2390
    %9378 = vmatprep.subr.bf16.mxu0 %v2375
    %9379 = vmatpush1.bf16.msra.mxu0 %v2374
    %9380 = vmatprep.subr.bf16.mxu0 %v2615
    %9381 = vmatpush2.bf16.msra.mxu0 %v2614
    %9382 = vmatprep.subr.bf16.mxu0 %v2599
    %9383 = vmatpush2.bf16.msra.mxu0 %v2598
    %9384 = vmatprep.subr.bf16.mxu0 %v2583
    %9385 = vmatpush2.bf16.msra.mxu0 %v2582
    %9386 = vmatprep.subr.bf16.mxu0 %v2567
    %9387 = vmatpush2.bf16.msra.mxu0 %v2566
    %9388 = vmatprep.subr.bf16.mxu0 %v2551
    %9389 = vmatpush2.bf16.msra.mxu0 %v2550
    %9390 = vmatprep.subr.bf16.mxu0 %v2535
    %9391 = vmatpush2.bf16.msra.mxu0 %v2534
    %9392 = vmatprep.subr.bf16.mxu0 %v2519
    %9393 = vmatpush2.bf16.msra.mxu0 %v2518
    %9394 = vmatprep.subr.bf16.mxu0 %v2503
    %9395 = vmatpush2.bf16.msra.mxu0 %v2502
    %9396 = vmatprep.mubr.bf16.mxu0 %v8748
    %9397 = vmatmul.mubr.bf16.gmra.mxu0 %v8747
    %v9398 = vpop.f32.mrf.mxu0
    %v9399 = vadd.f32 %v9358, %v9398
    %v9400 = vpop.f32.mrf.mxu0
    %v9401 = vadd.f32 %v9360, %v9400
    %v9402 = vpop.f32.mrf.mxu0
    %v9403 = vpop.f32.mrf.mxu0
    %9404 = vdwg.mxu0
    %v9421 = vcombine.low %v8825, %v8827
    %v9422 = vcombine.low %v8907, %v8909
    %v9424 = vunpack.c.l.s4 1983009808
    %v9425 = vunpack.c.0.s8 %v9424
    %v9426 = vlaneseq
    %v9427 = vshrl.u32 %v9426, 7
    %v9428 = vsub.s32 %v9425, %v9427
    %v9429 = vrot.slane %v9421, %v9428
    %v9431 = vunpack.c.l.s4 1983009808
    %v9432 = vunpack.c.0.s8 %v9431
    %v9433 = vlaneseq
    %v9434 = vshrl.u32 %v9433, 7
    %v9435 = vsub.s32 %v9432, %v9434
    %v9436 = vrot.slane %v9422, %v9435
    %v9437 = vcombine.low %v9429, %v9436
    %v9438 = vcombine.low %v8989, %v8991
    %v9439 = vcombine.low %v9071, %v9073
    %v9441 = vunpack.c.l.s4 1983009808
    %v9442 = vunpack.c.0.s8 %v9441
    %v9443 = vlaneseq
    %v9444 = vshrl.u32 %v9443, 7
    %v9445 = vsub.s32 %v9442, %v9444
    %v9446 = vrot.slane %v9438, %v9445
    %v9448 = vunpack.c.l.s4 1983009808
    %v9449 = vunpack.c.0.s8 %v9448
    %v9450 = vlaneseq
    %v9451 = vshrl.u32 %v9450, 7
    %v9452 = vsub.s32 %v9449, %v9451
    %v9453 = vrot.slane %v9439, %v9452
    %v9454 = vcombine.low %v9446, %v9453
    %v9455 = vcombine.low %v9153, %v9155
    %v9456 = vcombine.low %v9235, %v9237
    %v9458 = vunpack.c.l.s4 1983009808
    %v9459 = vunpack.c.0.s8 %v9458
    %v9460 = vlaneseq
    %v9461 = vshrl.u32 %v9460, 7
    %v9462 = vsub.s32 %v9459, %v9461
    %v9463 = vrot.slane %v9455, %v9462
    %v9465 = vunpack.c.l.s4 1983009808
    %v9466 = vunpack.c.0.s8 %v9465
    %v9467 = vlaneseq
    %v9468 = vshrl.u32 %v9467, 7
    %v9469 = vsub.s32 %v9466, %v9468
    %v9470 = vrot.slane %v9456, %v9469
    %v9471 = vcombine.low %v9463, %v9470
    %v9472 = vcombine.low %v9317, %v9319
    %v9473 = vcombine.low %v9399, %v9401
    %v9475 = vunpack.c.l.s4 1983009808
    %v9476 = vunpack.c.0.s8 %v9475
    %v9477 = vlaneseq
    %v9478 = vshrl.u32 %v9477, 7
    %v9479 = vsub.s32 %v9476, %v9478
    %v9480 = vrot.slane %v9472, %v9479
    %v9482 = vunpack.c.l.s4 1983009808
    %v9483 = vunpack.c.0.s8 %v9482
    %v9484 = vlaneseq
    %v9485 = vshrl.u32 %v9484, 7
    %v9486 = vsub.s32 %v9483, %v9485
    %v9487 = vrot.slane %v9473, %v9486
    %v9488 = vcombine.low %v9480, %v9487
    %v9493 = vadd.f32 %v8719, %v9437
    %v9494 = vadd.f32 %v8720, %v9454
    %v9495 = vadd.f32 %v8721, %v9471
    %v9496 = vadd.f32 %v8722, %v9488
    %v9497 = vxor.u32 %v9493, 2147483648
    %v9498 = vmul.f32 %v9497, 1.442695
    %v9499 = vpow.pop %v9498
    %v9500 = vadd.f32 %v9499, 1.0
    %v9501 = vrcp.pop %v9500
    %v9502 = vmul.f32 1.0, %v9501
    %v9503 = vxor.u32 %v9494, 2147483648
    %v9504 = vmul.f32 %v9503, 1.442695
    %v9505 = vpow.pop %v9504
    %v9506 = vadd.f32 %v9505, 1.0
    %v9507 = vrcp.pop %v9506
    %v9508 = vmul.f32 1.0, %v9507
    %v9509 = vtanh.pop %v9495
    %v9510 = vxor.u32 %v9496, 2147483648
    %v9511 = vmul.f32 %v9510, 1.442695
    %v9512 = vpow.pop %v9511
    %v9513 = vadd.f32 %v9512, 1.0
    %v9514 = vrcp.pop %v9513
    %v9515 = vmul.f32 1.0, %v9514
    %v9516 = vmul.f32 %v9508, %v8715
    %v9517 = vmul.f32 %v9502, %v9509
    %v9518 = vadd.f32 %v9516, %v9517
    %v9519 = vtanh.pop %v9518
    %v9520 = vmul.f32 %v9515, %v9519
    %9521 = vst [vmem:[#allocation2] sm:$0xff] %v9520
    %9522 = vst [vmem:[#allocation3] sm:$0xff] %v9518
    // Predicated region
    $region22: #{pose_encoder.1} parent=1 // pred_check
      %p9523 = pneg %p18
    $region23: #{pose_encoder.1} parent=1 // pred_check_branch
      %9525 = sbr.rel (%p9523) target = $region25
    $region24: #{pose_encoder.1} parent=1 // pred_region
      %v9527 = vcombine.high %v9520, %v9520
      %v9529 = vunpack.c.l.s4 1983009808
      %v9530 = vunpack.c.0.s8 %v9529
      %v9531 = vlaneseq
      %v9532 = vshrl.u32 %v9531, 7
      %v9533 = vsub.s32 %v9530, %v9532
      %v9534 = vrot.slane %v9520, %v9533
      %v9536 = vunpack.c.l.s4 1983009808
      %v9537 = vunpack.c.0.s8 %v9536
      %v9538 = vlaneseq
      %v9539 = vshrl.u32 %v9538, 7
      %v9540 = vsub.s32 %v9537, %v9539
      %v9541 = vrot.slane %v9527, %v9540
      %v9542 = vcombine.high %v9534, %v9534
      %v9543 = vcombine.high %v9541, %v9541
      %v9548 = vpack.c.bf16 %v9534, %v9534
      %v9549 = vpack.c.bf16 %v9542, %v9542
      %v9550 = vpack.c.bf16 %v9541, %v9541
      %v9551 = vpack.c.bf16 %v9543, %v9543
      %v9552 = vld [vmem:[%s2] sm:$0xff]
      %v9553 = vld [vmem:[%s2 + $0x8] sm:$0xff]
      %v9554 = vld [vmem:[%s2 + $0x10] sm:$0xff]
      %v9555 = vld [vmem:[%s2 + $0x18] sm:$0xff]
      %v9556 = vld [vmem:[%s2 + $0x20] sm:$0xff]
      %v9557 = vld [vmem:[%s2 + $0x28] sm:$0xff]
      %v9558 = vld [vmem:[%s2 + $0x30] sm:$0xff]
      %v9559 = vld [vmem:[%s2 + $0x38] sm:$0xff]
      %v9560 = vld [vmem:[%s2 + $0x40] sm:$0xff]
      %v9561 = vld [vmem:[%s2 + $0x48] sm:$0xff]
      %v9562 = vld [vmem:[%s2 + $0x50] sm:$0xff]
      %v9563 = vld [vmem:[%s2 + $0x58] sm:$0xff]
      %v9564 = vld [vmem:[%s2 + $0x60] sm:$0xff]
      %v9565 = vld [vmem:[%s2 + $0x68] sm:$0xff]
      %v9566 = vld [vmem:[%s2 + $0x70] sm:$0xff]
      %v9567 = vld [vmem:[%s2 + $0x78] sm:$0xff]
      %v9568 = vld [vmem:[%s2 + $0x80] sm:$0xff]
      %v9569 = vld [vmem:[%s2 + $0x88] sm:$0xff]
      %v9570 = vld [vmem:[%s2 + $0x90] sm:$0xff]
      %v9571 = vld [vmem:[%s2 + $0x98] sm:$0xff]
      %v9572 = vld [vmem:[%s2 + $0xa0] sm:$0xff]
      %v9573 = vld [vmem:[%s2 + $0xa8] sm:$0xff]
      %v9574 = vld [vmem:[%s2 + $0xb0] sm:$0xff]
      %v9575 = vld [vmem:[%s2 + $0xb8] sm:$0xff]
      %v9576 = vld [vmem:[%s2 + $0xc0] sm:$0xff]
      %v9577 = vld [vmem:[%s2 + $0xc8] sm:$0xff]
      %v9578 = vld [vmem:[%s2 + $0xd0] sm:$0xff]
      %v9579 = vld [vmem:[%s2 + $0xd8] sm:$0xff]
      %v9580 = vld [vmem:[%s2 + $0xe0] sm:$0xff]
      %v9581 = vld [vmem:[%s2 + $0xe8] sm:$0xff]
      %v9582 = vld [vmem:[%s2 + $0xf0] sm:$0xff]
      %v9583 = vld [vmem:[%s2 + $0xf8] sm:$0xff]
      %v9584 = vld [vmem:[%s2 + $0x100] sm:$0xff]
      %v9585 = vld [vmem:[%s2 + $0x108] sm:$0xff]
      %v9586 = vld [vmem:[%s2 + $0x110] sm:$0xff]
      %v9587 = vld [vmem:[%s2 + $0x118] sm:$0xff]
      %v9588 = vld [vmem:[%s2 + $0x120] sm:$0xff]
      %v9589 = vld [vmem:[%s2 + $0x128] sm:$0xff]
      %v9590 = vld [vmem:[%s2 + $0x130] sm:$0xff]
      %v9591 = vld [vmem:[%s2 + $0x138] sm:$0xff]
      %v9592 = vld [vmem:[%s2 + $0x140] sm:$0xff]
      %v9593 = vld [vmem:[%s2 + $0x148] sm:$0xff]
      %v9594 = vld [vmem:[%s2 + $0x150] sm:$0xff]
      %v9595 = vld [vmem:[%s2 + $0x158] sm:$0xff]
      %v9596 = vld [vmem:[%s2 + $0x160] sm:$0xff]
      %v9597 = vld [vmem:[%s2 + $0x168] sm:$0xff]
      %v9598 = vld [vmem:[%s2 + $0x170] sm:$0xff]
      %v9599 = vld [vmem:[%s2 + $0x178] sm:$0xff]
      %v9600 = vld [vmem:[%s2 + $0x180] sm:$0xff]
      %v9601 = vld [vmem:[%s2 + $0x188] sm:$0xff]
      %v9602 = vld [vmem:[%s2 + $0x190] sm:$0xff]
      %v9603 = vld [vmem:[%s2 + $0x198] sm:$0xff]
      %v9604 = vld [vmem:[%s2 + $0x1a0] sm:$0xff]
      %v9605 = vld [vmem:[%s2 + $0x1a8] sm:$0xff]
      %v9606 = vld [vmem:[%s2 + $0x1b0] sm:$0xff]
      %v9607 = vld [vmem:[%s2 + $0x1b8] sm:$0xff]
      %v9608 = vld [vmem:[%s2 + $0x1c0] sm:$0xff]
      %v9609 = vld [vmem:[%s2 + $0x1c8] sm:$0xff]
      %v9610 = vld [vmem:[%s2 + $0x1d0] sm:$0xff]
      %v9611 = vld [vmem:[%s2 + $0x1d8] sm:$0xff]
      %v9612 = vld [vmem:[%s2 + $0x1e0] sm:$0xff]
      %v9613 = vld [vmem:[%s2 + $0x1e8] sm:$0xff]
      %v9614 = vld [vmem:[%s2 + $0x1f0] sm:$0xff]
      %v9615 = vld [vmem:[%s2 + $0x1f8] sm:$0xff]
      %v9616 = vld [vmem:[%s3] sm:$0x3]
      %v9618 = vlaneseq
      %v9619 = vshrl.u32 %v9618, 7
      %v9620 = vsub.s32 0, %v9619
      %v9621 = vrot.slane %v9616, %v9620
      %v9622 = vlaneseq
      %v9623 = vshrl.u32 %v9622, 7
      %v9624 = vsub.s32 1, %v9623
      %v9625 = vrot.slane %v9616, %v9624
      %v9692 = vunpack.c.l.b16 %v9552
      %v9693 = vunpack.c.h.b16 %v9552
      %v9694 = vunpack.c.l.b16 %v9553
      %v9695 = vunpack.c.h.b16 %v9553
      %v9696 = vunpack.c.l.b16 %v9554
      %v9697 = vunpack.c.h.b16 %v9554
      %v9698 = vunpack.c.l.b16 %v9555
      %v9699 = vunpack.c.h.b16 %v9555
      %v9700 = vunpack.c.l.b16 %v9556
      %v9701 = vunpack.c.h.b16 %v9556
      %v9702 = vunpack.c.l.b16 %v9557
      %v9703 = vunpack.c.h.b16 %v9557
      %v9704 = vunpack.c.l.b16 %v9558
      %v9705 = vunpack.c.h.b16 %v9558
      %v9706 = vunpack.c.l.b16 %v9559
      %v9707 = vunpack.c.h.b16 %v9559
      %v9708 = vunpack.c.l.b16 %v9560
      %v9709 = vunpack.c.h.b16 %v9560
      %v9710 = vunpack.c.l.b16 %v9561
      %v9711 = vunpack.c.h.b16 %v9561
      %v9712 = vunpack.c.l.b16 %v9562
      %v9713 = vunpack.c.h.b16 %v9562
      %v9714 = vunpack.c.l.b16 %v9563
      %v9715 = vunpack.c.h.b16 %v9563
      %v9716 = vunpack.c.l.b16 %v9564
      %v9717 = vunpack.c.h.b16 %v9564
      %v9718 = vunpack.c.l.b16 %v9565
      %v9719 = vunpack.c.h.b16 %v9565
      %v9720 = vunpack.c.l.b16 %v9566
      %v9721 = vunpack.c.h.b16 %v9566
      %v9722 = vunpack.c.l.b16 %v9567
      %v9723 = vunpack.c.h.b16 %v9567
      %v9724 = vunpack.c.l.b16 %v9568
      %v9725 = vunpack.c.h.b16 %v9568
      %v9726 = vunpack.c.l.b16 %v9569
      %v9727 = vunpack.c.h.b16 %v9569
      %v9728 = vunpack.c.l.b16 %v9570
      %v9729 = vunpack.c.h.b16 %v9570
      %v9730 = vunpack.c.l.b16 %v9571
      %v9731 = vunpack.c.h.b16 %v9571
      %v9732 = vunpack.c.l.b16 %v9572
      %v9733 = vunpack.c.h.b16 %v9572
      %v9734 = vunpack.c.l.b16 %v9573
      %v9735 = vunpack.c.h.b16 %v9573
      %v9736 = vunpack.c.l.b16 %v9574
      %v9737 = vunpack.c.h.b16 %v9574
      %v9738 = vunpack.c.l.b16 %v9575
      %v9739 = vunpack.c.h.b16 %v9575
      %v9740 = vunpack.c.l.b16 %v9576
      %v9741 = vunpack.c.h.b16 %v9576
      %v9742 = vunpack.c.l.b16 %v9577
      %v9743 = vunpack.c.h.b16 %v9577
      %v9744 = vunpack.c.l.b16 %v9578
      %v9745 = vunpack.c.h.b16 %v9578
      %v9746 = vunpack.c.l.b16 %v9579
      %v9747 = vunpack.c.h.b16 %v9579
      %v9748 = vunpack.c.l.b16 %v9580
      %v9749 = vunpack.c.h.b16 %v9580
      %v9750 = vunpack.c.l.b16 %v9581
      %v9751 = vunpack.c.h.b16 %v9581
      %v9752 = vunpack.c.l.b16 %v9582
      %v9753 = vunpack.c.h.b16 %v9582
      %v9754 = vunpack.c.l.b16 %v9583
      %v9755 = vunpack.c.h.b16 %v9583
      %v9756 = vunpack.c.l.b16 %v9584
      %v9757 = vunpack.c.h.b16 %v9584
      %v9758 = vunpack.c.l.b16 %v9585
      %v9759 = vunpack.c.h.b16 %v9585
      %v9760 = vunpack.c.l.b16 %v9586
      %v9761 = vunpack.c.h.b16 %v9586
      %v9762 = vunpack.c.l.b16 %v9587
      %v9763 = vunpack.c.h.b16 %v9587
      %v9764 = vunpack.c.l.b16 %v9588
      %v9765 = vunpack.c.h.b16 %v9588
      %v9766 = vunpack.c.l.b16 %v9589
      %v9767 = vunpack.c.h.b16 %v9589
      %v9768 = vunpack.c.l.b16 %v9590
      %v9769 = vunpack.c.h.b16 %v9590
      %v9770 = vunpack.c.l.b16 %v9591
      %v9771 = vunpack.c.h.b16 %v9591
      %v9772 = vunpack.c.l.b16 %v9592
      %v9773 = vunpack.c.h.b16 %v9592
      %v9774 = vunpack.c.l.b16 %v9593
      %v9775 = vunpack.c.h.b16 %v9593
      %v9776 = vunpack.c.l.b16 %v9594
      %v9777 = vunpack.c.h.b16 %v9594
      %v9778 = vunpack.c.l.b16 %v9595
      %v9779 = vunpack.c.h.b16 %v9595
      %v9780 = vunpack.c.l.b16 %v9596
      %v9781 = vunpack.c.h.b16 %v9596
      %v9782 = vunpack.c.l.b16 %v9597
      %v9783 = vunpack.c.h.b16 %v9597
      %v9784 = vunpack.c.l.b16 %v9598
      %v9785 = vunpack.c.h.b16 %v9598
      %v9786 = vunpack.c.l.b16 %v9599
      %v9787 = vunpack.c.h.b16 %v9599
      %v9788 = vunpack.c.l.b16 %v9600
      %v9789 = vunpack.c.h.b16 %v9600
      %v9790 = vunpack.c.l.b16 %v9601
      %v9791 = vunpack.c.h.b16 %v9601
      %v9792 = vunpack.c.l.b16 %v9602
      %v9793 = vunpack.c.h.b16 %v9602
      %v9794 = vunpack.c.l.b16 %v9603
      %v9795 = vunpack.c.h.b16 %v9603
      %v9796 = vunpack.c.l.b16 %v9604
      %v9797 = vunpack.c.h.b16 %v9604
      %v9798 = vunpack.c.l.b16 %v9605
      %v9799 = vunpack.c.h.b16 %v9605
      %v9800 = vunpack.c.l.b16 %v9606
      %v9801 = vunpack.c.h.b16 %v9606
      %v9802 = vunpack.c.l.b16 %v9607
      %v9803 = vunpack.c.h.b16 %v9607
      %v9804 = vunpack.c.l.b16 %v9608
      %v9805 = vunpack.c.h.b16 %v9608
      %v9806 = vunpack.c.l.b16 %v9609
      %v9807 = vunpack.c.h.b16 %v9609
      %v9808 = vunpack.c.l.b16 %v9610
      %v9809 = vunpack.c.h.b16 %v9610
      %v9810 = vunpack.c.l.b16 %v9611
      %v9811 = vunpack.c.h.b16 %v9611
      %v9812 = vunpack.c.l.b16 %v9612
      %v9813 = vunpack.c.h.b16 %v9612
      %v9814 = vunpack.c.l.b16 %v9613
      %v9815 = vunpack.c.h.b16 %v9613
      %v9816 = vunpack.c.l.b16 %v9614
      %v9817 = vunpack.c.h.b16 %v9614
      %v9818 = vunpack.c.l.b16 %v9615
      %v9819 = vunpack.c.h.b16 %v9615
      %v9820 = vpack.c.b16 %v9694, %v9692
      %v9821 = vpack.c.b16 %v9695, %v9693
      %v9822 = vpack.c.b16 %v9698, %v9696
      %v9823 = vpack.c.b16 %v9699, %v9697
      %v9824 = vpack.c.b16 %v9702, %v9700
      %v9825 = vpack.c.b16 %v9703, %v9701
      %v9826 = vpack.c.b16 %v9706, %v9704
      %v9827 = vpack.c.b16 %v9707, %v9705
      %v9828 = vpack.c.b16 %v9710, %v9708
      %v9829 = vpack.c.b16 %v9711, %v9709
      %v9830 = vpack.c.b16 %v9714, %v9712
      %v9831 = vpack.c.b16 %v9715, %v9713
      %v9832 = vpack.c.b16 %v9718, %v9716
      %v9833 = vpack.c.b16 %v9719, %v9717
      %v9834 = vpack.c.b16 %v9722, %v9720
      %v9835 = vpack.c.b16 %v9723, %v9721
      %v9836 = vpack.c.b16 %v9726, %v9724
      %v9837 = vpack.c.b16 %v9727, %v9725
      %v9838 = vpack.c.b16 %v9730, %v9728
      %v9839 = vpack.c.b16 %v9731, %v9729
      %v9840 = vpack.c.b16 %v9734, %v9732
      %v9841 = vpack.c.b16 %v9735, %v9733
      %v9842 = vpack.c.b16 %v9738, %v9736
      %v9843 = vpack.c.b16 %v9739, %v9737
      %v9844 = vpack.c.b16 %v9742, %v9740
      %v9845 = vpack.c.b16 %v9743, %v9741
      %v9846 = vpack.c.b16 %v9746, %v9744
      %v9847 = vpack.c.b16 %v9747, %v9745
      %v9848 = vpack.c.b16 %v9750, %v9748
      %v9849 = vpack.c.b16 %v9751, %v9749
      %v9850 = vpack.c.b16 %v9754, %v9752
      %v9851 = vpack.c.b16 %v9755, %v9753
      %v9852 = vpack.c.b16 %v9758, %v9756
      %v9853 = vpack.c.b16 %v9759, %v9757
      %v9854 = vpack.c.b16 %v9762, %v9760
      %v9855 = vpack.c.b16 %v9763, %v9761
      %v9856 = vpack.c.b16 %v9766, %v9764
      %v9857 = vpack.c.b16 %v9767, %v9765
      %v9858 = vpack.c.b16 %v9770, %v9768
      %v9859 = vpack.c.b16 %v9771, %v9769
      %v9860 = vpack.c.b16 %v9774, %v9772
      %v9861 = vpack.c.b16 %v9775, %v9773
      %v9862 = vpack.c.b16 %v9778, %v9776
      %v9863 = vpack.c.b16 %v9779, %v9777
      %v9864 = vpack.c.b16 %v9782, %v9780
      %v9865 = vpack.c.b16 %v9783, %v9781
      %v9866 = vpack.c.b16 %v9786, %v9784
      %v9867 = vpack.c.b16 %v9787, %v9785
      %v9868 = vpack.c.b16 %v9790, %v9788
      %v9869 = vpack.c.b16 %v9791, %v9789
      %v9870 = vpack.c.b16 %v9794, %v9792
      %v9871 = vpack.c.b16 %v9795, %v9793
      %v9872 = vpack.c.b16 %v9798, %v9796
      %v9873 = vpack.c.b16 %v9799, %v9797
      %v9874 = vpack.c.b16 %v9802, %v9800
      %v9875 = vpack.c.b16 %v9803, %v9801
      %v9876 = vpack.c.b16 %v9806, %v9804
      %v9877 = vpack.c.b16 %v9807, %v9805
      %v9878 = vpack.c.b16 %v9810, %v9808
      %v9879 = vpack.c.b16 %v9811, %v9809
      %v9880 = vpack.c.b16 %v9814, %v9812
      %v9881 = vpack.c.b16 %v9815, %v9813
      %v9882 = vpack.c.b16 %v9818, %v9816
      %v9883 = vpack.c.b16 %v9819, %v9817
      %9948 = vmatprep.subr.bf16.mxu0 %v9835
      %9949 = vmatpush1.bf16.msra.mxu0 %v9834
      %9950 = vmatprep.subr.bf16.mxu0 %v9833
      %9951 = vmatpush1.bf16.msra.mxu0 %v9832
      %9952 = vmatprep.subr.bf16.mxu0 %v9831
      %9953 = vmatpush1.bf16.msra.mxu0 %v9830
      %9954 = vmatprep.subr.bf16.mxu0 %v9829
      %9955 = vmatpush1.bf16.msra.mxu0 %v9828
      %9956 = vmatprep.subr.bf16.mxu0 %v9827
      %9957 = vmatpush1.bf16.msra.mxu0 %v9826
      %9958 = vmatprep.subr.bf16.mxu0 %v9825
      %9959 = vmatpush1.bf16.msra.mxu0 %v9824
      %9960 = vmatprep.subr.bf16.mxu0 %v9823
      %9961 = vmatpush1.bf16.msra.mxu0 %v9822
      %9962 = vmatprep.subr.bf16.mxu0 %v9821
      %9963 = vmatpush1.bf16.msra.mxu0 %v9820
      %9964 = vmatprep.subr.bf16.mxu0 %v9851
      %9965 = vmatpush2.bf16.msra.mxu0 %v9850
      %9966 = vmatprep.subr.bf16.mxu0 %v9849
      %9967 = vmatpush2.bf16.msra.mxu0 %v9848
      %9968 = vmatprep.subr.bf16.mxu0 %v9847
      %9969 = vmatpush2.bf16.msra.mxu0 %v9846
      %9970 = vmatprep.subr.bf16.mxu0 %v9845
      %9971 = vmatpush2.bf16.msra.mxu0 %v9844
      %9972 = vmatprep.subr.bf16.mxu0 %v9843
      %9973 = vmatpush2.bf16.msra.mxu0 %v9842
      %9974 = vmatprep.subr.bf16.mxu0 %v9841
      %9975 = vmatpush2.bf16.msra.mxu0 %v9840
      %9976 = vmatprep.subr.bf16.mxu0 %v9839
      %9977 = vmatpush2.bf16.msra.mxu0 %v9838
      %9978 = vmatprep.subr.bf16.mxu0 %v9837
      %9979 = vmatpush2.bf16.msra.mxu0 %v9836
      %9980 = vmatprep.mubr.bf16.mxu0 %v9549
      %9981 = vmatmul.mubr.bf16.gmra.mxu0 %v9548
      %v9982 = vpop.f32.mrf.mxu0
      %v9983 = vadd.f32 %v9621, %v9982
      %v9984 = vpop.f32.mrf.mxu0
      %v9985 = vadd.f32 %v9625, %v9984
      %v9986 = vpop.f32.mrf.mxu0
      %v9987 = vpop.f32.mrf.mxu0
      %9988 = vdwg.mxu0
      %9989 = vmatprep.subr.bf16.mxu0 %v9867
      %9990 = vmatpush1.bf16.msra.mxu0 %v9866
      %9991 = vmatprep.subr.bf16.mxu0 %v9865
      %9992 = vmatpush1.bf16.msra.mxu0 %v9864
      %9993 = vmatprep.subr.bf16.mxu0 %v9863
      %9994 = vmatpush1.bf16.msra.mxu0 %v9862
      %9995 = vmatprep.subr.bf16.mxu0 %v9861
      %9996 = vmatpush1.bf16.msra.mxu0 %v9860
      %9997 = vmatprep.subr.bf16.mxu0 %v9859
      %9998 = vmatpush1.bf16.msra.mxu0 %v9858
      %9999 = vmatprep.subr.bf16.mxu0 %v9857
      %10000 = vmatpush1.bf16.msra.mxu0 %v9856
      %10001 = vmatprep.subr.bf16.mxu0 %v9855
      %10002 = vmatpush1.bf16.msra.mxu0 %v9854
      %10003 = vmatprep.subr.bf16.mxu0 %v9853
      %10004 = vmatpush1.bf16.msra.mxu0 %v9852
      %10005 = vmatprep.subr.bf16.mxu0 %v9883
      %10006 = vmatpush2.bf16.msra.mxu0 %v9882
      %10007 = vmatprep.subr.bf16.mxu0 %v9881
      %10008 = vmatpush2.bf16.msra.mxu0 %v9880
      %10009 = vmatprep.subr.bf16.mxu0 %v9879
      %10010 = vmatpush2.bf16.msra.mxu0 %v9878
      %10011 = vmatprep.subr.bf16.mxu0 %v9877
      %10012 = vmatpush2.bf16.msra.mxu0 %v9876
      %10013 = vmatprep.subr.bf16.mxu0 %v9875
      %10014 = vmatpush2.bf16.msra.mxu0 %v9874
      %10015 = vmatprep.subr.bf16.mxu0 %v9873
      %10016 = vmatpush2.bf16.msra.mxu0 %v9872
      %10017 = vmatprep.subr.bf16.mxu0 %v9871
      %10018 = vmatpush2.bf16.msra.mxu0 %v9870
      %10019 = vmatprep.subr.bf16.mxu0 %v9869
      %10020 = vmatpush2.bf16.msra.mxu0 %v9868
      %10021 = vmatprep.mubr.bf16.mxu0 %v9551
      %10022 = vmatmul.mubr.bf16.gmra.mxu0 %v9550
      %v10023 = vpop.f32.mrf.mxu0
      %v10024 = vadd.f32 %v9983, %v10023
      %v10025 = vpop.f32.mrf.mxu0
      %v10026 = vadd.f32 %v9985, %v10025
      %v10027 = vpop.f32.mrf.mxu0
      %v10028 = vpop.f32.mrf.mxu0
      %10029 = vdwg.mxu0
      %v10032 = vcombine.low %v10024, %v10026
      %v10034 = vunpack.c.l.s4 1983009808
      %v10035 = vunpack.c.0.s8 %v10034
      %v10036 = vlaneseq
      %v10037 = vshrl.u32 %v10036, 7
      %v10038 = vsub.s32 %v10035, %v10037
      %v10039 = vrot.slane %v10032, %v10038
      %10041 = vst [vmem:[#allocation4] sm:$0xf] %v10039
    $region25: #{pose_encoder.1} parent=1 // pred_fallthru
      _
    // Predicated region
    $region26: #{pose_encoder.1} parent=1 // pred_check
      _
    $region27: #{pose_encoder.1} parent=1 // pred_check_branch
      %10043 = sbr.rel (0) target = $region29
    $region28: #{pose_encoder.1} parent=1 // pred_region
      %s10045 = ssub.s32 64, 64
      %10046 = vsyncadd [#allocation5], %s10045
      %s10048 = sshll.u32 [#allocation4], 4
      %s10049 = int_to_ptr.vmem [resolvable:$true] %s10048
      %10051 = dma.vmem_to_hbm [thread:$0]  %s10049, 64, %s4, [#allocation5]
    $region29: #{pose_encoder.1} parent=1 // pred_fallthru
      _
    // Predicated region
    $region30: #{pose_encoder.1} parent=1 // pred_check
      _
    $region31: #{pose_encoder.1} parent=1 // pred_check_branch
      %10053 = sbr.rel (0) target = $region33
    $region32: #{pose_encoder.1} parent=1 // pred_region
      %10054 = dma.done [#allocation5], 64
    $region33: #{pose_encoder.1} parent=1 // pred_fallthru
      _
    %10055 = vsyncpa [#allocation5], 1

</llo_original>
